<compile_context>
chip_gen: v7x
topology: tpu7x:2x2x1
jax: 0.10.0
libtpu: 0.0.40
codegen_flags: <defaults>
</compile_context>

<pallas_src>
import functools

import jax
import jax.numpy as jnp
from jax import lax
from jax.experimental import pallas as pl
from jax.experimental.pallas import tpu as pltpu

BN_EPS = 1e-5
_ROW_TILE = 8  # sublane-aligned output row tile: keeps the dw accumulator in vregs


# ----------------------------------------------------------------------------
# in-kernel helpers
# ----------------------------------------------------------------------------
def _zero_halo(pad_ref):
    """Zero only the 1-pixel halo border of the pad scratch.

    The interior is fully rewritten every grid step, so the previous full-buffer
    clear is unnecessary.  Done every step (O(perimeter), negligible) so it is
    correct even when the batch grid is sharded across TensorCores."""
    hp, wp, c = pad_ref.shape
    zrow = jnp.zeros((1, wp, c), pad_ref.dtype)
    pad_ref[pl.ds(0, 1), :, :] = zrow
    pad_ref[pl.ds(hp - 1, 1), :, :] = zrow
    zcol = jnp.zeros((hp, 1, c), pad_ref.dtype)
    pad_ref[:, pl.ds(0, 1), :] = zcol
    pad_ref[:, pl.ds(wp - 1, 1), :] = zcol


def _tap_weights(w_ref, c):
    """Load the 9 depthwise taps (BN scale folded) once; hoisted out of loops."""
    w_all = w_ref[...].astype(jnp.float32)            # (9, c)
    return [w_all[t].reshape(1, 1, c) for t in range(9)]


def _dw3x3_row_tile(pad_ref, taps_w, r0, rt, wo, stride):
    """3x3 depthwise conv (pad=1) for `rt` output rows starting at output row
    r0, read from the zero-halo scratch and accumulated in registers."""
    acc = None
    if stride == 1:
        for t in range(9):
            di, dj = divmod(t, 3)
            tap = pad_ref[pl.ds(r0 + di, rt), pl.ds(dj, wo), :]
            term = tap * taps_w[t]
            acc = term if acc is None else acc + term
    elif stride == 2:
        for di in range(3):
            rows = pl.ds(r0 * 2 + di, rt, stride=2)
            # De-interleave padded columns once per row band (2 strided reads)
            # and feed all three column taps from the compact planes.
            ev = pad_ref[rows, pl.ds(0, wo + 1, stride=2), :]   # (rt, wo+1, c)
            od = pad_ref[rows, pl.ds(1, wo, stride=2), :]       # (rt, wo,   c)
            col_taps = (ev[:, 0:wo, :], od, ev[:, 1:wo + 1, :])
            for dj in range(3):
                term = col_taps[dj] * taps_w[3 * di + dj]
                acc = term if acc is None else acc + term
    else:  # stride == 3 (allowed by the module, rare)
        for t in range(9):
            di, dj = divmod(t, 3)
            tap = pad_ref[pl.ds(r0 * stride + di, rt, stride=stride),
                          pl.ds(dj, wo, stride=stride), :]
            term = tap * taps_w[t]
            acc = term if acc is None else acc + term
    return acc


# ----------------------------------------------------------------------------
# fused kernels (one batch element per grid step, NHWC layout, C on lanes)
# ----------------------------------------------------------------------------
def _fused_stride1_kernel(x_ref, w1_ref, b1_ref, dww_ref, dwb_ref,
                          w2_ref, b2_ref, o_ref, pad_ref,
                          *, row_tile, compute_dtype):
    """stride == 1:  out = channel_shuffle(cat(x1, branch2(x2)), 2)."""
    _, hh, ww, cc = x_ref.shape
    bf = cc // 2

    x3 = x_ref[0]                                    # (H, W, 2bf), input dtype
    x2 = x3[..., bf:].astype(compute_dtype)          # branch2 input (lane slice)

    # pw1 + BN(folded) + SiLU, f32 accumulation on the MXU.
    y = jnp.dot(x2.reshape(hh * ww, bf), w1_ref[...],
                preferred_element_type=jnp.float32)
    y = y + b1_ref[...]
    y = y * jax.nn.sigmoid(y)

    # Stage the pw1 output once in the halo scratch for the depthwise taps.
    _zero_halo(pad_ref)
    pad_ref[pl.ds(1, hh), pl.ds(1, ww), :] = y.reshape(hh, ww, bf)

    taps_w = _tap_weights(dww_ref, bf)
    dwb = dwb_ref[...].reshape(1, 1, bf)
    w2 = w2_ref[...]
    b2 = b2_ref[...]
    x1 = x3[..., :bf]                                # exact passthrough

    # Per row tile: dw (in registers) -> pw2 + BN + SiLU -> interleave -> store.
    for r0 in range(0, hh, row_tile):
        rt = min(row_tile, hh - r0)
        d = _dw3x3_row_tile(pad_ref, taps_w, r0, rt, ww, 1) + dwb
        z = jnp.dot(d.reshape(rt * ww, bf).astype(compute_dtype), w2,
                    preferred_element_type=jnp.float32)
        z = z + b2
        z = z * jax.nn.sigmoid(z)
        zt = z.reshape(rt, ww, bf).astype(o_ref.dtype)
        x1t = x1[r0:r0 + rt].astype(o_ref.dtype)
        # channel_shuffle(groups=2): even channels <- x1, odd <- branch2.
        o_ref[0, pl.ds(r0, rt), :, :] = jnp.stack(
            [x1t, zt], axis=-1).reshape(rt, ww, cc)


def _fused_strided_kernel(x_ref, dw1w_ref, dw1b_ref, wa_ref, ba_ref,
                          w1_ref, b1_ref, dw2w_ref, dw2b_ref, wb_ref, bb_ref,
                          o_ref, pad1_ref, pad2_ref,
                          *, stride, row_tile, compute_dtype):
    """stride > 1:  out = channel_shuffle(cat(branch1(x), branch2(x)), 2)."""
    _, hh, ww, cin = x_ref.shape
    _, ho, wo, cout = o_ref.shape
    bf = cout // 2

    x3 = x_ref[0].astype(jnp.float32)

    # branch1 depthwise input: x itself, staged in a halo scratch.
    _zero_halo(pad1_ref)
    pad1_ref[pl.ds(1, hh), pl.ds(1, ww), :] = x3

    # branch2 pw1 + BN + SiLU, staged in its own halo scratch.
    y = jnp.dot(x3.reshape(hh * ww, cin).astype(compute_dtype), w1_ref[...],
                preferred_element_type=jnp.float32)
    y = y + b1_ref[...]
    y = y * jax.nn.sigmoid(y)
    _zero_halo(pad2_ref)
    pad2_ref[pl.ds(1, hh), pl.ds(1, ww), :] = y.reshape(hh, ww, bf)

    taps1 = _tap_weights(dw1w_ref, cin)
    taps2 = _tap_weights(dw2w_ref, bf)
    dw1b = dw1b_ref[...].reshape(1, 1, cin)
    dw2b = dw2b_ref[...].reshape(1, 1, bf)
    wa = wa_ref[...]
    ba = ba_ref[...]
    wb = wb_ref[...]
    bb = bb_ref[...]

    for r0 in range(0, ho, row_tile):
        rt = min(row_tile, ho - r0)
        # branch1: dw(stride)+BN -> 1x1 conv + BN + SiLU  (even output channels)
        a = _dw3x3_row_tile(pad1_ref, taps1, r0, rt, wo, stride) + dw1b
        za = jnp.dot(a.reshape(rt * wo, cin).astype(compute_dtype), wa,
                     preferred_element_type=jnp.float32) + ba
        za = za * jax.nn.sigmoid(za)
        # branch2: dw(stride)+BN -> 1x1 conv + BN + SiLU  (odd output channels)
        b = _dw3x3_row_tile(pad2_ref, taps2, r0, rt, wo, stride) + dw2b
        zb = jnp.dot(b.reshape(rt * wo, bf).astype(compute_dtype), wb,
                     preferred_element_type=jnp.float32) + bb
        zb = zb * jax.nn.sigmoid(zb)
        za3 = za.reshape(rt, wo, bf).astype(o_ref.dtype)
        zb3 = zb.reshape(rt, wo, bf).astype(o_ref.dtype)
        o_ref[0, pl.ds(r0, rt), :, :] = jnp.stack(
            [za3, zb3], axis=-1).reshape(rt, wo, cout)


# ----------------------------------------------------------------------------
# host-side weight preparation (BN folding)
# ----------------------------------------------------------------------------
def _prep_stride1(p2, compute_dtype):
    bf = p2['pw1_w'].shape[1]
    w1 = (p2['pw1_w'] * p2['pw1_scale'][None, :]).astype(compute_dtype)
    b1 = p2['pw1_bias'].reshape(1, bf).astype(jnp.float32)
    dww = (p2['dw_w'] * p2['dw_scale'][None, :]).astype(jnp.float32)
    dwb = p2['dw_bias'].reshape(1, bf).astype(jnp.float32)
    w2 = (p2['pw2_w'] * p2['pw2_scale'][None, :]).astype(compute_dtype)
    b2 = p2['pw2_bias'].reshape(1, bf).astype(jnp.float32)
    return w1, b1, dww, dwb, w2, b2


def _prep_strided(params, compute_dtype):
    p1, p2 = params['branch1'], params['branch2']
    cin = p1['dw_w'].shape[1]
    bf = p2['pw1_w'].shape[1]
    dw1w = (p1['dw_w'] * p1['dw_scale'][None, :]).astype(jnp.float32)
    dw1b = p1['dw_bias'].reshape(1, cin).astype(jnp.float32)
    wa = (p1['pw_w'] * p1['pw_scale'][None, :]).astype(compute_dtype)
    ba = p1['pw_bias'].reshape(1, bf).astype(jnp.float32)
    w1 = (p2['pw1_w'] * p2['pw1_scale'][None, :]).astype(compute_dtype)
    b1 = p2['pw1_bias'].reshape(1, bf).astype(jnp.float32)
    dw2w = (p2['dw_w'] * p2['dw_scale'][None, :]).astype(jnp.float32)
    dw2b = p2['dw_bias'].reshape(1, bf).astype(jnp.float32)
    wb = (p2['pw2_w'] * p2['pw2_scale'][None, :]).astype(compute_dtype)
    bb = p2['pw2_bias'].reshape(1, bf).astype(jnp.float32)
    return dw1w, dw1b, wa, ba, w1, b1, dw2w, dw2b, wb, bb


def _vmem_limit_bytes(io_block_bytes, scratch_bytes):
    # Double-buffered in/out blocks + persistent scratches + f32 intermediates
    # slack; clamp to [default 32 MiB, 64 MiB] so it is valid on v5e..v7x.
    est = 2 * io_block_bytes + scratch_bytes
    return int(min(64 * 1024 * 1024, max(32 * 1024 * 1024, 3 * est)))


# ----------------------------------------------------------------------------
# pallas_call wrappers
# ----------------------------------------------------------------------------
def _shuffle_block_s1_nhwc(x, params, compute_dtype, row_tile):
    n, h, w, c = x.shape
    bf = c // 2
    w1, b1, dww, dwb, w2, b2 = _prep_stride1(params['branch2'], compute_dtype)
    kernel = functools.partial(_fused_stride1_kernel, row_tile=row_tile,
                               compute_dtype=compute_dtype)
    io_bytes = 2 * h * w * c * x.dtype.itemsize
    scratch_bytes = (h + 2) * (w + 2) * bf * 4
    return pl.pallas_call(
        kernel,
        grid=(n,),
        in_specs=[
            pl.BlockSpec((1, h, w, c), lambda i: (i, 0, 0, 0)),
            pl.BlockSpec((bf, bf), lambda i: (0, 0)),
            pl.BlockSpec((1, bf), lambda i: (0, 0)),
            pl.BlockSpec((9, bf), lambda i: (0, 0)),
            pl.BlockSpec((1, bf), lambda i: (0, 0)),
            pl.BlockSpec((bf, bf), lambda i: (0, 0)),
            pl.BlockSpec((1, bf), lambda i: (0, 0)),
        ],
        out_specs=pl.BlockSpec((1, h, w, c), lambda i: (i, 0, 0, 0)),
        out_shape=jax.ShapeDtypeStruct((n, h, w, c), x.dtype),
        scratch_shapes=[pltpu.VMEM((h + 2, w + 2, bf), jnp.float32)],
        compiler_params=pltpu.CompilerParams(
            dimension_semantics=("parallel",),
            vmem_limit_bytes=_vmem_limit_bytes(io_bytes, scratch_bytes)),
    )(x, w1, b1, dww, dwb, w2, b2)


def _shuffle_block_strided_nhwc(x, params, stride, compute_dtype, row_tile):
    n, h, w, cin = x.shape
    bf = params['branch2']['pw1_w'].shape[1]
    cout = 2 * bf
    ho = (h - 1) // stride + 1   # kernel=3, pad=1
    wo = (w - 1) // stride + 1
    prepped = _prep_strided(params, compute_dtype)
    kernel = functools.partial(_fused_strided_kernel, stride=stride,
                               row_tile=row_tile, compute_dtype=compute_dtype)
    io_bytes = (h * w * cin + ho * wo * cout) * x.dtype.itemsize
    scratch_bytes = (h + 2) * (w + 2) * (cin + bf) * 4
    return pl.pallas_call(
        kernel,
        grid=(n,),
        in_specs=[
            pl.BlockSpec((1, h, w, cin), lambda i: (i, 0, 0, 0)),
            pl.BlockSpec((9, cin), lambda i: (0, 0)),
            pl.BlockSpec((1, cin), lambda i: (0, 0)),
            pl.BlockSpec((cin, bf), lambda i: (0, 0)),
            pl.BlockSpec((1, bf), lambda i: (0, 0)),
            pl.BlockSpec((cin, bf), lambda i: (0, 0)),
            pl.BlockSpec((1, bf), lambda i: (0, 0)),
            pl.BlockSpec((9, bf), lambda i: (0, 0)),
            pl.BlockSpec((1, bf), lambda i: (0, 0)),
            pl.BlockSpec((bf, bf), lambda i: (0, 0)),
            pl.BlockSpec((1, bf), lambda i: (0, 0)),
        ],
        out_specs=pl.BlockSpec((1, ho, wo, cout), lambda i: (i, 0, 0, 0)),
        out_shape=jax.ShapeDtypeStruct((n, ho, wo, cout), x.dtype),
        scratch_shapes=[pltpu.VMEM((h + 2, w + 2, cin), jnp.float32),
                        pltpu.VMEM((h + 2, w + 2, bf), jnp.float32)],
        compiler_params=pltpu.CompilerParams(
            dimension_semantics=("parallel",),
            vmem_limit_bytes=_vmem_limit_bytes(io_bytes, scratch_bytes)),
    )(x, *prepped)


def shuffle_block_forward_nhwc(x_nhwc, params, stride,
                               compute_dtype=jnp.bfloat16, row_tile=_ROW_TILE):
    if stride == 1:
        return _shuffle_block_s1_nhwc(x_nhwc, params, compute_dtype, row_tile)
    return _shuffle_block_strided_nhwc(x_nhwc, params, stride, compute_dtype,
                                       row_tile)


def shuffle_block_forward(x_nchw, params, stride, compute_dtype=jnp.bfloat16,
                          row_tile=_ROW_TILE):
    # TODO(synk): when chaining blocks keep activations in NHWC and hoist these
    #             NCHW<->NHWC transposes out of the per-block wrapper.
    x = jnp.transpose(x_nchw, (0, 2, 3, 1))
    out = shuffle_block_forward_nhwc(x, params, stride, compute_dtype, row_tile)
    return jnp.transpose(out, (0, 3, 1, 2))


# ----------------------------------------------------------------------------
# deterministic parameter construction (PyTorch-style layout + BN folding)
# ----------------------------------------------------------------------------
def _bn_fold(gamma, beta, mean, var):
    scale = gamma / jnp.sqrt(var + BN_EPS)
    bias = beta - mean * scale
    return scale, bias


def init_params(key, inp, oup, stride):
    bf = oup // 2
    assert stride != 1 or inp == bf * 2
    keys = iter(jax.random.split(key, 64))

    def bn(c):
        g = 1.0 + 0.1 * jax.random.normal(next(keys), (c,), jnp.float32)
        b = 0.1 * jax.random.normal(next(keys), (c,), jnp.float32)
        m = 0.1 * jax.random.normal(next(keys), (c,), jnp.float32)
        v = jax.random.uniform(next(keys), (c,), jnp.float32, 0.5, 1.5)
        return _bn_fold(g, b, m, v)

    def pw_w(cin, cout):
        return 0.1 * jax.random.normal(next(keys), (cin, cout), jnp.float32)

    def dw_w(c):  # stored as (9, C): w[3*di+dj, c]
        return 0.1 * jax.random.normal(next(keys), (9, c), jnp.float32)

    params = {}
    if stride > 1:
        s1, b1 = bn(inp)
        s2, b2 = bn(bf)
        params['branch1'] = dict(dw_w=dw_w(inp), dw_scale=s1, dw_bias=b1,
                                 pw_w=pw_w(inp, bf), pw_scale=s2, pw_bias=b2)
    in2 = inp if stride > 1 else bf
    sa, ba = bn(bf)
    sb, bb = bn(bf)
    sc, bc = bn(bf)
    params['branch2'] = dict(pw1_w=pw_w(in2, bf), pw1_scale=sa, pw1_bias=ba,
                             dw_w=dw_w(bf), dw_scale=sb, dw_bias=bb,
                             pw2_w=pw_w(bf, bf), pw2_scale=sc, pw2_bias=bc)
    return params


# ----------------------------------------------------------------------------
# pure-JAX reference (for correctness check)
# ----------------------------------------------------------------------------
def _ref_pw(x, w, scale, bias, silu):
    y = jnp.einsum('nhwc,cd->nhwd', x, w)
    y = y * scale + bias
    return y * jax.nn.sigmoid(y) if silu else y


def _ref_dw(x, w9c, scale, bias, stride):
    c = x.shape[-1]
    kern = w9c.reshape(3, 3, 1, c)  # HWIO, depthwise
    y = lax.conv_general_dilated(x, kern, (stride, stride), ((1, 1), (1, 1)),
                                 dimension_numbers=('NHWC', 'HWIO', 'NHWC'),
                                 feature_group_count=c)
    return y * scale + bias


def _ref_channel_shuffle(x, groups):
    n, h, w, c = x.shape
    x = x.reshape(n, h, w, groups, c // groups)
    x = jnp.swapaxes(x, 3, 4)
    return x.reshape(n, h, w, c)


def reference_forward(x_nchw, params, stride):
    x = jnp.transpose(x_nchw, (0, 2, 3, 1))
    if stride == 1:
        bf = x.shape[-1] // 2
        a = x[..., :bf]
        x2 = x[..., bf:]
        p = params['branch2']
        b = _ref_pw(x2, p['pw1_w'], p['pw1_scale'], p['pw1_bias'], True)
        b = _ref_dw(b, p['dw_w'], p['dw_scale'], p['dw_bias'], stride)
        b = _ref_pw(b, p['pw2_w'], p['pw2_scale'], p['pw2_bias'], True)
    else:
        p1 = params['branch1']
        a = _ref_dw(x, p1['dw_w'], p1['dw_scale'], p1['dw_bias'], stride)
        a = _ref_pw(a, p1['pw_w'], p1['pw_scale'], p1['pw_bias'], True)
        p = params['branch2']
        b = _ref_pw(x, p['pw1_w'], p['pw1_scale'], p['pw1_bias'], True)
        b = _ref_dw(b, p['dw_w'], p['dw_scale'], p['dw_bias'], stride)
        b = _ref_pw(b, p['pw2_w'], p['pw2_scale'], p['pw2_bias'], True)
    out = _ref_channel_shuffle(jnp.concatenate([a, b], axis=-1), 2)
    return jnp.transpose(out, (0, 3, 1, 2))


# ----------------------------------------------------------------------------
if __name__ == "__main__":
    key = jax.random.PRNGKey(0)
    k_x, k_p1, k_p2 = jax.random.split(key, 3)

    fwd = jax.jit(shuffle_block_forward, static_argnums=(2, 3))

    x1 = jax.random.normal(k_x, (2, 8, 16, 16), jnp.float32)   # NCHW
    p_s1 = init_params(k_p1, inp=8, oup=8, stride=1)
    p_s2 = init_params(k_p2, inp=8, oup=16, stride=2)

    # ---- f32 compute path: check against the pure-JAX reference ----
    out1 = fwd(x1, p_s1, 1, jnp.float32)
    ref1 = reference_forward(x1, p_s1, 1)
    jax.block_until_ready(out1)
    assert out1.shape == (2, 8, 16, 16)
    assert jnp.allclose(out1, ref1, atol=5e-3, rtol=5e-3), \
        float(jnp.max(jnp.abs(out1 - ref1)))

    out2 = fwd(x1, p_s2, 2, jnp.float32)
    ref2 = reference_forward(x1, p_s2, 2)
    jax.block_until_ready(out2)
    assert out2.shape == (2, 16, 8, 8)
    assert jnp.allclose(out2, ref2, atol=5e-3, rtol=5e-3), \
        float(jnp.max(jnp.abs(out2 - ref2)))

    # ---- bf16 MXU fast path (default): looser tolerance vs f32 reference ----
    out1b = fwd(x1, p_s1, 1, jnp.bfloat16)
    out2b = fwd(x1, p_s2, 2, jnp.bfloat16)
    jax.block_until_ready((out1b, out2b))
    assert jnp.allclose(out1b, ref1, atol=1e-1, rtol=1e-1)
    assert jnp.allclose(out2b, ref2, atol=1e-1, rtol=1e-1)

    print("KERNEL_OK")
</pallas_src>

<mosaic_0001>
module attributes {stable_mosaic.version = 11 : i64} {
  func.func @_fused_stride1_kernel(%arg0: i32, %arg1: memref<1x16x16x8xf32, #tpu.memory_space<vmem>>, %arg2: memref<4x4xf32, #tpu.memory_space<vmem>>, %arg3: memref<1x4xf32, #tpu.memory_space<vmem>>, %arg4: memref<9x4xf32, #tpu.memory_space<vmem>>, %arg5: memref<1x4xf32, #tpu.memory_space<vmem>>, %arg6: memref<4x4xf32, #tpu.memory_space<vmem>>, %arg7: memref<1x4xf32, #tpu.memory_space<vmem>>, %arg8: memref<1x16x16x8xf32, #tpu.memory_space<vmem>>, %arg9: memref<18x18x4xf32, #tpu.memory_space<vmem>>) attributes {dimension_semantics = [#tpu.dimension_semantics<parallel>], iteration_bounds = array<i64: 2>, scalar_prefetch = 0 : i64, scratch_operands = 1 : i64, tpu.core_type = #tpu.core_type<tc>, window_params = [{transform_indices = @transform_0, window_bounds = array<i64: 1, 16, 16, 8>}, {pipeline_mode = #tpu.pipeline_mode<synchronous>, transform_indices = @transform_1, window_bounds = array<i64: 4, 4>}, {pipeline_mode = #tpu.pipeline_mode<synchronous>, transform_indices = @transform_2, window_bounds = array<i64: 1, 4>}, {pipeline_mode = #tpu.pipeline_mode<synchronous>, transform_indices = @transform_3, window_bounds = array<i64: 9, 4>}, {pipeline_mode = #tpu.pipeline_mode<synchronous>, transform_indices = @transform_4, window_bounds = array<i64: 1, 4>}, {pipeline_mode = #tpu.pipeline_mode<synchronous>, transform_indices = @transform_5, window_bounds = array<i64: 4, 4>}, {pipeline_mode = #tpu.pipeline_mode<synchronous>, transform_indices = @transform_6, window_bounds = array<i64: 1, 4>}, {transform_indices = @transform_7, window_bounds = array<i64: 1, 16, 16, 8>}]} {
    %c0 = arith.constant 0 : index
    %c0_0 = arith.constant 0 : index
    %c0_1 = arith.constant 0 : index
    %c0_2 = arith.constant 0 : index
    %0 = vector.load %arg1[%c0, %c0_0, %c0_1, %c0_2] : memref<1x16x16x8xf32, #tpu.memory_space<vmem>>, vector<1x16x16x8xf32>
    %1 = vector.shape_cast %0 : vector<1x16x16x8xf32> to vector<16x16x8xf32>
    %2 = vector.extract_strided_slice %1 {offsets = [0, 0, 4], sizes = [16, 16, 4], strides = [1, 1, 1]} : vector<16x16x8xf32> to vector<16x16x4xf32>
    %3 = vector.shape_cast %2 : vector<16x16x4xf32> to vector<256x4xf32>
    %c0_3 = arith.constant 0 : index
    %c0_4 = arith.constant 0 : index
    %4 = vector.load %arg2[%c0_3, %c0_4] : memref<4x4xf32, #tpu.memory_space<vmem>>, vector<4x4xf32>
    %cst = arith.constant dense<0.000000e+00> : vector<256x4xf32>
    %5 = tpu.matmul %3, %4, %cst {dimension_numbers = #tpu.dot_dimension_numbers<[1], [0], [0], [1], [0, 0, 1, 1], [], []>} : vector<256x4xf32>, vector<4x4xf32>, vector<256x4xf32> -> vector<256x4xf32>
    %c0_5 = arith.constant 0 : index
    %c0_6 = arith.constant 0 : index
    %6 = vector.load %arg3[%c0_5, %c0_6] : memref<1x4xf32, #tpu.memory_space<vmem>>, vector<1x4xf32>
    %7 = vector.broadcast %6 : vector<1x4xf32> to vector<256x4xf32>
    %8 = arith.addf %5, %7 : vector<256x4xf32>
    %9 = arith.negf %8 : vector<256x4xf32>
    %10 = math.exp %9 : vector<256x4xf32>
    %cst_7 = arith.constant 1.000000e+00 : f32
    %11 = vector.broadcast %cst_7 : f32 to vector<256x4xf32>
    %12 = arith.addf %11, %10 : vector<256x4xf32>
    %13 = arith.divf %11, %12 : vector<256x4xf32>
    %14 = arith.mulf %8, %13 : vector<256x4xf32>
    %cst_8 = arith.constant 0.000000e+00 : f32
    %15 = vector.broadcast %cst_8 : f32 to vector<1x18x4xf32>
    %c0_9 = arith.constant 0 : index
    %c0_10 = arith.constant 0 : index
    %c0_11 = arith.constant 0 : index
    %16 = vector.load %arg9[%c0_9, %c0_10, %c0_11] : memref<18x18x4xf32, #tpu.memory_space<vmem>>, vector<1x18x4xf32>
    tpu.vector_store %arg9[%c0_9, %c0_10, %c0_11], %15 {strides = array<i32>} : memref<18x18x4xf32, #tpu.memory_space<vmem>>, vector<1x18x4xf32>,
    %c17 = arith.constant 17 : index
    %c0_12 = arith.constant 0 : index
    %c0_13 = arith.constant 0 : index
    %17 = vector.load %arg9[%c17, %c0_12, %c0_13] : memref<18x18x4xf32, #tpu.memory_space<vmem>>, vector<1x18x4xf32>
    tpu.vector_store %arg9[%c17, %c0_12, %c0_13], %15 {strides = array<i32>} : memref<18x18x4xf32, #tpu.memory_space<vmem>>, vector<1x18x4xf32>,
    %cst_14 = arith.constant 0.000000e+00 : f32
    %18 = vector.broadcast %cst_14 : f32 to vector<18x1x4xf32>
    %c0_15 = arith.constant 0 : index
    %c0_16 = arith.constant 0 : index
    %c0_17 = arith.constant 0 : index
    %19 = vector.load %arg9[%c0_15, %c0_16, %c0_17] : memref<18x18x4xf32, #tpu.memory_space<vmem>>, vector<18x1x4xf32>
    tpu.vector_store %arg9[%c0_15, %c0_16, %c0_17], %18 {strides = array<i32>} : memref<18x18x4xf32, #tpu.memory_space<vmem>>, vector<18x1x4xf32>,
    %c0_18 = arith.constant 0 : index
    %c17_19 = arith.constant 17 : index
    %c0_20 = arith.constant 0 : index
    %20 = vector.load %arg9[%c0_18, %c17_19, %c0_20] : memref<18x18x4xf32, #tpu.memory_space<vmem>>, vector<18x1x4xf32>
    tpu.vector_store %arg9[%c0_18, %c17_19, %c0_20], %18 {strides = array<i32>} : memref<18x18x4xf32, #tpu.memory_space<vmem>>, vector<18x1x4xf32>,
    %21 = vector.shape_cast %14 : vector<256x4xf32> to vector<16x16x4xf32>
    %c1 = arith.constant 1 : index
    %c1_21 = arith.constant 1 : index
    %c0_22 = arith.constant 0 : index
    %22 = vector.load %arg9[%c1, %c1_21, %c0_22] : memref<18x18x4xf32, #tpu.memory_space<vmem>>, vector<16x16x4xf32>
    tpu.vector_store %arg9[%c1, %c1_21, %c0_22], %21 {strides = array<i32>} : memref<18x18x4xf32, #tpu.memory_space<vmem>>, vector<16x16x4xf32>,
    %c0_23 = arith.constant 0 : index
    %c0_24 = arith.constant 0 : index
    %23 = vector.load %arg4[%c0_23, %c0_24] : memref<9x4xf32, #tpu.memory_space<vmem>>, vector<9x4xf32>
    %24 = vector.extract_strided_slice %23 {offsets = [0, 0], sizes = [1, 4], strides = [1, 1]} : vector<9x4xf32> to vector<1x4xf32>
    %25 = vector.shape_cast %24 : vector<1x4xf32> to vector<4xf32>
    %26 = vector.shape_cast %25 : vector<4xf32> to vector<1x1x4xf32>
    %27 = vector.extract_strided_slice %23 {offsets = [1, 0], sizes = [1, 4], strides = [1, 1]} : vector<9x4xf32> to vector<1x4xf32>
    %28 = vector.shape_cast %27 : vector<1x4xf32> to vector<4xf32>
    %29 = vector.shape_cast %28 : vector<4xf32> to vector<1x1x4xf32>
    %30 = vector.extract_strided_slice %23 {offsets = [2, 0], sizes = [1, 4], strides = [1, 1]} : vector<9x4xf32> to vector<1x4xf32>
    %31 = vector.shape_cast %30 : vector<1x4xf32> to vector<4xf32>
    %32 = vector.shape_cast %31 : vector<4xf32> to vector<1x1x4xf32>
    %33 = vector.extract_strided_slice %23 {offsets = [3, 0], sizes = [1, 4], strides = [1, 1]} : vector<9x4xf32> to vector<1x4xf32>
    %34 = vector.shape_cast %33 : vector<1x4xf32> to vector<4xf32>
    %35 = vector.shape_cast %34 : vector<4xf32> to vector<1x1x4xf32>
    %36 = vector.extract_strided_slice %23 {offsets = [4, 0], sizes = [1, 4], strides = [1, 1]} : vector<9x4xf32> to vector<1x4xf32>
    %37 = vector.shape_cast %36 : vector<1x4xf32> to vector<4xf32>
    %38 = vector.shape_cast %37 : vector<4xf32> to vector<1x1x4xf32>
    %39 = vector.extract_strided_slice %23 {offsets = [5, 0], sizes = [1, 4], strides = [1, 1]} : vector<9x4xf32> to vector<1x4xf32>
    %40 = vector.shape_cast %39 : vector<1x4xf32> to vector<4xf32>
    %41 = vector.shape_cast %40 : vector<4xf32> to vector<1x1x4xf32>
    %42 = vector.extract_strided_slice %23 {offsets = [6, 0], sizes = [1, 4], strides = [1, 1]} : vector<9x4xf32> to vector<1x4xf32>
    %43 = vector.shape_cast %42 : vector<1x4xf32> to vector<4xf32>
    %44 = vector.shape_cast %43 : vector<4xf32> to vector<1x1x4xf32>
    %45 = vector.extract_strided_slice %23 {offsets = [7, 0], sizes = [1, 4], strides = [1, 1]} : vector<9x4xf32> to vector<1x4xf32>
    %46 = vector.shape_cast %45 : vector<1x4xf32> to vector<4xf32>
    %47 = vector.shape_cast %46 : vector<4xf32> to vector<1x1x4xf32>
    %48 = vector.extract_strided_slice %23 {offsets = [8, 0], sizes = [1, 4], strides = [1, 1]} : vector<9x4xf32> to vector<1x4xf32>
    %49 = vector.shape_cast %48 : vector<1x4xf32> to vector<4xf32>
    %50 = vector.shape_cast %49 : vector<4xf32> to vector<1x1x4xf32>
    %c0_25 = arith.constant 0 : index
    %c0_26 = arith.constant 0 : index
    %51 = vector.load %arg5[%c0_25, %c0_26] : memref<1x4xf32, #tpu.memory_space<vmem>>, vector<1x4xf32>
    %52 = vector.shape_cast %51 : vector<1x4xf32> to vector<1x1x4xf32>
    %c0_27 = arith.constant 0 : index
    %c0_28 = arith.constant 0 : index
    %53 = vector.load %arg6[%c0_27, %c0_28] : memref<4x4xf32, #tpu.memory_space<vmem>>, vector<4x4xf32>
    %c0_29 = arith.constant 0 : index
    %c0_30 = arith.constant 0 : index
    %54 = vector.load %arg7[%c0_29, %c0_30] : memref<1x4xf32, #tpu.memory_space<vmem>>, vector<1x4xf32>
    %55 = vector.extract_strided_slice %1 {offsets = [0, 0, 0], sizes = [16, 16, 4], strides = [1, 1, 1]} : vector<16x16x8xf32> to vector<16x16x4xf32>
    %c0_31 = arith.constant 0 : index
    %c0_32 = arith.constant 0 : index
    %c0_33 = arith.constant 0 : index
    %56 = vector.load %arg9[%c0_31, %c0_32, %c0_33] : memref<18x18x4xf32, #tpu.memory_space<vmem>>, vector<8x16x4xf32>
    %57 = vector.broadcast %26 : vector<1x1x4xf32> to vector<8x16x4xf32>
    %58 = arith.mulf %56, %57 : vector<8x16x4xf32>
    %c0_34 = arith.constant 0 : index
    %c1_35 = arith.constant 1 : index
    %c0_36 = arith.constant 0 : index
    %59 = vector.load %arg9[%c0_34, %c1_35, %c0_36] : memref<18x18x4xf32, #tpu.memory_space<vmem>>, vector<8x16x4xf32>
    %60 = vector.broadcast %29 : vector<1x1x4xf32> to vector<8x16x4xf32>
    %61 = arith.mulf %59, %60 : vector<8x16x4xf32>
    %62 = arith.addf %58, %61 : vector<8x16x4xf32>
    %c0_37 = arith.constant 0 : index
    %c2 = arith.constant 2 : index
    %c0_38 = arith.constant 0 : index
    %63 = vector.load %arg9[%c0_37, %c2, %c0_38] : memref<18x18x4xf32, #tpu.memory_space<vmem>>, vector<8x16x4xf32>
    %64 = vector.broadcast %32 : vector<1x1x4xf32> to vector<8x16x4xf32>
    %65 = arith.mulf %63, %64 : vector<8x16x4xf32>
    %66 = arith.addf %62, %65 : vector<8x16x4xf32>
    %c1_39 = arith.constant 1 : index
    %c0_40 = arith.constant 0 : index
    %c0_41 = arith.constant 0 : index
    %67 = vector.load %arg9[%c1_39, %c0_40, %c0_41] : memref<18x18x4xf32, #tpu.memory_space<vmem>>, vector<8x16x4xf32>
    %68 = vector.broadcast %35 : vector<1x1x4xf32> to vector<8x16x4xf32>
    %69 = arith.mulf %67, %68 : vector<8x16x4xf32>
    %70 = arith.addf %66, %69 : vector<8x16x4xf32>
    %c1_42 = arith.constant 1 : index
    %c1_43 = arith.constant 1 : index
    %c0_44 = arith.constant 0 : index
    %71 = vector.load %arg9[%c1_42, %c1_43, %c0_44] : memref<18x18x4xf32, #tpu.memory_space<vmem>>, vector<8x16x4xf32>
    %72 = vector.broadcast %38 : vector<1x1x4xf32> to vector<8x16x4xf32>
    %73 = arith.mulf %71, %72 : vector<8x16x4xf32>
    %74 = arith.addf %70, %73 : vector<8x16x4xf32>
    %c1_45 = arith.constant 1 : index
    %c2_46 = arith.constant 2 : index
    %c0_47 = arith.constant 0 : index
    %75 = vector.load %arg9[%c1_45, %c2_46, %c0_47] : memref<18x18x4xf32, #tpu.memory_space<vmem>>, vector<8x16x4xf32>
    %76 = vector.broadcast %41 : vector<1x1x4xf32> to vector<8x16x4xf32>
    %77 = arith.mulf %75, %76 : vector<8x16x4xf32>
    %78 = arith.addf %74, %77 : vector<8x16x4xf32>
    %c2_48 = arith.constant 2 : index
    %c0_49 = arith.constant 0 : index
    %c0_50 = arith.constant 0 : index
    %79 = vector.load %arg9[%c2_48, %c0_49, %c0_50] : memref<18x18x4xf32, #tpu.memory_space<vmem>>, vector<8x16x4xf32>
    %80 = vector.broadcast %44 : vector<1x1x4xf32> to vector<8x16x4xf32>
    %81 = arith.mulf %79, %80 : vector<8x16x4xf32>
    %82 = arith.addf %78, %81 : vector<8x16x4xf32>
    %c2_51 = arith.constant 2 : index
    %c1_52 = arith.constant 1 : index
    %c0_53 = arith.constant 0 : index
    %83 = vector.load %arg9[%c2_51, %c1_52, %c0_53] : memref<18x18x4xf32, #tpu.memory_space<vmem>>, vector<8x16x4xf32>
    %84 = vector.broadcast %47 : vector<1x1x4xf32> to vector<8x16x4xf32>
    %85 = arith.mulf %83, %84 : vector<8x16x4xf32>
    %86 = arith.addf %82, %85 : vector<8x16x4xf32>
    %c2_54 = arith.constant 2 : index
    %c2_55 = arith.constant 2 : index
    %c0_56 = arith.constant 0 : index
    %87 = vector.load %arg9[%c2_54, %c2_55, %c0_56] : memref<18x18x4xf32, #tpu.memory_space<vmem>>, vector<8x16x4xf32>
    %88 = vector.broadcast %50 : vector<1x1x4xf32> to vector<8x16x4xf32>
    %89 = arith.mulf %87, %88 : vector<8x16x4xf32>
    %90 = arith.addf %86, %89 : vector<8x16x4xf32>
    %91 = vector.broadcast %52 : vector<1x1x4xf32> to vector<8x16x4xf32>
    %92 = arith.addf %90, %91 : vector<8x16x4xf32>
    %93 = vector.shape_cast %92 : vector<8x16x4xf32> to vector<128x4xf32>
    %cst_57 = arith.constant dense<0.000000e+00> : vector<128x4xf32>
    %94 = tpu.matmul %93, %53, %cst_57 {dimension_numbers = #tpu.dot_dimension_numbers<[1], [0], [0], [1], [0, 0, 1, 1], [], []>} : vector<128x4xf32>, vector<4x4xf32>, vector<128x4xf32> -> vector<128x4xf32>
    %95 = vector.broadcast %54 : vector<1x4xf32> to vector<128x4xf32>
    %96 = arith.addf %94, %95 : vector<128x4xf32>
    %97 = arith.negf %96 : vector<128x4xf32>
    %98 = math.exp %97 : vector<128x4xf32>
    %cst_58 = arith.constant 1.000000e+00 : f32
    %99 = vector.broadcast %cst_58 : f32 to vector<128x4xf32>
    %100 = arith.addf %99, %98 : vector<128x4xf32>
    %101 = arith.divf %99, %100 : vector<128x4xf32>
    %102 = arith.mulf %96, %101 : vector<128x4xf32>
    %103 = vector.shape_cast %102 : vector<128x4xf32> to vector<8x16x4xf32>
    %104 = vector.extract_strided_slice %55 {offsets = [0, 0, 0], sizes = [8, 16, 4], strides = [1, 1, 1]} : vector<16x16x4xf32> to vector<8x16x4xf32>
    %105 = vector.shape_cast %104 : vector<8x16x4xf32> to vector<8x16x4x1xf32>
    %106 = vector.shape_cast %103 : vector<8x16x4xf32> to vector<8x16x4x1xf32>
    %107 = tpu.concatenate %105, %106 in 3 : vector<8x16x4x1xf32>, vector<8x16x4x1xf32> -> vector<8x16x4x2xf32>
    %108 = vector.shape_cast %107 : vector<8x16x4x2xf32> to vector<8x16x8xf32>
    %c0_59 = arith.constant 0 : index
    %c0_60 = arith.constant 0 : index
    %c0_61 = arith.constant 0 : index
    %c0_62 = arith.constant 0 : index
    %109 = vector.load %arg8[%c0_59, %c0_60, %c0_61, %c0_62] : memref<1x16x16x8xf32, #tpu.memory_space<vmem>>, vector<1x8x16x8xf32>
    %110 = vector.shape_cast %109 : vector<1x8x16x8xf32> to vector<8x16x8xf32>
    %111 = vector.shape_cast %108 : vector<8x16x8xf32> to vector<1x8x16x8xf32>
    tpu.vector_store %arg8[%c0_59, %c0_60, %c0_61, %c0_62], %111 {strides = array<i32>} : memref<1x16x16x8xf32, #tpu.memory_space<vmem>>, vector<1x8x16x8xf32>,
    %c8 = arith.constant 8 : index
    %c0_63 = arith.constant 0 : index
    %c0_64 = arith.constant 0 : index
    %112 = vector.load %arg9[%c8, %c0_63, %c0_64] : memref<18x18x4xf32, #tpu.memory_space<vmem>>, vector<8x16x4xf32>
    %113 = vector.broadcast %26 : vector<1x1x4xf32> to vector<8x16x4xf32>
    %114 = arith.mulf %112, %113 : vector<8x16x4xf32>
    %c8_65 = arith.constant 8 : index
    %c1_66 = arith.constant 1 : index
    %c0_67 = arith.constant 0 : index
    %115 = vector.load %arg9[%c8_65, %c1_66, %c0_67] : memref<18x18x4xf32, #tpu.memory_space<vmem>>, vector<8x16x4xf32>
    %116 = vector.broadcast %29 : vector<1x1x4xf32> to vector<8x16x4xf32>
    %117 = arith.mulf %115, %116 : vector<8x16x4xf32>
    %118 = arith.addf %114, %117 : vector<8x16x4xf32>
    %c8_68 = arith.constant 8 : index
    %c2_69 = arith.constant 2 : index
    %c0_70 = arith.constant 0 : index
    %119 = vector.load %arg9[%c8_68, %c2_69, %c0_70] : memref<18x18x4xf32, #tpu.memory_space<vmem>>, vector<8x16x4xf32>
    %120 = vector.broadcast %32 : vector<1x1x4xf32> to vector<8x16x4xf32>
    %121 = arith.mulf %119, %120 : vector<8x16x4xf32>
    %122 = arith.addf %118, %121 : vector<8x16x4xf32>
    %c9 = arith.constant 9 : index
    %c0_71 = arith.constant 0 : index
    %c0_72 = arith.constant 0 : index
    %123 = vector.load %arg9[%c9, %c0_71, %c0_72] : memref<18x18x4xf32, #tpu.memory_space<vmem>>, vector<8x16x4xf32>
    %124 = vector.broadcast %35 : vector<1x1x4xf32> to vector<8x16x4xf32>
    %125 = arith.mulf %123, %124 : vector<8x16x4xf32>
    %126 = arith.addf %122, %125 : vector<8x16x4xf32>
    %c9_73 = arith.constant 9 : index
    %c1_74 = arith.constant 1 : index
    %c0_75 = arith.constant 0 : index
    %127 = vector.load %arg9[%c9_73, %c1_74, %c0_75] : memref<18x18x4xf32, #tpu.memory_space<vmem>>, vector<8x16x4xf32>
    %128 = vector.broadcast %38 : vector<1x1x4xf32> to vector<8x16x4xf32>
    %129 = arith.mulf %127, %128 : vector<8x16x4xf32>
    %130 = arith.addf %126, %129 : vector<8x16x4xf32>
    %c9_76 = arith.constant 9 : index
    %c2_77 = arith.constant 2 : index
    %c0_78 = arith.constant 0 : index
    %131 = vector.load %arg9[%c9_76, %c2_77, %c0_78] : memref<18x18x4xf32, #tpu.memory_space<vmem>>, vector<8x16x4xf32>
    %132 = vector.broadcast %41 : vector<1x1x4xf32> to vector<8x16x4xf32>
    %133 = arith.mulf %131, %132 : vector<8x16x4xf32>
    %134 = arith.addf %130, %133 : vector<8x16x4xf32>
    %c10 = arith.constant 10 : index
    %c0_79 = arith.constant 0 : index
    %c0_80 = arith.constant 0 : index
    %135 = vector.load %arg9[%c10, %c0_79, %c0_80] : memref<18x18x4xf32, #tpu.memory_space<vmem>>, vector<8x16x4xf32>
    %136 = vector.broadcast %44 : vector<1x1x4xf32> to vector<8x16x4xf32>
    %137 = arith.mulf %135, %136 : vector<8x16x4xf32>
    %138 = arith.addf %134, %137 : vector<8x16x4xf32>
    %c10_81 = arith.constant 10 : index
    %c1_82 = arith.constant 1 : index
    %c0_83 = arith.constant 0 : index
    %139 = vector.load %arg9[%c10_81, %c1_82, %c0_83] : memref<18x18x4xf32, #tpu.memory_space<vmem>>, vector<8x16x4xf32>
    %140 = vector.broadcast %47 : vector<1x1x4xf32> to vector<8x16x4xf32>
    %141 = arith.mulf %139, %140 : vector<8x16x4xf32>
    %142 = arith.addf %138, %141 : vector<8x16x4xf32>
    %c10_84 = arith.constant 10 : index
    %c2_85 = arith.constant 2 : index
    %c0_86 = arith.constant 0 : index
    %143 = vector.load %arg9[%c10_84, %c2_85, %c0_86] : memref<18x18x4xf32, #tpu.memory_space<vmem>>, vector<8x16x4xf32>
    %144 = vector.broadcast %50 : vector<1x1x4xf32> to vector<8x16x4xf32>
    %145 = arith.mulf %143, %144 : vector<8x16x4xf32>
    %146 = arith.addf %142, %145 : vector<8x16x4xf32>
    %147 = vector.broadcast %52 : vector<1x1x4xf32> to vector<8x16x4xf32>
    %148 = arith.addf %146, %147 : vector<8x16x4xf32>
    %149 = vector.shape_cast %148 : vector<8x16x4xf32> to vector<128x4xf32>
    %cst_87 = arith.constant dense<0.000000e+00> : vector<128x4xf32>
    %150 = tpu.matmul %149, %53, %cst_87 {dimension_numbers = #tpu.dot_dimension_numbers<[1], [0], [0], [1], [0, 0, 1, 1], [], []>} : vector<128x4xf32>, vector<4x4xf32>, vector<128x4xf32> -> vector<128x4xf32>
    %151 = vector.broadcast %54 : vector<1x4xf32> to vector<128x4xf32>
    %152 = arith.addf %150, %151 : vector<128x4xf32>
    %153 = arith.negf %152 : vector<128x4xf32>
    %154 = math.exp %153 : vector<128x4xf32>
    %cst_88 = arith.constant 1.000000e+00 : f32
    %155 = vector.broadcast %cst_88 : f32 to vector<128x4xf32>
    %156 = arith.addf %155, %154 : vector<128x4xf32>
    %157 = arith.divf %155, %156 : vector<128x4xf32>
    %158 = arith.mulf %152, %157 : vector<128x4xf32>
    %159 = vector.shape_cast %158 : vector<128x4xf32> to vector<8x16x4xf32>
    %160 = vector.extract_strided_slice %55 {offsets = [8, 0, 0], sizes = [8, 16, 4], strides = [1, 1, 1]} : vector<16x16x4xf32> to vector<8x16x4xf32>
    %161 = vector.shape_cast %160 : vector<8x16x4xf32> to vector<8x16x4x1xf32>
    %162 = vector.shape_cast %159 : vector<8x16x4xf32> to vector<8x16x4x1xf32>
    %163 = tpu.concatenate %161, %162 in 3 : vector<8x16x4x1xf32>, vector<8x16x4x1xf32> -> vector<8x16x4x2xf32>
    %164 = vector.shape_cast %163 : vector<8x16x4x2xf32> to vector<8x16x8xf32>
    %c0_89 = arith.constant 0 : index
    %c8_90 = arith.constant 8 : index
    %c0_91 = arith.constant 0 : index
    %c0_92 = arith.constant 0 : index
    %165 = vector.load %arg8[%c0_89, %c8_90, %c0_91, %c0_92] : memref<1x16x16x8xf32, #tpu.memory_space<vmem>>, vector<1x8x16x8xf32>
    %166 = vector.shape_cast %165 : vector<1x8x16x8xf32> to vector<8x16x8xf32>
    %167 = vector.shape_cast %164 : vector<8x16x8xf32> to vector<1x8x16x8xf32>
    tpu.vector_store %arg8[%c0_89, %c8_90, %c0_91, %c0_92], %167 {strides = array<i32>} : memref<1x16x16x8xf32, #tpu.memory_space<vmem>>, vector<1x8x16x8xf32>,
    return
  }
  func.func @transform_0(%arg0: i32) -> (i32, i32, i32, i32) {
    %c0_i32 = arith.constant 0 : i32
    %c0_i32_0 = arith.constant 0 : i32
    %c0_i32_1 = arith.constant 0 : i32
    %c0_i32_2 = arith.constant 0 : i32
    return %arg0, %c0_i32, %c0_i32_0, %c0_i32_1 : i32, i32, i32, i32
  }
  func.func @transform_1(%arg0: i32) -> (i32, i32) {
    %c0_i32 = arith.constant 0 : i32
    %c0_i32_0 = arith.constant 0 : i32
    %c0_i32_1 = arith.constant 0 : i32
    return %c0_i32, %c0_i32_0 : i32, i32
  }
  func.func @transform_2(%arg0: i32) -> (i32, i32) {
    %c0_i32 = arith.constant 0 : i32
    %c0_i32_0 = arith.constant 0 : i32
    %c0_i32_1 = arith.constant 0 : i32
    return %c0_i32, %c0_i32_0 : i32, i32
  }
  func.func @transform_3(%arg0: i32) -> (i32, i32) {
    %c0_i32 = arith.constant 0 : i32
    %c0_i32_0 = arith.constant 0 : i32
    %c0_i32_1 = arith.constant 0 : i32
    return %c0_i32, %c0_i32_0 : i32, i32
  }
  func.func @transform_4(%arg0: i32) -> (i32, i32) {
    %c0_i32 = arith.constant 0 : i32
    %c0_i32_0 = arith.constant 0 : i32
    %c0_i32_1 = arith.constant 0 : i32
    return %c0_i32, %c0_i32_0 : i32, i32
  }
  func.func @transform_5(%arg0: i32) -> (i32, i32) {
    %c0_i32 = arith.constant 0 : i32
    %c0_i32_0 = arith.constant 0 : i32
    %c0_i32_1 = arith.constant 0 : i32
    return %c0_i32, %c0_i32_0 : i32, i32
  }
  func.func @transform_6(%arg0: i32) -> (i32, i32) {
    %c0_i32 = arith.constant 0 : i32
    %c0_i32_0 = arith.constant 0 : i32
    %c0_i32_1 = arith.constant 0 : i32
    return %c0_i32, %c0_i32_0 : i32, i32
  }
  func.func @transform_7(%arg0: i32) -> (i32, i32, i32, i32) {
    %c0_i32 = arith.constant 0 : i32
    %c0_i32_0 = arith.constant 0 : i32
    %c0_i32_1 = arith.constant 0 : i32
    %c0_i32_2 = arith.constant 0 : i32
    return %arg0, %c0_i32, %c0_i32_0, %c0_i32_1 : i32, i32, i32, i32
  }
}

</mosaic_0001>

<llo_original>
// kernel: shuffle_block_forward.1
$region0: #{shuffle_block_forward.1}
  #allocation0 [shape = 'u32[]', space=smem, size = 0x4, offset = 0x4, fixed_abs, tag = 'smem constant byte address 0x4 - core index']
  #allocation1 [shape = 'u32[144,128]{1,0:T(1,128)}', space=vmem, size = 0x12000, scoped, tag = 'internal scratch']
  #allocation2 [shape = 'f32[18,18,4]{2,1,0:T(8,128)}', space=vmem, size = 0x36000, scoped, tag = 'scratch operand']
  %s0 = inlined_call_operand.vmem [shape: f32[2,16,16,8], index: 0, kind: input, shape index: {}]
  %s1 = inlined_call_operand.vmem [shape: f32[4,4], index: 1, kind: input, shape index: {}]
  %s2 = inlined_call_operand.vmem [shape: f32[1,4], index: 2, kind: input, shape index: {}]
  %s3 = inlined_call_operand.vmem [shape: f32[9,4], index: 3, kind: input, shape index: {}]
  %s4 = inlined_call_operand.vmem [shape: f32[1,4], index: 4, kind: input, shape index: {}]
  %s5 = inlined_call_operand.vmem [shape: f32[4,4], index: 5, kind: input, shape index: {}]
  %s6 = inlined_call_operand.vmem [shape: f32[1,4], index: 6, kind: input, shape index: {}]
  %s7 = inlined_call_operand.vmem [shape: f32[2,16,16,8], index: 7, kind: output, shape index: {}]
  %s8 = sld [smem:[#allocation0]]
  $region61: #{shuffle_block_forward.1} parent=0
    _
  %s10 = ssub.s32 1, %s8
  %s11 = scalar_select 0, %s10, %s8
  loop: start=0, step=1, limit=4
  $region2: #{shuffle_block_forward.1} parent=0 // loop_pre_header
    _
  $region3: #{shuffle_block_forward.1} parent=0 // loop_header
    %s13 = sphi 0, %s17
    %p14 = scmp.ge.s32.totalorder %s13, 4
    %s23 = sphi 0, %s25
    %s26 = sphi 0, %s23
    %s27 = sphi 0, %s26
    %s43 = sphi 0, %s27
    %s47 = sphi 0, %s47
    %s49 = sphi 0, %s47
    %s50 = sphi 0, %s49
    %s64 = sphi 0, %s50
    %s68 = sphi 0, %s68
    %s70 = sphi 0, %s68
    %s71 = sphi 0, %s70
    %s85 = sphi 0, %s71
    %s89 = sphi 0, %s89
    %s91 = sphi 0, %s89
    %s92 = sphi 0, %s91
    %s106 = sphi 0, %s92
    %s110 = sphi 0, %s110
    %s112 = sphi 0, %s110
    %s113 = sphi 0, %s112
    %s127 = sphi 0, %s113
    %s131 = sphi 0, %s131
    %s133 = sphi 0, %s131
    %s134 = sphi 0, %s133
    %s148 = sphi 0, %s134
    %s152 = sphi 0, %s152
    %s154 = sphi 0, %s152
    %s155 = sphi 0, %s154
    %s169 = sphi 0, %s155
    %s175 = sphi 0, %s177
    %s178 = sphi 0, %s175
    %s179 = sphi 0, %s178
    %s195 = sphi 0, %s179
  $region4: #{shuffle_block_forward.1} parent=0 // loop_header_branch
    %16 = sbr.rel (%p14) target = $region8
  $region5: #{shuffle_block_forward.1} parent=0 // loop_body
    %s18 = ssub.s32 %s13, 1
    %s19 = ssub.s32 %s13, 2
    %s20 = sadd.s32 %s13, 1
    %s21 = ssub.s32 %s13, %s20
    %p22 = scmp.eq.s32.totalorder %s21, 0
    %s24 = sadd.s32 %s23, 1
    %s25 = scalar_select %p22, %s23, %s24
    %p28 = pneg %p22
    %p29 = scmp.eq.s32.totalorder %s13, 1
    %p30 = por %p28, %p29
    %p31 = scmp.ne.s32.totalorder %s23, %s26
    %p32 = scmp.eq.s32.totalorder %s13, 0
    %p33 = por %p31, %p32
    %p34 = scmp.ne.s32.totalorder %s23, %s26
    %p35 = scmp.eq.s32.totalorder %s18, 1
    %p36 = por %p34, %p35
    %p37 = scmp.ne.s32.totalorder %s26, %s27
    %p38 = scmp.eq.s32.totalorder %s18, 0
    %p39 = por %p37, %p38
    %p40 = scmp.ne.s32.totalorder %s26, %s27
    %p41 = scmp.eq.s32.totalorder %s19, 1
    %p42 = por %p40, %p41
    %p44 = scmp.ne.s32.totalorder %s27, %s43
    %p45 = scmp.eq.s32.totalorder %s19, 0
    %p46 = por %p44, %p45
    %s48 = sadd.s32 %s47, 1
    %p51 = scmp.eq.s32.totalorder %s13, 1
    %p52 = scmp.ne.s32.totalorder %s47, %s49
    %p53 = scmp.eq.s32.totalorder %s13, 0
    %p54 = por %p52, %p53
    %p55 = scmp.ne.s32.totalorder %s47, %s49
    %p56 = scmp.eq.s32.totalorder %s18, 1
    %p57 = por %p55, %p56
    %p58 = scmp.ne.s32.totalorder %s49, %s50
    %p59 = scmp.eq.s32.totalorder %s18, 0
    %p60 = por %p58, %p59
    %p61 = scmp.ne.s32.totalorder %s49, %s50
    %p62 = scmp.eq.s32.totalorder %s19, 1
    %p63 = por %p61, %p62
    %p65 = scmp.ne.s32.totalorder %s50, %s64
    %p66 = scmp.eq.s32.totalorder %s19, 0
    %p67 = por %p65, %p66
    %s69 = sadd.s32 %s68, 1
    %p72 = scmp.eq.s32.totalorder %s13, 1
    %p73 = scmp.ne.s32.totalorder %s68, %s70
    %p74 = scmp.eq.s32.totalorder %s13, 0
    %p75 = por %p73, %p74
    %p76 = scmp.ne.s32.totalorder %s68, %s70
    %p77 = scmp.eq.s32.totalorder %s18, 1
    %p78 = por %p76, %p77
    %p79 = scmp.ne.s32.totalorder %s70, %s71
    %p80 = scmp.eq.s32.totalorder %s18, 0
    %p81 = por %p79, %p80
    %p82 = scmp.ne.s32.totalorder %s70, %s71
    %p83 = scmp.eq.s32.totalorder %s19, 1
    %p84 = por %p82, %p83
    %p86 = scmp.ne.s32.totalorder %s71, %s85
    %p87 = scmp.eq.s32.totalorder %s19, 0
    %p88 = por %p86, %p87
    %s90 = sadd.s32 %s89, 1
    %p93 = scmp.eq.s32.totalorder %s13, 1
    %p94 = scmp.ne.s32.totalorder %s89, %s91
    %p95 = scmp.eq.s32.totalorder %s13, 0
    %p96 = por %p94, %p95
    %p97 = scmp.ne.s32.totalorder %s89, %s91
    %p98 = scmp.eq.s32.totalorder %s18, 1
    %p99 = por %p97, %p98
    %p100 = scmp.ne.s32.totalorder %s91, %s92
    %p101 = scmp.eq.s32.totalorder %s18, 0
    %p102 = por %p100, %p101
    %p103 = scmp.ne.s32.totalorder %s91, %s92
    %p104 = scmp.eq.s32.totalorder %s19, 1
    %p105 = por %p103, %p104
    %p107 = scmp.ne.s32.totalorder %s92, %s106
    %p108 = scmp.eq.s32.totalorder %s19, 0
    %p109 = por %p107, %p108
    %s111 = sadd.s32 %s110, 1
    %p114 = scmp.eq.s32.totalorder %s13, 1
    %p115 = scmp.ne.s32.totalorder %s110, %s112
    %p116 = scmp.eq.s32.totalorder %s13, 0
    %p117 = por %p115, %p116
    %p118 = scmp.ne.s32.totalorder %s110, %s112
    %p119 = scmp.eq.s32.totalorder %s18, 1
    %p120 = por %p118, %p119
    %p121 = scmp.ne.s32.totalorder %s112, %s113
    %p122 = scmp.eq.s32.totalorder %s18, 0
    %p123 = por %p121, %p122
    %p124 = scmp.ne.s32.totalorder %s112, %s113
    %p125 = scmp.eq.s32.totalorder %s19, 1
    %p126 = por %p124, %p125
    %p128 = scmp.ne.s32.totalorder %s113, %s127
    %p129 = scmp.eq.s32.totalorder %s19, 0
    %p130 = por %p128, %p129
    %s132 = sadd.s32 %s131, 1
    %p135 = scmp.eq.s32.totalorder %s13, 1
    %p136 = scmp.ne.s32.totalorder %s131, %s133
    %p137 = scmp.eq.s32.totalorder %s13, 0
    %p138 = por %p136, %p137
    %p139 = scmp.ne.s32.totalorder %s131, %s133
    %p140 = scmp.eq.s32.totalorder %s18, 1
    %p141 = por %p139, %p140
    %p142 = scmp.ne.s32.totalorder %s133, %s134
    %p143 = scmp.eq.s32.totalorder %s18, 0
    %p144 = por %p142, %p143
    %p145 = scmp.ne.s32.totalorder %s133, %s134
    %p146 = scmp.eq.s32.totalorder %s19, 1
    %p147 = por %p145, %p146
    %p149 = scmp.ne.s32.totalorder %s134, %s148
    %p150 = scmp.eq.s32.totalorder %s19, 0
    %p151 = por %p149, %p150
    %s153 = sadd.s32 %s152, 1
    %p156 = scmp.eq.s32.totalorder %s13, 1
    %p157 = scmp.ne.s32.totalorder %s152, %s154
    %p158 = scmp.eq.s32.totalorder %s13, 0
    %p159 = por %p157, %p158
    %p160 = scmp.ne.s32.totalorder %s152, %s154
    %p161 = scmp.eq.s32.totalorder %s18, 1
    %p162 = por %p160, %p161
    %p163 = scmp.ne.s32.totalorder %s154, %s155
    %p164 = scmp.eq.s32.totalorder %s18, 0
    %p165 = por %p163, %p164
    %p166 = scmp.ne.s32.totalorder %s154, %s155
    %p167 = scmp.eq.s32.totalorder %s19, 1
    %p168 = por %p166, %p167
    %p170 = scmp.ne.s32.totalorder %s155, %s169
    %p171 = scmp.eq.s32.totalorder %s19, 0
    %p172 = por %p170, %p171
    %s173 = ssub.s32 %s13, %s20
    %p174 = scmp.eq.s32.totalorder %s173, 0
    %s176 = sadd.s32 %s175, 1
    %s177 = scalar_select %p174, %s175, %s176
    %p180 = pneg %p174
    %p181 = scmp.eq.s32.totalorder %s13, 1
    %p182 = por %p180, %p181
    %p183 = scmp.ne.s32.totalorder %s175, %s178
    %p184 = scmp.eq.s32.totalorder %s13, 0
    %p185 = por %p183, %p184
    %p186 = scmp.ne.s32.totalorder %s175, %s178
    %p187 = scmp.eq.s32.totalorder %s18, 1
    %p188 = por %p186, %p187
    %p189 = scmp.ne.s32.totalorder %s178, %s179
    %p190 = scmp.eq.s32.totalorder %s18, 0
    %p191 = por %p189, %p190
    %p192 = scmp.ne.s32.totalorder %s178, %s179
    %p193 = scmp.eq.s32.totalorder %s19, 1
    %p194 = por %p192, %p193
    %p196 = scmp.ne.s32.totalorder %s179, %s195
    %p197 = scmp.eq.s32.totalorder %s19, 0
    %p198 = por %p196, %p197
    %p199 = scmp.le.s32.totalorder 1, %s13
    %p200 = scmp.lt.s32.totalorder %s13, 3
    %p201 = pnand %p199, %p200
    %p202 = pneg %p201
    // Predicated region
    $region9: #{shuffle_block_forward.1} parent=5 // pred_check
      _
    $region10: #{shuffle_block_forward.1} parent=5 // pred_check_branch
      %204 = sbr.rel (%p201) target = $region12
    $region11: #{shuffle_block_forward.1} parent=5 // pred_region
      %s205 = ssub.s32 %s13, 1
      // Predicated region
      $region13: #{shuffle_block_forward.1} parent=11 // pred_check
        %p206 = pneg %p60
      $region14: #{shuffle_block_forward.1} parent=11 // pred_check_branch
        %208 = sbr.rel (%p206) target = $region16
      $region15: #{shuffle_block_forward.1} parent=11 // pred_region
        _
      $region16: #{shuffle_block_forward.1} parent=11 // pred_fallthru
        _
      // Predicated region
      $region17: #{shuffle_block_forward.1} parent=11 // pred_check
        %p209 = pneg %p81
      $region18: #{shuffle_block_forward.1} parent=11 // pred_check_branch
        %211 = sbr.rel (%p209) target = $region20
      $region19: #{shuffle_block_forward.1} parent=11 // pred_region
        _
      $region20: #{shuffle_block_forward.1} parent=11 // pred_fallthru
        _
      // Predicated region
      $region21: #{shuffle_block_forward.1} parent=11 // pred_check
        %p212 = pneg %p102
      $region22: #{shuffle_block_forward.1} parent=11 // pred_check_branch
        %214 = sbr.rel (%p212) target = $region24
      $region23: #{shuffle_block_forward.1} parent=11 // pred_region
        _
      $region24: #{shuffle_block_forward.1} parent=11 // pred_fallthru
        _
      // Predicated region
      $region25: #{shuffle_block_forward.1} parent=11 // pred_check
        %p215 = pneg %p123
      $region26: #{shuffle_block_forward.1} parent=11 // pred_check_branch
        %217 = sbr.rel (%p215) target = $region28
      $region27: #{shuffle_block_forward.1} parent=11 // pred_region
        _
      $region28: #{shuffle_block_forward.1} parent=11 // pred_fallthru
        _
      // Predicated region
      $region29: #{shuffle_block_forward.1} parent=11 // pred_check
        %p218 = pneg %p144
      $region30: #{shuffle_block_forward.1} parent=11 // pred_check_branch
        %220 = sbr.rel (%p218) target = $region32
      $region31: #{shuffle_block_forward.1} parent=11 // pred_region
        _
      $region32: #{shuffle_block_forward.1} parent=11 // pred_fallthru
        _
      // Predicated region
      $region33: #{shuffle_block_forward.1} parent=11 // pred_check
        %p221 = pneg %p165
      $region34: #{shuffle_block_forward.1} parent=11 // pred_check_branch
        %223 = sbr.rel (%p221) target = $region36
      $region35: #{shuffle_block_forward.1} parent=11 // pred_region
        _
      $region36: #{shuffle_block_forward.1} parent=11 // pred_fallthru
        _
    $region12: #{shuffle_block_forward.1} parent=5 // pred_fallthru
      _
    %p224 = scmp.lt.s32.totalorder %s13, 2
    // Predicated region
    $region37: #{shuffle_block_forward.1} parent=5 // pred_check
      %p225 = pneg %p224
    $region38: #{shuffle_block_forward.1} parent=5 // pred_check_branch
      %227 = sbr.rel (%p225) target = $region40
    $region39: #{shuffle_block_forward.1} parent=5 // pred_region
      // Predicated region
      $region41: #{shuffle_block_forward.1} parent=39 // pred_check
        %p228 = pneg %p33
      $region42: #{shuffle_block_forward.1} parent=39 // pred_check_branch
        %230 = sbr.rel (%p228) target = $region44
      $region43: #{shuffle_block_forward.1} parent=39 // pred_region
        %p231 = scmp.lt.s32.totalorder %s13, 1
        %s232 = scalar_select %p231, %s13, 1
        %s233 = smul.addr %s232, 32
        %s234 = smul.addr %s233, 8
        %s235 = scalar_lea.vmem %s0, %s234
      $region44: #{shuffle_block_forward.1} parent=39 // pred_fallthru
        _
    $region40: #{shuffle_block_forward.1} parent=5 // pred_fallthru
      _
    %p236 = scmp.le.s32.totalorder 1, %s13
    %p237 = scmp.lt.s32.totalorder %s13, 3
    %p238 = pnand %p236, %p237
    %p239 = pneg %p238
    // Predicated region
    $region45: #{shuffle_block_forward.1} parent=5 // pred_check
      _
    $region46: #{shuffle_block_forward.1} parent=5 // pred_check_branch
      %241 = sbr.rel (%p238) target = $region48
    $region47: #{shuffle_block_forward.1} parent=5 // pred_region
      %s242 = ssub.s32 %s13, 1
      %p243 = scmp.lt.s32.totalorder %s18, 1
      %s244 = scalar_select %p243, %s18, 1
      %s245 = smul.addr %s244, 32
      %s246 = smul.addr %s245, 8
      %s247 = scalar_lea.vmem %s0, %s246
      %p248 = pneg %p39
      %p249 = pneg %p36
      %p250 = pneg %p60
      %p251 = pneg %p57
      %p252 = pneg %p81
      %p253 = pneg %p78
      %p254 = pneg %p102
      %p255 = pneg %p99
      %p256 = pneg %p123
      %p257 = pneg %p120
      %p258 = pneg %p144
      %p259 = pneg %p141
      %p260 = pneg %p165
      %p261 = pneg %p162
      %p262 = pneg %p191
      %p263 = pneg %p188
      %p264 = scmp.lt.s32.totalorder %s18, 1
      %s265 = scalar_select %p264, %s18, 1
      %s266 = smul.addr %s265, 32
      %s267 = smul.addr %s266, 8
      %s268 = scalar_lea.vmem %s7, %s267
      %p269 = scmp.lt.s32.totalorder %s18, 1
      %s270 = scalar_select %p269, %s18, 1
      %s271 = smul.addr %s270, 32
      %s272 = smul.addr %s271, 8
      %s273 = scalar_lea.vmem %s0, %s272
      %p274 = scmp.lt.s32.totalorder %s18, 1
      %s275 = scalar_select %p274, %s18, 1
      %s276 = smul.addr %s275, 32
      %s277 = smul.addr %s276, 8
      %s278 = scalar_lea.vmem %s7, %s277
      %v279 = vld [vmem:[%s273] sm:$0xff]
      %v280 = vld [vmem:[%s273 + $0x8] sm:$0xff]
      %v281 = vld [vmem:[%s273 + $0x10] sm:$0xff]
      %v282 = vld [vmem:[%s273 + $0x18] sm:$0xff]
      %v283 = vld [vmem:[%s273 + $0x20] sm:$0xff]
      %v284 = vld [vmem:[%s273 + $0x28] sm:$0xff]
      %v285 = vld [vmem:[%s273 + $0x30] sm:$0xff]
      %v286 = vld [vmem:[%s273 + $0x38] sm:$0xff]
      %v287 = vld [vmem:[%s273 + $0x40] sm:$0xff]
      %v288 = vld [vmem:[%s273 + $0x48] sm:$0xff]
      %v289 = vld [vmem:[%s273 + $0x50] sm:$0xff]
      %v290 = vld [vmem:[%s273 + $0x58] sm:$0xff]
      %v291 = vld [vmem:[%s273 + $0x60] sm:$0xff]
      %v292 = vld [vmem:[%s273 + $0x68] sm:$0xff]
      %v293 = vld [vmem:[%s273 + $0x70] sm:$0xff]
      %v294 = vld [vmem:[%s273 + $0x78] sm:$0xff]
      %v295 = vld [vmem:[%s273 + $0x80] sm:$0xff]
      %v296 = vld [vmem:[%s273 + $0x88] sm:$0xff]
      %v297 = vld [vmem:[%s273 + $0x90] sm:$0xff]
      %v298 = vld [vmem:[%s273 + $0x98] sm:$0xff]
      %v299 = vld [vmem:[%s273 + $0xa0] sm:$0xff]
      %v300 = vld [vmem:[%s273 + $0xa8] sm:$0xff]
      %v301 = vld [vmem:[%s273 + $0xb0] sm:$0xff]
      %v302 = vld [vmem:[%s273 + $0xb8] sm:$0xff]
      %v303 = vld [vmem:[%s273 + $0xc0] sm:$0xff]
      %v304 = vld [vmem:[%s273 + $0xc8] sm:$0xff]
      %v305 = vld [vmem:[%s273 + $0xd0] sm:$0xff]
      %v306 = vld [vmem:[%s273 + $0xd8] sm:$0xff]
      %v307 = vld [vmem:[%s273 + $0xe0] sm:$0xff]
      %v308 = vld [vmem:[%s273 + $0xe8] sm:$0xff]
      %v309 = vld [vmem:[%s273 + $0xf0] sm:$0xff]
      %v310 = vld [vmem:[%s273 + $0xf8] sm:$0xff]
      %v311 = vld [vmem:[%s1] sm:$0xf]
      %v312 = vld [vmem:[%s2] sm:$0x1]
      %v314 = vlaneseq
      %v315 = vshrl.u32 %v314, 7
      %v316 = vsub.s32 0, %v315
      %v317 = vrot.slane %v312, %v316
      %351 = vrot.lane.b32.xlu0 %v279, 124
      %v352 = vpop.permute.xlu0 %351
      %353 = vrot.lane.b32.xlu0 %v280, 124
      %v354 = vpop.permute.xlu0 %353
      %355 = vrot.lane.b32.xlu0 %v281, 124
      %v356 = vpop.permute.xlu0 %355
      %357 = vrot.lane.b32.xlu0 %v282, 124
      %v358 = vpop.permute.xlu0 %357
      %359 = vrot.lane.b32.xlu0 %v283, 124
      %v360 = vpop.permute.xlu0 %359
      %361 = vrot.lane.b32.xlu0 %v284, 124
      %v362 = vpop.permute.xlu0 %361
      %363 = vrot.lane.b32.xlu0 %v285, 124
      %v364 = vpop.permute.xlu0 %363
      %365 = vrot.lane.b32.xlu0 %v286, 124
      %v366 = vpop.permute.xlu0 %365
      %367 = vrot.lane.b32.xlu0 %v287, 124
      %v368 = vpop.permute.xlu0 %367
      %369 = vrot.lane.b32.xlu0 %v288, 124
      %v370 = vpop.permute.xlu0 %369
      %371 = vrot.lane.b32.xlu0 %v289, 124
      %v372 = vpop.permute.xlu0 %371
      %373 = vrot.lane.b32.xlu0 %v290, 124
      %v374 = vpop.permute.xlu0 %373
      %375 = vrot.lane.b32.xlu0 %v291, 124
      %v376 = vpop.permute.xlu0 %375
      %377 = vrot.lane.b32.xlu0 %v292, 124
      %v378 = vpop.permute.xlu0 %377
      %379 = vrot.lane.b32.xlu0 %v293, 124
      %v380 = vpop.permute.xlu0 %379
      %381 = vrot.lane.b32.xlu0 %v294, 124
      %v382 = vpop.permute.xlu0 %381
      %383 = vrot.lane.b32.xlu0 %v295, 124
      %v384 = vpop.permute.xlu0 %383
      %385 = vrot.lane.b32.xlu0 %v296, 124
      %v386 = vpop.permute.xlu0 %385
      %387 = vrot.lane.b32.xlu0 %v297, 124
      %v388 = vpop.permute.xlu0 %387
      %389 = vrot.lane.b32.xlu0 %v298, 124
      %v390 = vpop.permute.xlu0 %389
      %391 = vrot.lane.b32.xlu0 %v299, 124
      %v392 = vpop.permute.xlu0 %391
      %393 = vrot.lane.b32.xlu0 %v300, 124
      %v394 = vpop.permute.xlu0 %393
      %395 = vrot.lane.b32.xlu0 %v301, 124
      %v396 = vpop.permute.xlu0 %395
      %397 = vrot.lane.b32.xlu0 %v302, 124
      %v398 = vpop.permute.xlu0 %397
      %399 = vrot.lane.b32.xlu0 %v303, 124
      %v400 = vpop.permute.xlu0 %399
      %401 = vrot.lane.b32.xlu0 %v304, 124
      %v402 = vpop.permute.xlu0 %401
      %403 = vrot.lane.b32.xlu0 %v305, 124
      %v404 = vpop.permute.xlu0 %403
      %405 = vrot.lane.b32.xlu0 %v306, 124
      %v406 = vpop.permute.xlu0 %405
      %407 = vrot.lane.b32.xlu0 %v307, 124
      %v408 = vpop.permute.xlu0 %407
      %409 = vrot.lane.b32.xlu0 %v308, 124
      %v410 = vpop.permute.xlu0 %409
      %411 = vrot.lane.b32.xlu0 %v309, 124
      %v412 = vpop.permute.xlu0 %411
      %413 = vrot.lane.b32.xlu0 %v310, 124
      %v414 = vpop.permute.xlu0 %413
      %vm415 = vcmask 31744
      %v416 = vsel %vm415, %v352, 0
      %v418 = vsel %vm415, %v354, 0
      %v420 = vsel %vm415, %v356, 0
      %v422 = vsel %vm415, %v358, 0
      %v424 = vsel %vm415, %v360, 0
      %v426 = vsel %vm415, %v362, 0
      %v428 = vsel %vm415, %v364, 0
      %v430 = vsel %vm415, %v366, 0
      %v432 = vsel %vm415, %v368, 0
      %v434 = vsel %vm415, %v370, 0
      %v436 = vsel %vm415, %v372, 0
      %v438 = vsel %vm415, %v374, 0
      %v440 = vsel %vm415, %v376, 0
      %v442 = vsel %vm415, %v378, 0
      %v444 = vsel %vm415, %v380, 0
      %v446 = vsel %vm415, %v382, 0
      %v448 = vsel %vm415, %v384, 0
      %v450 = vsel %vm415, %v386, 0
      %v452 = vsel %vm415, %v388, 0
      %v454 = vsel %vm415, %v390, 0
      %v456 = vsel %vm415, %v392, 0
      %v458 = vsel %vm415, %v394, 0
      %v460 = vsel %vm415, %v396, 0
      %v462 = vsel %vm415, %v398, 0
      %v464 = vsel %vm415, %v400, 0
      %v466 = vsel %vm415, %v402, 0
      %v468 = vsel %vm415, %v404, 0
      %v470 = vsel %vm415, %v406, 0
      %v472 = vsel %vm415, %v408, 0
      %v474 = vsel %vm415, %v410, 0
      %v476 = vsel %vm415, %v412, 0
      %v478 = vsel %vm415, %v414, 0
      %vm480 = vcmask 1043456
      %v482 = vsel %vm480, %v311, 0
      %484 = vmatprep.subr.mxu0 0.0
      %485 = vmatpush1.msra.mxu0 %v482
      %486 = vmatprep.subr.mxu0 0.0
      %487 = vmatpush1.msra.mxu0 0.0
      %488 = vmatprep.subr.mxu0 0.0
      %489 = vmatpush1.msra.mxu0 0.0
      %490 = vmatprep.subr.mxu0 0.0
      %491 = vmatpush1.msra.mxu0 0.0
      %492 = vmatprep.subr.mxu0 0.0
      %493 = vmatpush1.msra.mxu0 0.0
      %494 = vmatprep.subr.mxu0 0.0
      %495 = vmatpush1.msra.mxu0 0.0
      %496 = vmatprep.subr.mxu0 0.0
      %497 = vmatpush1.msra.mxu0 0.0
      %498 = vmatprep.subr.mxu0 0.0
      %499 = vmatpush1.msra.mxu0 0.0
      %500 = vmatprep.subr.mxu0 0.0
      %501 = vmatpush1.msra.mxu0 0.0
      %502 = vmatprep.subr.mxu0 0.0
      %503 = vmatpush1.msra.mxu0 0.0
      %504 = vmatprep.subr.mxu0 0.0
      %505 = vmatpush1.msra.mxu0 0.0
      %506 = vmatprep.subr.mxu0 0.0
      %507 = vmatpush1.msra.mxu0 0.0
      %508 = vmatprep.subr.mxu0 0.0
      %509 = vmatpush1.msra.mxu0 0.0
      %510 = vmatprep.subr.mxu0 0.0
      %511 = vmatpush1.msra.mxu0 0.0
      %512 = vmatprep.subr.mxu0 0.0
      %513 = vmatpush1.msra.mxu0 0.0
      %514 = vmatprep.subr.mxu0 0.0
      %515 = vmatpush1.msra.mxu0 0.0
      %516 = vmatprep.subr.mxu0 0.0
      %517 = vmatpush1.msra.mxu0 0.0
      %518 = vmatprep.subr.mxu0 0.0
      %519 = vmatpush1.msra.mxu0 0.0
      %520 = vmatprep.subr.mxu0 0.0
      %521 = vmatpush1.msra.mxu0 0.0
      %522 = vmatprep.subr.mxu0 0.0
      %523 = vmatpush1.msra.mxu0 0.0
      %524 = vmatprep.subr.mxu0 0.0
      %525 = vmatpush1.msra.mxu0 0.0
      %526 = vmatprep.subr.mxu0 0.0
      %527 = vmatpush1.msra.mxu0 0.0
      %528 = vmatprep.subr.mxu0 0.0
      %529 = vmatpush1.msra.mxu0 0.0
      %530 = vmatprep.subr.mxu0 0.0
      %531 = vmatpush1.msra.mxu0 0.0
      %532 = vmatprep.subr.mxu0 0.0
      %533 = vmatpush1.msra.mxu0 0.0
      %534 = vmatprep.subr.mxu0 0.0
      %535 = vmatpush1.msra.mxu0 0.0
      %536 = vmatprep.subr.mxu0 0.0
      %537 = vmatpush1.msra.mxu0 0.0
      %538 = vmatprep.subr.mxu0 0.0
      %539 = vmatpush1.msra.mxu0 0.0
      %540 = vmatprep.subr.mxu0 0.0
      %541 = vmatpush1.msra.mxu0 0.0
      %542 = vmatprep.subr.mxu0 0.0
      %543 = vmatpush1.msra.mxu0 0.0
      %544 = vmatprep.subr.mxu0 0.0
      %545 = vmatpush1.msra.mxu0 0.0
      %546 = vmatprep.subr.mxu0 0.0
      %547 = vmatpush1.msra.mxu0 0.0
      %548 = vmatprep.mubr.f32.mxu0 0.0
      %549 = vmatmul.mubr.f32.gmra.mrb[0].mxu0 %v416
      %v550 = vpop.f32.mrb[0].mxu0
      %v551 = vadd.f32 %v317, %v550
      %v552 = vpop.f32.mrb[0].mxu0
      %553 = vmatprep.mubr.f32.mxu0 0.0
      %554 = vmatmul.mubr.f32.gmra.mrb[0].mxu0 %v418
      %v555 = vpop.f32.mrb[0].mxu0
      %v556 = vadd.f32 %v317, %v555
      %v557 = vpop.f32.mrb[0].mxu0
      %558 = vmatprep.mubr.f32.mxu0 0.0
      %559 = vmatmul.mubr.f32.gmra.mrb[0].mxu0 %v420
      %v560 = vpop.f32.mrb[0].mxu0
      %v561 = vadd.f32 %v317, %v560
      %v562 = vpop.f32.mrb[0].mxu0
      %563 = vmatprep.mubr.f32.mxu0 0.0
      %564 = vmatmul.mubr.f32.gmra.mrb[0].mxu0 %v422
      %v565 = vpop.f32.mrb[0].mxu0
      %v566 = vadd.f32 %v317, %v565
      %v567 = vpop.f32.mrb[0].mxu0
      %568 = vmatprep.mubr.f32.mxu0 0.0
      %569 = vmatmul.mubr.f32.gmra.mrb[0].mxu0 %v424
      %v570 = vpop.f32.mrb[0].mxu0
      %v571 = vadd.f32 %v317, %v570
      %v572 = vpop.f32.mrb[0].mxu0
      %573 = vmatprep.mubr.f32.mxu0 0.0
      %574 = vmatmul.mubr.f32.gmra.mrb[0].mxu0 %v426
      %v575 = vpop.f32.mrb[0].mxu0
      %v576 = vadd.f32 %v317, %v575
      %v577 = vpop.f32.mrb[0].mxu0
      %578 = vmatprep.mubr.f32.mxu0 0.0
      %579 = vmatmul.mubr.f32.gmra.mrb[0].mxu0 %v428
      %v580 = vpop.f32.mrb[0].mxu0
      %v581 = vadd.f32 %v317, %v580
      %v582 = vpop.f32.mrb[0].mxu0
      %583 = vmatprep.mubr.f32.mxu0 0.0
      %584 = vmatmul.mubr.f32.gmra.mrb[0].mxu0 %v430
      %v585 = vpop.f32.mrb[0].mxu0
      %v586 = vadd.f32 %v317, %v585
      %v587 = vpop.f32.mrb[0].mxu0
      %588 = vmatprep.mubr.f32.mxu0 0.0
      %589 = vmatmul.mubr.f32.gmra.mrb[0].mxu0 %v432
      %v590 = vpop.f32.mrb[0].mxu0
      %v591 = vadd.f32 %v317, %v590
      %v592 = vpop.f32.mrb[0].mxu0
      %593 = vmatprep.mubr.f32.mxu0 0.0
      %594 = vmatmul.mubr.f32.gmra.mrb[0].mxu0 %v434
      %v595 = vpop.f32.mrb[0].mxu0
      %v596 = vadd.f32 %v317, %v595
      %v597 = vpop.f32.mrb[0].mxu0
      %598 = vmatprep.mubr.f32.mxu0 0.0
      %599 = vmatmul.mubr.f32.gmra.mrb[0].mxu0 %v436
      %v600 = vpop.f32.mrb[0].mxu0
      %v601 = vadd.f32 %v317, %v600
      %v602 = vpop.f32.mrb[0].mxu0
      %603 = vmatprep.mubr.f32.mxu0 0.0
      %604 = vmatmul.mubr.f32.gmra.mrb[0].mxu0 %v438
      %v605 = vpop.f32.mrb[0].mxu0
      %v606 = vadd.f32 %v317, %v605
      %v607 = vpop.f32.mrb[0].mxu0
      %608 = vmatprep.mubr.f32.mxu0 0.0
      %609 = vmatmul.mubr.f32.gmra.mrb[0].mxu0 %v440
      %v610 = vpop.f32.mrb[0].mxu0
      %v611 = vadd.f32 %v317, %v610
      %v612 = vpop.f32.mrb[0].mxu0
      %613 = vmatprep.mubr.f32.mxu0 0.0
      %614 = vmatmul.mubr.f32.gmra.mrb[0].mxu0 %v442
      %v615 = vpop.f32.mrb[0].mxu0
      %v616 = vadd.f32 %v317, %v615
      %v617 = vpop.f32.mrb[0].mxu0
      %618 = vmatprep.mubr.f32.mxu0 0.0
      %619 = vmatmul.mubr.f32.gmra.mrb[0].mxu0 %v444
      %v620 = vpop.f32.mrb[0].mxu0
      %v621 = vadd.f32 %v317, %v620
      %v622 = vpop.f32.mrb[0].mxu0
      %623 = vmatprep.mubr.f32.mxu0 0.0
      %624 = vmatmul.mubr.f32.gmra.mrb[0].mxu0 %v446
      %v625 = vpop.f32.mrb[0].mxu0
      %v626 = vadd.f32 %v317, %v625
      %v627 = vpop.f32.mrb[0].mxu0
      %628 = vmatprep.mubr.f32.mxu0 0.0
      %629 = vmatmul.mubr.f32.gmra.mrb[0].mxu0 %v448
      %v630 = vpop.f32.mrb[0].mxu0
      %v631 = vadd.f32 %v317, %v630
      %v632 = vpop.f32.mrb[0].mxu0
      %633 = vmatprep.mubr.f32.mxu0 0.0
      %634 = vmatmul.mubr.f32.gmra.mrb[0].mxu0 %v450
      %v635 = vpop.f32.mrb[0].mxu0
      %v636 = vadd.f32 %v317, %v635
      %v637 = vpop.f32.mrb[0].mxu0
      %638 = vmatprep.mubr.f32.mxu0 0.0
      %639 = vmatmul.mubr.f32.gmra.mrb[0].mxu0 %v452
      %v640 = vpop.f32.mrb[0].mxu0
      %v641 = vadd.f32 %v317, %v640
      %v642 = vpop.f32.mrb[0].mxu0
      %643 = vmatprep.mubr.f32.mxu0 0.0
      %644 = vmatmul.mubr.f32.gmra.mrb[0].mxu0 %v454
      %v645 = vpop.f32.mrb[0].mxu0
      %v646 = vadd.f32 %v317, %v645
      %v647 = vpop.f32.mrb[0].mxu0
      %648 = vmatprep.mubr.f32.mxu0 0.0
      %649 = vmatmul.mubr.f32.gmra.mrb[0].mxu0 %v456
      %v650 = vpop.f32.mrb[0].mxu0
      %v651 = vadd.f32 %v317, %v650
      %v652 = vpop.f32.mrb[0].mxu0
      %653 = vmatprep.mubr.f32.mxu0 0.0
      %654 = vmatmul.mubr.f32.gmra.mrb[0].mxu0 %v458
      %v655 = vpop.f32.mrb[0].mxu0
      %v656 = vadd.f32 %v317, %v655
      %v657 = vpop.f32.mrb[0].mxu0
      %658 = vmatprep.mubr.f32.mxu0 0.0
      %659 = vmatmul.mubr.f32.gmra.mrb[0].mxu0 %v460
      %v660 = vpop.f32.mrb[0].mxu0
      %v661 = vadd.f32 %v317, %v660
      %v662 = vpop.f32.mrb[0].mxu0
      %663 = vmatprep.mubr.f32.mxu0 0.0
      %664 = vmatmul.mubr.f32.gmra.mrb[0].mxu0 %v462
      %v665 = vpop.f32.mrb[0].mxu0
      %v666 = vadd.f32 %v317, %v665
      %v667 = vpop.f32.mrb[0].mxu0
      %668 = vmatprep.mubr.f32.mxu0 0.0
      %669 = vmatmul.mubr.f32.gmra.mrb[0].mxu0 %v464
      %v670 = vpop.f32.mrb[0].mxu0
      %v671 = vadd.f32 %v317, %v670
      %v672 = vpop.f32.mrb[0].mxu0
      %673 = vmatprep.mubr.f32.mxu0 0.0
      %674 = vmatmul.mubr.f32.gmra.mrb[0].mxu0 %v466
      %v675 = vpop.f32.mrb[0].mxu0
      %v676 = vadd.f32 %v317, %v675
      %v677 = vpop.f32.mrb[0].mxu0
      %678 = vmatprep.mubr.f32.mxu0 0.0
      %679 = vmatmul.mubr.f32.gmra.mrb[0].mxu0 %v468
      %v680 = vpop.f32.mrb[0].mxu0
      %v681 = vadd.f32 %v317, %v680
      %v682 = vpop.f32.mrb[0].mxu0
      %683 = vmatprep.mubr.f32.mxu0 0.0
      %684 = vmatmul.mubr.f32.gmra.mrb[0].mxu0 %v470
      %v685 = vpop.f32.mrb[0].mxu0
      %v686 = vadd.f32 %v317, %v685
      %v687 = vpop.f32.mrb[0].mxu0
      %688 = vmatprep.mubr.f32.mxu0 0.0
      %689 = vmatmul.mubr.f32.gmra.mrb[0].mxu0 %v472
      %v690 = vpop.f32.mrb[0].mxu0
      %v691 = vadd.f32 %v317, %v690
      %v692 = vpop.f32.mrb[0].mxu0
      %693 = vmatprep.mubr.f32.mxu0 0.0
      %694 = vmatmul.mubr.f32.gmra.mrb[0].mxu0 %v474
      %v695 = vpop.f32.mrb[0].mxu0
      %v696 = vadd.f32 %v317, %v695
      %v697 = vpop.f32.mrb[0].mxu0
      %698 = vmatprep.mubr.f32.mxu0 0.0
      %699 = vmatmul.mubr.f32.gmra.mrb[0].mxu0 %v476
      %v700 = vpop.f32.mrb[0].mxu0
      %v701 = vadd.f32 %v317, %v700
      %v702 = vpop.f32.mrb[0].mxu0
      %703 = vmatprep.mubr.f32.mxu0 0.0
      %704 = vmatmul.mubr.f32.gmra.mrb[0].mxu0 %v478
      %v705 = vpop.f32.mrb[0].mxu0
      %v706 = vadd.f32 %v317, %v705
      %v707 = vpop.f32.mrb[0].mxu0
      %708 = vdwg.mxu0
      %v709 = vxor.u32 %v551, 2147483648
      %v710 = vxor.u32 %v556, 2147483648
      %v711 = vxor.u32 %v561, 2147483648
      %v712 = vxor.u32 %v566, 2147483648
      %v713 = vxor.u32 %v571, 2147483648
      %v714 = vxor.u32 %v576, 2147483648
      %v715 = vxor.u32 %v581, 2147483648
      %v716 = vxor.u32 %v586, 2147483648
      %v717 = vxor.u32 %v591, 2147483648
      %v718 = vxor.u32 %v596, 2147483648
      %v719 = vxor.u32 %v601, 2147483648
      %v720 = vxor.u32 %v606, 2147483648
      %v721 = vxor.u32 %v611, 2147483648
      %v722 = vxor.u32 %v616, 2147483648
      %v723 = vxor.u32 %v621, 2147483648
      %v724 = vxor.u32 %v626, 2147483648
      %v725 = vxor.u32 %v631, 2147483648
      %v726 = vxor.u32 %v636, 2147483648
      %v727 = vxor.u32 %v641, 2147483648
      %v728 = vxor.u32 %v646, 2147483648
      %v729 = vxor.u32 %v651, 2147483648
      %v730 = vxor.u32 %v656, 2147483648
      %v731 = vxor.u32 %v661, 2147483648
      %v732 = vxor.u32 %v666, 2147483648
      %v733 = vxor.u32 %v671, 2147483648
      %v734 = vxor.u32 %v676, 2147483648
      %v735 = vxor.u32 %v681, 2147483648
      %v736 = vxor.u32 %v686, 2147483648
      %v737 = vxor.u32 %v691, 2147483648
      %v738 = vxor.u32 %v696, 2147483648
      %v739 = vxor.u32 %v701, 2147483648
      %v740 = vxor.u32 %v706, 2147483648
      %v741 = vmul.f32 %v709, 1.442695
      %v742 = vpow.pop %v741
      %v743 = vmul.f32 %v710, 1.442695
      %v744 = vpow.pop %v743
      %v745 = vmul.f32 %v711, 1.442695
      %v746 = vpow.pop %v745
      %v747 = vmul.f32 %v712, 1.442695
      %v748 = vpow.pop %v747
      %v749 = vmul.f32 %v713, 1.442695
      %v750 = vpow.pop %v749
      %v751 = vmul.f32 %v714, 1.442695
      %v752 = vpow.pop %v751
      %v753 = vmul.f32 %v715, 1.442695
      %v754 = vpow.pop %v753
      %v755 = vmul.f32 %v716, 1.442695
      %v756 = vpow.pop %v755
      %v757 = vmul.f32 %v717, 1.442695
      %v758 = vpow.pop %v757
      %v759 = vmul.f32 %v718, 1.442695
      %v760 = vpow.pop %v759
      %v761 = vmul.f32 %v719, 1.442695
      %v762 = vpow.pop %v761
      %v763 = vmul.f32 %v720, 1.442695
      %v764 = vpow.pop %v763
      %v765 = vmul.f32 %v721, 1.442695
      %v766 = vpow.pop %v765
      %v767 = vmul.f32 %v722, 1.442695
      %v768 = vpow.pop %v767
      %v769 = vmul.f32 %v723, 1.442695
      %v770 = vpow.pop %v769
      %v771 = vmul.f32 %v724, 1.442695
      %v772 = vpow.pop %v771
      %v773 = vmul.f32 %v725, 1.442695
      %v774 = vpow.pop %v773
      %v775 = vmul.f32 %v726, 1.442695
      %v776 = vpow.pop %v775
      %v777 = vmul.f32 %v727, 1.442695
      %v778 = vpow.pop %v777
      %v779 = vmul.f32 %v728, 1.442695
      %v780 = vpow.pop %v779
      %v781 = vmul.f32 %v729, 1.442695
      %v782 = vpow.pop %v781
      %v783 = vmul.f32 %v730, 1.442695
      %v784 = vpow.pop %v783
      %v785 = vmul.f32 %v731, 1.442695
      %v786 = vpow.pop %v785
      %v787 = vmul.f32 %v732, 1.442695
      %v788 = vpow.pop %v787
      %v789 = vmul.f32 %v733, 1.442695
      %v790 = vpow.pop %v789
      %v791 = vmul.f32 %v734, 1.442695
      %v792 = vpow.pop %v791
      %v793 = vmul.f32 %v735, 1.442695
      %v794 = vpow.pop %v793
      %v795 = vmul.f32 %v736, 1.442695
      %v796 = vpow.pop %v795
      %v797 = vmul.f32 %v737, 1.442695
      %v798 = vpow.pop %v797
      %v799 = vmul.f32 %v738, 1.442695
      %v800 = vpow.pop %v799
      %v801 = vmul.f32 %v739, 1.442695
      %v802 = vpow.pop %v801
      %v803 = vmul.f32 %v740, 1.442695
      %v804 = vpow.pop %v803
      %v805 = vadd.f32 %v742, 1.0
      %v806 = vadd.f32 %v744, 1.0
      %v807 = vadd.f32 %v746, 1.0
      %v808 = vadd.f32 %v748, 1.0
      %v809 = vadd.f32 %v750, 1.0
      %v810 = vadd.f32 %v752, 1.0
      %v811 = vadd.f32 %v754, 1.0
      %v812 = vadd.f32 %v756, 1.0
      %v813 = vadd.f32 %v758, 1.0
      %v814 = vadd.f32 %v760, 1.0
      %v815 = vadd.f32 %v762, 1.0
      %v816 = vadd.f32 %v764, 1.0
      %v817 = vadd.f32 %v766, 1.0
      %v818 = vadd.f32 %v768, 1.0
      %v819 = vadd.f32 %v770, 1.0
      %v820 = vadd.f32 %v772, 1.0
      %v821 = vadd.f32 %v774, 1.0
      %v822 = vadd.f32 %v776, 1.0
      %v823 = vadd.f32 %v778, 1.0
      %v824 = vadd.f32 %v780, 1.0
      %v825 = vadd.f32 %v782, 1.0
      %v826 = vadd.f32 %v784, 1.0
      %v827 = vadd.f32 %v786, 1.0
      %v828 = vadd.f32 %v788, 1.0
      %v829 = vadd.f32 %v790, 1.0
      %v830 = vadd.f32 %v792, 1.0
      %v831 = vadd.f32 %v794, 1.0
      %v832 = vadd.f32 %v796, 1.0
      %v833 = vadd.f32 %v798, 1.0
      %v834 = vadd.f32 %v800, 1.0
      %v835 = vadd.f32 %v802, 1.0
      %v836 = vadd.f32 %v804, 1.0
      %v837 = vrcp.pop %v805
      %v838 = vmul.f32 1.0, %v837
      %v839 = vrcp.pop %v806
      %v840 = vmul.f32 1.0, %v839
      %v841 = vrcp.pop %v807
      %v842 = vmul.f32 1.0, %v841
      %v843 = vrcp.pop %v808
      %v844 = vmul.f32 1.0, %v843
      %v845 = vrcp.pop %v809
      %v846 = vmul.f32 1.0, %v845
      %v847 = vrcp.pop %v810
      %v848 = vmul.f32 1.0, %v847
      %v849 = vrcp.pop %v811
      %v850 = vmul.f32 1.0, %v849
      %v851 = vrcp.pop %v812
      %v852 = vmul.f32 1.0, %v851
      %v853 = vrcp.pop %v813
      %v854 = vmul.f32 1.0, %v853
      %v855 = vrcp.pop %v814
      %v856 = vmul.f32 1.0, %v855
      %v857 = vrcp.pop %v815
      %v858 = vmul.f32 1.0, %v857
      %v859 = vrcp.pop %v816
      %v860 = vmul.f32 1.0, %v859
      %v861 = vrcp.pop %v817
      %v862 = vmul.f32 1.0, %v861
      %v863 = vrcp.pop %v818
      %v864 = vmul.f32 1.0, %v863
      %v865 = vrcp.pop %v819
      %v866 = vmul.f32 1.0, %v865
      %v867 = vrcp.pop %v820
      %v868 = vmul.f32 1.0, %v867
      %v869 = vrcp.pop %v821
      %v870 = vmul.f32 1.0, %v869
      %v871 = vrcp.pop %v822
      %v872 = vmul.f32 1.0, %v871
      %v873 = vrcp.pop %v823
      %v874 = vmul.f32 1.0, %v873
      %v875 = vrcp.pop %v824
      %v876 = vmul.f32 1.0, %v875
      %v877 = vrcp.pop %v825
      %v878 = vmul.f32 1.0, %v877
      %v879 = vrcp.pop %v826
      %v880 = vmul.f32 1.0, %v879
      %v881 = vrcp.pop %v827
      %v882 = vmul.f32 1.0, %v881
      %v883 = vrcp.pop %v828
      %v884 = vmul.f32 1.0, %v883
      %v885 = vrcp.pop %v829
      %v886 = vmul.f32 1.0, %v885
      %v887 = vrcp.pop %v830
      %v888 = vmul.f32 1.0, %v887
      %v889 = vrcp.pop %v831
      %v890 = vmul.f32 1.0, %v889
      %v891 = vrcp.pop %v832
      %v892 = vmul.f32 1.0, %v891
      %v893 = vrcp.pop %v833
      %v894 = vmul.f32 1.0, %v893
      %v895 = vrcp.pop %v834
      %v896 = vmul.f32 1.0, %v895
      %v897 = vrcp.pop %v835
      %v898 = vmul.f32 1.0, %v897
      %v899 = vrcp.pop %v836
      %v900 = vmul.f32 1.0, %v899
      %v901 = vmul.f32 %v551, %v838
      %v902 = vmul.f32 %v556, %v840
      %v903 = vmul.f32 %v561, %v842
      %v904 = vmul.f32 %v566, %v844
      %v905 = vmul.f32 %v571, %v846
      %v906 = vmul.f32 %v576, %v848
      %v907 = vmul.f32 %v581, %v850
      %v908 = vmul.f32 %v586, %v852
      %v909 = vmul.f32 %v591, %v854
      %v910 = vmul.f32 %v596, %v856
      %v911 = vmul.f32 %v601, %v858
      %v912 = vmul.f32 %v606, %v860
      %v913 = vmul.f32 %v611, %v862
      %v914 = vmul.f32 %v616, %v864
      %v915 = vmul.f32 %v621, %v866
      %v916 = vmul.f32 %v626, %v868
      %v917 = vmul.f32 %v631, %v870
      %v918 = vmul.f32 %v636, %v872
      %v919 = vmul.f32 %v641, %v874
      %v920 = vmul.f32 %v646, %v876
      %v921 = vmul.f32 %v651, %v878
      %v922 = vmul.f32 %v656, %v880
      %v923 = vmul.f32 %v661, %v882
      %v924 = vmul.f32 %v666, %v884
      %v925 = vmul.f32 %v671, %v886
      %v926 = vmul.f32 %v676, %v888
      %v927 = vmul.f32 %v681, %v890
      %v928 = vmul.f32 %v686, %v892
      %v929 = vmul.f32 %v691, %v894
      %v930 = vmul.f32 %v696, %v896
      %v931 = vmul.f32 %v701, %v898
      %v932 = vmul.f32 %v706, %v900
      %933 = vst.msk [vmem:[#allocation2] sm:$0xff] %vm415, 0.0
      %934 = vst.msk [vmem:[#allocation2 + $0x8] sm:$0xff] %vm415, 0.0
      %vm935 = vcmask 25600
      %936 = vst.msk [vmem:[#allocation2 + $0x10] sm:$0x3] %vm935, 0.0
      %s937 = scalar_lea.vmem [#allocation2], 408
      %938 = vst.msk [vmem:[%s937] sm:$0xff] %vm415, 0.0
      %939 = vst.msk [vmem:[%s937 + $0x8] sm:$0xff] %vm415, 0.0
      %940 = vst.msk [vmem:[%s937 + $0x10] sm:$0x3] %vm935, 0.0
      %vm941 = vcmask 24576
      %942 = vst.msk [vmem:[#allocation2] sm:$0x1] %vm941, 0.0
      %943 = vst.msk [vmem:[#allocation2 + $0x18] sm:$0x1] %vm941, 0.0
      %944 = vst.msk [vmem:[#allocation2 + $0x30] sm:$0x1] %vm941, 0.0
      %945 = vst.msk [vmem:[#allocation2 + $0x48] sm:$0x1] %vm941, 0.0
      %946 = vst.msk [vmem:[#allocation2 + $0x60] sm:$0x1] %vm941, 0.0
      %947 = vst.msk [vmem:[#allocation2 + $0x78] sm:$0x1] %vm941, 0.0
      %948 = vst.msk [vmem:[#allocation2 + $0x90] sm:$0x1] %vm941, 0.0
      %949 = vst.msk [vmem:[#allocation2 + $0xa8] sm:$0x1] %vm941, 0.0
      %950 = vst.msk [vmem:[#allocation2 + $0xc0] sm:$0x1] %vm941, 0.0
      %951 = vst.msk [vmem:[#allocation2 + $0xd8] sm:$0x1] %vm941, 0.0
      %952 = vst.msk [vmem:[#allocation2 + $0xf0] sm:$0x1] %vm941, 0.0
      %953 = vst.msk [vmem:[#allocation2 + $0x108] sm:$0x1] %vm941, 0.0
      %954 = vst.msk [vmem:[#allocation2 + $0x120] sm:$0x1] %vm941, 0.0
      %955 = vst.msk [vmem:[#allocation2 + $0x138] sm:$0x1] %vm941, 0.0
      %956 = vst.msk [vmem:[#allocation2 + $0x150] sm:$0x1] %vm941, 0.0
      %957 = vst.msk [vmem:[#allocation2 + $0x168] sm:$0x1] %vm941, 0.0
      %958 = vst.msk [vmem:[#allocation2 + $0x180] sm:$0x1] %vm941, 0.0
      %959 = vst.msk [vmem:[#allocation2 + $0x198] sm:$0x1] %vm941, 0.0
      %960 = vst.msk [vmem:[#allocation2 + $0x11] sm:$0x1] %vm941, 0.0
      %961 = vst.msk [vmem:[#allocation2 + $0x29] sm:$0x1] %vm941, 0.0
      %962 = vst.msk [vmem:[#allocation2 + $0x41] sm:$0x1] %vm941, 0.0
      %963 = vst.msk [vmem:[#allocation2 + $0x59] sm:$0x1] %vm941, 0.0
      %964 = vst.msk [vmem:[#allocation2 + $0x71] sm:$0x1] %vm941, 0.0
      %965 = vst.msk [vmem:[#allocation2 + $0x89] sm:$0x1] %vm941, 0.0
      %966 = vst.msk [vmem:[#allocation2 + $0xa1] sm:$0x1] %vm941, 0.0
      %967 = vst.msk [vmem:[#allocation2 + $0xb9] sm:$0x1] %vm941, 0.0
      %968 = vst.msk [vmem:[#allocation2 + $0xd1] sm:$0x1] %vm941, 0.0
      %969 = vst.msk [vmem:[#allocation2 + $0xe9] sm:$0x1] %vm941, 0.0
      %970 = vst.msk [vmem:[#allocation2 + $0x101] sm:$0x1] %vm941, 0.0
      %971 = vst.msk [vmem:[#allocation2 + $0x119] sm:$0x1] %vm941, 0.0
      %972 = vst.msk [vmem:[#allocation2 + $0x131] sm:$0x1] %vm941, 0.0
      %973 = vst.msk [vmem:[#allocation2 + $0x149] sm:$0x1] %vm941, 0.0
      %974 = vst.msk [vmem:[#allocation2 + $0x161] sm:$0x1] %vm941, 0.0
      %975 = vst.msk [vmem:[#allocation2 + $0x179] sm:$0x1] %vm941, 0.0
      %976 = vst.msk [vmem:[#allocation2 + $0x191] sm:$0x1] %vm941, 0.0
      %977 = vst.msk [vmem:[#allocation2 + $0x1a9] sm:$0x1] %vm941, 0.0
      %s978 = scalar_lea.vmem [#allocation2], 24
      %979 = vst.msk [vmem:[%s978 + $0x1] sm:$0xff] %vm415, %v901
      %980 = vst.msk [vmem:[%s978 + $0x9] sm:$0xff] %vm415, %v902
      %981 = vst.msk [vmem:[%s978 + $0x19] sm:$0xff] %vm415, %v903
      %982 = vst.msk [vmem:[%s978 + $0x21] sm:$0xff] %vm415, %v904
      %983 = vst.msk [vmem:[%s978 + $0x31] sm:$0xff] %vm415, %v905
      %984 = vst.msk [vmem:[%s978 + $0x39] sm:$0xff] %vm415, %v906
      %985 = vst.msk [vmem:[%s978 + $0x49] sm:$0xff] %vm415, %v907
      %986 = vst.msk [vmem:[%s978 + $0x51] sm:$0xff] %vm415, %v908
      %987 = vst.msk [vmem:[%s978 + $0x61] sm:$0xff] %vm415, %v909
      %988 = vst.msk [vmem:[%s978 + $0x69] sm:$0xff] %vm415, %v910
      %989 = vst.msk [vmem:[%s978 + $0x79] sm:$0xff] %vm415, %v911
      %990 = vst.msk [vmem:[%s978 + $0x81] sm:$0xff] %vm415, %v912
      %991 = vst.msk [vmem:[%s978 + $0x91] sm:$0xff] %vm415, %v913
      %992 = vst.msk [vmem:[%s978 + $0x99] sm:$0xff] %vm415, %v914
      %993 = vst.msk [vmem:[%s978 + $0xa9] sm:$0xff] %vm415, %v915
      %994 = vst.msk [vmem:[%s978 + $0xb1] sm:$0xff] %vm415, %v916
      %995 = vst.msk [vmem:[%s978 + $0xc1] sm:$0xff] %vm415, %v917
      %996 = vst.msk [vmem:[%s978 + $0xc9] sm:$0xff] %vm415, %v918
      %997 = vst.msk [vmem:[%s978 + $0xd9] sm:$0xff] %vm415, %v919
      %998 = vst.msk [vmem:[%s978 + $0xe1] sm:$0xff] %vm415, %v920
      %999 = vst.msk [vmem:[%s978 + $0xf1] sm:$0xff] %vm415, %v921
      %1000 = vst.msk [vmem:[%s978 + $0xf9] sm:$0xff] %vm415, %v922
      %1001 = vst.msk [vmem:[%s978 + $0x109] sm:$0xff] %vm415, %v923
      %1002 = vst.msk [vmem:[%s978 + $0x111] sm:$0xff] %vm415, %v924
      %1003 = vst.msk [vmem:[%s978 + $0x121] sm:$0xff] %vm415, %v925
      %1004 = vst.msk [vmem:[%s978 + $0x129] sm:$0xff] %vm415, %v926
      %1005 = vst.msk [vmem:[%s978 + $0x139] sm:$0xff] %vm415, %v927
      %1006 = vst.msk [vmem:[%s978 + $0x141] sm:$0xff] %vm415, %v928
      %1007 = vst.msk [vmem:[%s978 + $0x151] sm:$0xff] %vm415, %v929
      %1008 = vst.msk [vmem:[%s978 + $0x159] sm:$0xff] %vm415, %v930
      %1009 = vst.msk [vmem:[%s978 + $0x169] sm:$0xff] %vm415, %v931
      %1010 = vst.msk [vmem:[%s978 + $0x171] sm:$0xff] %vm415, %v932
      %v1011 = vld [vmem:[%s3] sm:$0xff]
      %v1012 = vld [vmem:[%s3 + $0x8] sm:$0x1]
      %v1013 = vld [vmem:[%s4] sm:$0x1]
      %v1014 = vld [vmem:[%s5] sm:$0xf]
      %v1015 = vld [vmem:[%s6] sm:$0x1]
      %v1016 = vld [vmem:[#allocation2] sm:$0xff]
      %v1017 = vld [vmem:[#allocation2 + $0x8] sm:$0xff]
      %v1018 = vld [vmem:[#allocation2 + $0x18] sm:$0xff]
      %v1019 = vld [vmem:[#allocation2 + $0x20] sm:$0xff]
      %v1020 = vld [vmem:[#allocation2 + $0x30] sm:$0xff]
      %v1021 = vld [vmem:[#allocation2 + $0x38] sm:$0xff]
      %v1022 = vld [vmem:[#allocation2 + $0x48] sm:$0xff]
      %v1023 = vld [vmem:[#allocation2 + $0x50] sm:$0xff]
      %v1024 = vld [vmem:[#allocation2 + $0x60] sm:$0xff]
      %v1025 = vld [vmem:[#allocation2 + $0x68] sm:$0xff]
      %v1026 = vld [vmem:[#allocation2 + $0x78] sm:$0xff]
      %v1027 = vld [vmem:[#allocation2 + $0x80] sm:$0xff]
      %v1028 = vld [vmem:[#allocation2 + $0x90] sm:$0xff]
      %v1029 = vld [vmem:[#allocation2 + $0x98] sm:$0xff]
      %v1030 = vld [vmem:[#allocation2 + $0xa8] sm:$0xff]
      %v1031 = vld [vmem:[#allocation2 + $0xb0] sm:$0xff]
      %v1032 = vlaneseq
      %v1033 = vshrl.u32 %v1032, 7
      %v1034 = vsub.s32 0, %v1033
      %v1035 = vrot.slane %v1011, %v1034
      %v1036 = vmul.f32 %v1016, %v1035
      %v1037 = vmul.f32 %v1017, %v1035
      %v1038 = vmul.f32 %v1018, %v1035
      %v1039 = vmul.f32 %v1019, %v1035
      %v1040 = vmul.f32 %v1020, %v1035
      %v1041 = vmul.f32 %v1021, %v1035
      %v1042 = vmul.f32 %v1022, %v1035
      %v1043 = vmul.f32 %v1023, %v1035
      %v1044 = vmul.f32 %v1024, %v1035
      %v1045 = vmul.f32 %v1025, %v1035
      %v1046 = vmul.f32 %v1026, %v1035
      %v1047 = vmul.f32 %v1027, %v1035
      %v1048 = vmul.f32 %v1028, %v1035
      %v1049 = vmul.f32 %v1029, %v1035
      %v1050 = vmul.f32 %v1030, %v1035
      %v1051 = vmul.f32 %v1031, %v1035
      %v1052 = vld [vmem:[#allocation2 + $0x1] sm:$0xff]
      %v1053 = vld [vmem:[#allocation2 + $0x9] sm:$0xff]
      %v1054 = vld [vmem:[#allocation2 + $0x19] sm:$0xff]
      %v1055 = vld [vmem:[#allocation2 + $0x21] sm:$0xff]
      %v1056 = vld [vmem:[#allocation2 + $0x31] sm:$0xff]
      %v1057 = vld [vmem:[#allocation2 + $0x39] sm:$0xff]
      %v1058 = vld [vmem:[#allocation2 + $0x49] sm:$0xff]
      %v1059 = vld [vmem:[#allocation2 + $0x51] sm:$0xff]
      %v1060 = vld [vmem:[#allocation2 + $0x61] sm:$0xff]
      %v1061 = vld [vmem:[#allocation2 + $0x69] sm:$0xff]
      %v1062 = vld [vmem:[#allocation2 + $0x79] sm:$0xff]
      %v1063 = vld [vmem:[#allocation2 + $0x81] sm:$0xff]
      %v1064 = vld [vmem:[#allocation2 + $0x91] sm:$0xff]
      %v1065 = vld [vmem:[#allocation2 + $0x99] sm:$0xff]
      %v1066 = vld [vmem:[#allocation2 + $0xa9] sm:$0xff]
      %v1067 = vld [vmem:[#allocation2 + $0xb1] sm:$0xff]
      %v1068 = vlaneseq
      %v1069 = vshrl.u32 %v1068, 7
      %v1070 = vsub.s32 1, %v1069
      %v1071 = vrot.slane %v1011, %v1070
      %v1072 = vmul.f32 %v1052, %v1071
      %v1073 = vmul.f32 %v1053, %v1071
      %v1074 = vmul.f32 %v1054, %v1071
      %v1075 = vmul.f32 %v1055, %v1071
      %v1076 = vmul.f32 %v1056, %v1071
      %v1077 = vmul.f32 %v1057, %v1071
      %v1078 = vmul.f32 %v1058, %v1071
      %v1079 = vmul.f32 %v1059, %v1071
      %v1080 = vmul.f32 %v1060, %v1071
      %v1081 = vmul.f32 %v1061, %v1071
      %v1082 = vmul.f32 %v1062, %v1071
      %v1083 = vmul.f32 %v1063, %v1071
      %v1084 = vmul.f32 %v1064, %v1071
      %v1085 = vmul.f32 %v1065, %v1071
      %v1086 = vmul.f32 %v1066, %v1071
      %v1087 = vmul.f32 %v1067, %v1071
      %v1088 = vadd.f32 %v1036, %v1072
      %v1089 = vadd.f32 %v1037, %v1073
      %v1090 = vadd.f32 %v1038, %v1074
      %v1091 = vadd.f32 %v1039, %v1075
      %v1092 = vadd.f32 %v1040, %v1076
      %v1093 = vadd.f32 %v1041, %v1077
      %v1094 = vadd.f32 %v1042, %v1078
      %v1095 = vadd.f32 %v1043, %v1079
      %v1096 = vadd.f32 %v1044, %v1080
      %v1097 = vadd.f32 %v1045, %v1081
      %v1098 = vadd.f32 %v1046, %v1082
      %v1099 = vadd.f32 %v1047, %v1083
      %v1100 = vadd.f32 %v1048, %v1084
      %v1101 = vadd.f32 %v1049, %v1085
      %v1102 = vadd.f32 %v1050, %v1086
      %v1103 = vadd.f32 %v1051, %v1087
      %v1104 = vld [vmem:[#allocation2 + $0x2] sm:$0xff]
      %v1105 = vld [vmem:[#allocation2 + $0xa] sm:$0xff]
      %v1106 = vld [vmem:[#allocation2 + $0x1a] sm:$0xff]
      %v1107 = vld [vmem:[#allocation2 + $0x22] sm:$0xff]
      %v1108 = vld [vmem:[#allocation2 + $0x32] sm:$0xff]
      %v1109 = vld [vmem:[#allocation2 + $0x3a] sm:$0xff]
      %v1110 = vld [vmem:[#allocation2 + $0x4a] sm:$0xff]
      %v1111 = vld [vmem:[#allocation2 + $0x52] sm:$0xff]
      %v1112 = vld [vmem:[#allocation2 + $0x62] sm:$0xff]
      %v1113 = vld [vmem:[#allocation2 + $0x6a] sm:$0xff]
      %v1114 = vld [vmem:[#allocation2 + $0x7a] sm:$0xff]
      %v1115 = vld [vmem:[#allocation2 + $0x82] sm:$0xff]
      %v1116 = vld [vmem:[#allocation2 + $0x92] sm:$0xff]
      %v1117 = vld [vmem:[#allocation2 + $0x9a] sm:$0xff]
      %v1118 = vld [vmem:[#allocation2 + $0xaa] sm:$0xff]
      %v1119 = vld [vmem:[#allocation2 + $0xb2] sm:$0xff]
      %v1120 = vlaneseq
      %v1121 = vshrl.u32 %v1120, 7
      %v1122 = vsub.s32 2, %v1121
      %v1123 = vrot.slane %v1011, %v1122
      %v1124 = vmul.f32 %v1104, %v1123
      %v1125 = vmul.f32 %v1105, %v1123
      %v1126 = vmul.f32 %v1106, %v1123
      %v1127 = vmul.f32 %v1107, %v1123
      %v1128 = vmul.f32 %v1108, %v1123
      %v1129 = vmul.f32 %v1109, %v1123
      %v1130 = vmul.f32 %v1110, %v1123
      %v1131 = vmul.f32 %v1111, %v1123
      %v1132 = vmul.f32 %v1112, %v1123
      %v1133 = vmul.f32 %v1113, %v1123
      %v1134 = vmul.f32 %v1114, %v1123
      %v1135 = vmul.f32 %v1115, %v1123
      %v1136 = vmul.f32 %v1116, %v1123
      %v1137 = vmul.f32 %v1117, %v1123
      %v1138 = vmul.f32 %v1118, %v1123
      %v1139 = vmul.f32 %v1119, %v1123
      %v1140 = vadd.f32 %v1088, %v1124
      %v1141 = vadd.f32 %v1089, %v1125
      %v1142 = vadd.f32 %v1090, %v1126
      %v1143 = vadd.f32 %v1091, %v1127
      %v1144 = vadd.f32 %v1092, %v1128
      %v1145 = vadd.f32 %v1093, %v1129
      %v1146 = vadd.f32 %v1094, %v1130
      %v1147 = vadd.f32 %v1095, %v1131
      %v1148 = vadd.f32 %v1096, %v1132
      %v1149 = vadd.f32 %v1097, %v1133
      %v1150 = vadd.f32 %v1098, %v1134
      %v1151 = vadd.f32 %v1099, %v1135
      %v1152 = vadd.f32 %v1100, %v1136
      %v1153 = vadd.f32 %v1101, %v1137
      %v1154 = vadd.f32 %v1102, %v1138
      %v1155 = vadd.f32 %v1103, %v1139
      %v1156 = vld [vmem:[%s978] sm:$0xff]
      %v1157 = vld [vmem:[%s978 + $0x8] sm:$0xff]
      %v1158 = vld [vmem:[%s978 + $0x18] sm:$0xff]
      %v1159 = vld [vmem:[%s978 + $0x20] sm:$0xff]
      %v1160 = vld [vmem:[%s978 + $0x30] sm:$0xff]
      %v1161 = vld [vmem:[%s978 + $0x38] sm:$0xff]
      %v1162 = vld [vmem:[%s978 + $0x48] sm:$0xff]
      %v1163 = vld [vmem:[%s978 + $0x50] sm:$0xff]
      %v1164 = vld [vmem:[%s978 + $0x60] sm:$0xff]
      %v1165 = vld [vmem:[%s978 + $0x68] sm:$0xff]
      %v1166 = vld [vmem:[%s978 + $0x78] sm:$0xff]
      %v1167 = vld [vmem:[%s978 + $0x80] sm:$0xff]
      %v1168 = vld [vmem:[%s978 + $0x90] sm:$0xff]
      %v1169 = vld [vmem:[%s978 + $0x98] sm:$0xff]
      %v1170 = vld [vmem:[%s978 + $0xa8] sm:$0xff]
      %v1171 = vld [vmem:[%s978 + $0xb0] sm:$0xff]
      %v1172 = vlaneseq
      %v1173 = vshrl.u32 %v1172, 7
      %v1174 = vsub.s32 3, %v1173
      %v1175 = vrot.slane %v1011, %v1174
      %v1176 = vmul.f32 %v1156, %v1175
      %v1177 = vmul.f32 %v1157, %v1175
      %v1178 = vmul.f32 %v1158, %v1175
      %v1179 = vmul.f32 %v1159, %v1175
      %v1180 = vmul.f32 %v1160, %v1175
      %v1181 = vmul.f32 %v1161, %v1175
      %v1182 = vmul.f32 %v1162, %v1175
      %v1183 = vmul.f32 %v1163, %v1175
      %v1184 = vmul.f32 %v1164, %v1175
      %v1185 = vmul.f32 %v1165, %v1175
      %v1186 = vmul.f32 %v1166, %v1175
      %v1187 = vmul.f32 %v1167, %v1175
      %v1188 = vmul.f32 %v1168, %v1175
      %v1189 = vmul.f32 %v1169, %v1175
      %v1190 = vmul.f32 %v1170, %v1175
      %v1191 = vmul.f32 %v1171, %v1175
      %v1192 = vadd.f32 %v1140, %v1176
      %v1193 = vadd.f32 %v1141, %v1177
      %v1194 = vadd.f32 %v1142, %v1178
      %v1195 = vadd.f32 %v1143, %v1179
      %v1196 = vadd.f32 %v1144, %v1180
      %v1197 = vadd.f32 %v1145, %v1181
      %v1198 = vadd.f32 %v1146, %v1182
      %v1199 = vadd.f32 %v1147, %v1183
      %v1200 = vadd.f32 %v1148, %v1184
      %v1201 = vadd.f32 %v1149, %v1185
      %v1202 = vadd.f32 %v1150, %v1186
      %v1203 = vadd.f32 %v1151, %v1187
      %v1204 = vadd.f32 %v1152, %v1188
      %v1205 = vadd.f32 %v1153, %v1189
      %v1206 = vadd.f32 %v1154, %v1190
      %v1207 = vadd.f32 %v1155, %v1191
      %v1208 = vld [vmem:[%s978 + $0x1] sm:$0xff]
      %v1209 = vld [vmem:[%s978 + $0x9] sm:$0xff]
      %v1210 = vld [vmem:[%s978 + $0x19] sm:$0xff]
      %v1211 = vld [vmem:[%s978 + $0x21] sm:$0xff]
      %v1212 = vld [vmem:[%s978 + $0x31] sm:$0xff]
      %v1213 = vld [vmem:[%s978 + $0x39] sm:$0xff]
      %v1214 = vld [vmem:[%s978 + $0x49] sm:$0xff]
      %v1215 = vld [vmem:[%s978 + $0x51] sm:$0xff]
      %v1216 = vld [vmem:[%s978 + $0x61] sm:$0xff]
      %v1217 = vld [vmem:[%s978 + $0x69] sm:$0xff]
      %v1218 = vld [vmem:[%s978 + $0x79] sm:$0xff]
      %v1219 = vld [vmem:[%s978 + $0x81] sm:$0xff]
      %v1220 = vld [vmem:[%s978 + $0x91] sm:$0xff]
      %v1221 = vld [vmem:[%s978 + $0x99] sm:$0xff]
      %v1222 = vld [vmem:[%s978 + $0xa9] sm:$0xff]
      %v1223 = vld [vmem:[%s978 + $0xb1] sm:$0xff]
      %v1224 = vlaneseq
      %v1225 = vshrl.u32 %v1224, 7
      %v1226 = vsub.s32 4, %v1225
      %v1227 = vrot.slane %v1011, %v1226
      %v1228 = vmul.f32 %v1208, %v1227
      %v1229 = vmul.f32 %v1209, %v1227
      %v1230 = vmul.f32 %v1210, %v1227
      %v1231 = vmul.f32 %v1211, %v1227
      %v1232 = vmul.f32 %v1212, %v1227
      %v1233 = vmul.f32 %v1213, %v1227
      %v1234 = vmul.f32 %v1214, %v1227
      %v1235 = vmul.f32 %v1215, %v1227
      %v1236 = vmul.f32 %v1216, %v1227
      %v1237 = vmul.f32 %v1217, %v1227
      %v1238 = vmul.f32 %v1218, %v1227
      %v1239 = vmul.f32 %v1219, %v1227
      %v1240 = vmul.f32 %v1220, %v1227
      %v1241 = vmul.f32 %v1221, %v1227
      %v1242 = vmul.f32 %v1222, %v1227
      %v1243 = vmul.f32 %v1223, %v1227
      %v1244 = vadd.f32 %v1192, %v1228
      %v1245 = vadd.f32 %v1193, %v1229
      %v1246 = vadd.f32 %v1194, %v1230
      %v1247 = vadd.f32 %v1195, %v1231
      %v1248 = vadd.f32 %v1196, %v1232
      %v1249 = vadd.f32 %v1197, %v1233
      %v1250 = vadd.f32 %v1198, %v1234
      %v1251 = vadd.f32 %v1199, %v1235
      %v1252 = vadd.f32 %v1200, %v1236
      %v1253 = vadd.f32 %v1201, %v1237
      %v1254 = vadd.f32 %v1202, %v1238
      %v1255 = vadd.f32 %v1203, %v1239
      %v1256 = vadd.f32 %v1204, %v1240
      %v1257 = vadd.f32 %v1205, %v1241
      %v1258 = vadd.f32 %v1206, %v1242
      %v1259 = vadd.f32 %v1207, %v1243
      %v1260 = vld [vmem:[%s978 + $0x2] sm:$0xff]
      %v1261 = vld [vmem:[%s978 + $0xa] sm:$0xff]
      %v1262 = vld [vmem:[%s978 + $0x1a] sm:$0xff]
      %v1263 = vld [vmem:[%s978 + $0x22] sm:$0xff]
      %v1264 = vld [vmem:[%s978 + $0x32] sm:$0xff]
      %v1265 = vld [vmem:[%s978 + $0x3a] sm:$0xff]
      %v1266 = vld [vmem:[%s978 + $0x4a] sm:$0xff]
      %v1267 = vld [vmem:[%s978 + $0x52] sm:$0xff]
      %v1268 = vld [vmem:[%s978 + $0x62] sm:$0xff]
      %v1269 = vld [vmem:[%s978 + $0x6a] sm:$0xff]
      %v1270 = vld [vmem:[%s978 + $0x7a] sm:$0xff]
      %v1271 = vld [vmem:[%s978 + $0x82] sm:$0xff]
      %v1272 = vld [vmem:[%s978 + $0x92] sm:$0xff]
      %v1273 = vld [vmem:[%s978 + $0x9a] sm:$0xff]
      %v1274 = vld [vmem:[%s978 + $0xaa] sm:$0xff]
      %v1275 = vld [vmem:[%s978 + $0xb2] sm:$0xff]
      %v1276 = vlaneseq
      %v1277 = vshrl.u32 %v1276, 7
      %v1278 = vsub.s32 5, %v1277
      %v1279 = vrot.slane %v1011, %v1278
      %v1280 = vmul.f32 %v1260, %v1279
      %v1281 = vmul.f32 %v1261, %v1279
      %v1282 = vmul.f32 %v1262, %v1279
      %v1283 = vmul.f32 %v1263, %v1279
      %v1284 = vmul.f32 %v1264, %v1279
      %v1285 = vmul.f32 %v1265, %v1279
      %v1286 = vmul.f32 %v1266, %v1279
      %v1287 = vmul.f32 %v1267, %v1279
      %v1288 = vmul.f32 %v1268, %v1279
      %v1289 = vmul.f32 %v1269, %v1279
      %v1290 = vmul.f32 %v1270, %v1279
      %v1291 = vmul.f32 %v1271, %v1279
      %v1292 = vmul.f32 %v1272, %v1279
      %v1293 = vmul.f32 %v1273, %v1279
      %v1294 = vmul.f32 %v1274, %v1279
      %v1295 = vmul.f32 %v1275, %v1279
      %v1296 = vadd.f32 %v1244, %v1280
      %v1297 = vadd.f32 %v1245, %v1281
      %v1298 = vadd.f32 %v1246, %v1282
      %v1299 = vadd.f32 %v1247, %v1283
      %v1300 = vadd.f32 %v1248, %v1284
      %v1301 = vadd.f32 %v1249, %v1285
      %v1302 = vadd.f32 %v1250, %v1286
      %v1303 = vadd.f32 %v1251, %v1287
      %v1304 = vadd.f32 %v1252, %v1288
      %v1305 = vadd.f32 %v1253, %v1289
      %v1306 = vadd.f32 %v1254, %v1290
      %v1307 = vadd.f32 %v1255, %v1291
      %v1308 = vadd.f32 %v1256, %v1292
      %v1309 = vadd.f32 %v1257, %v1293
      %v1310 = vadd.f32 %v1258, %v1294
      %v1311 = vadd.f32 %v1259, %v1295
      %s1312 = scalar_lea.vmem [#allocation2], 48
      %v1313 = vld [vmem:[%s1312] sm:$0xff]
      %v1314 = vld [vmem:[%s1312 + $0x8] sm:$0xff]
      %v1315 = vld [vmem:[%s1312 + $0x18] sm:$0xff]
      %v1316 = vld [vmem:[%s1312 + $0x20] sm:$0xff]
      %v1317 = vld [vmem:[%s1312 + $0x30] sm:$0xff]
      %v1318 = vld [vmem:[%s1312 + $0x38] sm:$0xff]
      %v1319 = vld [vmem:[%s1312 + $0x48] sm:$0xff]
      %v1320 = vld [vmem:[%s1312 + $0x50] sm:$0xff]
      %v1321 = vld [vmem:[%s1312 + $0x60] sm:$0xff]
      %v1322 = vld [vmem:[%s1312 + $0x68] sm:$0xff]
      %v1323 = vld [vmem:[%s1312 + $0x78] sm:$0xff]
      %v1324 = vld [vmem:[%s1312 + $0x80] sm:$0xff]
      %v1325 = vld [vmem:[%s1312 + $0x90] sm:$0xff]
      %v1326 = vld [vmem:[%s1312 + $0x98] sm:$0xff]
      %v1327 = vld [vmem:[%s1312 + $0xa8] sm:$0xff]
      %v1328 = vld [vmem:[%s1312 + $0xb0] sm:$0xff]
      %v1329 = vlaneseq
      %v1330 = vshrl.u32 %v1329, 7
      %v1331 = vsub.s32 6, %v1330
      %v1332 = vrot.slane %v1011, %v1331
      %v1333 = vmul.f32 %v1313, %v1332
      %v1334 = vmul.f32 %v1314, %v1332
      %v1335 = vmul.f32 %v1315, %v1332
      %v1336 = vmul.f32 %v1316, %v1332
      %v1337 = vmul.f32 %v1317, %v1332
      %v1338 = vmul.f32 %v1318, %v1332
      %v1339 = vmul.f32 %v1319, %v1332
      %v1340 = vmul.f32 %v1320, %v1332
      %v1341 = vmul.f32 %v1321, %v1332
      %v1342 = vmul.f32 %v1322, %v1332
      %v1343 = vmul.f32 %v1323, %v1332
      %v1344 = vmul.f32 %v1324, %v1332
      %v1345 = vmul.f32 %v1325, %v1332
      %v1346 = vmul.f32 %v1326, %v1332
      %v1347 = vmul.f32 %v1327, %v1332
      %v1348 = vmul.f32 %v1328, %v1332
      %v1349 = vadd.f32 %v1296, %v1333
      %v1350 = vadd.f32 %v1297, %v1334
      %v1351 = vadd.f32 %v1298, %v1335
      %v1352 = vadd.f32 %v1299, %v1336
      %v1353 = vadd.f32 %v1300, %v1337
      %v1354 = vadd.f32 %v1301, %v1338
      %v1355 = vadd.f32 %v1302, %v1339
      %v1356 = vadd.f32 %v1303, %v1340
      %v1357 = vadd.f32 %v1304, %v1341
      %v1358 = vadd.f32 %v1305, %v1342
      %v1359 = vadd.f32 %v1306, %v1343
      %v1360 = vadd.f32 %v1307, %v1344
      %v1361 = vadd.f32 %v1308, %v1345
      %v1362 = vadd.f32 %v1309, %v1346
      %v1363 = vadd.f32 %v1310, %v1347
      %v1364 = vadd.f32 %v1311, %v1348
      %v1365 = vld [vmem:[%s1312 + $0x1] sm:$0xff]
      %v1366 = vld [vmem:[%s1312 + $0x9] sm:$0xff]
      %v1367 = vld [vmem:[%s1312 + $0x19] sm:$0xff]
      %v1368 = vld [vmem:[%s1312 + $0x21] sm:$0xff]
      %v1369 = vld [vmem:[%s1312 + $0x31] sm:$0xff]
      %v1370 = vld [vmem:[%s1312 + $0x39] sm:$0xff]
      %v1371 = vld [vmem:[%s1312 + $0x49] sm:$0xff]
      %v1372 = vld [vmem:[%s1312 + $0x51] sm:$0xff]
      %v1373 = vld [vmem:[%s1312 + $0x61] sm:$0xff]
      %v1374 = vld [vmem:[%s1312 + $0x69] sm:$0xff]
      %v1375 = vld [vmem:[%s1312 + $0x79] sm:$0xff]
      %v1376 = vld [vmem:[%s1312 + $0x81] sm:$0xff]
      %v1377 = vld [vmem:[%s1312 + $0x91] sm:$0xff]
      %v1378 = vld [vmem:[%s1312 + $0x99] sm:$0xff]
      %v1379 = vld [vmem:[%s1312 + $0xa9] sm:$0xff]
      %v1380 = vld [vmem:[%s1312 + $0xb1] sm:$0xff]
      %v1381 = vlaneseq
      %v1382 = vshrl.u32 %v1381, 7
      %v1383 = vsub.s32 7, %v1382
      %v1384 = vrot.slane %v1011, %v1383
      %v1385 = vmul.f32 %v1365, %v1384
      %v1386 = vmul.f32 %v1366, %v1384
      %v1387 = vmul.f32 %v1367, %v1384
      %v1388 = vmul.f32 %v1368, %v1384
      %v1389 = vmul.f32 %v1369, %v1384
      %v1390 = vmul.f32 %v1370, %v1384
      %v1391 = vmul.f32 %v1371, %v1384
      %v1392 = vmul.f32 %v1372, %v1384
      %v1393 = vmul.f32 %v1373, %v1384
      %v1394 = vmul.f32 %v1374, %v1384
      %v1395 = vmul.f32 %v1375, %v1384
      %v1396 = vmul.f32 %v1376, %v1384
      %v1397 = vmul.f32 %v1377, %v1384
      %v1398 = vmul.f32 %v1378, %v1384
      %v1399 = vmul.f32 %v1379, %v1384
      %v1400 = vmul.f32 %v1380, %v1384
      %v1401 = vadd.f32 %v1349, %v1385
      %v1402 = vadd.f32 %v1350, %v1386
      %v1403 = vadd.f32 %v1351, %v1387
      %v1404 = vadd.f32 %v1352, %v1388
      %v1405 = vadd.f32 %v1353, %v1389
      %v1406 = vadd.f32 %v1354, %v1390
      %v1407 = vadd.f32 %v1355, %v1391
      %v1408 = vadd.f32 %v1356, %v1392
      %v1409 = vadd.f32 %v1357, %v1393
      %v1410 = vadd.f32 %v1358, %v1394
      %v1411 = vadd.f32 %v1359, %v1395
      %v1412 = vadd.f32 %v1360, %v1396
      %v1413 = vadd.f32 %v1361, %v1397
      %v1414 = vadd.f32 %v1362, %v1398
      %v1415 = vadd.f32 %v1363, %v1399
      %v1416 = vadd.f32 %v1364, %v1400
      %v1417 = vld [vmem:[%s1312 + $0x2] sm:$0xff]
      %v1418 = vld [vmem:[%s1312 + $0xa] sm:$0xff]
      %v1419 = vld [vmem:[%s1312 + $0x1a] sm:$0xff]
      %v1420 = vld [vmem:[%s1312 + $0x22] sm:$0xff]
      %v1421 = vld [vmem:[%s1312 + $0x32] sm:$0xff]
      %v1422 = vld [vmem:[%s1312 + $0x3a] sm:$0xff]
      %v1423 = vld [vmem:[%s1312 + $0x4a] sm:$0xff]
      %v1424 = vld [vmem:[%s1312 + $0x52] sm:$0xff]
      %v1425 = vld [vmem:[%s1312 + $0x62] sm:$0xff]
      %v1426 = vld [vmem:[%s1312 + $0x6a] sm:$0xff]
      %v1427 = vld [vmem:[%s1312 + $0x7a] sm:$0xff]
      %v1428 = vld [vmem:[%s1312 + $0x82] sm:$0xff]
      %v1429 = vld [vmem:[%s1312 + $0x92] sm:$0xff]
      %v1430 = vld [vmem:[%s1312 + $0x9a] sm:$0xff]
      %v1431 = vld [vmem:[%s1312 + $0xaa] sm:$0xff]
      %v1432 = vld [vmem:[%s1312 + $0xb2] sm:$0xff]
      %v1433 = vlaneseq
      %v1434 = vshrl.u32 %v1433, 7
      %v1435 = vsub.s32 0, %v1434
      %v1436 = vrot.slane %v1012, %v1435
      %v1437 = vmul.f32 %v1417, %v1436
      %v1438 = vmul.f32 %v1418, %v1436
      %v1439 = vmul.f32 %v1419, %v1436
      %v1440 = vmul.f32 %v1420, %v1436
      %v1441 = vmul.f32 %v1421, %v1436
      %v1442 = vmul.f32 %v1422, %v1436
      %v1443 = vmul.f32 %v1423, %v1436
      %v1444 = vmul.f32 %v1424, %v1436
      %v1445 = vmul.f32 %v1425, %v1436
      %v1446 = vmul.f32 %v1426, %v1436
      %v1447 = vmul.f32 %v1427, %v1436
      %v1448 = vmul.f32 %v1428, %v1436
      %v1449 = vmul.f32 %v1429, %v1436
      %v1450 = vmul.f32 %v1430, %v1436
      %v1451 = vmul.f32 %v1431, %v1436
      %v1452 = vmul.f32 %v1432, %v1436
      %v1453 = vadd.f32 %v1401, %v1437
      %v1454 = vadd.f32 %v1402, %v1438
      %v1455 = vadd.f32 %v1403, %v1439
      %v1456 = vadd.f32 %v1404, %v1440
      %v1457 = vadd.f32 %v1405, %v1441
      %v1458 = vadd.f32 %v1406, %v1442
      %v1459 = vadd.f32 %v1407, %v1443
      %v1460 = vadd.f32 %v1408, %v1444
      %v1461 = vadd.f32 %v1409, %v1445
      %v1462 = vadd.f32 %v1410, %v1446
      %v1463 = vadd.f32 %v1411, %v1447
      %v1464 = vadd.f32 %v1412, %v1448
      %v1465 = vadd.f32 %v1413, %v1449
      %v1466 = vadd.f32 %v1414, %v1450
      %v1467 = vadd.f32 %v1415, %v1451
      %v1468 = vadd.f32 %v1416, %v1452
      %v1470 = vlaneseq
      %v1471 = vshrl.u32 %v1470, 7
      %v1472 = vsub.s32 0, %v1471
      %v1473 = vrot.slane %v1013, %v1472
      %v1475 = vadd.f32 %v1453, %v1473
      %v1476 = vadd.f32 %v1454, %v1473
      %v1477 = vadd.f32 %v1455, %v1473
      %v1478 = vadd.f32 %v1456, %v1473
      %v1479 = vadd.f32 %v1457, %v1473
      %v1480 = vadd.f32 %v1458, %v1473
      %v1481 = vadd.f32 %v1459, %v1473
      %v1482 = vadd.f32 %v1460, %v1473
      %v1483 = vadd.f32 %v1461, %v1473
      %v1484 = vadd.f32 %v1462, %v1473
      %v1485 = vadd.f32 %v1463, %v1473
      %v1486 = vadd.f32 %v1464, %v1473
      %v1487 = vadd.f32 %v1465, %v1473
      %v1488 = vadd.f32 %v1466, %v1473
      %v1489 = vadd.f32 %v1467, %v1473
      %v1490 = vadd.f32 %v1468, %v1473
      %v1492 = vlaneseq
      %v1493 = vshrl.u32 %v1492, 7
      %v1494 = vsub.s32 0, %v1493
      %v1495 = vrot.slane %v1015, %v1494
      %v1498 = vsel %vm415, %v1475, 0
      %v1501 = vsel %vm415, %v1476, 0
      %v1504 = vsel %vm415, %v1477, 0
      %v1507 = vsel %vm415, %v1478, 0
      %v1510 = vsel %vm415, %v1479, 0
      %v1513 = vsel %vm415, %v1480, 0
      %v1516 = vsel %vm415, %v1481, 0
      %v1519 = vsel %vm415, %v1482, 0
      %v1522 = vsel %vm415, %v1483, 0
      %v1525 = vsel %vm415, %v1484, 0
      %v1528 = vsel %vm415, %v1485, 0
      %v1531 = vsel %vm415, %v1486, 0
      %v1534 = vsel %vm415, %v1487, 0
      %v1537 = vsel %vm415, %v1488, 0
      %v1540 = vsel %vm415, %v1489, 0
      %v1543 = vsel %vm415, %v1490, 0
      %v1546 = vsel %vm480, %v1014, 0
      %1548 = vmatprep.subr.mxu0 0.0
      %1549 = vmatpush1.msra.mxu0 %v1546
      %1550 = vmatprep.subr.mxu0 0.0
      %1551 = vmatpush1.msra.mxu0 0.0
      %1552 = vmatprep.subr.mxu0 0.0
      %1553 = vmatpush1.msra.mxu0 0.0
      %1554 = vmatprep.subr.mxu0 0.0
      %1555 = vmatpush1.msra.mxu0 0.0
      %1556 = vmatprep.subr.mxu0 0.0
      %1557 = vmatpush1.msra.mxu0 0.0
      %1558 = vmatprep.subr.mxu0 0.0
      %1559 = vmatpush1.msra.mxu0 0.0
      %1560 = vmatprep.subr.mxu0 0.0
      %1561 = vmatpush1.msra.mxu0 0.0
      %1562 = vmatprep.subr.mxu0 0.0
      %1563 = vmatpush1.msra.mxu0 0.0
      %1564 = vmatprep.subr.mxu0 0.0
      %1565 = vmatpush1.msra.mxu0 0.0
      %1566 = vmatprep.subr.mxu0 0.0
      %1567 = vmatpush1.msra.mxu0 0.0
      %1568 = vmatprep.subr.mxu0 0.0
      %1569 = vmatpush1.msra.mxu0 0.0
      %1570 = vmatprep.subr.mxu0 0.0
      %1571 = vmatpush1.msra.mxu0 0.0
      %1572 = vmatprep.subr.mxu0 0.0
      %1573 = vmatpush1.msra.mxu0 0.0
      %1574 = vmatprep.subr.mxu0 0.0
      %1575 = vmatpush1.msra.mxu0 0.0
      %1576 = vmatprep.subr.mxu0 0.0
      %1577 = vmatpush1.msra.mxu0 0.0
      %1578 = vmatprep.subr.mxu0 0.0
      %1579 = vmatpush1.msra.mxu0 0.0
      %1580 = vmatprep.subr.mxu0 0.0
      %1581 = vmatpush1.msra.mxu0 0.0
      %1582 = vmatprep.subr.mxu0 0.0
      %1583 = vmatpush1.msra.mxu0 0.0
      %1584 = vmatprep.subr.mxu0 0.0
      %1585 = vmatpush1.msra.mxu0 0.0
      %1586 = vmatprep.subr.mxu0 0.0
      %1587 = vmatpush1.msra.mxu0 0.0
      %1588 = vmatprep.subr.mxu0 0.0
      %1589 = vmatpush1.msra.mxu0 0.0
      %1590 = vmatprep.subr.mxu0 0.0
      %1591 = vmatpush1.msra.mxu0 0.0
      %1592 = vmatprep.subr.mxu0 0.0
      %1593 = vmatpush1.msra.mxu0 0.0
      %1594 = vmatprep.subr.mxu0 0.0
      %1595 = vmatpush1.msra.mxu0 0.0
      %1596 = vmatprep.subr.mxu0 0.0
      %1597 = vmatpush1.msra.mxu0 0.0
      %1598 = vmatprep.subr.mxu0 0.0
      %1599 = vmatpush1.msra.mxu0 0.0
      %1600 = vmatprep.subr.mxu0 0.0
      %1601 = vmatpush1.msra.mxu0 0.0
      %1602 = vmatprep.subr.mxu0 0.0
      %1603 = vmatpush1.msra.mxu0 0.0
      %1604 = vmatprep.subr.mxu0 0.0
      %1605 = vmatpush1.msra.mxu0 0.0
      %1606 = vmatprep.subr.mxu0 0.0
      %1607 = vmatpush1.msra.mxu0 0.0
      %1608 = vmatprep.subr.mxu0 0.0
      %1609 = vmatpush1.msra.mxu0 0.0
      %1610 = vmatprep.subr.mxu0 0.0
      %1611 = vmatpush1.msra.mxu0 0.0
      %1612 = vmatprep.mubr.f32.mxu0 0.0
      %1613 = vmatmul.mubr.f32.gmra.mrb[0].mxu0 %v1498
      %v1614 = vpop.f32.mrb[0].mxu0
      %v1615 = vadd.f32 %v1495, %v1614
      %v1616 = vpop.f32.mrb[0].mxu0
      %1617 = vmatprep.mubr.f32.mxu0 0.0
      %1618 = vmatmul.mubr.f32.gmra.mrb[0].mxu0 %v1501
      %v1619 = vpop.f32.mrb[0].mxu0
      %v1620 = vadd.f32 %v1495, %v1619
      %v1621 = vpop.f32.mrb[0].mxu0
      %1622 = vmatprep.mubr.f32.mxu0 0.0
      %1623 = vmatmul.mubr.f32.gmra.mrb[0].mxu0 %v1504
      %v1624 = vpop.f32.mrb[0].mxu0
      %v1625 = vadd.f32 %v1495, %v1624
      %v1626 = vpop.f32.mrb[0].mxu0
      %1627 = vmatprep.mubr.f32.mxu0 0.0
      %1628 = vmatmul.mubr.f32.gmra.mrb[0].mxu0 %v1507
      %v1629 = vpop.f32.mrb[0].mxu0
      %v1630 = vadd.f32 %v1495, %v1629
      %v1631 = vpop.f32.mrb[0].mxu0
      %1632 = vmatprep.mubr.f32.mxu0 0.0
      %1633 = vmatmul.mubr.f32.gmra.mrb[0].mxu0 %v1510
      %v1634 = vpop.f32.mrb[0].mxu0
      %v1635 = vadd.f32 %v1495, %v1634
      %v1636 = vpop.f32.mrb[0].mxu0
      %1637 = vmatprep.mubr.f32.mxu0 0.0
      %1638 = vmatmul.mubr.f32.gmra.mrb[0].mxu0 %v1513
      %v1639 = vpop.f32.mrb[0].mxu0
      %v1640 = vadd.f32 %v1495, %v1639
      %v1641 = vpop.f32.mrb[0].mxu0
      %1642 = vmatprep.mubr.f32.mxu0 0.0
      %1643 = vmatmul.mubr.f32.gmra.mrb[0].mxu0 %v1516
      %v1644 = vpop.f32.mrb[0].mxu0
      %v1645 = vadd.f32 %v1495, %v1644
      %v1646 = vpop.f32.mrb[0].mxu0
      %1647 = vmatprep.mubr.f32.mxu0 0.0
      %1648 = vmatmul.mubr.f32.gmra.mrb[0].mxu0 %v1519
      %v1649 = vpop.f32.mrb[0].mxu0
      %v1650 = vadd.f32 %v1495, %v1649
      %v1651 = vpop.f32.mrb[0].mxu0
      %1652 = vmatprep.mubr.f32.mxu0 0.0
      %1653 = vmatmul.mubr.f32.gmra.mrb[0].mxu0 %v1522
      %v1654 = vpop.f32.mrb[0].mxu0
      %v1655 = vadd.f32 %v1495, %v1654
      %v1656 = vpop.f32.mrb[0].mxu0
      %1657 = vmatprep.mubr.f32.mxu0 0.0
      %1658 = vmatmul.mubr.f32.gmra.mrb[0].mxu0 %v1525
      %v1659 = vpop.f32.mrb[0].mxu0
      %v1660 = vadd.f32 %v1495, %v1659
      %v1661 = vpop.f32.mrb[0].mxu0
      %1662 = vmatprep.mubr.f32.mxu0 0.0
      %1663 = vmatmul.mubr.f32.gmra.mrb[0].mxu0 %v1528
      %v1664 = vpop.f32.mrb[0].mxu0
      %v1665 = vadd.f32 %v1495, %v1664
      %v1666 = vpop.f32.mrb[0].mxu0
      %1667 = vmatprep.mubr.f32.mxu0 0.0
      %1668 = vmatmul.mubr.f32.gmra.mrb[0].mxu0 %v1531
      %v1669 = vpop.f32.mrb[0].mxu0
      %v1670 = vadd.f32 %v1495, %v1669
      %v1671 = vpop.f32.mrb[0].mxu0
      %1672 = vmatprep.mubr.f32.mxu0 0.0
      %1673 = vmatmul.mubr.f32.gmra.mrb[0].mxu0 %v1534
      %v1674 = vpop.f32.mrb[0].mxu0
      %v1675 = vadd.f32 %v1495, %v1674
      %v1676 = vpop.f32.mrb[0].mxu0
      %1677 = vmatprep.mubr.f32.mxu0 0.0
      %1678 = vmatmul.mubr.f32.gmra.mrb[0].mxu0 %v1537
      %v1679 = vpop.f32.mrb[0].mxu0
      %v1680 = vadd.f32 %v1495, %v1679
      %v1681 = vpop.f32.mrb[0].mxu0
      %1682 = vmatprep.mubr.f32.mxu0 0.0
      %1683 = vmatmul.mubr.f32.gmra.mrb[0].mxu0 %v1540
      %v1684 = vpop.f32.mrb[0].mxu0
      %v1685 = vadd.f32 %v1495, %v1684
      %v1686 = vpop.f32.mrb[0].mxu0
      %1687 = vmatprep.mubr.f32.mxu0 0.0
      %1688 = vmatmul.mubr.f32.gmra.mrb[0].mxu0 %v1543
      %v1689 = vpop.f32.mrb[0].mxu0
      %v1690 = vadd.f32 %v1495, %v1689
      %v1691 = vpop.f32.mrb[0].mxu0
      %1692 = vdwg.mxu0
      %v1693 = vxor.u32 %v1615, 2147483648
      %v1694 = vxor.u32 %v1620, 2147483648
      %v1695 = vxor.u32 %v1625, 2147483648
      %v1696 = vxor.u32 %v1630, 2147483648
      %v1697 = vxor.u32 %v1635, 2147483648
      %v1698 = vxor.u32 %v1640, 2147483648
      %v1699 = vxor.u32 %v1645, 2147483648
      %v1700 = vxor.u32 %v1650, 2147483648
      %v1701 = vxor.u32 %v1655, 2147483648
      %v1702 = vxor.u32 %v1660, 2147483648
      %v1703 = vxor.u32 %v1665, 2147483648
      %v1704 = vxor.u32 %v1670, 2147483648
      %v1705 = vxor.u32 %v1675, 2147483648
      %v1706 = vxor.u32 %v1680, 2147483648
      %v1707 = vxor.u32 %v1685, 2147483648
      %v1708 = vxor.u32 %v1690, 2147483648
      %v1709 = vmul.f32 %v1693, 1.442695
      %v1710 = vpow.pop %v1709
      %v1711 = vmul.f32 %v1694, 1.442695
      %v1712 = vpow.pop %v1711
      %v1713 = vmul.f32 %v1695, 1.442695
      %v1714 = vpow.pop %v1713
      %v1715 = vmul.f32 %v1696, 1.442695
      %v1716 = vpow.pop %v1715
      %v1717 = vmul.f32 %v1697, 1.442695
      %v1718 = vpow.pop %v1717
      %v1719 = vmul.f32 %v1698, 1.442695
      %v1720 = vpow.pop %v1719
      %v1721 = vmul.f32 %v1699, 1.442695
      %v1722 = vpow.pop %v1721
      %v1723 = vmul.f32 %v1700, 1.442695
      %v1724 = vpow.pop %v1723
      %v1725 = vmul.f32 %v1701, 1.442695
      %v1726 = vpow.pop %v1725
      %v1727 = vmul.f32 %v1702, 1.442695
      %v1728 = vpow.pop %v1727
      %v1729 = vmul.f32 %v1703, 1.442695
      %v1730 = vpow.pop %v1729
      %v1731 = vmul.f32 %v1704, 1.442695
      %v1732 = vpow.pop %v1731
      %v1733 = vmul.f32 %v1705, 1.442695
      %v1734 = vpow.pop %v1733
      %v1735 = vmul.f32 %v1706, 1.442695
      %v1736 = vpow.pop %v1735
      %v1737 = vmul.f32 %v1707, 1.442695
      %v1738 = vpow.pop %v1737
      %v1739 = vmul.f32 %v1708, 1.442695
      %v1740 = vpow.pop %v1739
      %v1741 = vadd.f32 %v1710, 1.0
      %v1742 = vadd.f32 %v1712, 1.0
      %v1743 = vadd.f32 %v1714, 1.0
      %v1744 = vadd.f32 %v1716, 1.0
      %v1745 = vadd.f32 %v1718, 1.0
      %v1746 = vadd.f32 %v1720, 1.0
      %v1747 = vadd.f32 %v1722, 1.0
      %v1748 = vadd.f32 %v1724, 1.0
      %v1749 = vadd.f32 %v1726, 1.0
      %v1750 = vadd.f32 %v1728, 1.0
      %v1751 = vadd.f32 %v1730, 1.0
      %v1752 = vadd.f32 %v1732, 1.0
      %v1753 = vadd.f32 %v1734, 1.0
      %v1754 = vadd.f32 %v1736, 1.0
      %v1755 = vadd.f32 %v1738, 1.0
      %v1756 = vadd.f32 %v1740, 1.0
      %v1757 = vrcp.pop %v1741
      %v1758 = vmul.f32 1.0, %v1757
      %v1759 = vrcp.pop %v1742
      %v1760 = vmul.f32 1.0, %v1759
      %v1761 = vrcp.pop %v1743
      %v1762 = vmul.f32 1.0, %v1761
      %v1763 = vrcp.pop %v1744
      %v1764 = vmul.f32 1.0, %v1763
      %v1765 = vrcp.pop %v1745
      %v1766 = vmul.f32 1.0, %v1765
      %v1767 = vrcp.pop %v1746
      %v1768 = vmul.f32 1.0, %v1767
      %v1769 = vrcp.pop %v1747
      %v1770 = vmul.f32 1.0, %v1769
      %v1771 = vrcp.pop %v1748
      %v1772 = vmul.f32 1.0, %v1771
      %v1773 = vrcp.pop %v1749
      %v1774 = vmul.f32 1.0, %v1773
      %v1775 = vrcp.pop %v1750
      %v1776 = vmul.f32 1.0, %v1775
      %v1777 = vrcp.pop %v1751
      %v1778 = vmul.f32 1.0, %v1777
      %v1779 = vrcp.pop %v1752
      %v1780 = vmul.f32 1.0, %v1779
      %v1781 = vrcp.pop %v1753
      %v1782 = vmul.f32 1.0, %v1781
      %v1783 = vrcp.pop %v1754
      %v1784 = vmul.f32 1.0, %v1783
      %v1785 = vrcp.pop %v1755
      %v1786 = vmul.f32 1.0, %v1785
      %v1787 = vrcp.pop %v1756
      %v1788 = vmul.f32 1.0, %v1787
      %v1789 = vmul.f32 %v1615, %v1758
      %v1790 = vmul.f32 %v1620, %v1760
      %v1791 = vmul.f32 %v1625, %v1762
      %v1792 = vmul.f32 %v1630, %v1764
      %v1793 = vmul.f32 %v1635, %v1766
      %v1794 = vmul.f32 %v1640, %v1768
      %v1795 = vmul.f32 %v1645, %v1770
      %v1796 = vmul.f32 %v1650, %v1772
      %v1797 = vmul.f32 %v1655, %v1774
      %v1798 = vmul.f32 %v1660, %v1776
      %v1799 = vmul.f32 %v1665, %v1778
      %v1800 = vmul.f32 %v1670, %v1780
      %v1801 = vmul.f32 %v1675, %v1782
      %v1802 = vmul.f32 %v1680, %v1784
      %v1803 = vmul.f32 %v1685, %v1786
      %v1804 = vmul.f32 %v1690, %v1788
      %v1805 = vlaneseq
      %v1806 = vshrl.u32 %v1805, 7
      %v1807 = vsub.s32 0, %v1806
      %v1808 = vrot.slane %v279, %v1807
      %1810 = vbcast.lane.b32.xlu0 %v1808, 256
      %v1811 = vpop.permute.xlu0 %1810
      %v1812 = vlaneseq
      %v1813 = vshrl.u32 %v1812, 7
      %v1814 = vsub.s32 1, %v1813
      %v1815 = vrot.slane %v279, %v1814
      %1817 = vbcast.lane.b32.xlu0 %v1815, 256
      %v1818 = vpop.permute.xlu0 %1817
      %v1819 = vlaneseq
      %v1820 = vshrl.u32 %v1819, 7
      %v1821 = vsub.s32 2, %v1820
      %v1822 = vrot.slane %v279, %v1821
      %1824 = vbcast.lane.b32.xlu0 %v1822, 256
      %v1825 = vpop.permute.xlu0 %1824
      %v1826 = vlaneseq
      %v1827 = vshrl.u32 %v1826, 7
      %v1828 = vsub.s32 3, %v1827
      %v1829 = vrot.slane %v279, %v1828
      %1831 = vbcast.lane.b32.xlu0 %v1829, 256
      %v1832 = vpop.permute.xlu0 %1831
      %v1833 = vlaneseq
      %v1834 = vshrl.u32 %v1833, 7
      %v1835 = vsub.s32 4, %v1834
      %v1836 = vrot.slane %v279, %v1835
      %1838 = vbcast.lane.b32.xlu0 %v1836, 256
      %v1839 = vpop.permute.xlu0 %1838
      %v1840 = vlaneseq
      %v1841 = vshrl.u32 %v1840, 7
      %v1842 = vsub.s32 5, %v1841
      %v1843 = vrot.slane %v279, %v1842
      %1845 = vbcast.lane.b32.xlu0 %v1843, 256
      %v1846 = vpop.permute.xlu0 %1845
      %v1847 = vlaneseq
      %v1848 = vshrl.u32 %v1847, 7
      %v1849 = vsub.s32 6, %v1848
      %v1850 = vrot.slane %v279, %v1849
      %1852 = vbcast.lane.b32.xlu0 %v1850, 256
      %v1853 = vpop.permute.xlu0 %1852
      %v1854 = vlaneseq
      %v1855 = vshrl.u32 %v1854, 7
      %v1856 = vsub.s32 7, %v1855
      %v1857 = vrot.slane %v279, %v1856
      %1859 = vbcast.lane.b32.xlu0 %v1857, 256
      %v1860 = vpop.permute.xlu0 %1859
      %v1861 = vlaneseq
      %v1862 = vshrl.u32 %v1861, 7
      %v1863 = vsub.s32 0, %v1862
      %v1864 = vrot.slane %v280, %v1863
      %1866 = vbcast.lane.b32.xlu0 %v1864, 256
      %v1867 = vpop.permute.xlu0 %1866
      %v1868 = vlaneseq
      %v1869 = vshrl.u32 %v1868, 7
      %v1870 = vsub.s32 1, %v1869
      %v1871 = vrot.slane %v280, %v1870
      %1873 = vbcast.lane.b32.xlu0 %v1871, 256
      %v1874 = vpop.permute.xlu0 %1873
      %v1875 = vlaneseq
      %v1876 = vshrl.u32 %v1875, 7
      %v1877 = vsub.s32 2, %v1876
      %v1878 = vrot.slane %v280, %v1877
      %1880 = vbcast.lane.b32.xlu0 %v1878, 256
      %v1881 = vpop.permute.xlu0 %1880
      %v1882 = vlaneseq
      %v1883 = vshrl.u32 %v1882, 7
      %v1884 = vsub.s32 3, %v1883
      %v1885 = vrot.slane %v280, %v1884
      %1887 = vbcast.lane.b32.xlu0 %v1885, 256
      %v1888 = vpop.permute.xlu0 %1887
      %v1889 = vlaneseq
      %v1890 = vshrl.u32 %v1889, 7
      %v1891 = vsub.s32 4, %v1890
      %v1892 = vrot.slane %v280, %v1891
      %1894 = vbcast.lane.b32.xlu0 %v1892, 256
      %v1895 = vpop.permute.xlu0 %1894
      %v1896 = vlaneseq
      %v1897 = vshrl.u32 %v1896, 7
      %v1898 = vsub.s32 5, %v1897
      %v1899 = vrot.slane %v280, %v1898
      %1901 = vbcast.lane.b32.xlu0 %v1899, 256
      %v1902 = vpop.permute.xlu0 %1901
      %v1903 = vlaneseq
      %v1904 = vshrl.u32 %v1903, 7
      %v1905 = vsub.s32 6, %v1904
      %v1906 = vrot.slane %v280, %v1905
      %1908 = vbcast.lane.b32.xlu0 %v1906, 256
      %v1909 = vpop.permute.xlu0 %1908
      %v1910 = vlaneseq
      %v1911 = vshrl.u32 %v1910, 7
      %v1912 = vsub.s32 7, %v1911
      %v1913 = vrot.slane %v280, %v1912
      %1915 = vbcast.lane.b32.xlu0 %v1913, 256
      %v1916 = vpop.permute.xlu0 %1915
      %v1917 = vlaneseq
      %v1918 = vshrl.u32 %v1917, 7
      %v1919 = vsub.s32 0, %v1918
      %v1920 = vrot.slane %v281, %v1919
      %1922 = vbcast.lane.b32.xlu0 %v1920, 256
      %v1923 = vpop.permute.xlu0 %1922
      %v1924 = vlaneseq
      %v1925 = vshrl.u32 %v1924, 7
      %v1926 = vsub.s32 1, %v1925
      %v1927 = vrot.slane %v281, %v1926
      %1929 = vbcast.lane.b32.xlu0 %v1927, 256
      %v1930 = vpop.permute.xlu0 %1929
      %v1931 = vlaneseq
      %v1932 = vshrl.u32 %v1931, 7
      %v1933 = vsub.s32 2, %v1932
      %v1934 = vrot.slane %v281, %v1933
      %1936 = vbcast.lane.b32.xlu0 %v1934, 256
      %v1937 = vpop.permute.xlu0 %1936
      %v1938 = vlaneseq
      %v1939 = vshrl.u32 %v1938, 7
      %v1940 = vsub.s32 3, %v1939
      %v1941 = vrot.slane %v281, %v1940
      %1943 = vbcast.lane.b32.xlu0 %v1941, 256
      %v1944 = vpop.permute.xlu0 %1943
      %v1945 = vlaneseq
      %v1946 = vshrl.u32 %v1945, 7
      %v1947 = vsub.s32 4, %v1946
      %v1948 = vrot.slane %v281, %v1947
      %1950 = vbcast.lane.b32.xlu0 %v1948, 256
      %v1951 = vpop.permute.xlu0 %1950
      %v1952 = vlaneseq
      %v1953 = vshrl.u32 %v1952, 7
      %v1954 = vsub.s32 5, %v1953
      %v1955 = vrot.slane %v281, %v1954
      %1957 = vbcast.lane.b32.xlu0 %v1955, 256
      %v1958 = vpop.permute.xlu0 %1957
      %v1959 = vlaneseq
      %v1960 = vshrl.u32 %v1959, 7
      %v1961 = vsub.s32 6, %v1960
      %v1962 = vrot.slane %v281, %v1961
      %1964 = vbcast.lane.b32.xlu0 %v1962, 256
      %v1965 = vpop.permute.xlu0 %1964
      %v1966 = vlaneseq
      %v1967 = vshrl.u32 %v1966, 7
      %v1968 = vsub.s32 7, %v1967
      %v1969 = vrot.slane %v281, %v1968
      %1971 = vbcast.lane.b32.xlu0 %v1969, 256
      %v1972 = vpop.permute.xlu0 %1971
      %v1973 = vlaneseq
      %v1974 = vshrl.u32 %v1973, 7
      %v1975 = vsub.s32 0, %v1974
      %v1976 = vrot.slane %v282, %v1975
      %1978 = vbcast.lane.b32.xlu0 %v1976, 256
      %v1979 = vpop.permute.xlu0 %1978
      %v1980 = vlaneseq
      %v1981 = vshrl.u32 %v1980, 7
      %v1982 = vsub.s32 1, %v1981
      %v1983 = vrot.slane %v282, %v1982
      %1985 = vbcast.lane.b32.xlu0 %v1983, 256
      %v1986 = vpop.permute.xlu0 %1985
      %v1987 = vlaneseq
      %v1988 = vshrl.u32 %v1987, 7
      %v1989 = vsub.s32 2, %v1988
      %v1990 = vrot.slane %v282, %v1989
      %1992 = vbcast.lane.b32.xlu0 %v1990, 256
      %v1993 = vpop.permute.xlu0 %1992
      %v1994 = vlaneseq
      %v1995 = vshrl.u32 %v1994, 7
      %v1996 = vsub.s32 3, %v1995
      %v1997 = vrot.slane %v282, %v1996
      %1999 = vbcast.lane.b32.xlu0 %v1997, 256
      %v2000 = vpop.permute.xlu0 %1999
      %v2001 = vlaneseq
      %v2002 = vshrl.u32 %v2001, 7
      %v2003 = vsub.s32 4, %v2002
      %v2004 = vrot.slane %v282, %v2003
      %2006 = vbcast.lane.b32.xlu0 %v2004, 256
      %v2007 = vpop.permute.xlu0 %2006
      %v2008 = vlaneseq
      %v2009 = vshrl.u32 %v2008, 7
      %v2010 = vsub.s32 5, %v2009
      %v2011 = vrot.slane %v282, %v2010
      %2013 = vbcast.lane.b32.xlu0 %v2011, 256
      %v2014 = vpop.permute.xlu0 %2013
      %v2015 = vlaneseq
      %v2016 = vshrl.u32 %v2015, 7
      %v2017 = vsub.s32 6, %v2016
      %v2018 = vrot.slane %v282, %v2017
      %2020 = vbcast.lane.b32.xlu0 %v2018, 256
      %v2021 = vpop.permute.xlu0 %2020
      %v2022 = vlaneseq
      %v2023 = vshrl.u32 %v2022, 7
      %v2024 = vsub.s32 7, %v2023
      %v2025 = vrot.slane %v282, %v2024
      %2027 = vbcast.lane.b32.xlu0 %v2025, 256
      %v2028 = vpop.permute.xlu0 %2027
      %v2029 = vlaneseq
      %v2030 = vshrl.u32 %v2029, 7
      %v2031 = vsub.s32 0, %v2030
      %v2032 = vrot.slane %v283, %v2031
      %2034 = vbcast.lane.b32.xlu0 %v2032, 256
      %v2035 = vpop.permute.xlu0 %2034
      %v2036 = vlaneseq
      %v2037 = vshrl.u32 %v2036, 7
      %v2038 = vsub.s32 1, %v2037
      %v2039 = vrot.slane %v283, %v2038
      %2041 = vbcast.lane.b32.xlu0 %v2039, 256
      %v2042 = vpop.permute.xlu0 %2041
      %v2043 = vlaneseq
      %v2044 = vshrl.u32 %v2043, 7
      %v2045 = vsub.s32 2, %v2044
      %v2046 = vrot.slane %v283, %v2045
      %2048 = vbcast.lane.b32.xlu0 %v2046, 256
      %v2049 = vpop.permute.xlu0 %2048
      %v2050 = vlaneseq
      %v2051 = vshrl.u32 %v2050, 7
      %v2052 = vsub.s32 3, %v2051
      %v2053 = vrot.slane %v283, %v2052
      %2055 = vbcast.lane.b32.xlu0 %v2053, 256
      %v2056 = vpop.permute.xlu0 %2055
      %v2057 = vlaneseq
      %v2058 = vshrl.u32 %v2057, 7
      %v2059 = vsub.s32 4, %v2058
      %v2060 = vrot.slane %v283, %v2059
      %2062 = vbcast.lane.b32.xlu0 %v2060, 256
      %v2063 = vpop.permute.xlu0 %2062
      %v2064 = vlaneseq
      %v2065 = vshrl.u32 %v2064, 7
      %v2066 = vsub.s32 5, %v2065
      %v2067 = vrot.slane %v283, %v2066
      %2069 = vbcast.lane.b32.xlu0 %v2067, 256
      %v2070 = vpop.permute.xlu0 %2069
      %v2071 = vlaneseq
      %v2072 = vshrl.u32 %v2071, 7
      %v2073 = vsub.s32 6, %v2072
      %v2074 = vrot.slane %v283, %v2073
      %2076 = vbcast.lane.b32.xlu0 %v2074, 256
      %v2077 = vpop.permute.xlu0 %2076
      %v2078 = vlaneseq
      %v2079 = vshrl.u32 %v2078, 7
      %v2080 = vsub.s32 7, %v2079
      %v2081 = vrot.slane %v283, %v2080
      %2083 = vbcast.lane.b32.xlu0 %v2081, 256
      %v2084 = vpop.permute.xlu0 %2083
      %v2085 = vlaneseq
      %v2086 = vshrl.u32 %v2085, 7
      %v2087 = vsub.s32 0, %v2086
      %v2088 = vrot.slane %v284, %v2087
      %2090 = vbcast.lane.b32.xlu0 %v2088, 256
      %v2091 = vpop.permute.xlu0 %2090
      %v2092 = vlaneseq
      %v2093 = vshrl.u32 %v2092, 7
      %v2094 = vsub.s32 1, %v2093
      %v2095 = vrot.slane %v284, %v2094
      %2097 = vbcast.lane.b32.xlu0 %v2095, 256
      %v2098 = vpop.permute.xlu0 %2097
      %v2099 = vlaneseq
      %v2100 = vshrl.u32 %v2099, 7
      %v2101 = vsub.s32 2, %v2100
      %v2102 = vrot.slane %v284, %v2101
      %2104 = vbcast.lane.b32.xlu0 %v2102, 256
      %v2105 = vpop.permute.xlu0 %2104
      %v2106 = vlaneseq
      %v2107 = vshrl.u32 %v2106, 7
      %v2108 = vsub.s32 3, %v2107
      %v2109 = vrot.slane %v284, %v2108
      %2111 = vbcast.lane.b32.xlu0 %v2109, 256
      %v2112 = vpop.permute.xlu0 %2111
      %v2113 = vlaneseq
      %v2114 = vshrl.u32 %v2113, 7
      %v2115 = vsub.s32 4, %v2114
      %v2116 = vrot.slane %v284, %v2115
      %2118 = vbcast.lane.b32.xlu0 %v2116, 256
      %v2119 = vpop.permute.xlu0 %2118
      %v2120 = vlaneseq
      %v2121 = vshrl.u32 %v2120, 7
      %v2122 = vsub.s32 5, %v2121
      %v2123 = vrot.slane %v284, %v2122
      %2125 = vbcast.lane.b32.xlu0 %v2123, 256
      %v2126 = vpop.permute.xlu0 %2125
      %v2127 = vlaneseq
      %v2128 = vshrl.u32 %v2127, 7
      %v2129 = vsub.s32 6, %v2128
      %v2130 = vrot.slane %v284, %v2129
      %2132 = vbcast.lane.b32.xlu0 %v2130, 256
      %v2133 = vpop.permute.xlu0 %2132
      %v2134 = vlaneseq
      %v2135 = vshrl.u32 %v2134, 7
      %v2136 = vsub.s32 7, %v2135
      %v2137 = vrot.slane %v284, %v2136
      %2139 = vbcast.lane.b32.xlu0 %v2137, 256
      %v2140 = vpop.permute.xlu0 %2139
      %v2141 = vlaneseq
      %v2142 = vshrl.u32 %v2141, 7
      %v2143 = vsub.s32 0, %v2142
      %v2144 = vrot.slane %v285, %v2143
      %2146 = vbcast.lane.b32.xlu0 %v2144, 256
      %v2147 = vpop.permute.xlu0 %2146
      %v2148 = vlaneseq
      %v2149 = vshrl.u32 %v2148, 7
      %v2150 = vsub.s32 1, %v2149
      %v2151 = vrot.slane %v285, %v2150
      %2153 = vbcast.lane.b32.xlu0 %v2151, 256
      %v2154 = vpop.permute.xlu0 %2153
      %v2155 = vlaneseq
      %v2156 = vshrl.u32 %v2155, 7
      %v2157 = vsub.s32 2, %v2156
      %v2158 = vrot.slane %v285, %v2157
      %2160 = vbcast.lane.b32.xlu0 %v2158, 256
      %v2161 = vpop.permute.xlu0 %2160
      %v2162 = vlaneseq
      %v2163 = vshrl.u32 %v2162, 7
      %v2164 = vsub.s32 3, %v2163
      %v2165 = vrot.slane %v285, %v2164
      %2167 = vbcast.lane.b32.xlu0 %v2165, 256
      %v2168 = vpop.permute.xlu0 %2167
      %v2169 = vlaneseq
      %v2170 = vshrl.u32 %v2169, 7
      %v2171 = vsub.s32 4, %v2170
      %v2172 = vrot.slane %v285, %v2171
      %2174 = vbcast.lane.b32.xlu0 %v2172, 256
      %v2175 = vpop.permute.xlu0 %2174
      %v2176 = vlaneseq
      %v2177 = vshrl.u32 %v2176, 7
      %v2178 = vsub.s32 5, %v2177
      %v2179 = vrot.slane %v285, %v2178
      %2181 = vbcast.lane.b32.xlu0 %v2179, 256
      %v2182 = vpop.permute.xlu0 %2181
      %v2183 = vlaneseq
      %v2184 = vshrl.u32 %v2183, 7
      %v2185 = vsub.s32 6, %v2184
      %v2186 = vrot.slane %v285, %v2185
      %2188 = vbcast.lane.b32.xlu0 %v2186, 256
      %v2189 = vpop.permute.xlu0 %2188
      %v2190 = vlaneseq
      %v2191 = vshrl.u32 %v2190, 7
      %v2192 = vsub.s32 7, %v2191
      %v2193 = vrot.slane %v285, %v2192
      %2195 = vbcast.lane.b32.xlu0 %v2193, 256
      %v2196 = vpop.permute.xlu0 %2195
      %v2197 = vlaneseq
      %v2198 = vshrl.u32 %v2197, 7
      %v2199 = vsub.s32 0, %v2198
      %v2200 = vrot.slane %v286, %v2199
      %2202 = vbcast.lane.b32.xlu0 %v2200, 256
      %v2203 = vpop.permute.xlu0 %2202
      %v2204 = vlaneseq
      %v2205 = vshrl.u32 %v2204, 7
      %v2206 = vsub.s32 1, %v2205
      %v2207 = vrot.slane %v286, %v2206
      %2209 = vbcast.lane.b32.xlu0 %v2207, 256
      %v2210 = vpop.permute.xlu0 %2209
      %v2211 = vlaneseq
      %v2212 = vshrl.u32 %v2211, 7
      %v2213 = vsub.s32 2, %v2212
      %v2214 = vrot.slane %v286, %v2213
      %2216 = vbcast.lane.b32.xlu0 %v2214, 256
      %v2217 = vpop.permute.xlu0 %2216
      %v2218 = vlaneseq
      %v2219 = vshrl.u32 %v2218, 7
      %v2220 = vsub.s32 3, %v2219
      %v2221 = vrot.slane %v286, %v2220
      %2223 = vbcast.lane.b32.xlu0 %v2221, 256
      %v2224 = vpop.permute.xlu0 %2223
      %v2225 = vlaneseq
      %v2226 = vshrl.u32 %v2225, 7
      %v2227 = vsub.s32 4, %v2226
      %v2228 = vrot.slane %v286, %v2227
      %2230 = vbcast.lane.b32.xlu0 %v2228, 256
      %v2231 = vpop.permute.xlu0 %2230
      %v2232 = vlaneseq
      %v2233 = vshrl.u32 %v2232, 7
      %v2234 = vsub.s32 5, %v2233
      %v2235 = vrot.slane %v286, %v2234
      %2237 = vbcast.lane.b32.xlu0 %v2235, 256
      %v2238 = vpop.permute.xlu0 %2237
      %v2239 = vlaneseq
      %v2240 = vshrl.u32 %v2239, 7
      %v2241 = vsub.s32 6, %v2240
      %v2242 = vrot.slane %v286, %v2241
      %2244 = vbcast.lane.b32.xlu0 %v2242, 256
      %v2245 = vpop.permute.xlu0 %2244
      %v2246 = vlaneseq
      %v2247 = vshrl.u32 %v2246, 7
      %v2248 = vsub.s32 7, %v2247
      %v2249 = vrot.slane %v286, %v2248
      %2251 = vbcast.lane.b32.xlu0 %v2249, 256
      %v2252 = vpop.permute.xlu0 %2251
      %v2253 = vlaneseq
      %v2254 = vshrl.u32 %v2253, 7
      %v2255 = vsub.s32 0, %v2254
      %v2256 = vrot.slane %v287, %v2255
      %2258 = vbcast.lane.b32.xlu0 %v2256, 256
      %v2259 = vpop.permute.xlu0 %2258
      %v2260 = vlaneseq
      %v2261 = vshrl.u32 %v2260, 7
      %v2262 = vsub.s32 1, %v2261
      %v2263 = vrot.slane %v287, %v2262
      %2265 = vbcast.lane.b32.xlu0 %v2263, 256
      %v2266 = vpop.permute.xlu0 %2265
      %v2267 = vlaneseq
      %v2268 = vshrl.u32 %v2267, 7
      %v2269 = vsub.s32 2, %v2268
      %v2270 = vrot.slane %v287, %v2269
      %2272 = vbcast.lane.b32.xlu0 %v2270, 256
      %v2273 = vpop.permute.xlu0 %2272
      %v2274 = vlaneseq
      %v2275 = vshrl.u32 %v2274, 7
      %v2276 = vsub.s32 3, %v2275
      %v2277 = vrot.slane %v287, %v2276
      %2279 = vbcast.lane.b32.xlu0 %v2277, 256
      %v2280 = vpop.permute.xlu0 %2279
      %v2281 = vlaneseq
      %v2282 = vshrl.u32 %v2281, 7
      %v2283 = vsub.s32 4, %v2282
      %v2284 = vrot.slane %v287, %v2283
      %2286 = vbcast.lane.b32.xlu0 %v2284, 256
      %v2287 = vpop.permute.xlu0 %2286
      %v2288 = vlaneseq
      %v2289 = vshrl.u32 %v2288, 7
      %v2290 = vsub.s32 5, %v2289
      %v2291 = vrot.slane %v287, %v2290
      %2293 = vbcast.lane.b32.xlu0 %v2291, 256
      %v2294 = vpop.permute.xlu0 %2293
      %v2295 = vlaneseq
      %v2296 = vshrl.u32 %v2295, 7
      %v2297 = vsub.s32 6, %v2296
      %v2298 = vrot.slane %v287, %v2297
      %2300 = vbcast.lane.b32.xlu0 %v2298, 256
      %v2301 = vpop.permute.xlu0 %2300
      %v2302 = vlaneseq
      %v2303 = vshrl.u32 %v2302, 7
      %v2304 = vsub.s32 7, %v2303
      %v2305 = vrot.slane %v287, %v2304
      %2307 = vbcast.lane.b32.xlu0 %v2305, 256
      %v2308 = vpop.permute.xlu0 %2307
      %v2309 = vlaneseq
      %v2310 = vshrl.u32 %v2309, 7
      %v2311 = vsub.s32 0, %v2310
      %v2312 = vrot.slane %v288, %v2311
      %2314 = vbcast.lane.b32.xlu0 %v2312, 256
      %v2315 = vpop.permute.xlu0 %2314
      %v2316 = vlaneseq
      %v2317 = vshrl.u32 %v2316, 7
      %v2318 = vsub.s32 1, %v2317
      %v2319 = vrot.slane %v288, %v2318
      %2321 = vbcast.lane.b32.xlu0 %v2319, 256
      %v2322 = vpop.permute.xlu0 %2321
      %v2323 = vlaneseq
      %v2324 = vshrl.u32 %v2323, 7
      %v2325 = vsub.s32 2, %v2324
      %v2326 = vrot.slane %v288, %v2325
      %2328 = vbcast.lane.b32.xlu0 %v2326, 256
      %v2329 = vpop.permute.xlu0 %2328
      %v2330 = vlaneseq
      %v2331 = vshrl.u32 %v2330, 7
      %v2332 = vsub.s32 3, %v2331
      %v2333 = vrot.slane %v288, %v2332
      %2335 = vbcast.lane.b32.xlu0 %v2333, 256
      %v2336 = vpop.permute.xlu0 %2335
      %v2337 = vlaneseq
      %v2338 = vshrl.u32 %v2337, 7
      %v2339 = vsub.s32 4, %v2338
      %v2340 = vrot.slane %v288, %v2339
      %2342 = vbcast.lane.b32.xlu0 %v2340, 256
      %v2343 = vpop.permute.xlu0 %2342
      %v2344 = vlaneseq
      %v2345 = vshrl.u32 %v2344, 7
      %v2346 = vsub.s32 5, %v2345
      %v2347 = vrot.slane %v288, %v2346
      %2349 = vbcast.lane.b32.xlu0 %v2347, 256
      %v2350 = vpop.permute.xlu0 %2349
      %v2351 = vlaneseq
      %v2352 = vshrl.u32 %v2351, 7
      %v2353 = vsub.s32 6, %v2352
      %v2354 = vrot.slane %v288, %v2353
      %2356 = vbcast.lane.b32.xlu0 %v2354, 256
      %v2357 = vpop.permute.xlu0 %2356
      %v2358 = vlaneseq
      %v2359 = vshrl.u32 %v2358, 7
      %v2360 = vsub.s32 7, %v2359
      %v2361 = vrot.slane %v288, %v2360
      %2363 = vbcast.lane.b32.xlu0 %v2361, 256
      %v2364 = vpop.permute.xlu0 %2363
      %v2365 = vlaneseq
      %v2366 = vshrl.u32 %v2365, 7
      %v2367 = vsub.s32 0, %v2366
      %v2368 = vrot.slane %v289, %v2367
      %2370 = vbcast.lane.b32.xlu0 %v2368, 256
      %v2371 = vpop.permute.xlu0 %2370
      %v2372 = vlaneseq
      %v2373 = vshrl.u32 %v2372, 7
      %v2374 = vsub.s32 1, %v2373
      %v2375 = vrot.slane %v289, %v2374
      %2377 = vbcast.lane.b32.xlu0 %v2375, 256
      %v2378 = vpop.permute.xlu0 %2377
      %v2379 = vlaneseq
      %v2380 = vshrl.u32 %v2379, 7
      %v2381 = vsub.s32 2, %v2380
      %v2382 = vrot.slane %v289, %v2381
      %2384 = vbcast.lane.b32.xlu0 %v2382, 256
      %v2385 = vpop.permute.xlu0 %2384
      %v2386 = vlaneseq
      %v2387 = vshrl.u32 %v2386, 7
      %v2388 = vsub.s32 3, %v2387
      %v2389 = vrot.slane %v289, %v2388
      %2391 = vbcast.lane.b32.xlu0 %v2389, 256
      %v2392 = vpop.permute.xlu0 %2391
      %v2393 = vlaneseq
      %v2394 = vshrl.u32 %v2393, 7
      %v2395 = vsub.s32 4, %v2394
      %v2396 = vrot.slane %v289, %v2395
      %2398 = vbcast.lane.b32.xlu0 %v2396, 256
      %v2399 = vpop.permute.xlu0 %2398
      %v2400 = vlaneseq
      %v2401 = vshrl.u32 %v2400, 7
      %v2402 = vsub.s32 5, %v2401
      %v2403 = vrot.slane %v289, %v2402
      %2405 = vbcast.lane.b32.xlu0 %v2403, 256
      %v2406 = vpop.permute.xlu0 %2405
      %v2407 = vlaneseq
      %v2408 = vshrl.u32 %v2407, 7
      %v2409 = vsub.s32 6, %v2408
      %v2410 = vrot.slane %v289, %v2409
      %2412 = vbcast.lane.b32.xlu0 %v2410, 256
      %v2413 = vpop.permute.xlu0 %2412
      %v2414 = vlaneseq
      %v2415 = vshrl.u32 %v2414, 7
      %v2416 = vsub.s32 7, %v2415
      %v2417 = vrot.slane %v289, %v2416
      %2419 = vbcast.lane.b32.xlu0 %v2417, 256
      %v2420 = vpop.permute.xlu0 %2419
      %v2421 = vlaneseq
      %v2422 = vshrl.u32 %v2421, 7
      %v2423 = vsub.s32 0, %v2422
      %v2424 = vrot.slane %v290, %v2423
      %2426 = vbcast.lane.b32.xlu0 %v2424, 256
      %v2427 = vpop.permute.xlu0 %2426
      %v2428 = vlaneseq
      %v2429 = vshrl.u32 %v2428, 7
      %v2430 = vsub.s32 1, %v2429
      %v2431 = vrot.slane %v290, %v2430
      %2433 = vbcast.lane.b32.xlu0 %v2431, 256
      %v2434 = vpop.permute.xlu0 %2433
      %v2435 = vlaneseq
      %v2436 = vshrl.u32 %v2435, 7
      %v2437 = vsub.s32 2, %v2436
      %v2438 = vrot.slane %v290, %v2437
      %2440 = vbcast.lane.b32.xlu0 %v2438, 256
      %v2441 = vpop.permute.xlu0 %2440
      %v2442 = vlaneseq
      %v2443 = vshrl.u32 %v2442, 7
      %v2444 = vsub.s32 3, %v2443
      %v2445 = vrot.slane %v290, %v2444
      %2447 = vbcast.lane.b32.xlu0 %v2445, 256
      %v2448 = vpop.permute.xlu0 %2447
      %v2449 = vlaneseq
      %v2450 = vshrl.u32 %v2449, 7
      %v2451 = vsub.s32 4, %v2450
      %v2452 = vrot.slane %v290, %v2451
      %2454 = vbcast.lane.b32.xlu0 %v2452, 256
      %v2455 = vpop.permute.xlu0 %2454
      %v2456 = vlaneseq
      %v2457 = vshrl.u32 %v2456, 7
      %v2458 = vsub.s32 5, %v2457
      %v2459 = vrot.slane %v290, %v2458
      %2461 = vbcast.lane.b32.xlu0 %v2459, 256
      %v2462 = vpop.permute.xlu0 %2461
      %v2463 = vlaneseq
      %v2464 = vshrl.u32 %v2463, 7
      %v2465 = vsub.s32 6, %v2464
      %v2466 = vrot.slane %v290, %v2465
      %2468 = vbcast.lane.b32.xlu0 %v2466, 256
      %v2469 = vpop.permute.xlu0 %2468
      %v2470 = vlaneseq
      %v2471 = vshrl.u32 %v2470, 7
      %v2472 = vsub.s32 7, %v2471
      %v2473 = vrot.slane %v290, %v2472
      %2475 = vbcast.lane.b32.xlu0 %v2473, 256
      %v2476 = vpop.permute.xlu0 %2475
      %v2477 = vlaneseq
      %v2478 = vshrl.u32 %v2477, 7
      %v2479 = vsub.s32 0, %v2478
      %v2480 = vrot.slane %v291, %v2479
      %2482 = vbcast.lane.b32.xlu0 %v2480, 256
      %v2483 = vpop.permute.xlu0 %2482
      %v2484 = vlaneseq
      %v2485 = vshrl.u32 %v2484, 7
      %v2486 = vsub.s32 1, %v2485
      %v2487 = vrot.slane %v291, %v2486
      %2489 = vbcast.lane.b32.xlu0 %v2487, 256
      %v2490 = vpop.permute.xlu0 %2489
      %v2491 = vlaneseq
      %v2492 = vshrl.u32 %v2491, 7
      %v2493 = vsub.s32 2, %v2492
      %v2494 = vrot.slane %v291, %v2493
      %2496 = vbcast.lane.b32.xlu0 %v2494, 256
      %v2497 = vpop.permute.xlu0 %2496
      %v2498 = vlaneseq
      %v2499 = vshrl.u32 %v2498, 7
      %v2500 = vsub.s32 3, %v2499
      %v2501 = vrot.slane %v291, %v2500
      %2503 = vbcast.lane.b32.xlu0 %v2501, 256
      %v2504 = vpop.permute.xlu0 %2503
      %v2505 = vlaneseq
      %v2506 = vshrl.u32 %v2505, 7
      %v2507 = vsub.s32 4, %v2506
      %v2508 = vrot.slane %v291, %v2507
      %2510 = vbcast.lane.b32.xlu0 %v2508, 256
      %v2511 = vpop.permute.xlu0 %2510
      %v2512 = vlaneseq
      %v2513 = vshrl.u32 %v2512, 7
      %v2514 = vsub.s32 5, %v2513
      %v2515 = vrot.slane %v291, %v2514
      %2517 = vbcast.lane.b32.xlu0 %v2515, 256
      %v2518 = vpop.permute.xlu0 %2517
      %v2519 = vlaneseq
      %v2520 = vshrl.u32 %v2519, 7
      %v2521 = vsub.s32 6, %v2520
      %v2522 = vrot.slane %v291, %v2521
      %2524 = vbcast.lane.b32.xlu0 %v2522, 256
      %v2525 = vpop.permute.xlu0 %2524
      %v2526 = vlaneseq
      %v2527 = vshrl.u32 %v2526, 7
      %v2528 = vsub.s32 7, %v2527
      %v2529 = vrot.slane %v291, %v2528
      %2531 = vbcast.lane.b32.xlu0 %v2529, 256
      %v2532 = vpop.permute.xlu0 %2531
      %v2533 = vlaneseq
      %v2534 = vshrl.u32 %v2533, 7
      %v2535 = vsub.s32 0, %v2534
      %v2536 = vrot.slane %v292, %v2535
      %2538 = vbcast.lane.b32.xlu0 %v2536, 256
      %v2539 = vpop.permute.xlu0 %2538
      %v2540 = vlaneseq
      %v2541 = vshrl.u32 %v2540, 7
      %v2542 = vsub.s32 1, %v2541
      %v2543 = vrot.slane %v292, %v2542
      %2545 = vbcast.lane.b32.xlu0 %v2543, 256
      %v2546 = vpop.permute.xlu0 %2545
      %v2547 = vlaneseq
      %v2548 = vshrl.u32 %v2547, 7
      %v2549 = vsub.s32 2, %v2548
      %v2550 = vrot.slane %v292, %v2549
      %2552 = vbcast.lane.b32.xlu0 %v2550, 256
      %v2553 = vpop.permute.xlu0 %2552
      %v2554 = vlaneseq
      %v2555 = vshrl.u32 %v2554, 7
      %v2556 = vsub.s32 3, %v2555
      %v2557 = vrot.slane %v292, %v2556
      %2559 = vbcast.lane.b32.xlu0 %v2557, 256
      %v2560 = vpop.permute.xlu0 %2559
      %v2561 = vlaneseq
      %v2562 = vshrl.u32 %v2561, 7
      %v2563 = vsub.s32 4, %v2562
      %v2564 = vrot.slane %v292, %v2563
      %2566 = vbcast.lane.b32.xlu0 %v2564, 256
      %v2567 = vpop.permute.xlu0 %2566
      %v2568 = vlaneseq
      %v2569 = vshrl.u32 %v2568, 7
      %v2570 = vsub.s32 5, %v2569
      %v2571 = vrot.slane %v292, %v2570
      %2573 = vbcast.lane.b32.xlu0 %v2571, 256
      %v2574 = vpop.permute.xlu0 %2573
      %v2575 = vlaneseq
      %v2576 = vshrl.u32 %v2575, 7
      %v2577 = vsub.s32 6, %v2576
      %v2578 = vrot.slane %v292, %v2577
      %2580 = vbcast.lane.b32.xlu0 %v2578, 256
      %v2581 = vpop.permute.xlu0 %2580
      %v2582 = vlaneseq
      %v2583 = vshrl.u32 %v2582, 7
      %v2584 = vsub.s32 7, %v2583
      %v2585 = vrot.slane %v292, %v2584
      %2587 = vbcast.lane.b32.xlu0 %v2585, 256
      %v2588 = vpop.permute.xlu0 %2587
      %v2589 = vlaneseq
      %v2590 = vshrl.u32 %v2589, 7
      %v2591 = vsub.s32 0, %v2590
      %v2592 = vrot.slane %v293, %v2591
      %2594 = vbcast.lane.b32.xlu0 %v2592, 256
      %v2595 = vpop.permute.xlu0 %2594
      %v2596 = vlaneseq
      %v2597 = vshrl.u32 %v2596, 7
      %v2598 = vsub.s32 1, %v2597
      %v2599 = vrot.slane %v293, %v2598
      %2601 = vbcast.lane.b32.xlu0 %v2599, 256
      %v2602 = vpop.permute.xlu0 %2601
      %v2603 = vlaneseq
      %v2604 = vshrl.u32 %v2603, 7
      %v2605 = vsub.s32 2, %v2604
      %v2606 = vrot.slane %v293, %v2605
      %2608 = vbcast.lane.b32.xlu0 %v2606, 256
      %v2609 = vpop.permute.xlu0 %2608
      %v2610 = vlaneseq
      %v2611 = vshrl.u32 %v2610, 7
      %v2612 = vsub.s32 3, %v2611
      %v2613 = vrot.slane %v293, %v2612
      %2615 = vbcast.lane.b32.xlu0 %v2613, 256
      %v2616 = vpop.permute.xlu0 %2615
      %v2617 = vlaneseq
      %v2618 = vshrl.u32 %v2617, 7
      %v2619 = vsub.s32 4, %v2618
      %v2620 = vrot.slane %v293, %v2619
      %2622 = vbcast.lane.b32.xlu0 %v2620, 256
      %v2623 = vpop.permute.xlu0 %2622
      %v2624 = vlaneseq
      %v2625 = vshrl.u32 %v2624, 7
      %v2626 = vsub.s32 5, %v2625
      %v2627 = vrot.slane %v293, %v2626
      %2629 = vbcast.lane.b32.xlu0 %v2627, 256
      %v2630 = vpop.permute.xlu0 %2629
      %v2631 = vlaneseq
      %v2632 = vshrl.u32 %v2631, 7
      %v2633 = vsub.s32 6, %v2632
      %v2634 = vrot.slane %v293, %v2633
      %2636 = vbcast.lane.b32.xlu0 %v2634, 256
      %v2637 = vpop.permute.xlu0 %2636
      %v2638 = vlaneseq
      %v2639 = vshrl.u32 %v2638, 7
      %v2640 = vsub.s32 7, %v2639
      %v2641 = vrot.slane %v293, %v2640
      %2643 = vbcast.lane.b32.xlu0 %v2641, 256
      %v2644 = vpop.permute.xlu0 %2643
      %v2645 = vlaneseq
      %v2646 = vshrl.u32 %v2645, 7
      %v2647 = vsub.s32 0, %v2646
      %v2648 = vrot.slane %v294, %v2647
      %2650 = vbcast.lane.b32.xlu0 %v2648, 256
      %v2651 = vpop.permute.xlu0 %2650
      %v2652 = vlaneseq
      %v2653 = vshrl.u32 %v2652, 7
      %v2654 = vsub.s32 1, %v2653
      %v2655 = vrot.slane %v294, %v2654
      %2657 = vbcast.lane.b32.xlu0 %v2655, 256
      %v2658 = vpop.permute.xlu0 %2657
      %v2659 = vlaneseq
      %v2660 = vshrl.u32 %v2659, 7
      %v2661 = vsub.s32 2, %v2660
      %v2662 = vrot.slane %v294, %v2661
      %2664 = vbcast.lane.b32.xlu0 %v2662, 256
      %v2665 = vpop.permute.xlu0 %2664
      %v2666 = vlaneseq
      %v2667 = vshrl.u32 %v2666, 7
      %v2668 = vsub.s32 3, %v2667
      %v2669 = vrot.slane %v294, %v2668
      %2671 = vbcast.lane.b32.xlu0 %v2669, 256
      %v2672 = vpop.permute.xlu0 %2671
      %v2673 = vlaneseq
      %v2674 = vshrl.u32 %v2673, 7
      %v2675 = vsub.s32 4, %v2674
      %v2676 = vrot.slane %v294, %v2675
      %2678 = vbcast.lane.b32.xlu0 %v2676, 256
      %v2679 = vpop.permute.xlu0 %2678
      %v2680 = vlaneseq
      %v2681 = vshrl.u32 %v2680, 7
      %v2682 = vsub.s32 5, %v2681
      %v2683 = vrot.slane %v294, %v2682
      %2685 = vbcast.lane.b32.xlu0 %v2683, 256
      %v2686 = vpop.permute.xlu0 %2685
      %v2687 = vlaneseq
      %v2688 = vshrl.u32 %v2687, 7
      %v2689 = vsub.s32 6, %v2688
      %v2690 = vrot.slane %v294, %v2689
      %2692 = vbcast.lane.b32.xlu0 %v2690, 256
      %v2693 = vpop.permute.xlu0 %2692
      %v2694 = vlaneseq
      %v2695 = vshrl.u32 %v2694, 7
      %v2696 = vsub.s32 7, %v2695
      %v2697 = vrot.slane %v294, %v2696
      %2699 = vbcast.lane.b32.xlu0 %v2697, 256
      %v2700 = vpop.permute.xlu0 %2699
      %v2701 = vlaneseq
      %v2702 = vshrl.u32 %v2701, 7
      %v2703 = vsub.s32 0, %v2702
      %v2704 = vrot.slane %v1789, %v2703
      %2706 = vbcast.lane.b32.xlu0 %v2704, 256
      %v2707 = vpop.permute.xlu0 %2706
      %v2708 = vlaneseq
      %v2709 = vshrl.u32 %v2708, 7
      %v2710 = vsub.s32 1, %v2709
      %v2711 = vrot.slane %v1789, %v2710
      %2713 = vbcast.lane.b32.xlu0 %v2711, 256
      %v2714 = vpop.permute.xlu0 %2713
      %v2715 = vlaneseq
      %v2716 = vshrl.u32 %v2715, 7
      %v2717 = vsub.s32 2, %v2716
      %v2718 = vrot.slane %v1789, %v2717
      %2720 = vbcast.lane.b32.xlu0 %v2718, 256
      %v2721 = vpop.permute.xlu0 %2720
      %v2722 = vlaneseq
      %v2723 = vshrl.u32 %v2722, 7
      %v2724 = vsub.s32 3, %v2723
      %v2725 = vrot.slane %v1789, %v2724
      %2727 = vbcast.lane.b32.xlu0 %v2725, 256
      %v2728 = vpop.permute.xlu0 %2727
      %v2729 = vlaneseq
      %v2730 = vshrl.u32 %v2729, 7
      %v2731 = vsub.s32 4, %v2730
      %v2732 = vrot.slane %v1789, %v2731
      %2734 = vbcast.lane.b32.xlu0 %v2732, 256
      %v2735 = vpop.permute.xlu0 %2734
      %v2736 = vlaneseq
      %v2737 = vshrl.u32 %v2736, 7
      %v2738 = vsub.s32 5, %v2737
      %v2739 = vrot.slane %v1789, %v2738
      %2741 = vbcast.lane.b32.xlu0 %v2739, 256
      %v2742 = vpop.permute.xlu0 %2741
      %v2743 = vlaneseq
      %v2744 = vshrl.u32 %v2743, 7
      %v2745 = vsub.s32 6, %v2744
      %v2746 = vrot.slane %v1789, %v2745
      %2748 = vbcast.lane.b32.xlu0 %v2746, 256
      %v2749 = vpop.permute.xlu0 %2748
      %v2750 = vlaneseq
      %v2751 = vshrl.u32 %v2750, 7
      %v2752 = vsub.s32 7, %v2751
      %v2753 = vrot.slane %v1789, %v2752
      %2755 = vbcast.lane.b32.xlu0 %v2753, 256
      %v2756 = vpop.permute.xlu0 %2755
      %v2757 = vlaneseq
      %v2758 = vshrl.u32 %v2757, 7
      %v2759 = vsub.s32 0, %v2758
      %v2760 = vrot.slane %v1790, %v2759
      %2762 = vbcast.lane.b32.xlu0 %v2760, 256
      %v2763 = vpop.permute.xlu0 %2762
      %v2764 = vlaneseq
      %v2765 = vshrl.u32 %v2764, 7
      %v2766 = vsub.s32 1, %v2765
      %v2767 = vrot.slane %v1790, %v2766
      %2769 = vbcast.lane.b32.xlu0 %v2767, 256
      %v2770 = vpop.permute.xlu0 %2769
      %v2771 = vlaneseq
      %v2772 = vshrl.u32 %v2771, 7
      %v2773 = vsub.s32 2, %v2772
      %v2774 = vrot.slane %v1790, %v2773
      %2776 = vbcast.lane.b32.xlu0 %v2774, 256
      %v2777 = vpop.permute.xlu0 %2776
      %v2778 = vlaneseq
      %v2779 = vshrl.u32 %v2778, 7
      %v2780 = vsub.s32 3, %v2779
      %v2781 = vrot.slane %v1790, %v2780
      %2783 = vbcast.lane.b32.xlu0 %v2781, 256
      %v2784 = vpop.permute.xlu0 %2783
      %v2785 = vlaneseq
      %v2786 = vshrl.u32 %v2785, 7
      %v2787 = vsub.s32 4, %v2786
      %v2788 = vrot.slane %v1790, %v2787
      %2790 = vbcast.lane.b32.xlu0 %v2788, 256
      %v2791 = vpop.permute.xlu0 %2790
      %v2792 = vlaneseq
      %v2793 = vshrl.u32 %v2792, 7
      %v2794 = vsub.s32 5, %v2793
      %v2795 = vrot.slane %v1790, %v2794
      %2797 = vbcast.lane.b32.xlu0 %v2795, 256
      %v2798 = vpop.permute.xlu0 %2797
      %v2799 = vlaneseq
      %v2800 = vshrl.u32 %v2799, 7
      %v2801 = vsub.s32 6, %v2800
      %v2802 = vrot.slane %v1790, %v2801
      %2804 = vbcast.lane.b32.xlu0 %v2802, 256
      %v2805 = vpop.permute.xlu0 %2804
      %v2806 = vlaneseq
      %v2807 = vshrl.u32 %v2806, 7
      %v2808 = vsub.s32 7, %v2807
      %v2809 = vrot.slane %v1790, %v2808
      %2811 = vbcast.lane.b32.xlu0 %v2809, 256
      %v2812 = vpop.permute.xlu0 %2811
      %v2813 = vlaneseq
      %v2814 = vshrl.u32 %v2813, 7
      %v2815 = vsub.s32 0, %v2814
      %v2816 = vrot.slane %v1791, %v2815
      %2818 = vbcast.lane.b32.xlu0 %v2816, 256
      %v2819 = vpop.permute.xlu0 %2818
      %v2820 = vlaneseq
      %v2821 = vshrl.u32 %v2820, 7
      %v2822 = vsub.s32 1, %v2821
      %v2823 = vrot.slane %v1791, %v2822
      %2825 = vbcast.lane.b32.xlu0 %v2823, 256
      %v2826 = vpop.permute.xlu0 %2825
      %v2827 = vlaneseq
      %v2828 = vshrl.u32 %v2827, 7
      %v2829 = vsub.s32 2, %v2828
      %v2830 = vrot.slane %v1791, %v2829
      %2832 = vbcast.lane.b32.xlu0 %v2830, 256
      %v2833 = vpop.permute.xlu0 %2832
      %v2834 = vlaneseq
      %v2835 = vshrl.u32 %v2834, 7
      %v2836 = vsub.s32 3, %v2835
      %v2837 = vrot.slane %v1791, %v2836
      %2839 = vbcast.lane.b32.xlu0 %v2837, 256
      %v2840 = vpop.permute.xlu0 %2839
      %v2841 = vlaneseq
      %v2842 = vshrl.u32 %v2841, 7
      %v2843 = vsub.s32 4, %v2842
      %v2844 = vrot.slane %v1791, %v2843
      %2846 = vbcast.lane.b32.xlu0 %v2844, 256
      %v2847 = vpop.permute.xlu0 %2846
      %v2848 = vlaneseq
      %v2849 = vshrl.u32 %v2848, 7
      %v2850 = vsub.s32 5, %v2849
      %v2851 = vrot.slane %v1791, %v2850
      %2853 = vbcast.lane.b32.xlu0 %v2851, 256
      %v2854 = vpop.permute.xlu0 %2853
      %v2855 = vlaneseq
      %v2856 = vshrl.u32 %v2855, 7
      %v2857 = vsub.s32 6, %v2856
      %v2858 = vrot.slane %v1791, %v2857
      %2860 = vbcast.lane.b32.xlu0 %v2858, 256
      %v2861 = vpop.permute.xlu0 %2860
      %v2862 = vlaneseq
      %v2863 = vshrl.u32 %v2862, 7
      %v2864 = vsub.s32 7, %v2863
      %v2865 = vrot.slane %v1791, %v2864
      %2867 = vbcast.lane.b32.xlu0 %v2865, 256
      %v2868 = vpop.permute.xlu0 %2867
      %v2869 = vlaneseq
      %v2870 = vshrl.u32 %v2869, 7
      %v2871 = vsub.s32 0, %v2870
      %v2872 = vrot.slane %v1792, %v2871
      %2874 = vbcast.lane.b32.xlu0 %v2872, 256
      %v2875 = vpop.permute.xlu0 %2874
      %v2876 = vlaneseq
      %v2877 = vshrl.u32 %v2876, 7
      %v2878 = vsub.s32 1, %v2877
      %v2879 = vrot.slane %v1792, %v2878
      %2881 = vbcast.lane.b32.xlu0 %v2879, 256
      %v2882 = vpop.permute.xlu0 %2881
      %v2883 = vlaneseq
      %v2884 = vshrl.u32 %v2883, 7
      %v2885 = vsub.s32 2, %v2884
      %v2886 = vrot.slane %v1792, %v2885
      %2888 = vbcast.lane.b32.xlu0 %v2886, 256
      %v2889 = vpop.permute.xlu0 %2888
      %v2890 = vlaneseq
      %v2891 = vshrl.u32 %v2890, 7
      %v2892 = vsub.s32 3, %v2891
      %v2893 = vrot.slane %v1792, %v2892
      %2895 = vbcast.lane.b32.xlu0 %v2893, 256
      %v2896 = vpop.permute.xlu0 %2895
      %v2897 = vlaneseq
      %v2898 = vshrl.u32 %v2897, 7
      %v2899 = vsub.s32 4, %v2898
      %v2900 = vrot.slane %v1792, %v2899
      %2902 = vbcast.lane.b32.xlu0 %v2900, 256
      %v2903 = vpop.permute.xlu0 %2902
      %v2904 = vlaneseq
      %v2905 = vshrl.u32 %v2904, 7
      %v2906 = vsub.s32 5, %v2905
      %v2907 = vrot.slane %v1792, %v2906
      %2909 = vbcast.lane.b32.xlu0 %v2907, 256
      %v2910 = vpop.permute.xlu0 %2909
      %v2911 = vlaneseq
      %v2912 = vshrl.u32 %v2911, 7
      %v2913 = vsub.s32 6, %v2912
      %v2914 = vrot.slane %v1792, %v2913
      %2916 = vbcast.lane.b32.xlu0 %v2914, 256
      %v2917 = vpop.permute.xlu0 %2916
      %v2918 = vlaneseq
      %v2919 = vshrl.u32 %v2918, 7
      %v2920 = vsub.s32 7, %v2919
      %v2921 = vrot.slane %v1792, %v2920
      %2923 = vbcast.lane.b32.xlu0 %v2921, 256
      %v2924 = vpop.permute.xlu0 %2923
      %v2925 = vlaneseq
      %v2926 = vshrl.u32 %v2925, 7
      %v2927 = vsub.s32 0, %v2926
      %v2928 = vrot.slane %v1793, %v2927
      %2930 = vbcast.lane.b32.xlu0 %v2928, 256
      %v2931 = vpop.permute.xlu0 %2930
      %v2932 = vlaneseq
      %v2933 = vshrl.u32 %v2932, 7
      %v2934 = vsub.s32 1, %v2933
      %v2935 = vrot.slane %v1793, %v2934
      %2937 = vbcast.lane.b32.xlu0 %v2935, 256
      %v2938 = vpop.permute.xlu0 %2937
      %v2939 = vlaneseq
      %v2940 = vshrl.u32 %v2939, 7
      %v2941 = vsub.s32 2, %v2940
      %v2942 = vrot.slane %v1793, %v2941
      %2944 = vbcast.lane.b32.xlu0 %v2942, 256
      %v2945 = vpop.permute.xlu0 %2944
      %v2946 = vlaneseq
      %v2947 = vshrl.u32 %v2946, 7
      %v2948 = vsub.s32 3, %v2947
      %v2949 = vrot.slane %v1793, %v2948
      %2951 = vbcast.lane.b32.xlu0 %v2949, 256
      %v2952 = vpop.permute.xlu0 %2951
      %v2953 = vlaneseq
      %v2954 = vshrl.u32 %v2953, 7
      %v2955 = vsub.s32 4, %v2954
      %v2956 = vrot.slane %v1793, %v2955
      %2958 = vbcast.lane.b32.xlu0 %v2956, 256
      %v2959 = vpop.permute.xlu0 %2958
      %v2960 = vlaneseq
      %v2961 = vshrl.u32 %v2960, 7
      %v2962 = vsub.s32 5, %v2961
      %v2963 = vrot.slane %v1793, %v2962
      %2965 = vbcast.lane.b32.xlu0 %v2963, 256
      %v2966 = vpop.permute.xlu0 %2965
      %v2967 = vlaneseq
      %v2968 = vshrl.u32 %v2967, 7
      %v2969 = vsub.s32 6, %v2968
      %v2970 = vrot.slane %v1793, %v2969
      %2972 = vbcast.lane.b32.xlu0 %v2970, 256
      %v2973 = vpop.permute.xlu0 %2972
      %v2974 = vlaneseq
      %v2975 = vshrl.u32 %v2974, 7
      %v2976 = vsub.s32 7, %v2975
      %v2977 = vrot.slane %v1793, %v2976
      %2979 = vbcast.lane.b32.xlu0 %v2977, 256
      %v2980 = vpop.permute.xlu0 %2979
      %v2981 = vlaneseq
      %v2982 = vshrl.u32 %v2981, 7
      %v2983 = vsub.s32 0, %v2982
      %v2984 = vrot.slane %v1794, %v2983
      %2986 = vbcast.lane.b32.xlu0 %v2984, 256
      %v2987 = vpop.permute.xlu0 %2986
      %v2988 = vlaneseq
      %v2989 = vshrl.u32 %v2988, 7
      %v2990 = vsub.s32 1, %v2989
      %v2991 = vrot.slane %v1794, %v2990
      %2993 = vbcast.lane.b32.xlu0 %v2991, 256
      %v2994 = vpop.permute.xlu0 %2993
      %v2995 = vlaneseq
      %v2996 = vshrl.u32 %v2995, 7
      %v2997 = vsub.s32 2, %v2996
      %v2998 = vrot.slane %v1794, %v2997
      %3000 = vbcast.lane.b32.xlu0 %v2998, 256
      %v3001 = vpop.permute.xlu0 %3000
      %v3002 = vlaneseq
      %v3003 = vshrl.u32 %v3002, 7
      %v3004 = vsub.s32 3, %v3003
      %v3005 = vrot.slane %v1794, %v3004
      %3007 = vbcast.lane.b32.xlu0 %v3005, 256
      %v3008 = vpop.permute.xlu0 %3007
      %v3009 = vlaneseq
      %v3010 = vshrl.u32 %v3009, 7
      %v3011 = vsub.s32 4, %v3010
      %v3012 = vrot.slane %v1794, %v3011
      %3014 = vbcast.lane.b32.xlu0 %v3012, 256
      %v3015 = vpop.permute.xlu0 %3014
      %v3016 = vlaneseq
      %v3017 = vshrl.u32 %v3016, 7
      %v3018 = vsub.s32 5, %v3017
      %v3019 = vrot.slane %v1794, %v3018
      %3021 = vbcast.lane.b32.xlu0 %v3019, 256
      %v3022 = vpop.permute.xlu0 %3021
      %v3023 = vlaneseq
      %v3024 = vshrl.u32 %v3023, 7
      %v3025 = vsub.s32 6, %v3024
      %v3026 = vrot.slane %v1794, %v3025
      %3028 = vbcast.lane.b32.xlu0 %v3026, 256
      %v3029 = vpop.permute.xlu0 %3028
      %v3030 = vlaneseq
      %v3031 = vshrl.u32 %v3030, 7
      %v3032 = vsub.s32 7, %v3031
      %v3033 = vrot.slane %v1794, %v3032
      %3035 = vbcast.lane.b32.xlu0 %v3033, 256
      %v3036 = vpop.permute.xlu0 %3035
      %v3037 = vlaneseq
      %v3038 = vshrl.u32 %v3037, 7
      %v3039 = vsub.s32 0, %v3038
      %v3040 = vrot.slane %v1795, %v3039
      %3042 = vbcast.lane.b32.xlu0 %v3040, 256
      %v3043 = vpop.permute.xlu0 %3042
      %v3044 = vlaneseq
      %v3045 = vshrl.u32 %v3044, 7
      %v3046 = vsub.s32 1, %v3045
      %v3047 = vrot.slane %v1795, %v3046
      %3049 = vbcast.lane.b32.xlu0 %v3047, 256
      %v3050 = vpop.permute.xlu0 %3049
      %v3051 = vlaneseq
      %v3052 = vshrl.u32 %v3051, 7
      %v3053 = vsub.s32 2, %v3052
      %v3054 = vrot.slane %v1795, %v3053
      %3056 = vbcast.lane.b32.xlu0 %v3054, 256
      %v3057 = vpop.permute.xlu0 %3056
      %v3058 = vlaneseq
      %v3059 = vshrl.u32 %v3058, 7
      %v3060 = vsub.s32 3, %v3059
      %v3061 = vrot.slane %v1795, %v3060
      %3063 = vbcast.lane.b32.xlu0 %v3061, 256
      %v3064 = vpop.permute.xlu0 %3063
      %v3065 = vlaneseq
      %v3066 = vshrl.u32 %v3065, 7
      %v3067 = vsub.s32 4, %v3066
      %v3068 = vrot.slane %v1795, %v3067
      %3070 = vbcast.lane.b32.xlu0 %v3068, 256
      %v3071 = vpop.permute.xlu0 %3070
      %v3072 = vlaneseq
      %v3073 = vshrl.u32 %v3072, 7
      %v3074 = vsub.s32 5, %v3073
      %v3075 = vrot.slane %v1795, %v3074
      %3077 = vbcast.lane.b32.xlu0 %v3075, 256
      %v3078 = vpop.permute.xlu0 %3077
      %v3079 = vlaneseq
      %v3080 = vshrl.u32 %v3079, 7
      %v3081 = vsub.s32 6, %v3080
      %v3082 = vrot.slane %v1795, %v3081
      %3084 = vbcast.lane.b32.xlu0 %v3082, 256
      %v3085 = vpop.permute.xlu0 %3084
      %v3086 = vlaneseq
      %v3087 = vshrl.u32 %v3086, 7
      %v3088 = vsub.s32 7, %v3087
      %v3089 = vrot.slane %v1795, %v3088
      %3091 = vbcast.lane.b32.xlu0 %v3089, 256
      %v3092 = vpop.permute.xlu0 %3091
      %v3093 = vlaneseq
      %v3094 = vshrl.u32 %v3093, 7
      %v3095 = vsub.s32 0, %v3094
      %v3096 = vrot.slane %v1796, %v3095
      %3098 = vbcast.lane.b32.xlu0 %v3096, 256
      %v3099 = vpop.permute.xlu0 %3098
      %v3100 = vlaneseq
      %v3101 = vshrl.u32 %v3100, 7
      %v3102 = vsub.s32 1, %v3101
      %v3103 = vrot.slane %v1796, %v3102
      %3105 = vbcast.lane.b32.xlu0 %v3103, 256
      %v3106 = vpop.permute.xlu0 %3105
      %v3107 = vlaneseq
      %v3108 = vshrl.u32 %v3107, 7
      %v3109 = vsub.s32 2, %v3108
      %v3110 = vrot.slane %v1796, %v3109
      %3112 = vbcast.lane.b32.xlu0 %v3110, 256
      %v3113 = vpop.permute.xlu0 %3112
      %v3114 = vlaneseq
      %v3115 = vshrl.u32 %v3114, 7
      %v3116 = vsub.s32 3, %v3115
      %v3117 = vrot.slane %v1796, %v3116
      %3119 = vbcast.lane.b32.xlu0 %v3117, 256
      %v3120 = vpop.permute.xlu0 %3119
      %v3121 = vlaneseq
      %v3122 = vshrl.u32 %v3121, 7
      %v3123 = vsub.s32 4, %v3122
      %v3124 = vrot.slane %v1796, %v3123
      %3126 = vbcast.lane.b32.xlu0 %v3124, 256
      %v3127 = vpop.permute.xlu0 %3126
      %v3128 = vlaneseq
      %v3129 = vshrl.u32 %v3128, 7
      %v3130 = vsub.s32 5, %v3129
      %v3131 = vrot.slane %v1796, %v3130
      %3133 = vbcast.lane.b32.xlu0 %v3131, 256
      %v3134 = vpop.permute.xlu0 %3133
      %v3135 = vlaneseq
      %v3136 = vshrl.u32 %v3135, 7
      %v3137 = vsub.s32 6, %v3136
      %v3138 = vrot.slane %v1796, %v3137
      %3140 = vbcast.lane.b32.xlu0 %v3138, 256
      %v3141 = vpop.permute.xlu0 %3140
      %v3142 = vlaneseq
      %v3143 = vshrl.u32 %v3142, 7
      %v3144 = vsub.s32 7, %v3143
      %v3145 = vrot.slane %v1796, %v3144
      %3147 = vbcast.lane.b32.xlu0 %v3145, 256
      %v3148 = vpop.permute.xlu0 %3147
      %v3149 = vlaneseq
      %v3150 = vshrl.u32 %v3149, 7
      %v3151 = vsub.s32 0, %v3150
      %v3152 = vrot.slane %v1797, %v3151
      %3154 = vbcast.lane.b32.xlu0 %v3152, 256
      %v3155 = vpop.permute.xlu0 %3154
      %v3156 = vlaneseq
      %v3157 = vshrl.u32 %v3156, 7
      %v3158 = vsub.s32 1, %v3157
      %v3159 = vrot.slane %v1797, %v3158
      %3161 = vbcast.lane.b32.xlu0 %v3159, 256
      %v3162 = vpop.permute.xlu0 %3161
      %v3163 = vlaneseq
      %v3164 = vshrl.u32 %v3163, 7
      %v3165 = vsub.s32 2, %v3164
      %v3166 = vrot.slane %v1797, %v3165
      %3168 = vbcast.lane.b32.xlu0 %v3166, 256
      %v3169 = vpop.permute.xlu0 %3168
      %v3170 = vlaneseq
      %v3171 = vshrl.u32 %v3170, 7
      %v3172 = vsub.s32 3, %v3171
      %v3173 = vrot.slane %v1797, %v3172
      %3175 = vbcast.lane.b32.xlu0 %v3173, 256
      %v3176 = vpop.permute.xlu0 %3175
      %v3177 = vlaneseq
      %v3178 = vshrl.u32 %v3177, 7
      %v3179 = vsub.s32 4, %v3178
      %v3180 = vrot.slane %v1797, %v3179
      %3182 = vbcast.lane.b32.xlu0 %v3180, 256
      %v3183 = vpop.permute.xlu0 %3182
      %v3184 = vlaneseq
      %v3185 = vshrl.u32 %v3184, 7
      %v3186 = vsub.s32 5, %v3185
      %v3187 = vrot.slane %v1797, %v3186
      %3189 = vbcast.lane.b32.xlu0 %v3187, 256
      %v3190 = vpop.permute.xlu0 %3189
      %v3191 = vlaneseq
      %v3192 = vshrl.u32 %v3191, 7
      %v3193 = vsub.s32 6, %v3192
      %v3194 = vrot.slane %v1797, %v3193
      %3196 = vbcast.lane.b32.xlu0 %v3194, 256
      %v3197 = vpop.permute.xlu0 %3196
      %v3198 = vlaneseq
      %v3199 = vshrl.u32 %v3198, 7
      %v3200 = vsub.s32 7, %v3199
      %v3201 = vrot.slane %v1797, %v3200
      %3203 = vbcast.lane.b32.xlu0 %v3201, 256
      %v3204 = vpop.permute.xlu0 %3203
      %v3205 = vlaneseq
      %v3206 = vshrl.u32 %v3205, 7
      %v3207 = vsub.s32 0, %v3206
      %v3208 = vrot.slane %v1798, %v3207
      %3210 = vbcast.lane.b32.xlu0 %v3208, 256
      %v3211 = vpop.permute.xlu0 %3210
      %v3212 = vlaneseq
      %v3213 = vshrl.u32 %v3212, 7
      %v3214 = vsub.s32 1, %v3213
      %v3215 = vrot.slane %v1798, %v3214
      %3217 = vbcast.lane.b32.xlu0 %v3215, 256
      %v3218 = vpop.permute.xlu0 %3217
      %v3219 = vlaneseq
      %v3220 = vshrl.u32 %v3219, 7
      %v3221 = vsub.s32 2, %v3220
      %v3222 = vrot.slane %v1798, %v3221
      %3224 = vbcast.lane.b32.xlu0 %v3222, 256
      %v3225 = vpop.permute.xlu0 %3224
      %v3226 = vlaneseq
      %v3227 = vshrl.u32 %v3226, 7
      %v3228 = vsub.s32 3, %v3227
      %v3229 = vrot.slane %v1798, %v3228
      %3231 = vbcast.lane.b32.xlu0 %v3229, 256
      %v3232 = vpop.permute.xlu0 %3231
      %v3233 = vlaneseq
      %v3234 = vshrl.u32 %v3233, 7
      %v3235 = vsub.s32 4, %v3234
      %v3236 = vrot.slane %v1798, %v3235
      %3238 = vbcast.lane.b32.xlu0 %v3236, 256
      %v3239 = vpop.permute.xlu0 %3238
      %v3240 = vlaneseq
      %v3241 = vshrl.u32 %v3240, 7
      %v3242 = vsub.s32 5, %v3241
      %v3243 = vrot.slane %v1798, %v3242
      %3245 = vbcast.lane.b32.xlu0 %v3243, 256
      %v3246 = vpop.permute.xlu0 %3245
      %v3247 = vlaneseq
      %v3248 = vshrl.u32 %v3247, 7
      %v3249 = vsub.s32 6, %v3248
      %v3250 = vrot.slane %v1798, %v3249
      %3252 = vbcast.lane.b32.xlu0 %v3250, 256
      %v3253 = vpop.permute.xlu0 %3252
      %v3254 = vlaneseq
      %v3255 = vshrl.u32 %v3254, 7
      %v3256 = vsub.s32 7, %v3255
      %v3257 = vrot.slane %v1798, %v3256
      %3259 = vbcast.lane.b32.xlu0 %v3257, 256
      %v3260 = vpop.permute.xlu0 %3259
      %v3261 = vlaneseq
      %v3262 = vshrl.u32 %v3261, 7
      %v3263 = vsub.s32 0, %v3262
      %v3264 = vrot.slane %v1799, %v3263
      %3266 = vbcast.lane.b32.xlu0 %v3264, 256
      %v3267 = vpop.permute.xlu0 %3266
      %v3268 = vlaneseq
      %v3269 = vshrl.u32 %v3268, 7
      %v3270 = vsub.s32 1, %v3269
      %v3271 = vrot.slane %v1799, %v3270
      %3273 = vbcast.lane.b32.xlu0 %v3271, 256
      %v3274 = vpop.permute.xlu0 %3273
      %v3275 = vlaneseq
      %v3276 = vshrl.u32 %v3275, 7
      %v3277 = vsub.s32 2, %v3276
      %v3278 = vrot.slane %v1799, %v3277
      %3280 = vbcast.lane.b32.xlu0 %v3278, 256
      %v3281 = vpop.permute.xlu0 %3280
      %v3282 = vlaneseq
      %v3283 = vshrl.u32 %v3282, 7
      %v3284 = vsub.s32 3, %v3283
      %v3285 = vrot.slane %v1799, %v3284
      %3287 = vbcast.lane.b32.xlu0 %v3285, 256
      %v3288 = vpop.permute.xlu0 %3287
      %v3289 = vlaneseq
      %v3290 = vshrl.u32 %v3289, 7
      %v3291 = vsub.s32 4, %v3290
      %v3292 = vrot.slane %v1799, %v3291
      %3294 = vbcast.lane.b32.xlu0 %v3292, 256
      %v3295 = vpop.permute.xlu0 %3294
      %v3296 = vlaneseq
      %v3297 = vshrl.u32 %v3296, 7
      %v3298 = vsub.s32 5, %v3297
      %v3299 = vrot.slane %v1799, %v3298
      %3301 = vbcast.lane.b32.xlu0 %v3299, 256
      %v3302 = vpop.permute.xlu0 %3301
      %v3303 = vlaneseq
      %v3304 = vshrl.u32 %v3303, 7
      %v3305 = vsub.s32 6, %v3304
      %v3306 = vrot.slane %v1799, %v3305
      %3308 = vbcast.lane.b32.xlu0 %v3306, 256
      %v3309 = vpop.permute.xlu0 %3308
      %v3310 = vlaneseq
      %v3311 = vshrl.u32 %v3310, 7
      %v3312 = vsub.s32 7, %v3311
      %v3313 = vrot.slane %v1799, %v3312
      %3315 = vbcast.lane.b32.xlu0 %v3313, 256
      %v3316 = vpop.permute.xlu0 %3315
      %v3317 = vlaneseq
      %v3318 = vshrl.u32 %v3317, 7
      %v3319 = vsub.s32 0, %v3318
      %v3320 = vrot.slane %v1800, %v3319
      %3322 = vbcast.lane.b32.xlu0 %v3320, 256
      %v3323 = vpop.permute.xlu0 %3322
      %v3324 = vlaneseq
      %v3325 = vshrl.u32 %v3324, 7
      %v3326 = vsub.s32 1, %v3325
      %v3327 = vrot.slane %v1800, %v3326
      %3329 = vbcast.lane.b32.xlu0 %v3327, 256
      %v3330 = vpop.permute.xlu0 %3329
      %v3331 = vlaneseq
      %v3332 = vshrl.u32 %v3331, 7
      %v3333 = vsub.s32 2, %v3332
      %v3334 = vrot.slane %v1800, %v3333
      %3336 = vbcast.lane.b32.xlu0 %v3334, 256
      %v3337 = vpop.permute.xlu0 %3336
      %v3338 = vlaneseq
      %v3339 = vshrl.u32 %v3338, 7
      %v3340 = vsub.s32 3, %v3339
      %v3341 = vrot.slane %v1800, %v3340
      %3343 = vbcast.lane.b32.xlu0 %v3341, 256
      %v3344 = vpop.permute.xlu0 %3343
      %v3345 = vlaneseq
      %v3346 = vshrl.u32 %v3345, 7
      %v3347 = vsub.s32 4, %v3346
      %v3348 = vrot.slane %v1800, %v3347
      %3350 = vbcast.lane.b32.xlu0 %v3348, 256
      %v3351 = vpop.permute.xlu0 %3350
      %v3352 = vlaneseq
      %v3353 = vshrl.u32 %v3352, 7
      %v3354 = vsub.s32 5, %v3353
      %v3355 = vrot.slane %v1800, %v3354
      %3357 = vbcast.lane.b32.xlu0 %v3355, 256
      %v3358 = vpop.permute.xlu0 %3357
      %v3359 = vlaneseq
      %v3360 = vshrl.u32 %v3359, 7
      %v3361 = vsub.s32 6, %v3360
      %v3362 = vrot.slane %v1800, %v3361
      %3364 = vbcast.lane.b32.xlu0 %v3362, 256
      %v3365 = vpop.permute.xlu0 %3364
      %v3366 = vlaneseq
      %v3367 = vshrl.u32 %v3366, 7
      %v3368 = vsub.s32 7, %v3367
      %v3369 = vrot.slane %v1800, %v3368
      %3371 = vbcast.lane.b32.xlu0 %v3369, 256
      %v3372 = vpop.permute.xlu0 %3371
      %v3373 = vlaneseq
      %v3374 = vshrl.u32 %v3373, 7
      %v3375 = vsub.s32 0, %v3374
      %v3376 = vrot.slane %v1801, %v3375
      %3378 = vbcast.lane.b32.xlu0 %v3376, 256
      %v3379 = vpop.permute.xlu0 %3378
      %v3380 = vlaneseq
      %v3381 = vshrl.u32 %v3380, 7
      %v3382 = vsub.s32 1, %v3381
      %v3383 = vrot.slane %v1801, %v3382
      %3385 = vbcast.lane.b32.xlu0 %v3383, 256
      %v3386 = vpop.permute.xlu0 %3385
      %v3387 = vlaneseq
      %v3388 = vshrl.u32 %v3387, 7
      %v3389 = vsub.s32 2, %v3388
      %v3390 = vrot.slane %v1801, %v3389
      %3392 = vbcast.lane.b32.xlu0 %v3390, 256
      %v3393 = vpop.permute.xlu0 %3392
      %v3394 = vlaneseq
      %v3395 = vshrl.u32 %v3394, 7
      %v3396 = vsub.s32 3, %v3395
      %v3397 = vrot.slane %v1801, %v3396
      %3399 = vbcast.lane.b32.xlu0 %v3397, 256
      %v3400 = vpop.permute.xlu0 %3399
      %v3401 = vlaneseq
      %v3402 = vshrl.u32 %v3401, 7
      %v3403 = vsub.s32 4, %v3402
      %v3404 = vrot.slane %v1801, %v3403
      %3406 = vbcast.lane.b32.xlu0 %v3404, 256
      %v3407 = vpop.permute.xlu0 %3406
      %v3408 = vlaneseq
      %v3409 = vshrl.u32 %v3408, 7
      %v3410 = vsub.s32 5, %v3409
      %v3411 = vrot.slane %v1801, %v3410
      %3413 = vbcast.lane.b32.xlu0 %v3411, 256
      %v3414 = vpop.permute.xlu0 %3413
      %v3415 = vlaneseq
      %v3416 = vshrl.u32 %v3415, 7
      %v3417 = vsub.s32 6, %v3416
      %v3418 = vrot.slane %v1801, %v3417
      %3420 = vbcast.lane.b32.xlu0 %v3418, 256
      %v3421 = vpop.permute.xlu0 %3420
      %v3422 = vlaneseq
      %v3423 = vshrl.u32 %v3422, 7
      %v3424 = vsub.s32 7, %v3423
      %v3425 = vrot.slane %v1801, %v3424
      %3427 = vbcast.lane.b32.xlu0 %v3425, 256
      %v3428 = vpop.permute.xlu0 %3427
      %v3429 = vlaneseq
      %v3430 = vshrl.u32 %v3429, 7
      %v3431 = vsub.s32 0, %v3430
      %v3432 = vrot.slane %v1802, %v3431
      %3434 = vbcast.lane.b32.xlu0 %v3432, 256
      %v3435 = vpop.permute.xlu0 %3434
      %v3436 = vlaneseq
      %v3437 = vshrl.u32 %v3436, 7
      %v3438 = vsub.s32 1, %v3437
      %v3439 = vrot.slane %v1802, %v3438
      %3441 = vbcast.lane.b32.xlu0 %v3439, 256
      %v3442 = vpop.permute.xlu0 %3441
      %v3443 = vlaneseq
      %v3444 = vshrl.u32 %v3443, 7
      %v3445 = vsub.s32 2, %v3444
      %v3446 = vrot.slane %v1802, %v3445
      %3448 = vbcast.lane.b32.xlu0 %v3446, 256
      %v3449 = vpop.permute.xlu0 %3448
      %v3450 = vlaneseq
      %v3451 = vshrl.u32 %v3450, 7
      %v3452 = vsub.s32 3, %v3451
      %v3453 = vrot.slane %v1802, %v3452
      %3455 = vbcast.lane.b32.xlu0 %v3453, 256
      %v3456 = vpop.permute.xlu0 %3455
      %v3457 = vlaneseq
      %v3458 = vshrl.u32 %v3457, 7
      %v3459 = vsub.s32 4, %v3458
      %v3460 = vrot.slane %v1802, %v3459
      %3462 = vbcast.lane.b32.xlu0 %v3460, 256
      %v3463 = vpop.permute.xlu0 %3462
      %v3464 = vlaneseq
      %v3465 = vshrl.u32 %v3464, 7
      %v3466 = vsub.s32 5, %v3465
      %v3467 = vrot.slane %v1802, %v3466
      %3469 = vbcast.lane.b32.xlu0 %v3467, 256
      %v3470 = vpop.permute.xlu0 %3469
      %v3471 = vlaneseq
      %v3472 = vshrl.u32 %v3471, 7
      %v3473 = vsub.s32 6, %v3472
      %v3474 = vrot.slane %v1802, %v3473
      %3476 = vbcast.lane.b32.xlu0 %v3474, 256
      %v3477 = vpop.permute.xlu0 %3476
      %v3478 = vlaneseq
      %v3479 = vshrl.u32 %v3478, 7
      %v3480 = vsub.s32 7, %v3479
      %v3481 = vrot.slane %v1802, %v3480
      %3483 = vbcast.lane.b32.xlu0 %v3481, 256
      %v3484 = vpop.permute.xlu0 %3483
      %v3485 = vlaneseq
      %v3486 = vshrl.u32 %v3485, 7
      %v3487 = vsub.s32 0, %v3486
      %v3488 = vrot.slane %v1803, %v3487
      %3490 = vbcast.lane.b32.xlu0 %v3488, 256
      %v3491 = vpop.permute.xlu0 %3490
      %v3492 = vlaneseq
      %v3493 = vshrl.u32 %v3492, 7
      %v3494 = vsub.s32 1, %v3493
      %v3495 = vrot.slane %v1803, %v3494
      %3497 = vbcast.lane.b32.xlu0 %v3495, 256
      %v3498 = vpop.permute.xlu0 %3497
      %v3499 = vlaneseq
      %v3500 = vshrl.u32 %v3499, 7
      %v3501 = vsub.s32 2, %v3500
      %v3502 = vrot.slane %v1803, %v3501
      %3504 = vbcast.lane.b32.xlu0 %v3502, 256
      %v3505 = vpop.permute.xlu0 %3504
      %v3506 = vlaneseq
      %v3507 = vshrl.u32 %v3506, 7
      %v3508 = vsub.s32 3, %v3507
      %v3509 = vrot.slane %v1803, %v3508
      %3511 = vbcast.lane.b32.xlu0 %v3509, 256
      %v3512 = vpop.permute.xlu0 %3511
      %v3513 = vlaneseq
      %v3514 = vshrl.u32 %v3513, 7
      %v3515 = vsub.s32 4, %v3514
      %v3516 = vrot.slane %v1803, %v3515
      %3518 = vbcast.lane.b32.xlu0 %v3516, 256
      %v3519 = vpop.permute.xlu0 %3518
      %v3520 = vlaneseq
      %v3521 = vshrl.u32 %v3520, 7
      %v3522 = vsub.s32 5, %v3521
      %v3523 = vrot.slane %v1803, %v3522
      %3525 = vbcast.lane.b32.xlu0 %v3523, 256
      %v3526 = vpop.permute.xlu0 %3525
      %v3527 = vlaneseq
      %v3528 = vshrl.u32 %v3527, 7
      %v3529 = vsub.s32 6, %v3528
      %v3530 = vrot.slane %v1803, %v3529
      %3532 = vbcast.lane.b32.xlu0 %v3530, 256
      %v3533 = vpop.permute.xlu0 %3532
      %v3534 = vlaneseq
      %v3535 = vshrl.u32 %v3534, 7
      %v3536 = vsub.s32 7, %v3535
      %v3537 = vrot.slane %v1803, %v3536
      %3539 = vbcast.lane.b32.xlu0 %v3537, 256
      %v3540 = vpop.permute.xlu0 %3539
      %v3541 = vlaneseq
      %v3542 = vshrl.u32 %v3541, 7
      %v3543 = vsub.s32 0, %v3542
      %v3544 = vrot.slane %v1804, %v3543
      %3546 = vbcast.lane.b32.xlu0 %v3544, 256
      %v3547 = vpop.permute.xlu0 %3546
      %v3548 = vlaneseq
      %v3549 = vshrl.u32 %v3548, 7
      %v3550 = vsub.s32 1, %v3549
      %v3551 = vrot.slane %v1804, %v3550
      %3553 = vbcast.lane.b32.xlu0 %v3551, 256
      %v3554 = vpop.permute.xlu0 %3553
      %v3555 = vlaneseq
      %v3556 = vshrl.u32 %v3555, 7
      %v3557 = vsub.s32 2, %v3556
      %v3558 = vrot.slane %v1804, %v3557
      %3560 = vbcast.lane.b32.xlu0 %v3558, 256
      %v3561 = vpop.permute.xlu0 %3560
      %v3562 = vlaneseq
      %v3563 = vshrl.u32 %v3562, 7
      %v3564 = vsub.s32 3, %v3563
      %v3565 = vrot.slane %v1804, %v3564
      %3567 = vbcast.lane.b32.xlu0 %v3565, 256
      %v3568 = vpop.permute.xlu0 %3567
      %v3569 = vlaneseq
      %v3570 = vshrl.u32 %v3569, 7
      %v3571 = vsub.s32 4, %v3570
      %v3572 = vrot.slane %v1804, %v3571
      %3574 = vbcast.lane.b32.xlu0 %v3572, 256
      %v3575 = vpop.permute.xlu0 %3574
      %v3576 = vlaneseq
      %v3577 = vshrl.u32 %v3576, 7
      %v3578 = vsub.s32 5, %v3577
      %v3579 = vrot.slane %v1804, %v3578
      %3581 = vbcast.lane.b32.xlu0 %v3579, 256
      %v3582 = vpop.permute.xlu0 %3581
      %v3583 = vlaneseq
      %v3584 = vshrl.u32 %v3583, 7
      %v3585 = vsub.s32 6, %v3584
      %v3586 = vrot.slane %v1804, %v3585
      %3588 = vbcast.lane.b32.xlu0 %v3586, 256
      %v3589 = vpop.permute.xlu0 %3588
      %v3590 = vlaneseq
      %v3591 = vshrl.u32 %v3590, 7
      %v3592 = vsub.s32 7, %v3591
      %v3593 = vrot.slane %v1804, %v3592
      %3595 = vbcast.lane.b32.xlu0 %v3593, 256
      %v3596 = vpop.permute.xlu0 %3595
      %vm3597 = vcmask 7168
      %v3598 = vsel %vm3597, %v1811, %v2707
      %v3599 = vsel %vm3597, %v1818, %v2714
      %v3600 = vsel %vm3597, %v1825, %v2721
      %v3601 = vsel %vm3597, %v1832, %v2728
      %v3602 = vsel %vm3597, %v1839, %v2735
      %v3603 = vsel %vm3597, %v1846, %v2742
      %v3604 = vsel %vm3597, %v1853, %v2749
      %v3605 = vsel %vm3597, %v1860, %v2756
      %v3606 = vsel %vm3597, %v1867, %v2763
      %v3607 = vsel %vm3597, %v1874, %v2770
      %v3608 = vsel %vm3597, %v1881, %v2777
      %v3609 = vsel %vm3597, %v1888, %v2784
      %v3610 = vsel %vm3597, %v1895, %v2791
      %v3611 = vsel %vm3597, %v1902, %v2798
      %v3612 = vsel %vm3597, %v1909, %v2805
      %v3613 = vsel %vm3597, %v1916, %v2812
      %v3614 = vsel %vm3597, %v1923, %v2819
      %v3615 = vsel %vm3597, %v1930, %v2826
      %v3616 = vsel %vm3597, %v1937, %v2833
      %v3617 = vsel %vm3597, %v1944, %v2840
      %v3618 = vsel %vm3597, %v1951, %v2847
      %v3619 = vsel %vm3597, %v1958, %v2854
      %v3620 = vsel %vm3597, %v1965, %v2861
      %v3621 = vsel %vm3597, %v1972, %v2868
      %v3622 = vsel %vm3597, %v1979, %v2875
      %v3623 = vsel %vm3597, %v1986, %v2882
      %v3624 = vsel %vm3597, %v1993, %v2889
      %v3625 = vsel %vm3597, %v2000, %v2896
      %v3626 = vsel %vm3597, %v2007, %v2903
      %v3627 = vsel %vm3597, %v2014, %v2910
      %v3628 = vsel %vm3597, %v2021, %v2917
      %v3629 = vsel %vm3597, %v2028, %v2924
      %v3630 = vsel %vm3597, %v2035, %v2931
      %v3631 = vsel %vm3597, %v2042, %v2938
      %v3632 = vsel %vm3597, %v2049, %v2945
      %v3633 = vsel %vm3597, %v2056, %v2952
      %v3634 = vsel %vm3597, %v2063, %v2959
      %v3635 = vsel %vm3597, %v2070, %v2966
      %v3636 = vsel %vm3597, %v2077, %v2973
      %v3637 = vsel %vm3597, %v2084, %v2980
      %v3638 = vsel %vm3597, %v2091, %v2987
      %v3639 = vsel %vm3597, %v2098, %v2994
      %v3640 = vsel %vm3597, %v2105, %v3001
      %v3641 = vsel %vm3597, %v2112, %v3008
      %v3642 = vsel %vm3597, %v2119, %v3015
      %v3643 = vsel %vm3597, %v2126, %v3022
      %v3644 = vsel %vm3597, %v2133, %v3029
      %v3645 = vsel %vm3597, %v2140, %v3036
      %v3646 = vsel %vm3597, %v2147, %v3043
      %v3647 = vsel %vm3597, %v2154, %v3050
      %v3648 = vsel %vm3597, %v2161, %v3057
      %v3649 = vsel %vm3597, %v2168, %v3064
      %v3650 = vsel %vm3597, %v2175, %v3071
      %v3651 = vsel %vm3597, %v2182, %v3078
      %v3652 = vsel %vm3597, %v2189, %v3085
      %v3653 = vsel %vm3597, %v2196, %v3092
      %v3654 = vsel %vm3597, %v2203, %v3099
      %v3655 = vsel %vm3597, %v2210, %v3106
      %v3656 = vsel %vm3597, %v2217, %v3113
      %v3657 = vsel %vm3597, %v2224, %v3120
      %v3658 = vsel %vm3597, %v2231, %v3127
      %v3659 = vsel %vm3597, %v2238, %v3134
      %v3660 = vsel %vm3597, %v2245, %v3141
      %v3661 = vsel %vm3597, %v2252, %v3148
      %v3662 = vsel %vm3597, %v2259, %v3155
      %v3663 = vsel %vm3597, %v2266, %v3162
      %v3664 = vsel %vm3597, %v2273, %v3169
      %v3665 = vsel %vm3597, %v2280, %v3176
      %v3666 = vsel %vm3597, %v2287, %v3183
      %v3667 = vsel %vm3597, %v2294, %v3190
      %v3668 = vsel %vm3597, %v2301, %v3197
      %v3669 = vsel %vm3597, %v2308, %v3204
      %v3670 = vsel %vm3597, %v2315, %v3211
      %v3671 = vsel %vm3597, %v2322, %v3218
      %v3672 = vsel %vm3597, %v2329, %v3225
      %v3673 = vsel %vm3597, %v2336, %v3232
      %v3674 = vsel %vm3597, %v2343, %v3239
      %v3675 = vsel %vm3597, %v2350, %v3246
      %v3676 = vsel %vm3597, %v2357, %v3253
      %v3677 = vsel %vm3597, %v2364, %v3260
      %v3678 = vsel %vm3597, %v2371, %v3267
      %v3679 = vsel %vm3597, %v2378, %v3274
      %v3680 = vsel %vm3597, %v2385, %v3281
      %v3681 = vsel %vm3597, %v2392, %v3288
      %v3682 = vsel %vm3597, %v2399, %v3295
      %v3683 = vsel %vm3597, %v2406, %v3302
      %v3684 = vsel %vm3597, %v2413, %v3309
      %v3685 = vsel %vm3597, %v2420, %v3316
      %v3686 = vsel %vm3597, %v2427, %v3323
      %v3687 = vsel %vm3597, %v2434, %v3330
      %v3688 = vsel %vm3597, %v2441, %v3337
      %v3689 = vsel %vm3597, %v2448, %v3344
      %v3690 = vsel %vm3597, %v2455, %v3351
      %v3691 = vsel %vm3597, %v2462, %v3358
      %v3692 = vsel %vm3597, %v2469, %v3365
      %v3693 = vsel %vm3597, %v2476, %v3372
      %v3694 = vsel %vm3597, %v2483, %v3379
      %v3695 = vsel %vm3597, %v2490, %v3386
      %v3696 = vsel %vm3597, %v2497, %v3393
      %v3697 = vsel %vm3597, %v2504, %v3400
      %v3698 = vsel %vm3597, %v2511, %v3407
      %v3699 = vsel %vm3597, %v2518, %v3414
      %v3700 = vsel %vm3597, %v2525, %v3421
      %v3701 = vsel %vm3597, %v2532, %v3428
      %v3702 = vsel %vm3597, %v2539, %v3435
      %v3703 = vsel %vm3597, %v2546, %v3442
      %v3704 = vsel %vm3597, %v2553, %v3449
      %v3705 = vsel %vm3597, %v2560, %v3456
      %v3706 = vsel %vm3597, %v2567, %v3463
      %v3707 = vsel %vm3597, %v2574, %v3470
      %v3708 = vsel %vm3597, %v2581, %v3477
      %v3709 = vsel %vm3597, %v2588, %v3484
      %v3710 = vsel %vm3597, %v2595, %v3491
      %v3711 = vsel %vm3597, %v2602, %v3498
      %v3712 = vsel %vm3597, %v2609, %v3505
      %v3713 = vsel %vm3597, %v2616, %v3512
      %v3714 = vsel %vm3597, %v2623, %v3519
      %v3715 = vsel %vm3597, %v2630, %v3526
      %v3716 = vsel %vm3597, %v2637, %v3533
      %v3717 = vsel %vm3597, %v2644, %v3540
      %v3718 = vsel %vm3597, %v2651, %v3547
      %v3719 = vsel %vm3597, %v2658, %v3554
      %v3720 = vsel %vm3597, %v2665, %v3561
      %v3721 = vsel %vm3597, %v2672, %v3568
      %v3722 = vsel %vm3597, %v2679, %v3575
      %v3723 = vsel %vm3597, %v2686, %v3582
      %v3724 = vsel %vm3597, %v2693, %v3589
      %v3725 = vsel %vm3597, %v2700, %v3596
      %v3726 = vcombine.low %v3598, %v3600
      %v3728 = vunpack.c.l.s4 1983009808
      %v3729 = vunpack.c.0.s8 %v3728
      %v3730 = vlaneseq
      %v3731 = vshrl.u32 %v3730, 7
      %v3732 = vsub.s32 %v3729, %v3731
      %v3733 = vrot.slane %v3726, %v3732
      %v3734 = vcombine.low %v3599, %v3601
      %v3736 = vunpack.c.l.s4 1983009808
      %v3737 = vunpack.c.0.s8 %v3736
      %v3738 = vlaneseq
      %v3739 = vshrl.u32 %v3738, 7
      %v3740 = vsub.s32 %v3737, %v3739
      %v3741 = vrot.slane %v3734, %v3740
      %v3742 = vcombine.low %v3602, %v3604
      %v3744 = vunpack.c.l.s4 1983009808
      %v3745 = vunpack.c.0.s8 %v3744
      %v3746 = vlaneseq
      %v3747 = vshrl.u32 %v3746, 7
      %v3748 = vsub.s32 %v3745, %v3747
      %v3749 = vrot.slane %v3742, %v3748
      %v3750 = vcombine.low %v3603, %v3605
      %v3752 = vunpack.c.l.s4 1983009808
      %v3753 = vunpack.c.0.s8 %v3752
      %v3754 = vlaneseq
      %v3755 = vshrl.u32 %v3754, 7
      %v3756 = vsub.s32 %v3753, %v3755
      %v3757 = vrot.slane %v3750, %v3756
      %v3758 = vcombine.low %v3733, %v3741
      %v3759 = vcombine.high %v3733, %v3741
      %v3761 = vunpack.c.l.s4 1934713408
      %v3762 = vunpack.c.0.s8 %v3761
      %v3763 = vlaneseq
      %v3764 = vshrl.u32 %v3763, 7
      %v3765 = vsub.s32 %v3762, %v3764
      %v3766 = vrot.slane %v3758, %v3765
      %v3768 = vunpack.c.l.s4 1934713408
      %v3769 = vunpack.c.0.s8 %v3768
      %v3770 = vlaneseq
      %v3771 = vshrl.u32 %v3770, 7
      %v3772 = vsub.s32 %v3769, %v3771
      %v3773 = vrot.slane %v3759, %v3772
      %v3774 = vcombine.low %v3749, %v3757
      %v3775 = vcombine.high %v3749, %v3757
      %v3777 = vunpack.c.l.s4 1934713408
      %v3778 = vunpack.c.0.s8 %v3777
      %v3779 = vlaneseq
      %v3780 = vshrl.u32 %v3779, 7
      %v3781 = vsub.s32 %v3778, %v3780
      %v3782 = vrot.slane %v3774, %v3781
      %v3784 = vunpack.c.l.s4 1934713408
      %v3785 = vunpack.c.0.s8 %v3784
      %v3786 = vlaneseq
      %v3787 = vshrl.u32 %v3786, 7
      %v3788 = vsub.s32 %v3785, %v3787
      %v3789 = vrot.slane %v3775, %v3788
      %v3790 = vcombine.low %v3766, %v3782
      %v3791 = vcombine.high %v3766, %v3782
      %v3792 = vcombine.low %v3773, %v3789
      %v3793 = vcombine.high %v3773, %v3789
      %v3794 = vcombine.low %v3606, %v3608
      %v3796 = vunpack.c.l.s4 1983009808
      %v3797 = vunpack.c.0.s8 %v3796
      %v3798 = vlaneseq
      %v3799 = vshrl.u32 %v3798, 7
      %v3800 = vsub.s32 %v3797, %v3799
      %v3801 = vrot.slane %v3794, %v3800
      %v3802 = vcombine.low %v3607, %v3609
      %v3804 = vunpack.c.l.s4 1983009808
      %v3805 = vunpack.c.0.s8 %v3804
      %v3806 = vlaneseq
      %v3807 = vshrl.u32 %v3806, 7
      %v3808 = vsub.s32 %v3805, %v3807
      %v3809 = vrot.slane %v3802, %v3808
      %v3810 = vcombine.low %v3610, %v3612
      %v3812 = vunpack.c.l.s4 1983009808
      %v3813 = vunpack.c.0.s8 %v3812
      %v3814 = vlaneseq
      %v3815 = vshrl.u32 %v3814, 7
      %v3816 = vsub.s32 %v3813, %v3815
      %v3817 = vrot.slane %v3810, %v3816
      %v3818 = vcombine.low %v3611, %v3613
      %v3820 = vunpack.c.l.s4 1983009808
      %v3821 = vunpack.c.0.s8 %v3820
      %v3822 = vlaneseq
      %v3823 = vshrl.u32 %v3822, 7
      %v3824 = vsub.s32 %v3821, %v3823
      %v3825 = vrot.slane %v3818, %v3824
      %v3826 = vcombine.low %v3801, %v3809
      %v3827 = vcombine.high %v3801, %v3809
      %v3829 = vunpack.c.l.s4 1934713408
      %v3830 = vunpack.c.0.s8 %v3829
      %v3831 = vlaneseq
      %v3832 = vshrl.u32 %v3831, 7
      %v3833 = vsub.s32 %v3830, %v3832
      %v3834 = vrot.slane %v3826, %v3833
      %v3836 = vunpack.c.l.s4 1934713408
      %v3837 = vunpack.c.0.s8 %v3836
      %v3838 = vlaneseq
      %v3839 = vshrl.u32 %v3838, 7
      %v3840 = vsub.s32 %v3837, %v3839
      %v3841 = vrot.slane %v3827, %v3840
      %v3842 = vcombine.low %v3817, %v3825
      %v3843 = vcombine.high %v3817, %v3825
      %v3845 = vunpack.c.l.s4 1934713408
      %v3846 = vunpack.c.0.s8 %v3845
      %v3847 = vlaneseq
      %v3848 = vshrl.u32 %v3847, 7
      %v3849 = vsub.s32 %v3846, %v3848
      %v3850 = vrot.slane %v3842, %v3849
      %v3852 = vunpack.c.l.s4 1934713408
      %v3853 = vunpack.c.0.s8 %v3852
      %v3854 = vlaneseq
      %v3855 = vshrl.u32 %v3854, 7
      %v3856 = vsub.s32 %v3853, %v3855
      %v3857 = vrot.slane %v3843, %v3856
      %v3858 = vcombine.low %v3834, %v3850
      %v3859 = vcombine.high %v3834, %v3850
      %v3860 = vcombine.low %v3841, %v3857
      %v3861 = vcombine.high %v3841, %v3857
      %v3862 = vcombine.low %v3614, %v3616
      %v3864 = vunpack.c.l.s4 1983009808
      %v3865 = vunpack.c.0.s8 %v3864
      %v3866 = vlaneseq
      %v3867 = vshrl.u32 %v3866, 7
      %v3868 = vsub.s32 %v3865, %v3867
      %v3869 = vrot.slane %v3862, %v3868
      %v3870 = vcombine.low %v3615, %v3617
      %v3872 = vunpack.c.l.s4 1983009808
      %v3873 = vunpack.c.0.s8 %v3872
      %v3874 = vlaneseq
      %v3875 = vshrl.u32 %v3874, 7
      %v3876 = vsub.s32 %v3873, %v3875
      %v3877 = vrot.slane %v3870, %v3876
      %v3878 = vcombine.low %v3618, %v3620
      %v3880 = vunpack.c.l.s4 1983009808
      %v3881 = vunpack.c.0.s8 %v3880
      %v3882 = vlaneseq
      %v3883 = vshrl.u32 %v3882, 7
      %v3884 = vsub.s32 %v3881, %v3883
      %v3885 = vrot.slane %v3878, %v3884
      %v3886 = vcombine.low %v3619, %v3621
      %v3888 = vunpack.c.l.s4 1983009808
      %v3889 = vunpack.c.0.s8 %v3888
      %v3890 = vlaneseq
      %v3891 = vshrl.u32 %v3890, 7
      %v3892 = vsub.s32 %v3889, %v3891
      %v3893 = vrot.slane %v3886, %v3892
      %v3894 = vcombine.low %v3869, %v3877
      %v3895 = vcombine.high %v3869, %v3877
      %v3897 = vunpack.c.l.s4 1934713408
      %v3898 = vunpack.c.0.s8 %v3897
      %v3899 = vlaneseq
      %v3900 = vshrl.u32 %v3899, 7
      %v3901 = vsub.s32 %v3898, %v3900
      %v3902 = vrot.slane %v3894, %v3901
      %v3904 = vunpack.c.l.s4 1934713408
      %v3905 = vunpack.c.0.s8 %v3904
      %v3906 = vlaneseq
      %v3907 = vshrl.u32 %v3906, 7
      %v3908 = vsub.s32 %v3905, %v3907
      %v3909 = vrot.slane %v3895, %v3908
      %v3910 = vcombine.low %v3885, %v3893
      %v3911 = vcombine.high %v3885, %v3893
      %v3913 = vunpack.c.l.s4 1934713408
      %v3914 = vunpack.c.0.s8 %v3913
      %v3915 = vlaneseq
      %v3916 = vshrl.u32 %v3915, 7
      %v3917 = vsub.s32 %v3914, %v3916
      %v3918 = vrot.slane %v3910, %v3917
      %v3920 = vunpack.c.l.s4 1934713408
      %v3921 = vunpack.c.0.s8 %v3920
      %v3922 = vlaneseq
      %v3923 = vshrl.u32 %v3922, 7
      %v3924 = vsub.s32 %v3921, %v3923
      %v3925 = vrot.slane %v3911, %v3924
      %v3926 = vcombine.low %v3902, %v3918
      %v3927 = vcombine.high %v3902, %v3918
      %v3928 = vcombine.low %v3909, %v3925
      %v3929 = vcombine.high %v3909, %v3925
      %v3930 = vcombine.low %v3622, %v3624
      %v3932 = vunpack.c.l.s4 1983009808
      %v3933 = vunpack.c.0.s8 %v3932
      %v3934 = vlaneseq
      %v3935 = vshrl.u32 %v3934, 7
      %v3936 = vsub.s32 %v3933, %v3935
      %v3937 = vrot.slane %v3930, %v3936
      %v3938 = vcombine.low %v3623, %v3625
      %v3940 = vunpack.c.l.s4 1983009808
      %v3941 = vunpack.c.0.s8 %v3940
      %v3942 = vlaneseq
      %v3943 = vshrl.u32 %v3942, 7
      %v3944 = vsub.s32 %v3941, %v3943
      %v3945 = vrot.slane %v3938, %v3944
      %v3946 = vcombine.low %v3626, %v3628
      %v3948 = vunpack.c.l.s4 1983009808
      %v3949 = vunpack.c.0.s8 %v3948
      %v3950 = vlaneseq
      %v3951 = vshrl.u32 %v3950, 7
      %v3952 = vsub.s32 %v3949, %v3951
      %v3953 = vrot.slane %v3946, %v3952
      %v3954 = vcombine.low %v3627, %v3629
      %v3956 = vunpack.c.l.s4 1983009808
      %v3957 = vunpack.c.0.s8 %v3956
      %v3958 = vlaneseq
      %v3959 = vshrl.u32 %v3958, 7
      %v3960 = vsub.s32 %v3957, %v3959
      %v3961 = vrot.slane %v3954, %v3960
      %v3962 = vcombine.low %v3937, %v3945
      %v3963 = vcombine.high %v3937, %v3945
      %v3965 = vunpack.c.l.s4 1934713408
      %v3966 = vunpack.c.0.s8 %v3965
      %v3967 = vlaneseq
      %v3968 = vshrl.u32 %v3967, 7
      %v3969 = vsub.s32 %v3966, %v3968
      %v3970 = vrot.slane %v3962, %v3969
      %v3972 = vunpack.c.l.s4 1934713408
      %v3973 = vunpack.c.0.s8 %v3972
      %v3974 = vlaneseq
      %v3975 = vshrl.u32 %v3974, 7
      %v3976 = vsub.s32 %v3973, %v3975
      %v3977 = vrot.slane %v3963, %v3976
      %v3978 = vcombine.low %v3953, %v3961
      %v3979 = vcombine.high %v3953, %v3961
      %v3981 = vunpack.c.l.s4 1934713408
      %v3982 = vunpack.c.0.s8 %v3981
      %v3983 = vlaneseq
      %v3984 = vshrl.u32 %v3983, 7
      %v3985 = vsub.s32 %v3982, %v3984
      %v3986 = vrot.slane %v3978, %v3985
      %v3988 = vunpack.c.l.s4 1934713408
      %v3989 = vunpack.c.0.s8 %v3988
      %v3990 = vlaneseq
      %v3991 = vshrl.u32 %v3990, 7
      %v3992 = vsub.s32 %v3989, %v3991
      %v3993 = vrot.slane %v3979, %v3992
      %v3994 = vcombine.low %v3970, %v3986
      %v3995 = vcombine.high %v3970, %v3986
      %v3996 = vcombine.low %v3977, %v3993
      %v3997 = vcombine.high %v3977, %v3993
      %v3998 = vcombine.low %v3630, %v3632
      %v4000 = vunpack.c.l.s4 1983009808
      %v4001 = vunpack.c.0.s8 %v4000
      %v4002 = vlaneseq
      %v4003 = vshrl.u32 %v4002, 7
      %v4004 = vsub.s32 %v4001, %v4003
      %v4005 = vrot.slane %v3998, %v4004
      %v4006 = vcombine.low %v3631, %v3633
      %v4008 = vunpack.c.l.s4 1983009808
      %v4009 = vunpack.c.0.s8 %v4008
      %v4010 = vlaneseq
      %v4011 = vshrl.u32 %v4010, 7
      %v4012 = vsub.s32 %v4009, %v4011
      %v4013 = vrot.slane %v4006, %v4012
      %v4014 = vcombine.low %v3634, %v3636
      %v4016 = vunpack.c.l.s4 1983009808
      %v4017 = vunpack.c.0.s8 %v4016
      %v4018 = vlaneseq
      %v4019 = vshrl.u32 %v4018, 7
      %v4020 = vsub.s32 %v4017, %v4019
      %v4021 = vrot.slane %v4014, %v4020
      %v4022 = vcombine.low %v3635, %v3637
      %v4024 = vunpack.c.l.s4 1983009808
      %v4025 = vunpack.c.0.s8 %v4024
      %v4026 = vlaneseq
      %v4027 = vshrl.u32 %v4026, 7
      %v4028 = vsub.s32 %v4025, %v4027
      %v4029 = vrot.slane %v4022, %v4028
      %v4030 = vcombine.low %v4005, %v4013
      %v4031 = vcombine.high %v4005, %v4013
      %v4033 = vunpack.c.l.s4 1934713408
      %v4034 = vunpack.c.0.s8 %v4033
      %v4035 = vlaneseq
      %v4036 = vshrl.u32 %v4035, 7
      %v4037 = vsub.s32 %v4034, %v4036
      %v4038 = vrot.slane %v4030, %v4037
      %v4040 = vunpack.c.l.s4 1934713408
      %v4041 = vunpack.c.0.s8 %v4040
      %v4042 = vlaneseq
      %v4043 = vshrl.u32 %v4042, 7
      %v4044 = vsub.s32 %v4041, %v4043
      %v4045 = vrot.slane %v4031, %v4044
      %v4046 = vcombine.low %v4021, %v4029
      %v4047 = vcombine.high %v4021, %v4029
      %v4049 = vunpack.c.l.s4 1934713408
      %v4050 = vunpack.c.0.s8 %v4049
      %v4051 = vlaneseq
      %v4052 = vshrl.u32 %v4051, 7
      %v4053 = vsub.s32 %v4050, %v4052
      %v4054 = vrot.slane %v4046, %v4053
      %v4056 = vunpack.c.l.s4 1934713408
      %v4057 = vunpack.c.0.s8 %v4056
      %v4058 = vlaneseq
      %v4059 = vshrl.u32 %v4058, 7
      %v4060 = vsub.s32 %v4057, %v4059
      %v4061 = vrot.slane %v4047, %v4060
      %v4062 = vcombine.low %v4038, %v4054
      %v4063 = vcombine.high %v4038, %v4054
      %v4064 = vcombine.low %v4045, %v4061
      %v4065 = vcombine.high %v4045, %v4061
      %v4066 = vcombine.low %v3638, %v3640
      %v4068 = vunpack.c.l.s4 1983009808
      %v4069 = vunpack.c.0.s8 %v4068
      %v4070 = vlaneseq
      %v4071 = vshrl.u32 %v4070, 7
      %v4072 = vsub.s32 %v4069, %v4071
      %v4073 = vrot.slane %v4066, %v4072
      %v4074 = vcombine.low %v3639, %v3641
      %v4076 = vunpack.c.l.s4 1983009808
      %v4077 = vunpack.c.0.s8 %v4076
      %v4078 = vlaneseq
      %v4079 = vshrl.u32 %v4078, 7
      %v4080 = vsub.s32 %v4077, %v4079
      %v4081 = vrot.slane %v4074, %v4080
      %v4082 = vcombine.low %v3642, %v3644
      %v4084 = vunpack.c.l.s4 1983009808
      %v4085 = vunpack.c.0.s8 %v4084
      %v4086 = vlaneseq
      %v4087 = vshrl.u32 %v4086, 7
      %v4088 = vsub.s32 %v4085, %v4087
      %v4089 = vrot.slane %v4082, %v4088
      %v4090 = vcombine.low %v3643, %v3645
      %v4092 = vunpack.c.l.s4 1983009808
      %v4093 = vunpack.c.0.s8 %v4092
      %v4094 = vlaneseq
      %v4095 = vshrl.u32 %v4094, 7
      %v4096 = vsub.s32 %v4093, %v4095
      %v4097 = vrot.slane %v4090, %v4096
      %v4098 = vcombine.low %v4073, %v4081
      %v4099 = vcombine.high %v4073, %v4081
      %v4101 = vunpack.c.l.s4 1934713408
      %v4102 = vunpack.c.0.s8 %v4101
      %v4103 = vlaneseq
      %v4104 = vshrl.u32 %v4103, 7
      %v4105 = vsub.s32 %v4102, %v4104
      %v4106 = vrot.slane %v4098, %v4105
      %v4108 = vunpack.c.l.s4 1934713408
      %v4109 = vunpack.c.0.s8 %v4108
      %v4110 = vlaneseq
      %v4111 = vshrl.u32 %v4110, 7
      %v4112 = vsub.s32 %v4109, %v4111
      %v4113 = vrot.slane %v4099, %v4112
      %v4114 = vcombine.low %v4089, %v4097
      %v4115 = vcombine.high %v4089, %v4097
      %v4117 = vunpack.c.l.s4 1934713408
      %v4118 = vunpack.c.0.s8 %v4117
      %v4119 = vlaneseq
      %v4120 = vshrl.u32 %v4119, 7
      %v4121 = vsub.s32 %v4118, %v4120
      %v4122 = vrot.slane %v4114, %v4121
      %v4124 = vunpack.c.l.s4 1934713408
      %v4125 = vunpack.c.0.s8 %v4124
      %v4126 = vlaneseq
      %v4127 = vshrl.u32 %v4126, 7
      %v4128 = vsub.s32 %v4125, %v4127
      %v4129 = vrot.slane %v4115, %v4128
      %v4130 = vcombine.low %v4106, %v4122
      %v4131 = vcombine.high %v4106, %v4122
      %v4132 = vcombine.low %v4113, %v4129
      %v4133 = vcombine.high %v4113, %v4129
      %v4134 = vcombine.low %v3646, %v3648
      %v4136 = vunpack.c.l.s4 1983009808
      %v4137 = vunpack.c.0.s8 %v4136
      %v4138 = vlaneseq
      %v4139 = vshrl.u32 %v4138, 7
      %v4140 = vsub.s32 %v4137, %v4139
      %v4141 = vrot.slane %v4134, %v4140
      %v4142 = vcombine.low %v3647, %v3649
      %v4144 = vunpack.c.l.s4 1983009808
      %v4145 = vunpack.c.0.s8 %v4144
      %v4146 = vlaneseq
      %v4147 = vshrl.u32 %v4146, 7
      %v4148 = vsub.s32 %v4145, %v4147
      %v4149 = vrot.slane %v4142, %v4148
      %v4150 = vcombine.low %v3650, %v3652
      %v4152 = vunpack.c.l.s4 1983009808
      %v4153 = vunpack.c.0.s8 %v4152
      %v4154 = vlaneseq
      %v4155 = vshrl.u32 %v4154, 7
      %v4156 = vsub.s32 %v4153, %v4155
      %v4157 = vrot.slane %v4150, %v4156
      %v4158 = vcombine.low %v3651, %v3653
      %v4160 = vunpack.c.l.s4 1983009808
      %v4161 = vunpack.c.0.s8 %v4160
      %v4162 = vlaneseq
      %v4163 = vshrl.u32 %v4162, 7
      %v4164 = vsub.s32 %v4161, %v4163
      %v4165 = vrot.slane %v4158, %v4164
      %v4166 = vcombine.low %v4141, %v4149
      %v4167 = vcombine.high %v4141, %v4149
      %v4169 = vunpack.c.l.s4 1934713408
      %v4170 = vunpack.c.0.s8 %v4169
      %v4171 = vlaneseq
      %v4172 = vshrl.u32 %v4171, 7
      %v4173 = vsub.s32 %v4170, %v4172
      %v4174 = vrot.slane %v4166, %v4173
      %v4176 = vunpack.c.l.s4 1934713408
      %v4177 = vunpack.c.0.s8 %v4176
      %v4178 = vlaneseq
      %v4179 = vshrl.u32 %v4178, 7
      %v4180 = vsub.s32 %v4177, %v4179
      %v4181 = vrot.slane %v4167, %v4180
      %v4182 = vcombine.low %v4157, %v4165
      %v4183 = vcombine.high %v4157, %v4165
      %v4185 = vunpack.c.l.s4 1934713408
      %v4186 = vunpack.c.0.s8 %v4185
      %v4187 = vlaneseq
      %v4188 = vshrl.u32 %v4187, 7
      %v4189 = vsub.s32 %v4186, %v4188
      %v4190 = vrot.slane %v4182, %v4189
      %v4192 = vunpack.c.l.s4 1934713408
      %v4193 = vunpack.c.0.s8 %v4192
      %v4194 = vlaneseq
      %v4195 = vshrl.u32 %v4194, 7
      %v4196 = vsub.s32 %v4193, %v4195
      %v4197 = vrot.slane %v4183, %v4196
      %v4198 = vcombine.low %v4174, %v4190
      %v4199 = vcombine.high %v4174, %v4190
      %v4200 = vcombine.low %v4181, %v4197
      %v4201 = vcombine.high %v4181, %v4197
      %v4202 = vcombine.low %v3654, %v3656
      %v4204 = vunpack.c.l.s4 1983009808
      %v4205 = vunpack.c.0.s8 %v4204
      %v4206 = vlaneseq
      %v4207 = vshrl.u32 %v4206, 7
      %v4208 = vsub.s32 %v4205, %v4207
      %v4209 = vrot.slane %v4202, %v4208
      %v4210 = vcombine.low %v3655, %v3657
      %v4212 = vunpack.c.l.s4 1983009808
      %v4213 = vunpack.c.0.s8 %v4212
      %v4214 = vlaneseq
      %v4215 = vshrl.u32 %v4214, 7
      %v4216 = vsub.s32 %v4213, %v4215
      %v4217 = vrot.slane %v4210, %v4216
      %v4218 = vcombine.low %v3658, %v3660
      %v4220 = vunpack.c.l.s4 1983009808
      %v4221 = vunpack.c.0.s8 %v4220
      %v4222 = vlaneseq
      %v4223 = vshrl.u32 %v4222, 7
      %v4224 = vsub.s32 %v4221, %v4223
      %v4225 = vrot.slane %v4218, %v4224
      %v4226 = vcombine.low %v3659, %v3661
      %v4228 = vunpack.c.l.s4 1983009808
      %v4229 = vunpack.c.0.s8 %v4228
      %v4230 = vlaneseq
      %v4231 = vshrl.u32 %v4230, 7
      %v4232 = vsub.s32 %v4229, %v4231
      %v4233 = vrot.slane %v4226, %v4232
      %v4234 = vcombine.low %v4209, %v4217
      %v4235 = vcombine.high %v4209, %v4217
      %v4237 = vunpack.c.l.s4 1934713408
      %v4238 = vunpack.c.0.s8 %v4237
      %v4239 = vlaneseq
      %v4240 = vshrl.u32 %v4239, 7
      %v4241 = vsub.s32 %v4238, %v4240
      %v4242 = vrot.slane %v4234, %v4241
      %v4244 = vunpack.c.l.s4 1934713408
      %v4245 = vunpack.c.0.s8 %v4244
      %v4246 = vlaneseq
      %v4247 = vshrl.u32 %v4246, 7
      %v4248 = vsub.s32 %v4245, %v4247
      %v4249 = vrot.slane %v4235, %v4248
      %v4250 = vcombine.low %v4225, %v4233
      %v4251 = vcombine.high %v4225, %v4233
      %v4253 = vunpack.c.l.s4 1934713408
      %v4254 = vunpack.c.0.s8 %v4253
      %v4255 = vlaneseq
      %v4256 = vshrl.u32 %v4255, 7
      %v4257 = vsub.s32 %v4254, %v4256
      %v4258 = vrot.slane %v4250, %v4257
      %v4260 = vunpack.c.l.s4 1934713408
      %v4261 = vunpack.c.0.s8 %v4260
      %v4262 = vlaneseq
      %v4263 = vshrl.u32 %v4262, 7
      %v4264 = vsub.s32 %v4261, %v4263
      %v4265 = vrot.slane %v4251, %v4264
      %v4266 = vcombine.low %v4242, %v4258
      %v4267 = vcombine.high %v4242, %v4258
      %v4268 = vcombine.low %v4249, %v4265
      %v4269 = vcombine.high %v4249, %v4265
      %v4270 = vcombine.low %v3662, %v3664
      %v4272 = vunpack.c.l.s4 1983009808
      %v4273 = vunpack.c.0.s8 %v4272
      %v4274 = vlaneseq
      %v4275 = vshrl.u32 %v4274, 7
      %v4276 = vsub.s32 %v4273, %v4275
      %v4277 = vrot.slane %v4270, %v4276
      %v4278 = vcombine.low %v3663, %v3665
      %v4280 = vunpack.c.l.s4 1983009808
      %v4281 = vunpack.c.0.s8 %v4280
      %v4282 = vlaneseq
      %v4283 = vshrl.u32 %v4282, 7
      %v4284 = vsub.s32 %v4281, %v4283
      %v4285 = vrot.slane %v4278, %v4284
      %v4286 = vcombine.low %v3666, %v3668
      %v4288 = vunpack.c.l.s4 1983009808
      %v4289 = vunpack.c.0.s8 %v4288
      %v4290 = vlaneseq
      %v4291 = vshrl.u32 %v4290, 7
      %v4292 = vsub.s32 %v4289, %v4291
      %v4293 = vrot.slane %v4286, %v4292
      %v4294 = vcombine.low %v3667, %v3669
      %v4296 = vunpack.c.l.s4 1983009808
      %v4297 = vunpack.c.0.s8 %v4296
      %v4298 = vlaneseq
      %v4299 = vshrl.u32 %v4298, 7
      %v4300 = vsub.s32 %v4297, %v4299
      %v4301 = vrot.slane %v4294, %v4300
      %v4302 = vcombine.low %v4277, %v4285
      %v4303 = vcombine.high %v4277, %v4285
      %v4305 = vunpack.c.l.s4 1934713408
      %v4306 = vunpack.c.0.s8 %v4305
      %v4307 = vlaneseq
      %v4308 = vshrl.u32 %v4307, 7
      %v4309 = vsub.s32 %v4306, %v4308
      %v4310 = vrot.slane %v4302, %v4309
      %v4312 = vunpack.c.l.s4 1934713408
      %v4313 = vunpack.c.0.s8 %v4312
      %v4314 = vlaneseq
      %v4315 = vshrl.u32 %v4314, 7
      %v4316 = vsub.s32 %v4313, %v4315
      %v4317 = vrot.slane %v4303, %v4316
      %v4318 = vcombine.low %v4293, %v4301
      %v4319 = vcombine.high %v4293, %v4301
      %v4321 = vunpack.c.l.s4 1934713408
      %v4322 = vunpack.c.0.s8 %v4321
      %v4323 = vlaneseq
      %v4324 = vshrl.u32 %v4323, 7
      %v4325 = vsub.s32 %v4322, %v4324
      %v4326 = vrot.slane %v4318, %v4325
      %v4328 = vunpack.c.l.s4 1934713408
      %v4329 = vunpack.c.0.s8 %v4328
      %v4330 = vlaneseq
      %v4331 = vshrl.u32 %v4330, 7
      %v4332 = vsub.s32 %v4329, %v4331
      %v4333 = vrot.slane %v4319, %v4332
      %v4334 = vcombine.low %v4310, %v4326
      %v4335 = vcombine.high %v4310, %v4326
      %v4336 = vcombine.low %v4317, %v4333
      %v4337 = vcombine.high %v4317, %v4333
      %v4338 = vcombine.low %v3670, %v3672
      %v4340 = vunpack.c.l.s4 1983009808
      %v4341 = vunpack.c.0.s8 %v4340
      %v4342 = vlaneseq
      %v4343 = vshrl.u32 %v4342, 7
      %v4344 = vsub.s32 %v4341, %v4343
      %v4345 = vrot.slane %v4338, %v4344
      %v4346 = vcombine.low %v3671, %v3673
      %v4348 = vunpack.c.l.s4 1983009808
      %v4349 = vunpack.c.0.s8 %v4348
      %v4350 = vlaneseq
      %v4351 = vshrl.u32 %v4350, 7
      %v4352 = vsub.s32 %v4349, %v4351
      %v4353 = vrot.slane %v4346, %v4352
      %v4354 = vcombine.low %v3674, %v3676
      %v4356 = vunpack.c.l.s4 1983009808
      %v4357 = vunpack.c.0.s8 %v4356
      %v4358 = vlaneseq
      %v4359 = vshrl.u32 %v4358, 7
      %v4360 = vsub.s32 %v4357, %v4359
      %v4361 = vrot.slane %v4354, %v4360
      %v4362 = vcombine.low %v3675, %v3677
      %v4364 = vunpack.c.l.s4 1983009808
      %v4365 = vunpack.c.0.s8 %v4364
      %v4366 = vlaneseq
      %v4367 = vshrl.u32 %v4366, 7
      %v4368 = vsub.s32 %v4365, %v4367
      %v4369 = vrot.slane %v4362, %v4368
      %v4370 = vcombine.low %v4345, %v4353
      %v4371 = vcombine.high %v4345, %v4353
      %v4373 = vunpack.c.l.s4 1934713408
      %v4374 = vunpack.c.0.s8 %v4373
      %v4375 = vlaneseq
      %v4376 = vshrl.u32 %v4375, 7
      %v4377 = vsub.s32 %v4374, %v4376
      %v4378 = vrot.slane %v4370, %v4377
      %v4380 = vunpack.c.l.s4 1934713408
      %v4381 = vunpack.c.0.s8 %v4380
      %v4382 = vlaneseq
      %v4383 = vshrl.u32 %v4382, 7
      %v4384 = vsub.s32 %v4381, %v4383
      %v4385 = vrot.slane %v4371, %v4384
      %v4386 = vcombine.low %v4361, %v4369
      %v4387 = vcombine.high %v4361, %v4369
      %v4389 = vunpack.c.l.s4 1934713408
      %v4390 = vunpack.c.0.s8 %v4389
      %v4391 = vlaneseq
      %v4392 = vshrl.u32 %v4391, 7
      %v4393 = vsub.s32 %v4390, %v4392
      %v4394 = vrot.slane %v4386, %v4393
      %v4396 = vunpack.c.l.s4 1934713408
      %v4397 = vunpack.c.0.s8 %v4396
      %v4398 = vlaneseq
      %v4399 = vshrl.u32 %v4398, 7
      %v4400 = vsub.s32 %v4397, %v4399
      %v4401 = vrot.slane %v4387, %v4400
      %v4402 = vcombine.low %v4378, %v4394
      %v4403 = vcombine.high %v4378, %v4394
      %v4404 = vcombine.low %v4385, %v4401
      %v4405 = vcombine.high %v4385, %v4401
      %v4406 = vcombine.low %v3678, %v3680
      %v4408 = vunpack.c.l.s4 1983009808
      %v4409 = vunpack.c.0.s8 %v4408
      %v4410 = vlaneseq
      %v4411 = vshrl.u32 %v4410, 7
      %v4412 = vsub.s32 %v4409, %v4411
      %v4413 = vrot.slane %v4406, %v4412
      %v4414 = vcombine.low %v3679, %v3681
      %v4416 = vunpack.c.l.s4 1983009808
      %v4417 = vunpack.c.0.s8 %v4416
      %v4418 = vlaneseq
      %v4419 = vshrl.u32 %v4418, 7
      %v4420 = vsub.s32 %v4417, %v4419
      %v4421 = vrot.slane %v4414, %v4420
      %v4422 = vcombine.low %v3682, %v3684
      %v4424 = vunpack.c.l.s4 1983009808
      %v4425 = vunpack.c.0.s8 %v4424
      %v4426 = vlaneseq
      %v4427 = vshrl.u32 %v4426, 7
      %v4428 = vsub.s32 %v4425, %v4427
      %v4429 = vrot.slane %v4422, %v4428
      %v4430 = vcombine.low %v3683, %v3685
      %v4432 = vunpack.c.l.s4 1983009808
      %v4433 = vunpack.c.0.s8 %v4432
      %v4434 = vlaneseq
      %v4435 = vshrl.u32 %v4434, 7
      %v4436 = vsub.s32 %v4433, %v4435
      %v4437 = vrot.slane %v4430, %v4436
      %v4438 = vcombine.low %v4413, %v4421
      %v4439 = vcombine.high %v4413, %v4421
      %v4441 = vunpack.c.l.s4 1934713408
      %v4442 = vunpack.c.0.s8 %v4441
      %v4443 = vlaneseq
      %v4444 = vshrl.u32 %v4443, 7
      %v4445 = vsub.s32 %v4442, %v4444
      %v4446 = vrot.slane %v4438, %v4445
      %v4448 = vunpack.c.l.s4 1934713408
      %v4449 = vunpack.c.0.s8 %v4448
      %v4450 = vlaneseq
      %v4451 = vshrl.u32 %v4450, 7
      %v4452 = vsub.s32 %v4449, %v4451
      %v4453 = vrot.slane %v4439, %v4452
      %v4454 = vcombine.low %v4429, %v4437
      %v4455 = vcombine.high %v4429, %v4437
      %v4457 = vunpack.c.l.s4 1934713408
      %v4458 = vunpack.c.0.s8 %v4457
      %v4459 = vlaneseq
      %v4460 = vshrl.u32 %v4459, 7
      %v4461 = vsub.s32 %v4458, %v4460
      %v4462 = vrot.slane %v4454, %v4461
      %v4464 = vunpack.c.l.s4 1934713408
      %v4465 = vunpack.c.0.s8 %v4464
      %v4466 = vlaneseq
      %v4467 = vshrl.u32 %v4466, 7
      %v4468 = vsub.s32 %v4465, %v4467
      %v4469 = vrot.slane %v4455, %v4468
      %v4470 = vcombine.low %v4446, %v4462
      %v4471 = vcombine.high %v4446, %v4462
      %v4472 = vcombine.low %v4453, %v4469
      %v4473 = vcombine.high %v4453, %v4469
      %v4474 = vcombine.low %v3686, %v3688
      %v4476 = vunpack.c.l.s4 1983009808
      %v4477 = vunpack.c.0.s8 %v4476
      %v4478 = vlaneseq
      %v4479 = vshrl.u32 %v4478, 7
      %v4480 = vsub.s32 %v4477, %v4479
      %v4481 = vrot.slane %v4474, %v4480
      %v4482 = vcombine.low %v3687, %v3689
      %v4484 = vunpack.c.l.s4 1983009808
      %v4485 = vunpack.c.0.s8 %v4484
      %v4486 = vlaneseq
      %v4487 = vshrl.u32 %v4486, 7
      %v4488 = vsub.s32 %v4485, %v4487
      %v4489 = vrot.slane %v4482, %v4488
      %v4490 = vcombine.low %v3690, %v3692
      %v4492 = vunpack.c.l.s4 1983009808
      %v4493 = vunpack.c.0.s8 %v4492
      %v4494 = vlaneseq
      %v4495 = vshrl.u32 %v4494, 7
      %v4496 = vsub.s32 %v4493, %v4495
      %v4497 = vrot.slane %v4490, %v4496
      %v4498 = vcombine.low %v3691, %v3693
      %v4500 = vunpack.c.l.s4 1983009808
      %v4501 = vunpack.c.0.s8 %v4500
      %v4502 = vlaneseq
      %v4503 = vshrl.u32 %v4502, 7
      %v4504 = vsub.s32 %v4501, %v4503
      %v4505 = vrot.slane %v4498, %v4504
      %v4506 = vcombine.low %v4481, %v4489
      %v4507 = vcombine.high %v4481, %v4489
      %v4509 = vunpack.c.l.s4 1934713408
      %v4510 = vunpack.c.0.s8 %v4509
      %v4511 = vlaneseq
      %v4512 = vshrl.u32 %v4511, 7
      %v4513 = vsub.s32 %v4510, %v4512
      %v4514 = vrot.slane %v4506, %v4513
      %v4516 = vunpack.c.l.s4 1934713408
      %v4517 = vunpack.c.0.s8 %v4516
      %v4518 = vlaneseq
      %v4519 = vshrl.u32 %v4518, 7
      %v4520 = vsub.s32 %v4517, %v4519
      %v4521 = vrot.slane %v4507, %v4520
      %v4522 = vcombine.low %v4497, %v4505
      %v4523 = vcombine.high %v4497, %v4505
      %v4525 = vunpack.c.l.s4 1934713408
      %v4526 = vunpack.c.0.s8 %v4525
      %v4527 = vlaneseq
      %v4528 = vshrl.u32 %v4527, 7
      %v4529 = vsub.s32 %v4526, %v4528
      %v4530 = vrot.slane %v4522, %v4529
      %v4532 = vunpack.c.l.s4 1934713408
      %v4533 = vunpack.c.0.s8 %v4532
      %v4534 = vlaneseq
      %v4535 = vshrl.u32 %v4534, 7
      %v4536 = vsub.s32 %v4533, %v4535
      %v4537 = vrot.slane %v4523, %v4536
      %v4538 = vcombine.low %v4514, %v4530
      %v4539 = vcombine.high %v4514, %v4530
      %v4540 = vcombine.low %v4521, %v4537
      %v4541 = vcombine.high %v4521, %v4537
      %v4542 = vcombine.low %v3694, %v3696
      %v4544 = vunpack.c.l.s4 1983009808
      %v4545 = vunpack.c.0.s8 %v4544
      %v4546 = vlaneseq
      %v4547 = vshrl.u32 %v4546, 7
      %v4548 = vsub.s32 %v4545, %v4547
      %v4549 = vrot.slane %v4542, %v4548
      %v4550 = vcombine.low %v3695, %v3697
      %v4552 = vunpack.c.l.s4 1983009808
      %v4553 = vunpack.c.0.s8 %v4552
      %v4554 = vlaneseq
      %v4555 = vshrl.u32 %v4554, 7
      %v4556 = vsub.s32 %v4553, %v4555
      %v4557 = vrot.slane %v4550, %v4556
      %v4558 = vcombine.low %v3698, %v3700
      %v4560 = vunpack.c.l.s4 1983009808
      %v4561 = vunpack.c.0.s8 %v4560
      %v4562 = vlaneseq
      %v4563 = vshrl.u32 %v4562, 7
      %v4564 = vsub.s32 %v4561, %v4563
      %v4565 = vrot.slane %v4558, %v4564
      %v4566 = vcombine.low %v3699, %v3701
      %v4568 = vunpack.c.l.s4 1983009808
      %v4569 = vunpack.c.0.s8 %v4568
      %v4570 = vlaneseq
      %v4571 = vshrl.u32 %v4570, 7
      %v4572 = vsub.s32 %v4569, %v4571
      %v4573 = vrot.slane %v4566, %v4572
      %v4574 = vcombine.low %v4549, %v4557
      %v4575 = vcombine.high %v4549, %v4557
      %v4577 = vunpack.c.l.s4 1934713408
      %v4578 = vunpack.c.0.s8 %v4577
      %v4579 = vlaneseq
      %v4580 = vshrl.u32 %v4579, 7
      %v4581 = vsub.s32 %v4578, %v4580
      %v4582 = vrot.slane %v4574, %v4581
      %v4584 = vunpack.c.l.s4 1934713408
      %v4585 = vunpack.c.0.s8 %v4584
      %v4586 = vlaneseq
      %v4587 = vshrl.u32 %v4586, 7
      %v4588 = vsub.s32 %v4585, %v4587
      %v4589 = vrot.slane %v4575, %v4588
      %v4590 = vcombine.low %v4565, %v4573
      %v4591 = vcombine.high %v4565, %v4573
      %v4593 = vunpack.c.l.s4 1934713408
      %v4594 = vunpack.c.0.s8 %v4593
      %v4595 = vlaneseq
      %v4596 = vshrl.u32 %v4595, 7
      %v4597 = vsub.s32 %v4594, %v4596
      %v4598 = vrot.slane %v4590, %v4597
      %v4600 = vunpack.c.l.s4 1934713408
      %v4601 = vunpack.c.0.s8 %v4600
      %v4602 = vlaneseq
      %v4603 = vshrl.u32 %v4602, 7
      %v4604 = vsub.s32 %v4601, %v4603
      %v4605 = vrot.slane %v4591, %v4604
      %v4606 = vcombine.low %v4582, %v4598
      %v4607 = vcombine.high %v4582, %v4598
      %v4608 = vcombine.low %v4589, %v4605
      %v4609 = vcombine.high %v4589, %v4605
      %v4610 = vcombine.low %v3702, %v3704
      %v4612 = vunpack.c.l.s4 1983009808
      %v4613 = vunpack.c.0.s8 %v4612
      %v4614 = vlaneseq
      %v4615 = vshrl.u32 %v4614, 7
      %v4616 = vsub.s32 %v4613, %v4615
      %v4617 = vrot.slane %v4610, %v4616
      %v4618 = vcombine.low %v3703, %v3705
      %v4620 = vunpack.c.l.s4 1983009808
      %v4621 = vunpack.c.0.s8 %v4620
      %v4622 = vlaneseq
      %v4623 = vshrl.u32 %v4622, 7
      %v4624 = vsub.s32 %v4621, %v4623
      %v4625 = vrot.slane %v4618, %v4624
      %v4626 = vcombine.low %v3706, %v3708
      %v4628 = vunpack.c.l.s4 1983009808
      %v4629 = vunpack.c.0.s8 %v4628
      %v4630 = vlaneseq
      %v4631 = vshrl.u32 %v4630, 7
      %v4632 = vsub.s32 %v4629, %v4631
      %v4633 = vrot.slane %v4626, %v4632
      %v4634 = vcombine.low %v3707, %v3709
      %v4636 = vunpack.c.l.s4 1983009808
      %v4637 = vunpack.c.0.s8 %v4636
      %v4638 = vlaneseq
      %v4639 = vshrl.u32 %v4638, 7
      %v4640 = vsub.s32 %v4637, %v4639
      %v4641 = vrot.slane %v4634, %v4640
      %v4642 = vcombine.low %v4617, %v4625
      %v4643 = vcombine.high %v4617, %v4625
      %v4645 = vunpack.c.l.s4 1934713408
      %v4646 = vunpack.c.0.s8 %v4645
      %v4647 = vlaneseq
      %v4648 = vshrl.u32 %v4647, 7
      %v4649 = vsub.s32 %v4646, %v4648
      %v4650 = vrot.slane %v4642, %v4649
      %v4652 = vunpack.c.l.s4 1934713408
      %v4653 = vunpack.c.0.s8 %v4652
      %v4654 = vlaneseq
      %v4655 = vshrl.u32 %v4654, 7
      %v4656 = vsub.s32 %v4653, %v4655
      %v4657 = vrot.slane %v4643, %v4656
      %v4658 = vcombine.low %v4633, %v4641
      %v4659 = vcombine.high %v4633, %v4641
      %v4661 = vunpack.c.l.s4 1934713408
      %v4662 = vunpack.c.0.s8 %v4661
      %v4663 = vlaneseq
      %v4664 = vshrl.u32 %v4663, 7
      %v4665 = vsub.s32 %v4662, %v4664
      %v4666 = vrot.slane %v4658, %v4665
      %v4668 = vunpack.c.l.s4 1934713408
      %v4669 = vunpack.c.0.s8 %v4668
      %v4670 = vlaneseq
      %v4671 = vshrl.u32 %v4670, 7
      %v4672 = vsub.s32 %v4669, %v4671
      %v4673 = vrot.slane %v4659, %v4672
      %v4674 = vcombine.low %v4650, %v4666
      %v4675 = vcombine.high %v4650, %v4666
      %v4676 = vcombine.low %v4657, %v4673
      %v4677 = vcombine.high %v4657, %v4673
      %v4678 = vcombine.low %v3710, %v3712
      %v4680 = vunpack.c.l.s4 1983009808
      %v4681 = vunpack.c.0.s8 %v4680
      %v4682 = vlaneseq
      %v4683 = vshrl.u32 %v4682, 7
      %v4684 = vsub.s32 %v4681, %v4683
      %v4685 = vrot.slane %v4678, %v4684
      %v4686 = vcombine.low %v3711, %v3713
      %v4688 = vunpack.c.l.s4 1983009808
      %v4689 = vunpack.c.0.s8 %v4688
      %v4690 = vlaneseq
      %v4691 = vshrl.u32 %v4690, 7
      %v4692 = vsub.s32 %v4689, %v4691
      %v4693 = vrot.slane %v4686, %v4692
      %v4694 = vcombine.low %v3714, %v3716
      %v4696 = vunpack.c.l.s4 1983009808
      %v4697 = vunpack.c.0.s8 %v4696
      %v4698 = vlaneseq
      %v4699 = vshrl.u32 %v4698, 7
      %v4700 = vsub.s32 %v4697, %v4699
      %v4701 = vrot.slane %v4694, %v4700
      %v4702 = vcombine.low %v3715, %v3717
      %v4704 = vunpack.c.l.s4 1983009808
      %v4705 = vunpack.c.0.s8 %v4704
      %v4706 = vlaneseq
      %v4707 = vshrl.u32 %v4706, 7
      %v4708 = vsub.s32 %v4705, %v4707
      %v4709 = vrot.slane %v4702, %v4708
      %v4710 = vcombine.low %v4685, %v4693
      %v4711 = vcombine.high %v4685, %v4693
      %v4713 = vunpack.c.l.s4 1934713408
      %v4714 = vunpack.c.0.s8 %v4713
      %v4715 = vlaneseq
      %v4716 = vshrl.u32 %v4715, 7
      %v4717 = vsub.s32 %v4714, %v4716
      %v4718 = vrot.slane %v4710, %v4717
      %v4720 = vunpack.c.l.s4 1934713408
      %v4721 = vunpack.c.0.s8 %v4720
      %v4722 = vlaneseq
      %v4723 = vshrl.u32 %v4722, 7
      %v4724 = vsub.s32 %v4721, %v4723
      %v4725 = vrot.slane %v4711, %v4724
      %v4726 = vcombine.low %v4701, %v4709
      %v4727 = vcombine.high %v4701, %v4709
      %v4729 = vunpack.c.l.s4 1934713408
      %v4730 = vunpack.c.0.s8 %v4729
      %v4731 = vlaneseq
      %v4732 = vshrl.u32 %v4731, 7
      %v4733 = vsub.s32 %v4730, %v4732
      %v4734 = vrot.slane %v4726, %v4733
      %v4736 = vunpack.c.l.s4 1934713408
      %v4737 = vunpack.c.0.s8 %v4736
      %v4738 = vlaneseq
      %v4739 = vshrl.u32 %v4738, 7
      %v4740 = vsub.s32 %v4737, %v4739
      %v4741 = vrot.slane %v4727, %v4740
      %v4742 = vcombine.low %v4718, %v4734
      %v4743 = vcombine.high %v4718, %v4734
      %v4744 = vcombine.low %v4725, %v4741
      %v4745 = vcombine.high %v4725, %v4741
      %v4746 = vcombine.low %v3718, %v3720
      %v4748 = vunpack.c.l.s4 1983009808
      %v4749 = vunpack.c.0.s8 %v4748
      %v4750 = vlaneseq
      %v4751 = vshrl.u32 %v4750, 7
      %v4752 = vsub.s32 %v4749, %v4751
      %v4753 = vrot.slane %v4746, %v4752
      %v4754 = vcombine.low %v3719, %v3721
      %v4756 = vunpack.c.l.s4 1983009808
      %v4757 = vunpack.c.0.s8 %v4756
      %v4758 = vlaneseq
      %v4759 = vshrl.u32 %v4758, 7
      %v4760 = vsub.s32 %v4757, %v4759
      %v4761 = vrot.slane %v4754, %v4760
      %v4762 = vcombine.low %v3722, %v3724
      %v4764 = vunpack.c.l.s4 1983009808
      %v4765 = vunpack.c.0.s8 %v4764
      %v4766 = vlaneseq
      %v4767 = vshrl.u32 %v4766, 7
      %v4768 = vsub.s32 %v4765, %v4767
      %v4769 = vrot.slane %v4762, %v4768
      %v4770 = vcombine.low %v3723, %v3725
      %v4772 = vunpack.c.l.s4 1983009808
      %v4773 = vunpack.c.0.s8 %v4772
      %v4774 = vlaneseq
      %v4775 = vshrl.u32 %v4774, 7
      %v4776 = vsub.s32 %v4773, %v4775
      %v4777 = vrot.slane %v4770, %v4776
      %v4778 = vcombine.low %v4753, %v4761
      %v4779 = vcombine.high %v4753, %v4761
      %v4781 = vunpack.c.l.s4 1934713408
      %v4782 = vunpack.c.0.s8 %v4781
      %v4783 = vlaneseq
      %v4784 = vshrl.u32 %v4783, 7
      %v4785 = vsub.s32 %v4782, %v4784
      %v4786 = vrot.slane %v4778, %v4785
      %v4788 = vunpack.c.l.s4 1934713408
      %v4789 = vunpack.c.0.s8 %v4788
      %v4790 = vlaneseq
      %v4791 = vshrl.u32 %v4790, 7
      %v4792 = vsub.s32 %v4789, %v4791
      %v4793 = vrot.slane %v4779, %v4792
      %v4794 = vcombine.low %v4769, %v4777
      %v4795 = vcombine.high %v4769, %v4777
      %v4797 = vunpack.c.l.s4 1934713408
      %v4798 = vunpack.c.0.s8 %v4797
      %v4799 = vlaneseq
      %v4800 = vshrl.u32 %v4799, 7
      %v4801 = vsub.s32 %v4798, %v4800
      %v4802 = vrot.slane %v4794, %v4801
      %v4804 = vunpack.c.l.s4 1934713408
      %v4805 = vunpack.c.0.s8 %v4804
      %v4806 = vlaneseq
      %v4807 = vshrl.u32 %v4806, 7
      %v4808 = vsub.s32 %v4805, %v4807
      %v4809 = vrot.slane %v4795, %v4808
      %v4810 = vcombine.low %v4786, %v4802
      %v4811 = vcombine.high %v4786, %v4802
      %v4812 = vcombine.low %v4793, %v4809
      %v4813 = vcombine.high %v4793, %v4809
      %4830 = vrot.lane.b32.xlu0 %v3791, 2
      %v4831 = vpop.permute.xlu0 %4830
      %4832 = vrot.lane.b32.xlu0 %v3859, 2
      %v4833 = vpop.permute.xlu0 %4832
      %4834 = vrot.lane.b32.xlu0 %v3927, 2
      %v4835 = vpop.permute.xlu0 %4834
      %4836 = vrot.lane.b32.xlu0 %v3995, 2
      %v4837 = vpop.permute.xlu0 %4836
      %4838 = vrot.lane.b32.xlu0 %v4063, 2
      %v4839 = vpop.permute.xlu0 %4838
      %4840 = vrot.lane.b32.xlu0 %v4131, 2
      %v4841 = vpop.permute.xlu0 %4840
      %4842 = vrot.lane.b32.xlu0 %v4199, 2
      %v4843 = vpop.permute.xlu0 %4842
      %4844 = vrot.lane.b32.xlu0 %v4267, 2
      %v4845 = vpop.permute.xlu0 %4844
      %4846 = vrot.lane.b32.xlu0 %v4335, 2
      %v4847 = vpop.permute.xlu0 %4846
      %4848 = vrot.lane.b32.xlu0 %v4403, 2
      %v4849 = vpop.permute.xlu0 %4848
      %4850 = vrot.lane.b32.xlu0 %v4471, 2
      %v4851 = vpop.permute.xlu0 %4850
      %4852 = vrot.lane.b32.xlu0 %v4539, 2
      %v4853 = vpop.permute.xlu0 %4852
      %4854 = vrot.lane.b32.xlu0 %v4607, 2
      %v4855 = vpop.permute.xlu0 %4854
      %4856 = vrot.lane.b32.xlu0 %v4675, 2
      %v4857 = vpop.permute.xlu0 %4856
      %4858 = vrot.lane.b32.xlu0 %v4743, 2
      %v4859 = vpop.permute.xlu0 %4858
      %4860 = vrot.lane.b32.xlu0 %v4811, 2
      %v4861 = vpop.permute.xlu0 %4860
      %4894 = vrot.lane.b32.xlu0 %v3792, 4
      %v4895 = vpop.permute.xlu0 %4894
      %4896 = vrot.lane.b32.xlu0 %v3860, 4
      %v4897 = vpop.permute.xlu0 %4896
      %4898 = vrot.lane.b32.xlu0 %v3928, 4
      %v4899 = vpop.permute.xlu0 %4898
      %4900 = vrot.lane.b32.xlu0 %v3996, 4
      %v4901 = vpop.permute.xlu0 %4900
      %4902 = vrot.lane.b32.xlu0 %v4064, 4
      %v4903 = vpop.permute.xlu0 %4902
      %4904 = vrot.lane.b32.xlu0 %v4132, 4
      %v4905 = vpop.permute.xlu0 %4904
      %4906 = vrot.lane.b32.xlu0 %v4200, 4
      %v4907 = vpop.permute.xlu0 %4906
      %4908 = vrot.lane.b32.xlu0 %v4268, 4
      %v4909 = vpop.permute.xlu0 %4908
      %4910 = vrot.lane.b32.xlu0 %v4336, 4
      %v4911 = vpop.permute.xlu0 %4910
      %4912 = vrot.lane.b32.xlu0 %v4404, 4
      %v4913 = vpop.permute.xlu0 %4912
      %4914 = vrot.lane.b32.xlu0 %v4472, 4
      %v4915 = vpop.permute.xlu0 %4914
      %4916 = vrot.lane.b32.xlu0 %v4540, 4
      %v4917 = vpop.permute.xlu0 %4916
      %4918 = vrot.lane.b32.xlu0 %v4608, 4
      %v4919 = vpop.permute.xlu0 %4918
      %4920 = vrot.lane.b32.xlu0 %v4676, 4
      %v4921 = vpop.permute.xlu0 %4920
      %4922 = vrot.lane.b32.xlu0 %v4744, 4
      %v4923 = vpop.permute.xlu0 %4922
      %4924 = vrot.lane.b32.xlu0 %v4812, 4
      %v4925 = vpop.permute.xlu0 %4924
      %4958 = vrot.lane.b32.xlu0 %v3793, 6
      %v4959 = vpop.permute.xlu0 %4958
      %4960 = vrot.lane.b32.xlu0 %v3861, 6
      %v4961 = vpop.permute.xlu0 %4960
      %4962 = vrot.lane.b32.xlu0 %v3929, 6
      %v4963 = vpop.permute.xlu0 %4962
      %4964 = vrot.lane.b32.xlu0 %v3997, 6
      %v4965 = vpop.permute.xlu0 %4964
      %4966 = vrot.lane.b32.xlu0 %v4065, 6
      %v4967 = vpop.permute.xlu0 %4966
      %4968 = vrot.lane.b32.xlu0 %v4133, 6
      %v4969 = vpop.permute.xlu0 %4968
      %4970 = vrot.lane.b32.xlu0 %v4201, 6
      %v4971 = vpop.permute.xlu0 %4970
      %4972 = vrot.lane.b32.xlu0 %v4269, 6
      %v4973 = vpop.permute.xlu0 %4972
      %4974 = vrot.lane.b32.xlu0 %v4337, 6
      %v4975 = vpop.permute.xlu0 %4974
      %4976 = vrot.lane.b32.xlu0 %v4405, 6
      %v4977 = vpop.permute.xlu0 %4976
      %4978 = vrot.lane.b32.xlu0 %v4473, 6
      %v4979 = vpop.permute.xlu0 %4978
      %4980 = vrot.lane.b32.xlu0 %v4541, 6
      %v4981 = vpop.permute.xlu0 %4980
      %4982 = vrot.lane.b32.xlu0 %v4609, 6
      %v4983 = vpop.permute.xlu0 %4982
      %4984 = vrot.lane.b32.xlu0 %v4677, 6
      %v4985 = vpop.permute.xlu0 %4984
      %4986 = vrot.lane.b32.xlu0 %v4745, 6
      %v4987 = vpop.permute.xlu0 %4986
      %4988 = vrot.lane.b32.xlu0 %v4813, 6
      %v4989 = vpop.permute.xlu0 %4988
      %vm5006 = vcmask 15360
      %v5007 = vsel %vm5006, %v3790, %v4831
      %v5008 = vsel %vm5006, %v3858, %v4833
      %v5009 = vsel %vm5006, %v3926, %v4835
      %v5010 = vsel %vm5006, %v3994, %v4837
      %v5011 = vsel %vm5006, %v4062, %v4839
      %v5012 = vsel %vm5006, %v4130, %v4841
      %v5013 = vsel %vm5006, %v4198, %v4843
      %v5014 = vsel %vm5006, %v4266, %v4845
      %v5015 = vsel %vm5006, %v4334, %v4847
      %v5016 = vsel %vm5006, %v4402, %v4849
      %v5017 = vsel %vm5006, %v4470, %v4851
      %v5018 = vsel %vm5006, %v4538, %v4853
      %v5019 = vsel %vm5006, %v4606, %v4855
      %v5020 = vsel %vm5006, %v4674, %v4857
      %v5021 = vsel %vm5006, %v4742, %v4859
      %v5022 = vsel %vm5006, %v4810, %v4861
      %v5023 = vsel %vm415, %v5007, %v4895
      %v5024 = vsel %vm415, %v5008, %v4897
      %v5025 = vsel %vm415, %v5009, %v4899
      %v5026 = vsel %vm415, %v5010, %v4901
      %v5027 = vsel %vm415, %v5011, %v4903
      %v5028 = vsel %vm415, %v5012, %v4905
      %v5029 = vsel %vm415, %v5013, %v4907
      %v5030 = vsel %vm415, %v5014, %v4909
      %v5031 = vsel %vm415, %v5015, %v4911
      %v5032 = vsel %vm415, %v5016, %v4913
      %v5033 = vsel %vm415, %v5017, %v4915
      %v5034 = vsel %vm415, %v5018, %v4917
      %v5035 = vsel %vm415, %v5019, %v4919
      %v5036 = vsel %vm415, %v5020, %v4921
      %v5037 = vsel %vm415, %v5021, %v4923
      %v5038 = vsel %vm415, %v5022, %v4925
      %vm5039 = vcmask 48128
      %v5040 = vsel %vm5039, %v5023, %v4959
      %v5041 = vsel %vm5039, %v5024, %v4961
      %v5042 = vsel %vm5039, %v5025, %v4963
      %v5043 = vsel %vm5039, %v5026, %v4965
      %v5044 = vsel %vm5039, %v5027, %v4967
      %v5045 = vsel %vm5039, %v5028, %v4969
      %v5046 = vsel %vm5039, %v5029, %v4971
      %v5047 = vsel %vm5039, %v5030, %v4973
      %v5048 = vsel %vm5039, %v5031, %v4975
      %v5049 = vsel %vm5039, %v5032, %v4977
      %v5050 = vsel %vm5039, %v5033, %v4979
      %v5051 = vsel %vm5039, %v5034, %v4981
      %v5052 = vsel %vm5039, %v5035, %v4983
      %v5053 = vsel %vm5039, %v5036, %v4985
      %v5054 = vsel %vm5039, %v5037, %v4987
      %v5055 = vsel %vm5039, %v5038, %v4989
      %vm5056 = vcmask 64512
      %5057 = vst.msk [vmem:[%s278] sm:$0xff] %vm5056, %v5040
      %5058 = vst.msk [vmem:[%s278 + $0x8] sm:$0xff] %vm5056, %v5041
      %5059 = vst.msk [vmem:[%s278 + $0x10] sm:$0xff] %vm5056, %v5042
      %5060 = vst.msk [vmem:[%s278 + $0x18] sm:$0xff] %vm5056, %v5043
      %5061 = vst.msk [vmem:[%s278 + $0x20] sm:$0xff] %vm5056, %v5044
      %5062 = vst.msk [vmem:[%s278 + $0x28] sm:$0xff] %vm5056, %v5045
      %5063 = vst.msk [vmem:[%s278 + $0x30] sm:$0xff] %vm5056, %v5046
      %5064 = vst.msk [vmem:[%s278 + $0x38] sm:$0xff] %vm5056, %v5047
      %5065 = vst.msk [vmem:[%s278 + $0x40] sm:$0xff] %vm5056, %v5048
      %5066 = vst.msk [vmem:[%s278 + $0x48] sm:$0xff] %vm5056, %v5049
      %5067 = vst.msk [vmem:[%s278 + $0x50] sm:$0xff] %vm5056, %v5050
      %5068 = vst.msk [vmem:[%s278 + $0x58] sm:$0xff] %vm5056, %v5051
      %5069 = vst.msk [vmem:[%s278 + $0x60] sm:$0xff] %vm5056, %v5052
      %5070 = vst.msk [vmem:[%s278 + $0x68] sm:$0xff] %vm5056, %v5053
      %5071 = vst.msk [vmem:[%s278 + $0x70] sm:$0xff] %vm5056, %v5054
      %5072 = vst.msk [vmem:[%s278 + $0x78] sm:$0xff] %vm5056, %v5055
      %s5073 = scalar_lea.vmem [#allocation2], 192
      %v5074 = vld [vmem:[%s5073] sm:$0xff]
      %v5075 = vld [vmem:[%s5073 + $0x8] sm:$0xff]
      %v5076 = vld [vmem:[%s5073 + $0x18] sm:$0xff]
      %v5077 = vld [vmem:[%s5073 + $0x20] sm:$0xff]
      %v5078 = vld [vmem:[%s5073 + $0x30] sm:$0xff]
      %v5079 = vld [vmem:[%s5073 + $0x38] sm:$0xff]
      %v5080 = vld [vmem:[%s5073 + $0x48] sm:$0xff]
      %v5081 = vld [vmem:[%s5073 + $0x50] sm:$0xff]
      %v5082 = vld [vmem:[%s5073 + $0x60] sm:$0xff]
      %v5083 = vld [vmem:[%s5073 + $0x68] sm:$0xff]
      %v5084 = vld [vmem:[%s5073 + $0x78] sm:$0xff]
      %v5085 = vld [vmem:[%s5073 + $0x80] sm:$0xff]
      %v5086 = vld [vmem:[%s5073 + $0x90] sm:$0xff]
      %v5087 = vld [vmem:[%s5073 + $0x98] sm:$0xff]
      %v5088 = vld [vmem:[%s5073 + $0xa8] sm:$0xff]
      %v5089 = vld [vmem:[%s5073 + $0xb0] sm:$0xff]
      %v5090 = vmul.f32 %v5074, %v1035
      %v5091 = vmul.f32 %v5075, %v1035
      %v5092 = vmul.f32 %v5076, %v1035
      %v5093 = vmul.f32 %v5077, %v1035
      %v5094 = vmul.f32 %v5078, %v1035
      %v5095 = vmul.f32 %v5079, %v1035
      %v5096 = vmul.f32 %v5080, %v1035
      %v5097 = vmul.f32 %v5081, %v1035
      %v5098 = vmul.f32 %v5082, %v1035
      %v5099 = vmul.f32 %v5083, %v1035
      %v5100 = vmul.f32 %v5084, %v1035
      %v5101 = vmul.f32 %v5085, %v1035
      %v5102 = vmul.f32 %v5086, %v1035
      %v5103 = vmul.f32 %v5087, %v1035
      %v5104 = vmul.f32 %v5088, %v1035
      %v5105 = vmul.f32 %v5089, %v1035
      %v5106 = vld [vmem:[%s5073 + $0x1] sm:$0xff]
      %v5107 = vld [vmem:[%s5073 + $0x9] sm:$0xff]
      %v5108 = vld [vmem:[%s5073 + $0x19] sm:$0xff]
      %v5109 = vld [vmem:[%s5073 + $0x21] sm:$0xff]
      %v5110 = vld [vmem:[%s5073 + $0x31] sm:$0xff]
      %v5111 = vld [vmem:[%s5073 + $0x39] sm:$0xff]
      %v5112 = vld [vmem:[%s5073 + $0x49] sm:$0xff]
      %v5113 = vld [vmem:[%s5073 + $0x51] sm:$0xff]
      %v5114 = vld [vmem:[%s5073 + $0x61] sm:$0xff]
      %v5115 = vld [vmem:[%s5073 + $0x69] sm:$0xff]
      %v5116 = vld [vmem:[%s5073 + $0x79] sm:$0xff]
      %v5117 = vld [vmem:[%s5073 + $0x81] sm:$0xff]
      %v5118 = vld [vmem:[%s5073 + $0x91] sm:$0xff]
      %v5119 = vld [vmem:[%s5073 + $0x99] sm:$0xff]
      %v5120 = vld [vmem:[%s5073 + $0xa9] sm:$0xff]
      %v5121 = vld [vmem:[%s5073 + $0xb1] sm:$0xff]
      %v5122 = vmul.f32 %v5106, %v1071
      %v5123 = vmul.f32 %v5107, %v1071
      %v5124 = vmul.f32 %v5108, %v1071
      %v5125 = vmul.f32 %v5109, %v1071
      %v5126 = vmul.f32 %v5110, %v1071
      %v5127 = vmul.f32 %v5111, %v1071
      %v5128 = vmul.f32 %v5112, %v1071
      %v5129 = vmul.f32 %v5113, %v1071
      %v5130 = vmul.f32 %v5114, %v1071
      %v5131 = vmul.f32 %v5115, %v1071
      %v5132 = vmul.f32 %v5116, %v1071
      %v5133 = vmul.f32 %v5117, %v1071
      %v5134 = vmul.f32 %v5118, %v1071
      %v5135 = vmul.f32 %v5119, %v1071
      %v5136 = vmul.f32 %v5120, %v1071
      %v5137 = vmul.f32 %v5121, %v1071
      %v5138 = vadd.f32 %v5090, %v5122
      %v5139 = vadd.f32 %v5091, %v5123
      %v5140 = vadd.f32 %v5092, %v5124
      %v5141 = vadd.f32 %v5093, %v5125
      %v5142 = vadd.f32 %v5094, %v5126
      %v5143 = vadd.f32 %v5095, %v5127
      %v5144 = vadd.f32 %v5096, %v5128
      %v5145 = vadd.f32 %v5097, %v5129
      %v5146 = vadd.f32 %v5098, %v5130
      %v5147 = vadd.f32 %v5099, %v5131
      %v5148 = vadd.f32 %v5100, %v5132
      %v5149 = vadd.f32 %v5101, %v5133
      %v5150 = vadd.f32 %v5102, %v5134
      %v5151 = vadd.f32 %v5103, %v5135
      %v5152 = vadd.f32 %v5104, %v5136
      %v5153 = vadd.f32 %v5105, %v5137
      %v5154 = vld [vmem:[%s5073 + $0x2] sm:$0xff]
      %v5155 = vld [vmem:[%s5073 + $0xa] sm:$0xff]
      %v5156 = vld [vmem:[%s5073 + $0x1a] sm:$0xff]
      %v5157 = vld [vmem:[%s5073 + $0x22] sm:$0xff]
      %v5158 = vld [vmem:[%s5073 + $0x32] sm:$0xff]
      %v5159 = vld [vmem:[%s5073 + $0x3a] sm:$0xff]
      %v5160 = vld [vmem:[%s5073 + $0x4a] sm:$0xff]
      %v5161 = vld [vmem:[%s5073 + $0x52] sm:$0xff]
      %v5162 = vld [vmem:[%s5073 + $0x62] sm:$0xff]
      %v5163 = vld [vmem:[%s5073 + $0x6a] sm:$0xff]
      %v5164 = vld [vmem:[%s5073 + $0x7a] sm:$0xff]
      %v5165 = vld [vmem:[%s5073 + $0x82] sm:$0xff]
      %v5166 = vld [vmem:[%s5073 + $0x92] sm:$0xff]
      %v5167 = vld [vmem:[%s5073 + $0x9a] sm:$0xff]
      %v5168 = vld [vmem:[%s5073 + $0xaa] sm:$0xff]
      %v5169 = vld [vmem:[%s5073 + $0xb2] sm:$0xff]
      %v5170 = vmul.f32 %v5154, %v1123
      %v5171 = vmul.f32 %v5155, %v1123
      %v5172 = vmul.f32 %v5156, %v1123
      %v5173 = vmul.f32 %v5157, %v1123
      %v5174 = vmul.f32 %v5158, %v1123
      %v5175 = vmul.f32 %v5159, %v1123
      %v5176 = vmul.f32 %v5160, %v1123
      %v5177 = vmul.f32 %v5161, %v1123
      %v5178 = vmul.f32 %v5162, %v1123
      %v5179 = vmul.f32 %v5163, %v1123
      %v5180 = vmul.f32 %v5164, %v1123
      %v5181 = vmul.f32 %v5165, %v1123
      %v5182 = vmul.f32 %v5166, %v1123
      %v5183 = vmul.f32 %v5167, %v1123
      %v5184 = vmul.f32 %v5168, %v1123
      %v5185 = vmul.f32 %v5169, %v1123
      %v5186 = vadd.f32 %v5138, %v5170
      %v5187 = vadd.f32 %v5139, %v5171
      %v5188 = vadd.f32 %v5140, %v5172
      %v5189 = vadd.f32 %v5141, %v5173
      %v5190 = vadd.f32 %v5142, %v5174
      %v5191 = vadd.f32 %v5143, %v5175
      %v5192 = vadd.f32 %v5144, %v5176
      %v5193 = vadd.f32 %v5145, %v5177
      %v5194 = vadd.f32 %v5146, %v5178
      %v5195 = vadd.f32 %v5147, %v5179
      %v5196 = vadd.f32 %v5148, %v5180
      %v5197 = vadd.f32 %v5149, %v5181
      %v5198 = vadd.f32 %v5150, %v5182
      %v5199 = vadd.f32 %v5151, %v5183
      %v5200 = vadd.f32 %v5152, %v5184
      %v5201 = vadd.f32 %v5153, %v5185
      %s5202 = scalar_lea.vmem [#allocation2], 216
      %v5203 = vld [vmem:[%s5202] sm:$0xff]
      %v5204 = vld [vmem:[%s5202 + $0x8] sm:$0xff]
      %v5205 = vld [vmem:[%s5202 + $0x18] sm:$0xff]
      %v5206 = vld [vmem:[%s5202 + $0x20] sm:$0xff]
      %v5207 = vld [vmem:[%s5202 + $0x30] sm:$0xff]
      %v5208 = vld [vmem:[%s5202 + $0x38] sm:$0xff]
      %v5209 = vld [vmem:[%s5202 + $0x48] sm:$0xff]
      %v5210 = vld [vmem:[%s5202 + $0x50] sm:$0xff]
      %v5211 = vld [vmem:[%s5202 + $0x60] sm:$0xff]
      %v5212 = vld [vmem:[%s5202 + $0x68] sm:$0xff]
      %v5213 = vld [vmem:[%s5202 + $0x78] sm:$0xff]
      %v5214 = vld [vmem:[%s5202 + $0x80] sm:$0xff]
      %v5215 = vld [vmem:[%s5202 + $0x90] sm:$0xff]
      %v5216 = vld [vmem:[%s5202 + $0x98] sm:$0xff]
      %v5217 = vld [vmem:[%s5202 + $0xa8] sm:$0xff]
      %v5218 = vld [vmem:[%s5202 + $0xb0] sm:$0xff]
      %v5219 = vmul.f32 %v5203, %v1175
      %v5220 = vmul.f32 %v5204, %v1175
      %v5221 = vmul.f32 %v5205, %v1175
      %v5222 = vmul.f32 %v5206, %v1175
      %v5223 = vmul.f32 %v5207, %v1175
      %v5224 = vmul.f32 %v5208, %v1175
      %v5225 = vmul.f32 %v5209, %v1175
      %v5226 = vmul.f32 %v5210, %v1175
      %v5227 = vmul.f32 %v5211, %v1175
      %v5228 = vmul.f32 %v5212, %v1175
      %v5229 = vmul.f32 %v5213, %v1175
      %v5230 = vmul.f32 %v5214, %v1175
      %v5231 = vmul.f32 %v5215, %v1175
      %v5232 = vmul.f32 %v5216, %v1175
      %v5233 = vmul.f32 %v5217, %v1175
      %v5234 = vmul.f32 %v5218, %v1175
      %v5235 = vadd.f32 %v5186, %v5219
      %v5236 = vadd.f32 %v5187, %v5220
      %v5237 = vadd.f32 %v5188, %v5221
      %v5238 = vadd.f32 %v5189, %v5222
      %v5239 = vadd.f32 %v5190, %v5223
      %v5240 = vadd.f32 %v5191, %v5224
      %v5241 = vadd.f32 %v5192, %v5225
      %v5242 = vadd.f32 %v5193, %v5226
      %v5243 = vadd.f32 %v5194, %v5227
      %v5244 = vadd.f32 %v5195, %v5228
      %v5245 = vadd.f32 %v5196, %v5229
      %v5246 = vadd.f32 %v5197, %v5230
      %v5247 = vadd.f32 %v5198, %v5231
      %v5248 = vadd.f32 %v5199, %v5232
      %v5249 = vadd.f32 %v5200, %v5233
      %v5250 = vadd.f32 %v5201, %v5234
      %v5251 = vld [vmem:[%s5202 + $0x1] sm:$0xff]
      %v5252 = vld [vmem:[%s5202 + $0x9] sm:$0xff]
      %v5253 = vld [vmem:[%s5202 + $0x19] sm:$0xff]
      %v5254 = vld [vmem:[%s5202 + $0x21] sm:$0xff]
      %v5255 = vld [vmem:[%s5202 + $0x31] sm:$0xff]
      %v5256 = vld [vmem:[%s5202 + $0x39] sm:$0xff]
      %v5257 = vld [vmem:[%s5202 + $0x49] sm:$0xff]
      %v5258 = vld [vmem:[%s5202 + $0x51] sm:$0xff]
      %v5259 = vld [vmem:[%s5202 + $0x61] sm:$0xff]
      %v5260 = vld [vmem:[%s5202 + $0x69] sm:$0xff]
      %v5261 = vld [vmem:[%s5202 + $0x79] sm:$0xff]
      %v5262 = vld [vmem:[%s5202 + $0x81] sm:$0xff]
      %v5263 = vld [vmem:[%s5202 + $0x91] sm:$0xff]
      %v5264 = vld [vmem:[%s5202 + $0x99] sm:$0xff]
      %v5265 = vld [vmem:[%s5202 + $0xa9] sm:$0xff]
      %v5266 = vld [vmem:[%s5202 + $0xb1] sm:$0xff]
      %v5267 = vmul.f32 %v5251, %v1227
      %v5268 = vmul.f32 %v5252, %v1227
      %v5269 = vmul.f32 %v5253, %v1227
      %v5270 = vmul.f32 %v5254, %v1227
      %v5271 = vmul.f32 %v5255, %v1227
      %v5272 = vmul.f32 %v5256, %v1227
      %v5273 = vmul.f32 %v5257, %v1227
      %v5274 = vmul.f32 %v5258, %v1227
      %v5275 = vmul.f32 %v5259, %v1227
      %v5276 = vmul.f32 %v5260, %v1227
      %v5277 = vmul.f32 %v5261, %v1227
      %v5278 = vmul.f32 %v5262, %v1227
      %v5279 = vmul.f32 %v5263, %v1227
      %v5280 = vmul.f32 %v5264, %v1227
      %v5281 = vmul.f32 %v5265, %v1227
      %v5282 = vmul.f32 %v5266, %v1227
      %v5283 = vadd.f32 %v5235, %v5267
      %v5284 = vadd.f32 %v5236, %v5268
      %v5285 = vadd.f32 %v5237, %v5269
      %v5286 = vadd.f32 %v5238, %v5270
      %v5287 = vadd.f32 %v5239, %v5271
      %v5288 = vadd.f32 %v5240, %v5272
      %v5289 = vadd.f32 %v5241, %v5273
      %v5290 = vadd.f32 %v5242, %v5274
      %v5291 = vadd.f32 %v5243, %v5275
      %v5292 = vadd.f32 %v5244, %v5276
      %v5293 = vadd.f32 %v5245, %v5277
      %v5294 = vadd.f32 %v5246, %v5278
      %v5295 = vadd.f32 %v5247, %v5279
      %v5296 = vadd.f32 %v5248, %v5280
      %v5297 = vadd.f32 %v5249, %v5281
      %v5298 = vadd.f32 %v5250, %v5282
      %v5299 = vld [vmem:[%s5202 + $0x2] sm:$0xff]
      %v5300 = vld [vmem:[%s5202 + $0xa] sm:$0xff]
      %v5301 = vld [vmem:[%s5202 + $0x1a] sm:$0xff]
      %v5302 = vld [vmem:[%s5202 + $0x22] sm:$0xff]
      %v5303 = vld [vmem:[%s5202 + $0x32] sm:$0xff]
      %v5304 = vld [vmem:[%s5202 + $0x3a] sm:$0xff]
      %v5305 = vld [vmem:[%s5202 + $0x4a] sm:$0xff]
      %v5306 = vld [vmem:[%s5202 + $0x52] sm:$0xff]
      %v5307 = vld [vmem:[%s5202 + $0x62] sm:$0xff]
      %v5308 = vld [vmem:[%s5202 + $0x6a] sm:$0xff]
      %v5309 = vld [vmem:[%s5202 + $0x7a] sm:$0xff]
      %v5310 = vld [vmem:[%s5202 + $0x82] sm:$0xff]
      %v5311 = vld [vmem:[%s5202 + $0x92] sm:$0xff]
      %v5312 = vld [vmem:[%s5202 + $0x9a] sm:$0xff]
      %v5313 = vld [vmem:[%s5202 + $0xaa] sm:$0xff]
      %v5314 = vld [vmem:[%s5202 + $0xb2] sm:$0xff]
      %v5315 = vmul.f32 %v5299, %v1279
      %v5316 = vmul.f32 %v5300, %v1279
      %v5317 = vmul.f32 %v5301, %v1279
      %v5318 = vmul.f32 %v5302, %v1279
      %v5319 = vmul.f32 %v5303, %v1279
      %v5320 = vmul.f32 %v5304, %v1279
      %v5321 = vmul.f32 %v5305, %v1279
      %v5322 = vmul.f32 %v5306, %v1279
      %v5323 = vmul.f32 %v5307, %v1279
      %v5324 = vmul.f32 %v5308, %v1279
      %v5325 = vmul.f32 %v5309, %v1279
      %v5326 = vmul.f32 %v5310, %v1279
      %v5327 = vmul.f32 %v5311, %v1279
      %v5328 = vmul.f32 %v5312, %v1279
      %v5329 = vmul.f32 %v5313, %v1279
      %v5330 = vmul.f32 %v5314, %v1279
      %v5331 = vadd.f32 %v5283, %v5315
      %v5332 = vadd.f32 %v5284, %v5316
      %v5333 = vadd.f32 %v5285, %v5317
      %v5334 = vadd.f32 %v5286, %v5318
      %v5335 = vadd.f32 %v5287, %v5319
      %v5336 = vadd.f32 %v5288, %v5320
      %v5337 = vadd.f32 %v5289, %v5321
      %v5338 = vadd.f32 %v5290, %v5322
      %v5339 = vadd.f32 %v5291, %v5323
      %v5340 = vadd.f32 %v5292, %v5324
      %v5341 = vadd.f32 %v5293, %v5325
      %v5342 = vadd.f32 %v5294, %v5326
      %v5343 = vadd.f32 %v5295, %v5327
      %v5344 = vadd.f32 %v5296, %v5328
      %v5345 = vadd.f32 %v5297, %v5329
      %v5346 = vadd.f32 %v5298, %v5330
      %s5347 = scalar_lea.vmem [#allocation2], 240
      %v5348 = vld [vmem:[%s5347] sm:$0xff]
      %v5349 = vld [vmem:[%s5347 + $0x8] sm:$0xff]
      %v5350 = vld [vmem:[%s5347 + $0x18] sm:$0xff]
      %v5351 = vld [vmem:[%s5347 + $0x20] sm:$0xff]
      %v5352 = vld [vmem:[%s5347 + $0x30] sm:$0xff]
      %v5353 = vld [vmem:[%s5347 + $0x38] sm:$0xff]
      %v5354 = vld [vmem:[%s5347 + $0x48] sm:$0xff]
      %v5355 = vld [vmem:[%s5347 + $0x50] sm:$0xff]
      %v5356 = vld [vmem:[%s5347 + $0x60] sm:$0xff]
      %v5357 = vld [vmem:[%s5347 + $0x68] sm:$0xff]
      %v5358 = vld [vmem:[%s5347 + $0x78] sm:$0xff]
      %v5359 = vld [vmem:[%s5347 + $0x80] sm:$0xff]
      %v5360 = vld [vmem:[%s5347 + $0x90] sm:$0xff]
      %v5361 = vld [vmem:[%s5347 + $0x98] sm:$0xff]
      %v5362 = vld [vmem:[%s5347 + $0xa8] sm:$0xff]
      %v5363 = vld [vmem:[%s5347 + $0xb0] sm:$0xff]
      %v5364 = vmul.f32 %v5348, %v1332
      %v5365 = vmul.f32 %v5349, %v1332
      %v5366 = vmul.f32 %v5350, %v1332
      %v5367 = vmul.f32 %v5351, %v1332
      %v5368 = vmul.f32 %v5352, %v1332
      %v5369 = vmul.f32 %v5353, %v1332
      %v5370 = vmul.f32 %v5354, %v1332
      %v5371 = vmul.f32 %v5355, %v1332
      %v5372 = vmul.f32 %v5356, %v1332
      %v5373 = vmul.f32 %v5357, %v1332
      %v5374 = vmul.f32 %v5358, %v1332
      %v5375 = vmul.f32 %v5359, %v1332
      %v5376 = vmul.f32 %v5360, %v1332
      %v5377 = vmul.f32 %v5361, %v1332
      %v5378 = vmul.f32 %v5362, %v1332
      %v5379 = vmul.f32 %v5363, %v1332
      %v5380 = vadd.f32 %v5331, %v5364
      %v5381 = vadd.f32 %v5332, %v5365
      %v5382 = vadd.f32 %v5333, %v5366
      %v5383 = vadd.f32 %v5334, %v5367
      %v5384 = vadd.f32 %v5335, %v5368
      %v5385 = vadd.f32 %v5336, %v5369
      %v5386 = vadd.f32 %v5337, %v5370
      %v5387 = vadd.f32 %v5338, %v5371
      %v5388 = vadd.f32 %v5339, %v5372
      %v5389 = vadd.f32 %v5340, %v5373
      %v5390 = vadd.f32 %v5341, %v5374
      %v5391 = vadd.f32 %v5342, %v5375
      %v5392 = vadd.f32 %v5343, %v5376
      %v5393 = vadd.f32 %v5344, %v5377
      %v5394 = vadd.f32 %v5345, %v5378
      %v5395 = vadd.f32 %v5346, %v5379
      %v5396 = vld [vmem:[%s5347 + $0x1] sm:$0xff]
      %v5397 = vld [vmem:[%s5347 + $0x9] sm:$0xff]
      %v5398 = vld [vmem:[%s5347 + $0x19] sm:$0xff]
      %v5399 = vld [vmem:[%s5347 + $0x21] sm:$0xff]
      %v5400 = vld [vmem:[%s5347 + $0x31] sm:$0xff]
      %v5401 = vld [vmem:[%s5347 + $0x39] sm:$0xff]
      %v5402 = vld [vmem:[%s5347 + $0x49] sm:$0xff]
      %v5403 = vld [vmem:[%s5347 + $0x51] sm:$0xff]
      %v5404 = vld [vmem:[%s5347 + $0x61] sm:$0xff]
      %v5405 = vld [vmem:[%s5347 + $0x69] sm:$0xff]
      %v5406 = vld [vmem:[%s5347 + $0x79] sm:$0xff]
      %v5407 = vld [vmem:[%s5347 + $0x81] sm:$0xff]
      %v5408 = vld [vmem:[%s5347 + $0x91] sm:$0xff]
      %v5409 = vld [vmem:[%s5347 + $0x99] sm:$0xff]
      %v5410 = vld [vmem:[%s5347 + $0xa9] sm:$0xff]
      %v5411 = vld [vmem:[%s5347 + $0xb1] sm:$0xff]
      %v5412 = vmul.f32 %v5396, %v1384
      %v5413 = vmul.f32 %v5397, %v1384
      %v5414 = vmul.f32 %v5398, %v1384
      %v5415 = vmul.f32 %v5399, %v1384
      %v5416 = vmul.f32 %v5400, %v1384
      %v5417 = vmul.f32 %v5401, %v1384
      %v5418 = vmul.f32 %v5402, %v1384
      %v5419 = vmul.f32 %v5403, %v1384
      %v5420 = vmul.f32 %v5404, %v1384
      %v5421 = vmul.f32 %v5405, %v1384
      %v5422 = vmul.f32 %v5406, %v1384
      %v5423 = vmul.f32 %v5407, %v1384
      %v5424 = vmul.f32 %v5408, %v1384
      %v5425 = vmul.f32 %v5409, %v1384
      %v5426 = vmul.f32 %v5410, %v1384
      %v5427 = vmul.f32 %v5411, %v1384
      %v5428 = vadd.f32 %v5380, %v5412
      %v5429 = vadd.f32 %v5381, %v5413
      %v5430 = vadd.f32 %v5382, %v5414
      %v5431 = vadd.f32 %v5383, %v5415
      %v5432 = vadd.f32 %v5384, %v5416
      %v5433 = vadd.f32 %v5385, %v5417
      %v5434 = vadd.f32 %v5386, %v5418
      %v5435 = vadd.f32 %v5387, %v5419
      %v5436 = vadd.f32 %v5388, %v5420
      %v5437 = vadd.f32 %v5389, %v5421
      %v5438 = vadd.f32 %v5390, %v5422
      %v5439 = vadd.f32 %v5391, %v5423
      %v5440 = vadd.f32 %v5392, %v5424
      %v5441 = vadd.f32 %v5393, %v5425
      %v5442 = vadd.f32 %v5394, %v5426
      %v5443 = vadd.f32 %v5395, %v5427
      %v5444 = vld [vmem:[%s5347 + $0x2] sm:$0xff]
      %v5445 = vld [vmem:[%s5347 + $0xa] sm:$0xff]
      %v5446 = vld [vmem:[%s5347 + $0x1a] sm:$0xff]
      %v5447 = vld [vmem:[%s5347 + $0x22] sm:$0xff]
      %v5448 = vld [vmem:[%s5347 + $0x32] sm:$0xff]
      %v5449 = vld [vmem:[%s5347 + $0x3a] sm:$0xff]
      %v5450 = vld [vmem:[%s5347 + $0x4a] sm:$0xff]
      %v5451 = vld [vmem:[%s5347 + $0x52] sm:$0xff]
      %v5452 = vld [vmem:[%s5347 + $0x62] sm:$0xff]
      %v5453 = vld [vmem:[%s5347 + $0x6a] sm:$0xff]
      %v5454 = vld [vmem:[%s5347 + $0x7a] sm:$0xff]
      %v5455 = vld [vmem:[%s5347 + $0x82] sm:$0xff]
      %v5456 = vld [vmem:[%s5347 + $0x92] sm:$0xff]
      %v5457 = vld [vmem:[%s5347 + $0x9a] sm:$0xff]
      %v5458 = vld [vmem:[%s5347 + $0xaa] sm:$0xff]
      %v5459 = vld [vmem:[%s5347 + $0xb2] sm:$0xff]
      %v5460 = vmul.f32 %v5444, %v1436
      %v5461 = vmul.f32 %v5445, %v1436
      %v5462 = vmul.f32 %v5446, %v1436
      %v5463 = vmul.f32 %v5447, %v1436
      %v5464 = vmul.f32 %v5448, %v1436
      %v5465 = vmul.f32 %v5449, %v1436
      %v5466 = vmul.f32 %v5450, %v1436
      %v5467 = vmul.f32 %v5451, %v1436
      %v5468 = vmul.f32 %v5452, %v1436
      %v5469 = vmul.f32 %v5453, %v1436
      %v5470 = vmul.f32 %v5454, %v1436
      %v5471 = vmul.f32 %v5455, %v1436
      %v5472 = vmul.f32 %v5456, %v1436
      %v5473 = vmul.f32 %v5457, %v1436
      %v5474 = vmul.f32 %v5458, %v1436
      %v5475 = vmul.f32 %v5459, %v1436
      %v5476 = vadd.f32 %v5428, %v5460
      %v5477 = vadd.f32 %v5429, %v5461
      %v5478 = vadd.f32 %v5430, %v5462
      %v5479 = vadd.f32 %v5431, %v5463
      %v5480 = vadd.f32 %v5432, %v5464
      %v5481 = vadd.f32 %v5433, %v5465
      %v5482 = vadd.f32 %v5434, %v5466
      %v5483 = vadd.f32 %v5435, %v5467
      %v5484 = vadd.f32 %v5436, %v5468
      %v5485 = vadd.f32 %v5437, %v5469
      %v5486 = vadd.f32 %v5438, %v5470
      %v5487 = vadd.f32 %v5439, %v5471
      %v5488 = vadd.f32 %v5440, %v5472
      %v5489 = vadd.f32 %v5441, %v5473
      %v5490 = vadd.f32 %v5442, %v5474
      %v5491 = vadd.f32 %v5443, %v5475
      %v5492 = vadd.f32 %v5476, %v1473
      %v5493 = vadd.f32 %v5477, %v1473
      %v5494 = vadd.f32 %v5478, %v1473
      %v5495 = vadd.f32 %v5479, %v1473
      %v5496 = vadd.f32 %v5480, %v1473
      %v5497 = vadd.f32 %v5481, %v1473
      %v5498 = vadd.f32 %v5482, %v1473
      %v5499 = vadd.f32 %v5483, %v1473
      %v5500 = vadd.f32 %v5484, %v1473
      %v5501 = vadd.f32 %v5485, %v1473
      %v5502 = vadd.f32 %v5486, %v1473
      %v5503 = vadd.f32 %v5487, %v1473
      %v5504 = vadd.f32 %v5488, %v1473
      %v5505 = vadd.f32 %v5489, %v1473
      %v5506 = vadd.f32 %v5490, %v1473
      %v5507 = vadd.f32 %v5491, %v1473
      %v5509 = vsel %vm415, %v5492, 0
      %v5512 = vsel %vm415, %v5493, 0
      %v5515 = vsel %vm415, %v5494, 0
      %v5518 = vsel %vm415, %v5495, 0
      %v5521 = vsel %vm415, %v5496, 0
      %v5524 = vsel %vm415, %v5497, 0
      %v5527 = vsel %vm415, %v5498, 0
      %v5530 = vsel %vm415, %v5499, 0
      %v5533 = vsel %vm415, %v5500, 0
      %v5536 = vsel %vm415, %v5501, 0
      %v5539 = vsel %vm415, %v5502, 0
      %v5542 = vsel %vm415, %v5503, 0
      %v5545 = vsel %vm415, %v5504, 0
      %v5548 = vsel %vm415, %v5505, 0
      %v5551 = vsel %vm415, %v5506, 0
      %v5554 = vsel %vm415, %v5507, 0
      %5556 = vmatprep.subr.mxu0 0.0
      %5557 = vmatpush1.msra.mxu0 %v1546
      %5558 = vmatprep.subr.mxu0 0.0
      %5559 = vmatpush1.msra.mxu0 0.0
      %5560 = vmatprep.subr.mxu0 0.0
      %5561 = vmatpush1.msra.mxu0 0.0
      %5562 = vmatprep.subr.mxu0 0.0
      %5563 = vmatpush1.msra.mxu0 0.0
      %5564 = vmatprep.subr.mxu0 0.0
      %5565 = vmatpush1.msra.mxu0 0.0
      %5566 = vmatprep.subr.mxu0 0.0
      %5567 = vmatpush1.msra.mxu0 0.0
      %5568 = vmatprep.subr.mxu0 0.0
      %5569 = vmatpush1.msra.mxu0 0.0
      %5570 = vmatprep.subr.mxu0 0.0
      %5571 = vmatpush1.msra.mxu0 0.0
      %5572 = vmatprep.subr.mxu0 0.0
      %5573 = vmatpush1.msra.mxu0 0.0
      %5574 = vmatprep.subr.mxu0 0.0
      %5575 = vmatpush1.msra.mxu0 0.0
      %5576 = vmatprep.subr.mxu0 0.0
      %5577 = vmatpush1.msra.mxu0 0.0
      %5578 = vmatprep.subr.mxu0 0.0
      %5579 = vmatpush1.msra.mxu0 0.0
      %5580 = vmatprep.subr.mxu0 0.0
      %5581 = vmatpush1.msra.mxu0 0.0
      %5582 = vmatprep.subr.mxu0 0.0
      %5583 = vmatpush1.msra.mxu0 0.0
      %5584 = vmatprep.subr.mxu0 0.0
      %5585 = vmatpush1.msra.mxu0 0.0
      %5586 = vmatprep.subr.mxu0 0.0
      %5587 = vmatpush1.msra.mxu0 0.0
      %5588 = vmatprep.subr.mxu0 0.0
      %5589 = vmatpush1.msra.mxu0 0.0
      %5590 = vmatprep.subr.mxu0 0.0
      %5591 = vmatpush1.msra.mxu0 0.0
      %5592 = vmatprep.subr.mxu0 0.0
      %5593 = vmatpush1.msra.mxu0 0.0
      %5594 = vmatprep.subr.mxu0 0.0
      %5595 = vmatpush1.msra.mxu0 0.0
      %5596 = vmatprep.subr.mxu0 0.0
      %5597 = vmatpush1.msra.mxu0 0.0
      %5598 = vmatprep.subr.mxu0 0.0
      %5599 = vmatpush1.msra.mxu0 0.0
      %5600 = vmatprep.subr.mxu0 0.0
      %5601 = vmatpush1.msra.mxu0 0.0
      %5602 = vmatprep.subr.mxu0 0.0
      %5603 = vmatpush1.msra.mxu0 0.0
      %5604 = vmatprep.subr.mxu0 0.0
      %5605 = vmatpush1.msra.mxu0 0.0
      %5606 = vmatprep.subr.mxu0 0.0
      %5607 = vmatpush1.msra.mxu0 0.0
      %5608 = vmatprep.subr.mxu0 0.0
      %5609 = vmatpush1.msra.mxu0 0.0
      %5610 = vmatprep.subr.mxu0 0.0
      %5611 = vmatpush1.msra.mxu0 0.0
      %5612 = vmatprep.subr.mxu0 0.0
      %5613 = vmatpush1.msra.mxu0 0.0
      %5614 = vmatprep.subr.mxu0 0.0
      %5615 = vmatpush1.msra.mxu0 0.0
      %5616 = vmatprep.subr.mxu0 0.0
      %5617 = vmatpush1.msra.mxu0 0.0
      %5618 = vmatprep.subr.mxu0 0.0
      %5619 = vmatpush1.msra.mxu0 0.0
      %5620 = vmatprep.mubr.f32.mxu0 0.0
      %5621 = vmatmul.mubr.f32.gmra.mrb[0].mxu0 %v5509
      %v5622 = vpop.f32.mrb[0].mxu0
      %v5623 = vadd.f32 %v1495, %v5622
      %v5624 = vpop.f32.mrb[0].mxu0
      %5625 = vmatprep.mubr.f32.mxu0 0.0
      %5626 = vmatmul.mubr.f32.gmra.mrb[0].mxu0 %v5512
      %v5627 = vpop.f32.mrb[0].mxu0
      %v5628 = vadd.f32 %v1495, %v5627
      %v5629 = vpop.f32.mrb[0].mxu0
      %5630 = vmatprep.mubr.f32.mxu0 0.0
      %5631 = vmatmul.mubr.f32.gmra.mrb[0].mxu0 %v5515
      %v5632 = vpop.f32.mrb[0].mxu0
      %v5633 = vadd.f32 %v1495, %v5632
      %v5634 = vpop.f32.mrb[0].mxu0
      %5635 = vmatprep.mubr.f32.mxu0 0.0
      %5636 = vmatmul.mubr.f32.gmra.mrb[0].mxu0 %v5518
      %v5637 = vpop.f32.mrb[0].mxu0
      %v5638 = vadd.f32 %v1495, %v5637
      %v5639 = vpop.f32.mrb[0].mxu0
      %5640 = vmatprep.mubr.f32.mxu0 0.0
      %5641 = vmatmul.mubr.f32.gmra.mrb[0].mxu0 %v5521
      %v5642 = vpop.f32.mrb[0].mxu0
      %v5643 = vadd.f32 %v1495, %v5642
      %v5644 = vpop.f32.mrb[0].mxu0
      %5645 = vmatprep.mubr.f32.mxu0 0.0
      %5646 = vmatmul.mubr.f32.gmra.mrb[0].mxu0 %v5524
      %v5647 = vpop.f32.mrb[0].mxu0
      %v5648 = vadd.f32 %v1495, %v5647
      %v5649 = vpop.f32.mrb[0].mxu0
      %5650 = vmatprep.mubr.f32.mxu0 0.0
      %5651 = vmatmul.mubr.f32.gmra.mrb[0].mxu0 %v5527
      %v5652 = vpop.f32.mrb[0].mxu0
      %v5653 = vadd.f32 %v1495, %v5652
      %v5654 = vpop.f32.mrb[0].mxu0
      %5655 = vmatprep.mubr.f32.mxu0 0.0
      %5656 = vmatmul.mubr.f32.gmra.mrb[0].mxu0 %v5530
      %v5657 = vpop.f32.mrb[0].mxu0
      %v5658 = vadd.f32 %v1495, %v5657
      %v5659 = vpop.f32.mrb[0].mxu0
      %5660 = vmatprep.mubr.f32.mxu0 0.0
      %5661 = vmatmul.mubr.f32.gmra.mrb[0].mxu0 %v5533
      %v5662 = vpop.f32.mrb[0].mxu0
      %v5663 = vadd.f32 %v1495, %v5662
      %v5664 = vpop.f32.mrb[0].mxu0
      %5665 = vmatprep.mubr.f32.mxu0 0.0
      %5666 = vmatmul.mubr.f32.gmra.mrb[0].mxu0 %v5536
      %v5667 = vpop.f32.mrb[0].mxu0
      %v5668 = vadd.f32 %v1495, %v5667
      %v5669 = vpop.f32.mrb[0].mxu0
      %5670 = vmatprep.mubr.f32.mxu0 0.0
      %5671 = vmatmul.mubr.f32.gmra.mrb[0].mxu0 %v5539
      %v5672 = vpop.f32.mrb[0].mxu0
      %v5673 = vadd.f32 %v1495, %v5672
      %v5674 = vpop.f32.mrb[0].mxu0
      %5675 = vmatprep.mubr.f32.mxu0 0.0
      %5676 = vmatmul.mubr.f32.gmra.mrb[0].mxu0 %v5542
      %v5677 = vpop.f32.mrb[0].mxu0
      %v5678 = vadd.f32 %v1495, %v5677
      %v5679 = vpop.f32.mrb[0].mxu0
      %5680 = vmatprep.mubr.f32.mxu0 0.0
      %5681 = vmatmul.mubr.f32.gmra.mrb[0].mxu0 %v5545
      %v5682 = vpop.f32.mrb[0].mxu0
      %v5683 = vadd.f32 %v1495, %v5682
      %v5684 = vpop.f32.mrb[0].mxu0
      %5685 = vmatprep.mubr.f32.mxu0 0.0
      %5686 = vmatmul.mubr.f32.gmra.mrb[0].mxu0 %v5548
      %v5687 = vpop.f32.mrb[0].mxu0
      %v5688 = vadd.f32 %v1495, %v5687
      %v5689 = vpop.f32.mrb[0].mxu0
      %5690 = vmatprep.mubr.f32.mxu0 0.0
      %5691 = vmatmul.mubr.f32.gmra.mrb[0].mxu0 %v5551
      %v5692 = vpop.f32.mrb[0].mxu0
      %v5693 = vadd.f32 %v1495, %v5692
      %v5694 = vpop.f32.mrb[0].mxu0
      %5695 = vmatprep.mubr.f32.mxu0 0.0
      %5696 = vmatmul.mubr.f32.gmra.mrb[0].mxu0 %v5554
      %v5697 = vpop.f32.mrb[0].mxu0
      %v5698 = vadd.f32 %v1495, %v5697
      %v5699 = vpop.f32.mrb[0].mxu0
      %5700 = vdwg.mxu0
      %v5701 = vxor.u32 %v5623, 2147483648
      %v5702 = vxor.u32 %v5628, 2147483648
      %v5703 = vxor.u32 %v5633, 2147483648
      %v5704 = vxor.u32 %v5638, 2147483648
      %v5705 = vxor.u32 %v5643, 2147483648
      %v5706 = vxor.u32 %v5648, 2147483648
      %v5707 = vxor.u32 %v5653, 2147483648
      %v5708 = vxor.u32 %v5658, 2147483648
      %v5709 = vxor.u32 %v5663, 2147483648
      %v5710 = vxor.u32 %v5668, 2147483648
      %v5711 = vxor.u32 %v5673, 2147483648
      %v5712 = vxor.u32 %v5678, 2147483648
      %v5713 = vxor.u32 %v5683, 2147483648
      %v5714 = vxor.u32 %v5688, 2147483648
      %v5715 = vxor.u32 %v5693, 2147483648
      %v5716 = vxor.u32 %v5698, 2147483648
      %v5717 = vmul.f32 %v5701, 1.442695
      %v5718 = vpow.pop %v5717
      %v5719 = vmul.f32 %v5702, 1.442695
      %v5720 = vpow.pop %v5719
      %v5721 = vmul.f32 %v5703, 1.442695
      %v5722 = vpow.pop %v5721
      %v5723 = vmul.f32 %v5704, 1.442695
      %v5724 = vpow.pop %v5723
      %v5725 = vmul.f32 %v5705, 1.442695
      %v5726 = vpow.pop %v5725
      %v5727 = vmul.f32 %v5706, 1.442695
      %v5728 = vpow.pop %v5727
      %v5729 = vmul.f32 %v5707, 1.442695
      %v5730 = vpow.pop %v5729
      %v5731 = vmul.f32 %v5708, 1.442695
      %v5732 = vpow.pop %v5731
      %v5733 = vmul.f32 %v5709, 1.442695
      %v5734 = vpow.pop %v5733
      %v5735 = vmul.f32 %v5710, 1.442695
      %v5736 = vpow.pop %v5735
      %v5737 = vmul.f32 %v5711, 1.442695
      %v5738 = vpow.pop %v5737
      %v5739 = vmul.f32 %v5712, 1.442695
      %v5740 = vpow.pop %v5739
      %v5741 = vmul.f32 %v5713, 1.442695
      %v5742 = vpow.pop %v5741
      %v5743 = vmul.f32 %v5714, 1.442695
      %v5744 = vpow.pop %v5743
      %v5745 = vmul.f32 %v5715, 1.442695
      %v5746 = vpow.pop %v5745
      %v5747 = vmul.f32 %v5716, 1.442695
      %v5748 = vpow.pop %v5747
      %v5749 = vadd.f32 %v5718, 1.0
      %v5750 = vadd.f32 %v5720, 1.0
      %v5751 = vadd.f32 %v5722, 1.0
      %v5752 = vadd.f32 %v5724, 1.0
      %v5753 = vadd.f32 %v5726, 1.0
      %v5754 = vadd.f32 %v5728, 1.0
      %v5755 = vadd.f32 %v5730, 1.0
      %v5756 = vadd.f32 %v5732, 1.0
      %v5757 = vadd.f32 %v5734, 1.0
      %v5758 = vadd.f32 %v5736, 1.0
      %v5759 = vadd.f32 %v5738, 1.0
      %v5760 = vadd.f32 %v5740, 1.0
      %v5761 = vadd.f32 %v5742, 1.0
      %v5762 = vadd.f32 %v5744, 1.0
      %v5763 = vadd.f32 %v5746, 1.0
      %v5764 = vadd.f32 %v5748, 1.0
      %v5765 = vrcp.pop %v5749
      %v5766 = vmul.f32 1.0, %v5765
      %v5767 = vrcp.pop %v5750
      %v5768 = vmul.f32 1.0, %v5767
      %v5769 = vrcp.pop %v5751
      %v5770 = vmul.f32 1.0, %v5769
      %v5771 = vrcp.pop %v5752
      %v5772 = vmul.f32 1.0, %v5771
      %v5773 = vrcp.pop %v5753
      %v5774 = vmul.f32 1.0, %v5773
      %v5775 = vrcp.pop %v5754
      %v5776 = vmul.f32 1.0, %v5775
      %v5777 = vrcp.pop %v5755
      %v5778 = vmul.f32 1.0, %v5777
      %v5779 = vrcp.pop %v5756
      %v5780 = vmul.f32 1.0, %v5779
      %v5781 = vrcp.pop %v5757
      %v5782 = vmul.f32 1.0, %v5781
      %v5783 = vrcp.pop %v5758
      %v5784 = vmul.f32 1.0, %v5783
      %v5785 = vrcp.pop %v5759
      %v5786 = vmul.f32 1.0, %v5785
      %v5787 = vrcp.pop %v5760
      %v5788 = vmul.f32 1.0, %v5787
      %v5789 = vrcp.pop %v5761
      %v5790 = vmul.f32 1.0, %v5789
      %v5791 = vrcp.pop %v5762
      %v5792 = vmul.f32 1.0, %v5791
      %v5793 = vrcp.pop %v5763
      %v5794 = vmul.f32 1.0, %v5793
      %v5795 = vrcp.pop %v5764
      %v5796 = vmul.f32 1.0, %v5795
      %v5797 = vmul.f32 %v5623, %v5766
      %v5798 = vmul.f32 %v5628, %v5768
      %v5799 = vmul.f32 %v5633, %v5770
      %v5800 = vmul.f32 %v5638, %v5772
      %v5801 = vmul.f32 %v5643, %v5774
      %v5802 = vmul.f32 %v5648, %v5776
      %v5803 = vmul.f32 %v5653, %v5778
      %v5804 = vmul.f32 %v5658, %v5780
      %v5805 = vmul.f32 %v5663, %v5782
      %v5806 = vmul.f32 %v5668, %v5784
      %v5807 = vmul.f32 %v5673, %v5786
      %v5808 = vmul.f32 %v5678, %v5788
      %v5809 = vmul.f32 %v5683, %v5790
      %v5810 = vmul.f32 %v5688, %v5792
      %v5811 = vmul.f32 %v5693, %v5794
      %v5812 = vmul.f32 %v5698, %v5796
      %v5813 = vlaneseq
      %v5814 = vshrl.u32 %v5813, 7
      %v5815 = vsub.s32 0, %v5814
      %v5816 = vrot.slane %v295, %v5815
      %5818 = vbcast.lane.b32.xlu0 %v5816, 256
      %v5819 = vpop.permute.xlu0 %5818
      %v5820 = vlaneseq
      %v5821 = vshrl.u32 %v5820, 7
      %v5822 = vsub.s32 1, %v5821
      %v5823 = vrot.slane %v295, %v5822
      %5825 = vbcast.lane.b32.xlu0 %v5823, 256
      %v5826 = vpop.permute.xlu0 %5825
      %v5827 = vlaneseq
      %v5828 = vshrl.u32 %v5827, 7
      %v5829 = vsub.s32 2, %v5828
      %v5830 = vrot.slane %v295, %v5829
      %5832 = vbcast.lane.b32.xlu0 %v5830, 256
      %v5833 = vpop.permute.xlu0 %5832
      %v5834 = vlaneseq
      %v5835 = vshrl.u32 %v5834, 7
      %v5836 = vsub.s32 3, %v5835
      %v5837 = vrot.slane %v295, %v5836
      %5839 = vbcast.lane.b32.xlu0 %v5837, 256
      %v5840 = vpop.permute.xlu0 %5839
      %v5841 = vlaneseq
      %v5842 = vshrl.u32 %v5841, 7
      %v5843 = vsub.s32 4, %v5842
      %v5844 = vrot.slane %v295, %v5843
      %5846 = vbcast.lane.b32.xlu0 %v5844, 256
      %v5847 = vpop.permute.xlu0 %5846
      %v5848 = vlaneseq
      %v5849 = vshrl.u32 %v5848, 7
      %v5850 = vsub.s32 5, %v5849
      %v5851 = vrot.slane %v295, %v5850
      %5853 = vbcast.lane.b32.xlu0 %v5851, 256
      %v5854 = vpop.permute.xlu0 %5853
      %v5855 = vlaneseq
      %v5856 = vshrl.u32 %v5855, 7
      %v5857 = vsub.s32 6, %v5856
      %v5858 = vrot.slane %v295, %v5857
      %5860 = vbcast.lane.b32.xlu0 %v5858, 256
      %v5861 = vpop.permute.xlu0 %5860
      %v5862 = vlaneseq
      %v5863 = vshrl.u32 %v5862, 7
      %v5864 = vsub.s32 7, %v5863
      %v5865 = vrot.slane %v295, %v5864
      %5867 = vbcast.lane.b32.xlu0 %v5865, 256
      %v5868 = vpop.permute.xlu0 %5867
      %v5869 = vlaneseq
      %v5870 = vshrl.u32 %v5869, 7
      %v5871 = vsub.s32 0, %v5870
      %v5872 = vrot.slane %v296, %v5871
      %5874 = vbcast.lane.b32.xlu0 %v5872, 256
      %v5875 = vpop.permute.xlu0 %5874
      %v5876 = vlaneseq
      %v5877 = vshrl.u32 %v5876, 7
      %v5878 = vsub.s32 1, %v5877
      %v5879 = vrot.slane %v296, %v5878
      %5881 = vbcast.lane.b32.xlu0 %v5879, 256
      %v5882 = vpop.permute.xlu0 %5881
      %v5883 = vlaneseq
      %v5884 = vshrl.u32 %v5883, 7
      %v5885 = vsub.s32 2, %v5884
      %v5886 = vrot.slane %v296, %v5885
      %5888 = vbcast.lane.b32.xlu0 %v5886, 256
      %v5889 = vpop.permute.xlu0 %5888
      %v5890 = vlaneseq
      %v5891 = vshrl.u32 %v5890, 7
      %v5892 = vsub.s32 3, %v5891
      %v5893 = vrot.slane %v296, %v5892
      %5895 = vbcast.lane.b32.xlu0 %v5893, 256
      %v5896 = vpop.permute.xlu0 %5895
      %v5897 = vlaneseq
      %v5898 = vshrl.u32 %v5897, 7
      %v5899 = vsub.s32 4, %v5898
      %v5900 = vrot.slane %v296, %v5899
      %5902 = vbcast.lane.b32.xlu0 %v5900, 256
      %v5903 = vpop.permute.xlu0 %5902
      %v5904 = vlaneseq
      %v5905 = vshrl.u32 %v5904, 7
      %v5906 = vsub.s32 5, %v5905
      %v5907 = vrot.slane %v296, %v5906
      %5909 = vbcast.lane.b32.xlu0 %v5907, 256
      %v5910 = vpop.permute.xlu0 %5909
      %v5911 = vlaneseq
      %v5912 = vshrl.u32 %v5911, 7
      %v5913 = vsub.s32 6, %v5912
      %v5914 = vrot.slane %v296, %v5913
      %5916 = vbcast.lane.b32.xlu0 %v5914, 256
      %v5917 = vpop.permute.xlu0 %5916
      %v5918 = vlaneseq
      %v5919 = vshrl.u32 %v5918, 7
      %v5920 = vsub.s32 7, %v5919
      %v5921 = vrot.slane %v296, %v5920
      %5923 = vbcast.lane.b32.xlu0 %v5921, 256
      %v5924 = vpop.permute.xlu0 %5923
      %v5925 = vlaneseq
      %v5926 = vshrl.u32 %v5925, 7
      %v5927 = vsub.s32 0, %v5926
      %v5928 = vrot.slane %v297, %v5927
      %5930 = vbcast.lane.b32.xlu0 %v5928, 256
      %v5931 = vpop.permute.xlu0 %5930
      %v5932 = vlaneseq
      %v5933 = vshrl.u32 %v5932, 7
      %v5934 = vsub.s32 1, %v5933
      %v5935 = vrot.slane %v297, %v5934
      %5937 = vbcast.lane.b32.xlu0 %v5935, 256
      %v5938 = vpop.permute.xlu0 %5937
      %v5939 = vlaneseq
      %v5940 = vshrl.u32 %v5939, 7
      %v5941 = vsub.s32 2, %v5940
      %v5942 = vrot.slane %v297, %v5941
      %5944 = vbcast.lane.b32.xlu0 %v5942, 256
      %v5945 = vpop.permute.xlu0 %5944
      %v5946 = vlaneseq
      %v5947 = vshrl.u32 %v5946, 7
      %v5948 = vsub.s32 3, %v5947
      %v5949 = vrot.slane %v297, %v5948
      %5951 = vbcast.lane.b32.xlu0 %v5949, 256
      %v5952 = vpop.permute.xlu0 %5951
      %v5953 = vlaneseq
      %v5954 = vshrl.u32 %v5953, 7
      %v5955 = vsub.s32 4, %v5954
      %v5956 = vrot.slane %v297, %v5955
      %5958 = vbcast.lane.b32.xlu0 %v5956, 256
      %v5959 = vpop.permute.xlu0 %5958
      %v5960 = vlaneseq
      %v5961 = vshrl.u32 %v5960, 7
      %v5962 = vsub.s32 5, %v5961
      %v5963 = vrot.slane %v297, %v5962
      %5965 = vbcast.lane.b32.xlu0 %v5963, 256
      %v5966 = vpop.permute.xlu0 %5965
      %v5967 = vlaneseq
      %v5968 = vshrl.u32 %v5967, 7
      %v5969 = vsub.s32 6, %v5968
      %v5970 = vrot.slane %v297, %v5969
      %5972 = vbcast.lane.b32.xlu0 %v5970, 256
      %v5973 = vpop.permute.xlu0 %5972
      %v5974 = vlaneseq
      %v5975 = vshrl.u32 %v5974, 7
      %v5976 = vsub.s32 7, %v5975
      %v5977 = vrot.slane %v297, %v5976
      %5979 = vbcast.lane.b32.xlu0 %v5977, 256
      %v5980 = vpop.permute.xlu0 %5979
      %v5981 = vlaneseq
      %v5982 = vshrl.u32 %v5981, 7
      %v5983 = vsub.s32 0, %v5982
      %v5984 = vrot.slane %v298, %v5983
      %5986 = vbcast.lane.b32.xlu0 %v5984, 256
      %v5987 = vpop.permute.xlu0 %5986
      %v5988 = vlaneseq
      %v5989 = vshrl.u32 %v5988, 7
      %v5990 = vsub.s32 1, %v5989
      %v5991 = vrot.slane %v298, %v5990
      %5993 = vbcast.lane.b32.xlu0 %v5991, 256
      %v5994 = vpop.permute.xlu0 %5993
      %v5995 = vlaneseq
      %v5996 = vshrl.u32 %v5995, 7
      %v5997 = vsub.s32 2, %v5996
      %v5998 = vrot.slane %v298, %v5997
      %6000 = vbcast.lane.b32.xlu0 %v5998, 256
      %v6001 = vpop.permute.xlu0 %6000
      %v6002 = vlaneseq
      %v6003 = vshrl.u32 %v6002, 7
      %v6004 = vsub.s32 3, %v6003
      %v6005 = vrot.slane %v298, %v6004
      %6007 = vbcast.lane.b32.xlu0 %v6005, 256
      %v6008 = vpop.permute.xlu0 %6007
      %v6009 = vlaneseq
      %v6010 = vshrl.u32 %v6009, 7
      %v6011 = vsub.s32 4, %v6010
      %v6012 = vrot.slane %v298, %v6011
      %6014 = vbcast.lane.b32.xlu0 %v6012, 256
      %v6015 = vpop.permute.xlu0 %6014
      %v6016 = vlaneseq
      %v6017 = vshrl.u32 %v6016, 7
      %v6018 = vsub.s32 5, %v6017
      %v6019 = vrot.slane %v298, %v6018
      %6021 = vbcast.lane.b32.xlu0 %v6019, 256
      %v6022 = vpop.permute.xlu0 %6021
      %v6023 = vlaneseq
      %v6024 = vshrl.u32 %v6023, 7
      %v6025 = vsub.s32 6, %v6024
      %v6026 = vrot.slane %v298, %v6025
      %6028 = vbcast.lane.b32.xlu0 %v6026, 256
      %v6029 = vpop.permute.xlu0 %6028
      %v6030 = vlaneseq
      %v6031 = vshrl.u32 %v6030, 7
      %v6032 = vsub.s32 7, %v6031
      %v6033 = vrot.slane %v298, %v6032
      %6035 = vbcast.lane.b32.xlu0 %v6033, 256
      %v6036 = vpop.permute.xlu0 %6035
      %v6037 = vlaneseq
      %v6038 = vshrl.u32 %v6037, 7
      %v6039 = vsub.s32 0, %v6038
      %v6040 = vrot.slane %v299, %v6039
      %6042 = vbcast.lane.b32.xlu0 %v6040, 256
      %v6043 = vpop.permute.xlu0 %6042
      %v6044 = vlaneseq
      %v6045 = vshrl.u32 %v6044, 7
      %v6046 = vsub.s32 1, %v6045
      %v6047 = vrot.slane %v299, %v6046
      %6049 = vbcast.lane.b32.xlu0 %v6047, 256
      %v6050 = vpop.permute.xlu0 %6049
      %v6051 = vlaneseq
      %v6052 = vshrl.u32 %v6051, 7
      %v6053 = vsub.s32 2, %v6052
      %v6054 = vrot.slane %v299, %v6053
      %6056 = vbcast.lane.b32.xlu0 %v6054, 256
      %v6057 = vpop.permute.xlu0 %6056
      %v6058 = vlaneseq
      %v6059 = vshrl.u32 %v6058, 7
      %v6060 = vsub.s32 3, %v6059
      %v6061 = vrot.slane %v299, %v6060
      %6063 = vbcast.lane.b32.xlu0 %v6061, 256
      %v6064 = vpop.permute.xlu0 %6063
      %v6065 = vlaneseq
      %v6066 = vshrl.u32 %v6065, 7
      %v6067 = vsub.s32 4, %v6066
      %v6068 = vrot.slane %v299, %v6067
      %6070 = vbcast.lane.b32.xlu0 %v6068, 256
      %v6071 = vpop.permute.xlu0 %6070
      %v6072 = vlaneseq
      %v6073 = vshrl.u32 %v6072, 7
      %v6074 = vsub.s32 5, %v6073
      %v6075 = vrot.slane %v299, %v6074
      %6077 = vbcast.lane.b32.xlu0 %v6075, 256
      %v6078 = vpop.permute.xlu0 %6077
      %v6079 = vlaneseq
      %v6080 = vshrl.u32 %v6079, 7
      %v6081 = vsub.s32 6, %v6080
      %v6082 = vrot.slane %v299, %v6081
      %6084 = vbcast.lane.b32.xlu0 %v6082, 256
      %v6085 = vpop.permute.xlu0 %6084
      %v6086 = vlaneseq
      %v6087 = vshrl.u32 %v6086, 7
      %v6088 = vsub.s32 7, %v6087
      %v6089 = vrot.slane %v299, %v6088
      %6091 = vbcast.lane.b32.xlu0 %v6089, 256
      %v6092 = vpop.permute.xlu0 %6091
      %v6093 = vlaneseq
      %v6094 = vshrl.u32 %v6093, 7
      %v6095 = vsub.s32 0, %v6094
      %v6096 = vrot.slane %v300, %v6095
      %6098 = vbcast.lane.b32.xlu0 %v6096, 256
      %v6099 = vpop.permute.xlu0 %6098
      %v6100 = vlaneseq
      %v6101 = vshrl.u32 %v6100, 7
      %v6102 = vsub.s32 1, %v6101
      %v6103 = vrot.slane %v300, %v6102
      %6105 = vbcast.lane.b32.xlu0 %v6103, 256
      %v6106 = vpop.permute.xlu0 %6105
      %v6107 = vlaneseq
      %v6108 = vshrl.u32 %v6107, 7
      %v6109 = vsub.s32 2, %v6108
      %v6110 = vrot.slane %v300, %v6109
      %6112 = vbcast.lane.b32.xlu0 %v6110, 256
      %v6113 = vpop.permute.xlu0 %6112
      %v6114 = vlaneseq
      %v6115 = vshrl.u32 %v6114, 7
      %v6116 = vsub.s32 3, %v6115
      %v6117 = vrot.slane %v300, %v6116
      %6119 = vbcast.lane.b32.xlu0 %v6117, 256
      %v6120 = vpop.permute.xlu0 %6119
      %v6121 = vlaneseq
      %v6122 = vshrl.u32 %v6121, 7
      %v6123 = vsub.s32 4, %v6122
      %v6124 = vrot.slane %v300, %v6123
      %6126 = vbcast.lane.b32.xlu0 %v6124, 256
      %v6127 = vpop.permute.xlu0 %6126
      %v6128 = vlaneseq
      %v6129 = vshrl.u32 %v6128, 7
      %v6130 = vsub.s32 5, %v6129
      %v6131 = vrot.slane %v300, %v6130
      %6133 = vbcast.lane.b32.xlu0 %v6131, 256
      %v6134 = vpop.permute.xlu0 %6133
      %v6135 = vlaneseq
      %v6136 = vshrl.u32 %v6135, 7
      %v6137 = vsub.s32 6, %v6136
      %v6138 = vrot.slane %v300, %v6137
      %6140 = vbcast.lane.b32.xlu0 %v6138, 256
      %v6141 = vpop.permute.xlu0 %6140
      %v6142 = vlaneseq
      %v6143 = vshrl.u32 %v6142, 7
      %v6144 = vsub.s32 7, %v6143
      %v6145 = vrot.slane %v300, %v6144
      %6147 = vbcast.lane.b32.xlu0 %v6145, 256
      %v6148 = vpop.permute.xlu0 %6147
      %v6149 = vlaneseq
      %v6150 = vshrl.u32 %v6149, 7
      %v6151 = vsub.s32 0, %v6150
      %v6152 = vrot.slane %v301, %v6151
      %6154 = vbcast.lane.b32.xlu0 %v6152, 256
      %v6155 = vpop.permute.xlu0 %6154
      %v6156 = vlaneseq
      %v6157 = vshrl.u32 %v6156, 7
      %v6158 = vsub.s32 1, %v6157
      %v6159 = vrot.slane %v301, %v6158
      %6161 = vbcast.lane.b32.xlu0 %v6159, 256
      %v6162 = vpop.permute.xlu0 %6161
      %v6163 = vlaneseq
      %v6164 = vshrl.u32 %v6163, 7
      %v6165 = vsub.s32 2, %v6164
      %v6166 = vrot.slane %v301, %v6165
      %6168 = vbcast.lane.b32.xlu0 %v6166, 256
      %v6169 = vpop.permute.xlu0 %6168
      %v6170 = vlaneseq
      %v6171 = vshrl.u32 %v6170, 7
      %v6172 = vsub.s32 3, %v6171
      %v6173 = vrot.slane %v301, %v6172
      %6175 = vbcast.lane.b32.xlu0 %v6173, 256
      %v6176 = vpop.permute.xlu0 %6175
      %v6177 = vlaneseq
      %v6178 = vshrl.u32 %v6177, 7
      %v6179 = vsub.s32 4, %v6178
      %v6180 = vrot.slane %v301, %v6179
      %6182 = vbcast.lane.b32.xlu0 %v6180, 256
      %v6183 = vpop.permute.xlu0 %6182
      %v6184 = vlaneseq
      %v6185 = vshrl.u32 %v6184, 7
      %v6186 = vsub.s32 5, %v6185
      %v6187 = vrot.slane %v301, %v6186
      %6189 = vbcast.lane.b32.xlu0 %v6187, 256
      %v6190 = vpop.permute.xlu0 %6189
      %v6191 = vlaneseq
      %v6192 = vshrl.u32 %v6191, 7
      %v6193 = vsub.s32 6, %v6192
      %v6194 = vrot.slane %v301, %v6193
      %6196 = vbcast.lane.b32.xlu0 %v6194, 256
      %v6197 = vpop.permute.xlu0 %6196
      %v6198 = vlaneseq
      %v6199 = vshrl.u32 %v6198, 7
      %v6200 = vsub.s32 7, %v6199
      %v6201 = vrot.slane %v301, %v6200
      %6203 = vbcast.lane.b32.xlu0 %v6201, 256
      %v6204 = vpop.permute.xlu0 %6203
      %v6205 = vlaneseq
      %v6206 = vshrl.u32 %v6205, 7
      %v6207 = vsub.s32 0, %v6206
      %v6208 = vrot.slane %v302, %v6207
      %6210 = vbcast.lane.b32.xlu0 %v6208, 256
      %v6211 = vpop.permute.xlu0 %6210
      %v6212 = vlaneseq
      %v6213 = vshrl.u32 %v6212, 7
      %v6214 = vsub.s32 1, %v6213
      %v6215 = vrot.slane %v302, %v6214
      %6217 = vbcast.lane.b32.xlu0 %v6215, 256
      %v6218 = vpop.permute.xlu0 %6217
      %v6219 = vlaneseq
      %v6220 = vshrl.u32 %v6219, 7
      %v6221 = vsub.s32 2, %v6220
      %v6222 = vrot.slane %v302, %v6221
      %6224 = vbcast.lane.b32.xlu0 %v6222, 256
      %v6225 = vpop.permute.xlu0 %6224
      %v6226 = vlaneseq
      %v6227 = vshrl.u32 %v6226, 7
      %v6228 = vsub.s32 3, %v6227
      %v6229 = vrot.slane %v302, %v6228
      %6231 = vbcast.lane.b32.xlu0 %v6229, 256
      %v6232 = vpop.permute.xlu0 %6231
      %v6233 = vlaneseq
      %v6234 = vshrl.u32 %v6233, 7
      %v6235 = vsub.s32 4, %v6234
      %v6236 = vrot.slane %v302, %v6235
      %6238 = vbcast.lane.b32.xlu0 %v6236, 256
      %v6239 = vpop.permute.xlu0 %6238
      %v6240 = vlaneseq
      %v6241 = vshrl.u32 %v6240, 7
      %v6242 = vsub.s32 5, %v6241
      %v6243 = vrot.slane %v302, %v6242
      %6245 = vbcast.lane.b32.xlu0 %v6243, 256
      %v6246 = vpop.permute.xlu0 %6245
      %v6247 = vlaneseq
      %v6248 = vshrl.u32 %v6247, 7
      %v6249 = vsub.s32 6, %v6248
      %v6250 = vrot.slane %v302, %v6249
      %6252 = vbcast.lane.b32.xlu0 %v6250, 256
      %v6253 = vpop.permute.xlu0 %6252
      %v6254 = vlaneseq
      %v6255 = vshrl.u32 %v6254, 7
      %v6256 = vsub.s32 7, %v6255
      %v6257 = vrot.slane %v302, %v6256
      %6259 = vbcast.lane.b32.xlu0 %v6257, 256
      %v6260 = vpop.permute.xlu0 %6259
      %v6261 = vlaneseq
      %v6262 = vshrl.u32 %v6261, 7
      %v6263 = vsub.s32 0, %v6262
      %v6264 = vrot.slane %v303, %v6263
      %6266 = vbcast.lane.b32.xlu0 %v6264, 256
      %v6267 = vpop.permute.xlu0 %6266
      %v6268 = vlaneseq
      %v6269 = vshrl.u32 %v6268, 7
      %v6270 = vsub.s32 1, %v6269
      %v6271 = vrot.slane %v303, %v6270
      %6273 = vbcast.lane.b32.xlu0 %v6271, 256
      %v6274 = vpop.permute.xlu0 %6273
      %v6275 = vlaneseq
      %v6276 = vshrl.u32 %v6275, 7
      %v6277 = vsub.s32 2, %v6276
      %v6278 = vrot.slane %v303, %v6277
      %6280 = vbcast.lane.b32.xlu0 %v6278, 256
      %v6281 = vpop.permute.xlu0 %6280
      %v6282 = vlaneseq
      %v6283 = vshrl.u32 %v6282, 7
      %v6284 = vsub.s32 3, %v6283
      %v6285 = vrot.slane %v303, %v6284
      %6287 = vbcast.lane.b32.xlu0 %v6285, 256
      %v6288 = vpop.permute.xlu0 %6287
      %v6289 = vlaneseq
      %v6290 = vshrl.u32 %v6289, 7
      %v6291 = vsub.s32 4, %v6290
      %v6292 = vrot.slane %v303, %v6291
      %6294 = vbcast.lane.b32.xlu0 %v6292, 256
      %v6295 = vpop.permute.xlu0 %6294
      %v6296 = vlaneseq
      %v6297 = vshrl.u32 %v6296, 7
      %v6298 = vsub.s32 5, %v6297
      %v6299 = vrot.slane %v303, %v6298
      %6301 = vbcast.lane.b32.xlu0 %v6299, 256
      %v6302 = vpop.permute.xlu0 %6301
      %v6303 = vlaneseq
      %v6304 = vshrl.u32 %v6303, 7
      %v6305 = vsub.s32 6, %v6304
      %v6306 = vrot.slane %v303, %v6305
      %6308 = vbcast.lane.b32.xlu0 %v6306, 256
      %v6309 = vpop.permute.xlu0 %6308
      %v6310 = vlaneseq
      %v6311 = vshrl.u32 %v6310, 7
      %v6312 = vsub.s32 7, %v6311
      %v6313 = vrot.slane %v303, %v6312
      %6315 = vbcast.lane.b32.xlu0 %v6313, 256
      %v6316 = vpop.permute.xlu0 %6315
      %v6317 = vlaneseq
      %v6318 = vshrl.u32 %v6317, 7
      %v6319 = vsub.s32 0, %v6318
      %v6320 = vrot.slane %v304, %v6319
      %6322 = vbcast.lane.b32.xlu0 %v6320, 256
      %v6323 = vpop.permute.xlu0 %6322
      %v6324 = vlaneseq
      %v6325 = vshrl.u32 %v6324, 7
      %v6326 = vsub.s32 1, %v6325
      %v6327 = vrot.slane %v304, %v6326
      %6329 = vbcast.lane.b32.xlu0 %v6327, 256
      %v6330 = vpop.permute.xlu0 %6329
      %v6331 = vlaneseq
      %v6332 = vshrl.u32 %v6331, 7
      %v6333 = vsub.s32 2, %v6332
      %v6334 = vrot.slane %v304, %v6333
      %6336 = vbcast.lane.b32.xlu0 %v6334, 256
      %v6337 = vpop.permute.xlu0 %6336
      %v6338 = vlaneseq
      %v6339 = vshrl.u32 %v6338, 7
      %v6340 = vsub.s32 3, %v6339
      %v6341 = vrot.slane %v304, %v6340
      %6343 = vbcast.lane.b32.xlu0 %v6341, 256
      %v6344 = vpop.permute.xlu0 %6343
      %v6345 = vlaneseq
      %v6346 = vshrl.u32 %v6345, 7
      %v6347 = vsub.s32 4, %v6346
      %v6348 = vrot.slane %v304, %v6347
      %6350 = vbcast.lane.b32.xlu0 %v6348, 256
      %v6351 = vpop.permute.xlu0 %6350
      %v6352 = vlaneseq
      %v6353 = vshrl.u32 %v6352, 7
      %v6354 = vsub.s32 5, %v6353
      %v6355 = vrot.slane %v304, %v6354
      %6357 = vbcast.lane.b32.xlu0 %v6355, 256
      %v6358 = vpop.permute.xlu0 %6357
      %v6359 = vlaneseq
      %v6360 = vshrl.u32 %v6359, 7
      %v6361 = vsub.s32 6, %v6360
      %v6362 = vrot.slane %v304, %v6361
      %6364 = vbcast.lane.b32.xlu0 %v6362, 256
      %v6365 = vpop.permute.xlu0 %6364
      %v6366 = vlaneseq
      %v6367 = vshrl.u32 %v6366, 7
      %v6368 = vsub.s32 7, %v6367
      %v6369 = vrot.slane %v304, %v6368
      %6371 = vbcast.lane.b32.xlu0 %v6369, 256
      %v6372 = vpop.permute.xlu0 %6371
      %v6373 = vlaneseq
      %v6374 = vshrl.u32 %v6373, 7
      %v6375 = vsub.s32 0, %v6374
      %v6376 = vrot.slane %v305, %v6375
      %6378 = vbcast.lane.b32.xlu0 %v6376, 256
      %v6379 = vpop.permute.xlu0 %6378
      %v6380 = vlaneseq
      %v6381 = vshrl.u32 %v6380, 7
      %v6382 = vsub.s32 1, %v6381
      %v6383 = vrot.slane %v305, %v6382
      %6385 = vbcast.lane.b32.xlu0 %v6383, 256
      %v6386 = vpop.permute.xlu0 %6385
      %v6387 = vlaneseq
      %v6388 = vshrl.u32 %v6387, 7
      %v6389 = vsub.s32 2, %v6388
      %v6390 = vrot.slane %v305, %v6389
      %6392 = vbcast.lane.b32.xlu0 %v6390, 256
      %v6393 = vpop.permute.xlu0 %6392
      %v6394 = vlaneseq
      %v6395 = vshrl.u32 %v6394, 7
      %v6396 = vsub.s32 3, %v6395
      %v6397 = vrot.slane %v305, %v6396
      %6399 = vbcast.lane.b32.xlu0 %v6397, 256
      %v6400 = vpop.permute.xlu0 %6399
      %v6401 = vlaneseq
      %v6402 = vshrl.u32 %v6401, 7
      %v6403 = vsub.s32 4, %v6402
      %v6404 = vrot.slane %v305, %v6403
      %6406 = vbcast.lane.b32.xlu0 %v6404, 256
      %v6407 = vpop.permute.xlu0 %6406
      %v6408 = vlaneseq
      %v6409 = vshrl.u32 %v6408, 7
      %v6410 = vsub.s32 5, %v6409
      %v6411 = vrot.slane %v305, %v6410
      %6413 = vbcast.lane.b32.xlu0 %v6411, 256
      %v6414 = vpop.permute.xlu0 %6413
      %v6415 = vlaneseq
      %v6416 = vshrl.u32 %v6415, 7
      %v6417 = vsub.s32 6, %v6416
      %v6418 = vrot.slane %v305, %v6417
      %6420 = vbcast.lane.b32.xlu0 %v6418, 256
      %v6421 = vpop.permute.xlu0 %6420
      %v6422 = vlaneseq
      %v6423 = vshrl.u32 %v6422, 7
      %v6424 = vsub.s32 7, %v6423
      %v6425 = vrot.slane %v305, %v6424
      %6427 = vbcast.lane.b32.xlu0 %v6425, 256
      %v6428 = vpop.permute.xlu0 %6427
      %v6429 = vlaneseq
      %v6430 = vshrl.u32 %v6429, 7
      %v6431 = vsub.s32 0, %v6430
      %v6432 = vrot.slane %v306, %v6431
      %6434 = vbcast.lane.b32.xlu0 %v6432, 256
      %v6435 = vpop.permute.xlu0 %6434
      %v6436 = vlaneseq
      %v6437 = vshrl.u32 %v6436, 7
      %v6438 = vsub.s32 1, %v6437
      %v6439 = vrot.slane %v306, %v6438
      %6441 = vbcast.lane.b32.xlu0 %v6439, 256
      %v6442 = vpop.permute.xlu0 %6441
      %v6443 = vlaneseq
      %v6444 = vshrl.u32 %v6443, 7
      %v6445 = vsub.s32 2, %v6444
      %v6446 = vrot.slane %v306, %v6445
      %6448 = vbcast.lane.b32.xlu0 %v6446, 256
      %v6449 = vpop.permute.xlu0 %6448
      %v6450 = vlaneseq
      %v6451 = vshrl.u32 %v6450, 7
      %v6452 = vsub.s32 3, %v6451
      %v6453 = vrot.slane %v306, %v6452
      %6455 = vbcast.lane.b32.xlu0 %v6453, 256
      %v6456 = vpop.permute.xlu0 %6455
      %v6457 = vlaneseq
      %v6458 = vshrl.u32 %v6457, 7
      %v6459 = vsub.s32 4, %v6458
      %v6460 = vrot.slane %v306, %v6459
      %6462 = vbcast.lane.b32.xlu0 %v6460, 256
      %v6463 = vpop.permute.xlu0 %6462
      %v6464 = vlaneseq
      %v6465 = vshrl.u32 %v6464, 7
      %v6466 = vsub.s32 5, %v6465
      %v6467 = vrot.slane %v306, %v6466
      %6469 = vbcast.lane.b32.xlu0 %v6467, 256
      %v6470 = vpop.permute.xlu0 %6469
      %v6471 = vlaneseq
      %v6472 = vshrl.u32 %v6471, 7
      %v6473 = vsub.s32 6, %v6472
      %v6474 = vrot.slane %v306, %v6473
      %6476 = vbcast.lane.b32.xlu0 %v6474, 256
      %v6477 = vpop.permute.xlu0 %6476
      %v6478 = vlaneseq
      %v6479 = vshrl.u32 %v6478, 7
      %v6480 = vsub.s32 7, %v6479
      %v6481 = vrot.slane %v306, %v6480
      %6483 = vbcast.lane.b32.xlu0 %v6481, 256
      %v6484 = vpop.permute.xlu0 %6483
      %v6485 = vlaneseq
      %v6486 = vshrl.u32 %v6485, 7
      %v6487 = vsub.s32 0, %v6486
      %v6488 = vrot.slane %v307, %v6487
      %6490 = vbcast.lane.b32.xlu0 %v6488, 256
      %v6491 = vpop.permute.xlu0 %6490
      %v6492 = vlaneseq
      %v6493 = vshrl.u32 %v6492, 7
      %v6494 = vsub.s32 1, %v6493
      %v6495 = vrot.slane %v307, %v6494
      %6497 = vbcast.lane.b32.xlu0 %v6495, 256
      %v6498 = vpop.permute.xlu0 %6497
      %v6499 = vlaneseq
      %v6500 = vshrl.u32 %v6499, 7
      %v6501 = vsub.s32 2, %v6500
      %v6502 = vrot.slane %v307, %v6501
      %6504 = vbcast.lane.b32.xlu0 %v6502, 256
      %v6505 = vpop.permute.xlu0 %6504
      %v6506 = vlaneseq
      %v6507 = vshrl.u32 %v6506, 7
      %v6508 = vsub.s32 3, %v6507
      %v6509 = vrot.slane %v307, %v6508
      %6511 = vbcast.lane.b32.xlu0 %v6509, 256
      %v6512 = vpop.permute.xlu0 %6511
      %v6513 = vlaneseq
      %v6514 = vshrl.u32 %v6513, 7
      %v6515 = vsub.s32 4, %v6514
      %v6516 = vrot.slane %v307, %v6515
      %6518 = vbcast.lane.b32.xlu0 %v6516, 256
      %v6519 = vpop.permute.xlu0 %6518
      %v6520 = vlaneseq
      %v6521 = vshrl.u32 %v6520, 7
      %v6522 = vsub.s32 5, %v6521
      %v6523 = vrot.slane %v307, %v6522
      %6525 = vbcast.lane.b32.xlu0 %v6523, 256
      %v6526 = vpop.permute.xlu0 %6525
      %v6527 = vlaneseq
      %v6528 = vshrl.u32 %v6527, 7
      %v6529 = vsub.s32 6, %v6528
      %v6530 = vrot.slane %v307, %v6529
      %6532 = vbcast.lane.b32.xlu0 %v6530, 256
      %v6533 = vpop.permute.xlu0 %6532
      %v6534 = vlaneseq
      %v6535 = vshrl.u32 %v6534, 7
      %v6536 = vsub.s32 7, %v6535
      %v6537 = vrot.slane %v307, %v6536
      %6539 = vbcast.lane.b32.xlu0 %v6537, 256
      %v6540 = vpop.permute.xlu0 %6539
      %v6541 = vlaneseq
      %v6542 = vshrl.u32 %v6541, 7
      %v6543 = vsub.s32 0, %v6542
      %v6544 = vrot.slane %v308, %v6543
      %6546 = vbcast.lane.b32.xlu0 %v6544, 256
      %v6547 = vpop.permute.xlu0 %6546
      %v6548 = vlaneseq
      %v6549 = vshrl.u32 %v6548, 7
      %v6550 = vsub.s32 1, %v6549
      %v6551 = vrot.slane %v308, %v6550
      %6553 = vbcast.lane.b32.xlu0 %v6551, 256
      %v6554 = vpop.permute.xlu0 %6553
      %v6555 = vlaneseq
      %v6556 = vshrl.u32 %v6555, 7
      %v6557 = vsub.s32 2, %v6556
      %v6558 = vrot.slane %v308, %v6557
      %6560 = vbcast.lane.b32.xlu0 %v6558, 256
      %v6561 = vpop.permute.xlu0 %6560
      %v6562 = vlaneseq
      %v6563 = vshrl.u32 %v6562, 7
      %v6564 = vsub.s32 3, %v6563
      %v6565 = vrot.slane %v308, %v6564
      %6567 = vbcast.lane.b32.xlu0 %v6565, 256
      %v6568 = vpop.permute.xlu0 %6567
      %v6569 = vlaneseq
      %v6570 = vshrl.u32 %v6569, 7
      %v6571 = vsub.s32 4, %v6570
      %v6572 = vrot.slane %v308, %v6571
      %6574 = vbcast.lane.b32.xlu0 %v6572, 256
      %v6575 = vpop.permute.xlu0 %6574
      %v6576 = vlaneseq
      %v6577 = vshrl.u32 %v6576, 7
      %v6578 = vsub.s32 5, %v6577
      %v6579 = vrot.slane %v308, %v6578
      %6581 = vbcast.lane.b32.xlu0 %v6579, 256
      %v6582 = vpop.permute.xlu0 %6581
      %v6583 = vlaneseq
      %v6584 = vshrl.u32 %v6583, 7
      %v6585 = vsub.s32 6, %v6584
      %v6586 = vrot.slane %v308, %v6585
      %6588 = vbcast.lane.b32.xlu0 %v6586, 256
      %v6589 = vpop.permute.xlu0 %6588
      %v6590 = vlaneseq
      %v6591 = vshrl.u32 %v6590, 7
      %v6592 = vsub.s32 7, %v6591
      %v6593 = vrot.slane %v308, %v6592
      %6595 = vbcast.lane.b32.xlu0 %v6593, 256
      %v6596 = vpop.permute.xlu0 %6595
      %v6597 = vlaneseq
      %v6598 = vshrl.u32 %v6597, 7
      %v6599 = vsub.s32 0, %v6598
      %v6600 = vrot.slane %v309, %v6599
      %6602 = vbcast.lane.b32.xlu0 %v6600, 256
      %v6603 = vpop.permute.xlu0 %6602
      %v6604 = vlaneseq
      %v6605 = vshrl.u32 %v6604, 7
      %v6606 = vsub.s32 1, %v6605
      %v6607 = vrot.slane %v309, %v6606
      %6609 = vbcast.lane.b32.xlu0 %v6607, 256
      %v6610 = vpop.permute.xlu0 %6609
      %v6611 = vlaneseq
      %v6612 = vshrl.u32 %v6611, 7
      %v6613 = vsub.s32 2, %v6612
      %v6614 = vrot.slane %v309, %v6613
      %6616 = vbcast.lane.b32.xlu0 %v6614, 256
      %v6617 = vpop.permute.xlu0 %6616
      %v6618 = vlaneseq
      %v6619 = vshrl.u32 %v6618, 7
      %v6620 = vsub.s32 3, %v6619
      %v6621 = vrot.slane %v309, %v6620
      %6623 = vbcast.lane.b32.xlu0 %v6621, 256
      %v6624 = vpop.permute.xlu0 %6623
      %v6625 = vlaneseq
      %v6626 = vshrl.u32 %v6625, 7
      %v6627 = vsub.s32 4, %v6626
      %v6628 = vrot.slane %v309, %v6627
      %6630 = vbcast.lane.b32.xlu0 %v6628, 256
      %v6631 = vpop.permute.xlu0 %6630
      %v6632 = vlaneseq
      %v6633 = vshrl.u32 %v6632, 7
      %v6634 = vsub.s32 5, %v6633
      %v6635 = vrot.slane %v309, %v6634
      %6637 = vbcast.lane.b32.xlu0 %v6635, 256
      %v6638 = vpop.permute.xlu0 %6637
      %v6639 = vlaneseq
      %v6640 = vshrl.u32 %v6639, 7
      %v6641 = vsub.s32 6, %v6640
      %v6642 = vrot.slane %v309, %v6641
      %6644 = vbcast.lane.b32.xlu0 %v6642, 256
      %v6645 = vpop.permute.xlu0 %6644
      %v6646 = vlaneseq
      %v6647 = vshrl.u32 %v6646, 7
      %v6648 = vsub.s32 7, %v6647
      %v6649 = vrot.slane %v309, %v6648
      %6651 = vbcast.lane.b32.xlu0 %v6649, 256
      %v6652 = vpop.permute.xlu0 %6651
      %v6653 = vlaneseq
      %v6654 = vshrl.u32 %v6653, 7
      %v6655 = vsub.s32 0, %v6654
      %v6656 = vrot.slane %v310, %v6655
      %6658 = vbcast.lane.b32.xlu0 %v6656, 256
      %v6659 = vpop.permute.xlu0 %6658
      %v6660 = vlaneseq
      %v6661 = vshrl.u32 %v6660, 7
      %v6662 = vsub.s32 1, %v6661
      %v6663 = vrot.slane %v310, %v6662
      %6665 = vbcast.lane.b32.xlu0 %v6663, 256
      %v6666 = vpop.permute.xlu0 %6665
      %v6667 = vlaneseq
      %v6668 = vshrl.u32 %v6667, 7
      %v6669 = vsub.s32 2, %v6668
      %v6670 = vrot.slane %v310, %v6669
      %6672 = vbcast.lane.b32.xlu0 %v6670, 256
      %v6673 = vpop.permute.xlu0 %6672
      %v6674 = vlaneseq
      %v6675 = vshrl.u32 %v6674, 7
      %v6676 = vsub.s32 3, %v6675
      %v6677 = vrot.slane %v310, %v6676
      %6679 = vbcast.lane.b32.xlu0 %v6677, 256
      %v6680 = vpop.permute.xlu0 %6679
      %v6681 = vlaneseq
      %v6682 = vshrl.u32 %v6681, 7
      %v6683 = vsub.s32 4, %v6682
      %v6684 = vrot.slane %v310, %v6683
      %6686 = vbcast.lane.b32.xlu0 %v6684, 256
      %v6687 = vpop.permute.xlu0 %6686
      %v6688 = vlaneseq
      %v6689 = vshrl.u32 %v6688, 7
      %v6690 = vsub.s32 5, %v6689
      %v6691 = vrot.slane %v310, %v6690
      %6693 = vbcast.lane.b32.xlu0 %v6691, 256
      %v6694 = vpop.permute.xlu0 %6693
      %v6695 = vlaneseq
      %v6696 = vshrl.u32 %v6695, 7
      %v6697 = vsub.s32 6, %v6696
      %v6698 = vrot.slane %v310, %v6697
      %6700 = vbcast.lane.b32.xlu0 %v6698, 256
      %v6701 = vpop.permute.xlu0 %6700
      %v6702 = vlaneseq
      %v6703 = vshrl.u32 %v6702, 7
      %v6704 = vsub.s32 7, %v6703
      %v6705 = vrot.slane %v310, %v6704
      %6707 = vbcast.lane.b32.xlu0 %v6705, 256
      %v6708 = vpop.permute.xlu0 %6707
      %v6709 = vlaneseq
      %v6710 = vshrl.u32 %v6709, 7
      %v6711 = vsub.s32 0, %v6710
      %v6712 = vrot.slane %v5797, %v6711
      %6714 = vbcast.lane.b32.xlu0 %v6712, 256
      %v6715 = vpop.permute.xlu0 %6714
      %v6716 = vlaneseq
      %v6717 = vshrl.u32 %v6716, 7
      %v6718 = vsub.s32 1, %v6717
      %v6719 = vrot.slane %v5797, %v6718
      %6721 = vbcast.lane.b32.xlu0 %v6719, 256
      %v6722 = vpop.permute.xlu0 %6721
      %v6723 = vlaneseq
      %v6724 = vshrl.u32 %v6723, 7
      %v6725 = vsub.s32 2, %v6724
      %v6726 = vrot.slane %v5797, %v6725
      %6728 = vbcast.lane.b32.xlu0 %v6726, 256
      %v6729 = vpop.permute.xlu0 %6728
      %v6730 = vlaneseq
      %v6731 = vshrl.u32 %v6730, 7
      %v6732 = vsub.s32 3, %v6731
      %v6733 = vrot.slane %v5797, %v6732
      %6735 = vbcast.lane.b32.xlu0 %v6733, 256
      %v6736 = vpop.permute.xlu0 %6735
      %v6737 = vlaneseq
      %v6738 = vshrl.u32 %v6737, 7
      %v6739 = vsub.s32 4, %v6738
      %v6740 = vrot.slane %v5797, %v6739
      %6742 = vbcast.lane.b32.xlu0 %v6740, 256
      %v6743 = vpop.permute.xlu0 %6742
      %v6744 = vlaneseq
      %v6745 = vshrl.u32 %v6744, 7
      %v6746 = vsub.s32 5, %v6745
      %v6747 = vrot.slane %v5797, %v6746
      %6749 = vbcast.lane.b32.xlu0 %v6747, 256
      %v6750 = vpop.permute.xlu0 %6749
      %v6751 = vlaneseq
      %v6752 = vshrl.u32 %v6751, 7
      %v6753 = vsub.s32 6, %v6752
      %v6754 = vrot.slane %v5797, %v6753
      %6756 = vbcast.lane.b32.xlu0 %v6754, 256
      %v6757 = vpop.permute.xlu0 %6756
      %v6758 = vlaneseq
      %v6759 = vshrl.u32 %v6758, 7
      %v6760 = vsub.s32 7, %v6759
      %v6761 = vrot.slane %v5797, %v6760
      %6763 = vbcast.lane.b32.xlu0 %v6761, 256
      %v6764 = vpop.permute.xlu0 %6763
      %v6765 = vlaneseq
      %v6766 = vshrl.u32 %v6765, 7
      %v6767 = vsub.s32 0, %v6766
      %v6768 = vrot.slane %v5798, %v6767
      %6770 = vbcast.lane.b32.xlu0 %v6768, 256
      %v6771 = vpop.permute.xlu0 %6770
      %v6772 = vlaneseq
      %v6773 = vshrl.u32 %v6772, 7
      %v6774 = vsub.s32 1, %v6773
      %v6775 = vrot.slane %v5798, %v6774
      %6777 = vbcast.lane.b32.xlu0 %v6775, 256
      %v6778 = vpop.permute.xlu0 %6777
      %v6779 = vlaneseq
      %v6780 = vshrl.u32 %v6779, 7
      %v6781 = vsub.s32 2, %v6780
      %v6782 = vrot.slane %v5798, %v6781
      %6784 = vbcast.lane.b32.xlu0 %v6782, 256
      %v6785 = vpop.permute.xlu0 %6784
      %v6786 = vlaneseq
      %v6787 = vshrl.u32 %v6786, 7
      %v6788 = vsub.s32 3, %v6787
      %v6789 = vrot.slane %v5798, %v6788
      %6791 = vbcast.lane.b32.xlu0 %v6789, 256
      %v6792 = vpop.permute.xlu0 %6791
      %v6793 = vlaneseq
      %v6794 = vshrl.u32 %v6793, 7
      %v6795 = vsub.s32 4, %v6794
      %v6796 = vrot.slane %v5798, %v6795
      %6798 = vbcast.lane.b32.xlu0 %v6796, 256
      %v6799 = vpop.permute.xlu0 %6798
      %v6800 = vlaneseq
      %v6801 = vshrl.u32 %v6800, 7
      %v6802 = vsub.s32 5, %v6801
      %v6803 = vrot.slane %v5798, %v6802
      %6805 = vbcast.lane.b32.xlu0 %v6803, 256
      %v6806 = vpop.permute.xlu0 %6805
      %v6807 = vlaneseq
      %v6808 = vshrl.u32 %v6807, 7
      %v6809 = vsub.s32 6, %v6808
      %v6810 = vrot.slane %v5798, %v6809
      %6812 = vbcast.lane.b32.xlu0 %v6810, 256
      %v6813 = vpop.permute.xlu0 %6812
      %v6814 = vlaneseq
      %v6815 = vshrl.u32 %v6814, 7
      %v6816 = vsub.s32 7, %v6815
      %v6817 = vrot.slane %v5798, %v6816
      %6819 = vbcast.lane.b32.xlu0 %v6817, 256
      %v6820 = vpop.permute.xlu0 %6819
      %v6821 = vlaneseq
      %v6822 = vshrl.u32 %v6821, 7
      %v6823 = vsub.s32 0, %v6822
      %v6824 = vrot.slane %v5799, %v6823
      %6826 = vbcast.lane.b32.xlu0 %v6824, 256
      %v6827 = vpop.permute.xlu0 %6826
      %v6828 = vlaneseq
      %v6829 = vshrl.u32 %v6828, 7
      %v6830 = vsub.s32 1, %v6829
      %v6831 = vrot.slane %v5799, %v6830
      %6833 = vbcast.lane.b32.xlu0 %v6831, 256
      %v6834 = vpop.permute.xlu0 %6833
      %v6835 = vlaneseq
      %v6836 = vshrl.u32 %v6835, 7
      %v6837 = vsub.s32 2, %v6836
      %v6838 = vrot.slane %v5799, %v6837
      %6840 = vbcast.lane.b32.xlu0 %v6838, 256
      %v6841 = vpop.permute.xlu0 %6840
      %v6842 = vlaneseq
      %v6843 = vshrl.u32 %v6842, 7
      %v6844 = vsub.s32 3, %v6843
      %v6845 = vrot.slane %v5799, %v6844
      %6847 = vbcast.lane.b32.xlu0 %v6845, 256
      %v6848 = vpop.permute.xlu0 %6847
      %v6849 = vlaneseq
      %v6850 = vshrl.u32 %v6849, 7
      %v6851 = vsub.s32 4, %v6850
      %v6852 = vrot.slane %v5799, %v6851
      %6854 = vbcast.lane.b32.xlu0 %v6852, 256
      %v6855 = vpop.permute.xlu0 %6854
      %v6856 = vlaneseq
      %v6857 = vshrl.u32 %v6856, 7
      %v6858 = vsub.s32 5, %v6857
      %v6859 = vrot.slane %v5799, %v6858
      %6861 = vbcast.lane.b32.xlu0 %v6859, 256
      %v6862 = vpop.permute.xlu0 %6861
      %v6863 = vlaneseq
      %v6864 = vshrl.u32 %v6863, 7
      %v6865 = vsub.s32 6, %v6864
      %v6866 = vrot.slane %v5799, %v6865
      %6868 = vbcast.lane.b32.xlu0 %v6866, 256
      %v6869 = vpop.permute.xlu0 %6868
      %v6870 = vlaneseq
      %v6871 = vshrl.u32 %v6870, 7
      %v6872 = vsub.s32 7, %v6871
      %v6873 = vrot.slane %v5799, %v6872
      %6875 = vbcast.lane.b32.xlu0 %v6873, 256
      %v6876 = vpop.permute.xlu0 %6875
      %v6877 = vlaneseq
      %v6878 = vshrl.u32 %v6877, 7
      %v6879 = vsub.s32 0, %v6878
      %v6880 = vrot.slane %v5800, %v6879
      %6882 = vbcast.lane.b32.xlu0 %v6880, 256
      %v6883 = vpop.permute.xlu0 %6882
      %v6884 = vlaneseq
      %v6885 = vshrl.u32 %v6884, 7
      %v6886 = vsub.s32 1, %v6885
      %v6887 = vrot.slane %v5800, %v6886
      %6889 = vbcast.lane.b32.xlu0 %v6887, 256
      %v6890 = vpop.permute.xlu0 %6889
      %v6891 = vlaneseq
      %v6892 = vshrl.u32 %v6891, 7
      %v6893 = vsub.s32 2, %v6892
      %v6894 = vrot.slane %v5800, %v6893
      %6896 = vbcast.lane.b32.xlu0 %v6894, 256
      %v6897 = vpop.permute.xlu0 %6896
      %v6898 = vlaneseq
      %v6899 = vshrl.u32 %v6898, 7
      %v6900 = vsub.s32 3, %v6899
      %v6901 = vrot.slane %v5800, %v6900
      %6903 = vbcast.lane.b32.xlu0 %v6901, 256
      %v6904 = vpop.permute.xlu0 %6903
      %v6905 = vlaneseq
      %v6906 = vshrl.u32 %v6905, 7
      %v6907 = vsub.s32 4, %v6906
      %v6908 = vrot.slane %v5800, %v6907
      %6910 = vbcast.lane.b32.xlu0 %v6908, 256
      %v6911 = vpop.permute.xlu0 %6910
      %v6912 = vlaneseq
      %v6913 = vshrl.u32 %v6912, 7
      %v6914 = vsub.s32 5, %v6913
      %v6915 = vrot.slane %v5800, %v6914
      %6917 = vbcast.lane.b32.xlu0 %v6915, 256
      %v6918 = vpop.permute.xlu0 %6917
      %v6919 = vlaneseq
      %v6920 = vshrl.u32 %v6919, 7
      %v6921 = vsub.s32 6, %v6920
      %v6922 = vrot.slane %v5800, %v6921
      %6924 = vbcast.lane.b32.xlu0 %v6922, 256
      %v6925 = vpop.permute.xlu0 %6924
      %v6926 = vlaneseq
      %v6927 = vshrl.u32 %v6926, 7
      %v6928 = vsub.s32 7, %v6927
      %v6929 = vrot.slane %v5800, %v6928
      %6931 = vbcast.lane.b32.xlu0 %v6929, 256
      %v6932 = vpop.permute.xlu0 %6931
      %v6933 = vlaneseq
      %v6934 = vshrl.u32 %v6933, 7
      %v6935 = vsub.s32 0, %v6934
      %v6936 = vrot.slane %v5801, %v6935
      %6938 = vbcast.lane.b32.xlu0 %v6936, 256
      %v6939 = vpop.permute.xlu0 %6938
      %v6940 = vlaneseq
      %v6941 = vshrl.u32 %v6940, 7
      %v6942 = vsub.s32 1, %v6941
      %v6943 = vrot.slane %v5801, %v6942
      %6945 = vbcast.lane.b32.xlu0 %v6943, 256
      %v6946 = vpop.permute.xlu0 %6945
      %v6947 = vlaneseq
      %v6948 = vshrl.u32 %v6947, 7
      %v6949 = vsub.s32 2, %v6948
      %v6950 = vrot.slane %v5801, %v6949
      %6952 = vbcast.lane.b32.xlu0 %v6950, 256
      %v6953 = vpop.permute.xlu0 %6952
      %v6954 = vlaneseq
      %v6955 = vshrl.u32 %v6954, 7
      %v6956 = vsub.s32 3, %v6955
      %v6957 = vrot.slane %v5801, %v6956
      %6959 = vbcast.lane.b32.xlu0 %v6957, 256
      %v6960 = vpop.permute.xlu0 %6959
      %v6961 = vlaneseq
      %v6962 = vshrl.u32 %v6961, 7
      %v6963 = vsub.s32 4, %v6962
      %v6964 = vrot.slane %v5801, %v6963
      %6966 = vbcast.lane.b32.xlu0 %v6964, 256
      %v6967 = vpop.permute.xlu0 %6966
      %v6968 = vlaneseq
      %v6969 = vshrl.u32 %v6968, 7
      %v6970 = vsub.s32 5, %v6969
      %v6971 = vrot.slane %v5801, %v6970
      %6973 = vbcast.lane.b32.xlu0 %v6971, 256
      %v6974 = vpop.permute.xlu0 %6973
      %v6975 = vlaneseq
      %v6976 = vshrl.u32 %v6975, 7
      %v6977 = vsub.s32 6, %v6976
      %v6978 = vrot.slane %v5801, %v6977
      %6980 = vbcast.lane.b32.xlu0 %v6978, 256
      %v6981 = vpop.permute.xlu0 %6980
      %v6982 = vlaneseq
      %v6983 = vshrl.u32 %v6982, 7
      %v6984 = vsub.s32 7, %v6983
      %v6985 = vrot.slane %v5801, %v6984
      %6987 = vbcast.lane.b32.xlu0 %v6985, 256
      %v6988 = vpop.permute.xlu0 %6987
      %v6989 = vlaneseq
      %v6990 = vshrl.u32 %v6989, 7
      %v6991 = vsub.s32 0, %v6990
      %v6992 = vrot.slane %v5802, %v6991
      %6994 = vbcast.lane.b32.xlu0 %v6992, 256
      %v6995 = vpop.permute.xlu0 %6994
      %v6996 = vlaneseq
      %v6997 = vshrl.u32 %v6996, 7
      %v6998 = vsub.s32 1, %v6997
      %v6999 = vrot.slane %v5802, %v6998
      %7001 = vbcast.lane.b32.xlu0 %v6999, 256
      %v7002 = vpop.permute.xlu0 %7001
      %v7003 = vlaneseq
      %v7004 = vshrl.u32 %v7003, 7
      %v7005 = vsub.s32 2, %v7004
      %v7006 = vrot.slane %v5802, %v7005
      %7008 = vbcast.lane.b32.xlu0 %v7006, 256
      %v7009 = vpop.permute.xlu0 %7008
      %v7010 = vlaneseq
      %v7011 = vshrl.u32 %v7010, 7
      %v7012 = vsub.s32 3, %v7011
      %v7013 = vrot.slane %v5802, %v7012
      %7015 = vbcast.lane.b32.xlu0 %v7013, 256
      %v7016 = vpop.permute.xlu0 %7015
      %v7017 = vlaneseq
      %v7018 = vshrl.u32 %v7017, 7
      %v7019 = vsub.s32 4, %v7018
      %v7020 = vrot.slane %v5802, %v7019
      %7022 = vbcast.lane.b32.xlu0 %v7020, 256
      %v7023 = vpop.permute.xlu0 %7022
      %v7024 = vlaneseq
      %v7025 = vshrl.u32 %v7024, 7
      %v7026 = vsub.s32 5, %v7025
      %v7027 = vrot.slane %v5802, %v7026
      %7029 = vbcast.lane.b32.xlu0 %v7027, 256
      %v7030 = vpop.permute.xlu0 %7029
      %v7031 = vlaneseq
      %v7032 = vshrl.u32 %v7031, 7
      %v7033 = vsub.s32 6, %v7032
      %v7034 = vrot.slane %v5802, %v7033
      %7036 = vbcast.lane.b32.xlu0 %v7034, 256
      %v7037 = vpop.permute.xlu0 %7036
      %v7038 = vlaneseq
      %v7039 = vshrl.u32 %v7038, 7
      %v7040 = vsub.s32 7, %v7039
      %v7041 = vrot.slane %v5802, %v7040
      %7043 = vbcast.lane.b32.xlu0 %v7041, 256
      %v7044 = vpop.permute.xlu0 %7043
      %v7045 = vlaneseq
      %v7046 = vshrl.u32 %v7045, 7
      %v7047 = vsub.s32 0, %v7046
      %v7048 = vrot.slane %v5803, %v7047
      %7050 = vbcast.lane.b32.xlu0 %v7048, 256
      %v7051 = vpop.permute.xlu0 %7050
      %v7052 = vlaneseq
      %v7053 = vshrl.u32 %v7052, 7
      %v7054 = vsub.s32 1, %v7053
      %v7055 = vrot.slane %v5803, %v7054
      %7057 = vbcast.lane.b32.xlu0 %v7055, 256
      %v7058 = vpop.permute.xlu0 %7057
      %v7059 = vlaneseq
      %v7060 = vshrl.u32 %v7059, 7
      %v7061 = vsub.s32 2, %v7060
      %v7062 = vrot.slane %v5803, %v7061
      %7064 = vbcast.lane.b32.xlu0 %v7062, 256
      %v7065 = vpop.permute.xlu0 %7064
      %v7066 = vlaneseq
      %v7067 = vshrl.u32 %v7066, 7
      %v7068 = vsub.s32 3, %v7067
      %v7069 = vrot.slane %v5803, %v7068
      %7071 = vbcast.lane.b32.xlu0 %v7069, 256
      %v7072 = vpop.permute.xlu0 %7071
      %v7073 = vlaneseq
      %v7074 = vshrl.u32 %v7073, 7
      %v7075 = vsub.s32 4, %v7074
      %v7076 = vrot.slane %v5803, %v7075
      %7078 = vbcast.lane.b32.xlu0 %v7076, 256
      %v7079 = vpop.permute.xlu0 %7078
      %v7080 = vlaneseq
      %v7081 = vshrl.u32 %v7080, 7
      %v7082 = vsub.s32 5, %v7081
      %v7083 = vrot.slane %v5803, %v7082
      %7085 = vbcast.lane.b32.xlu0 %v7083, 256
      %v7086 = vpop.permute.xlu0 %7085
      %v7087 = vlaneseq
      %v7088 = vshrl.u32 %v7087, 7
      %v7089 = vsub.s32 6, %v7088
      %v7090 = vrot.slane %v5803, %v7089
      %7092 = vbcast.lane.b32.xlu0 %v7090, 256
      %v7093 = vpop.permute.xlu0 %7092
      %v7094 = vlaneseq
      %v7095 = vshrl.u32 %v7094, 7
      %v7096 = vsub.s32 7, %v7095
      %v7097 = vrot.slane %v5803, %v7096
      %7099 = vbcast.lane.b32.xlu0 %v7097, 256
      %v7100 = vpop.permute.xlu0 %7099
      %v7101 = vlaneseq
      %v7102 = vshrl.u32 %v7101, 7
      %v7103 = vsub.s32 0, %v7102
      %v7104 = vrot.slane %v5804, %v7103
      %7106 = vbcast.lane.b32.xlu0 %v7104, 256
      %v7107 = vpop.permute.xlu0 %7106
      %v7108 = vlaneseq
      %v7109 = vshrl.u32 %v7108, 7
      %v7110 = vsub.s32 1, %v7109
      %v7111 = vrot.slane %v5804, %v7110
      %7113 = vbcast.lane.b32.xlu0 %v7111, 256
      %v7114 = vpop.permute.xlu0 %7113
      %v7115 = vlaneseq
      %v7116 = vshrl.u32 %v7115, 7
      %v7117 = vsub.s32 2, %v7116
      %v7118 = vrot.slane %v5804, %v7117
      %7120 = vbcast.lane.b32.xlu0 %v7118, 256
      %v7121 = vpop.permute.xlu0 %7120
      %v7122 = vlaneseq
      %v7123 = vshrl.u32 %v7122, 7
      %v7124 = vsub.s32 3, %v7123
      %v7125 = vrot.slane %v5804, %v7124
      %7127 = vbcast.lane.b32.xlu0 %v7125, 256
      %v7128 = vpop.permute.xlu0 %7127
      %v7129 = vlaneseq
      %v7130 = vshrl.u32 %v7129, 7
      %v7131 = vsub.s32 4, %v7130
      %v7132 = vrot.slane %v5804, %v7131
      %7134 = vbcast.lane.b32.xlu0 %v7132, 256
      %v7135 = vpop.permute.xlu0 %7134
      %v7136 = vlaneseq
      %v7137 = vshrl.u32 %v7136, 7
      %v7138 = vsub.s32 5, %v7137
      %v7139 = vrot.slane %v5804, %v7138
      %7141 = vbcast.lane.b32.xlu0 %v7139, 256
      %v7142 = vpop.permute.xlu0 %7141
      %v7143 = vlaneseq
      %v7144 = vshrl.u32 %v7143, 7
      %v7145 = vsub.s32 6, %v7144
      %v7146 = vrot.slane %v5804, %v7145
      %7148 = vbcast.lane.b32.xlu0 %v7146, 256
      %v7149 = vpop.permute.xlu0 %7148
      %v7150 = vlaneseq
      %v7151 = vshrl.u32 %v7150, 7
      %v7152 = vsub.s32 7, %v7151
      %v7153 = vrot.slane %v5804, %v7152
      %7155 = vbcast.lane.b32.xlu0 %v7153, 256
      %v7156 = vpop.permute.xlu0 %7155
      %v7157 = vlaneseq
      %v7158 = vshrl.u32 %v7157, 7
      %v7159 = vsub.s32 0, %v7158
      %v7160 = vrot.slane %v5805, %v7159
      %7162 = vbcast.lane.b32.xlu0 %v7160, 256
      %v7163 = vpop.permute.xlu0 %7162
      %v7164 = vlaneseq
      %v7165 = vshrl.u32 %v7164, 7
      %v7166 = vsub.s32 1, %v7165
      %v7167 = vrot.slane %v5805, %v7166
      %7169 = vbcast.lane.b32.xlu0 %v7167, 256
      %v7170 = vpop.permute.xlu0 %7169
      %v7171 = vlaneseq
      %v7172 = vshrl.u32 %v7171, 7
      %v7173 = vsub.s32 2, %v7172
      %v7174 = vrot.slane %v5805, %v7173
      %7176 = vbcast.lane.b32.xlu0 %v7174, 256
      %v7177 = vpop.permute.xlu0 %7176
      %v7178 = vlaneseq
      %v7179 = vshrl.u32 %v7178, 7
      %v7180 = vsub.s32 3, %v7179
      %v7181 = vrot.slane %v5805, %v7180
      %7183 = vbcast.lane.b32.xlu0 %v7181, 256
      %v7184 = vpop.permute.xlu0 %7183
      %v7185 = vlaneseq
      %v7186 = vshrl.u32 %v7185, 7
      %v7187 = vsub.s32 4, %v7186
      %v7188 = vrot.slane %v5805, %v7187
      %7190 = vbcast.lane.b32.xlu0 %v7188, 256
      %v7191 = vpop.permute.xlu0 %7190
      %v7192 = vlaneseq
      %v7193 = vshrl.u32 %v7192, 7
      %v7194 = vsub.s32 5, %v7193
      %v7195 = vrot.slane %v5805, %v7194
      %7197 = vbcast.lane.b32.xlu0 %v7195, 256
      %v7198 = vpop.permute.xlu0 %7197
      %v7199 = vlaneseq
      %v7200 = vshrl.u32 %v7199, 7
      %v7201 = vsub.s32 6, %v7200
      %v7202 = vrot.slane %v5805, %v7201
      %7204 = vbcast.lane.b32.xlu0 %v7202, 256
      %v7205 = vpop.permute.xlu0 %7204
      %v7206 = vlaneseq
      %v7207 = vshrl.u32 %v7206, 7
      %v7208 = vsub.s32 7, %v7207
      %v7209 = vrot.slane %v5805, %v7208
      %7211 = vbcast.lane.b32.xlu0 %v7209, 256
      %v7212 = vpop.permute.xlu0 %7211
      %v7213 = vlaneseq
      %v7214 = vshrl.u32 %v7213, 7
      %v7215 = vsub.s32 0, %v7214
      %v7216 = vrot.slane %v5806, %v7215
      %7218 = vbcast.lane.b32.xlu0 %v7216, 256
      %v7219 = vpop.permute.xlu0 %7218
      %v7220 = vlaneseq
      %v7221 = vshrl.u32 %v7220, 7
      %v7222 = vsub.s32 1, %v7221
      %v7223 = vrot.slane %v5806, %v7222
      %7225 = vbcast.lane.b32.xlu0 %v7223, 256
      %v7226 = vpop.permute.xlu0 %7225
      %v7227 = vlaneseq
      %v7228 = vshrl.u32 %v7227, 7
      %v7229 = vsub.s32 2, %v7228
      %v7230 = vrot.slane %v5806, %v7229
      %7232 = vbcast.lane.b32.xlu0 %v7230, 256
      %v7233 = vpop.permute.xlu0 %7232
      %v7234 = vlaneseq
      %v7235 = vshrl.u32 %v7234, 7
      %v7236 = vsub.s32 3, %v7235
      %v7237 = vrot.slane %v5806, %v7236
      %7239 = vbcast.lane.b32.xlu0 %v7237, 256
      %v7240 = vpop.permute.xlu0 %7239
      %v7241 = vlaneseq
      %v7242 = vshrl.u32 %v7241, 7
      %v7243 = vsub.s32 4, %v7242
      %v7244 = vrot.slane %v5806, %v7243
      %7246 = vbcast.lane.b32.xlu0 %v7244, 256
      %v7247 = vpop.permute.xlu0 %7246
      %v7248 = vlaneseq
      %v7249 = vshrl.u32 %v7248, 7
      %v7250 = vsub.s32 5, %v7249
      %v7251 = vrot.slane %v5806, %v7250
      %7253 = vbcast.lane.b32.xlu0 %v7251, 256
      %v7254 = vpop.permute.xlu0 %7253
      %v7255 = vlaneseq
      %v7256 = vshrl.u32 %v7255, 7
      %v7257 = vsub.s32 6, %v7256
      %v7258 = vrot.slane %v5806, %v7257
      %7260 = vbcast.lane.b32.xlu0 %v7258, 256
      %v7261 = vpop.permute.xlu0 %7260
      %v7262 = vlaneseq
      %v7263 = vshrl.u32 %v7262, 7
      %v7264 = vsub.s32 7, %v7263
      %v7265 = vrot.slane %v5806, %v7264
      %7267 = vbcast.lane.b32.xlu0 %v7265, 256
      %v7268 = vpop.permute.xlu0 %7267
      %v7269 = vlaneseq
      %v7270 = vshrl.u32 %v7269, 7
      %v7271 = vsub.s32 0, %v7270
      %v7272 = vrot.slane %v5807, %v7271
      %7274 = vbcast.lane.b32.xlu0 %v7272, 256
      %v7275 = vpop.permute.xlu0 %7274
      %v7276 = vlaneseq
      %v7277 = vshrl.u32 %v7276, 7
      %v7278 = vsub.s32 1, %v7277
      %v7279 = vrot.slane %v5807, %v7278
      %7281 = vbcast.lane.b32.xlu0 %v7279, 256
      %v7282 = vpop.permute.xlu0 %7281
      %v7283 = vlaneseq
      %v7284 = vshrl.u32 %v7283, 7
      %v7285 = vsub.s32 2, %v7284
      %v7286 = vrot.slane %v5807, %v7285
      %7288 = vbcast.lane.b32.xlu0 %v7286, 256
      %v7289 = vpop.permute.xlu0 %7288
      %v7290 = vlaneseq
      %v7291 = vshrl.u32 %v7290, 7
      %v7292 = vsub.s32 3, %v7291
      %v7293 = vrot.slane %v5807, %v7292
      %7295 = vbcast.lane.b32.xlu0 %v7293, 256
      %v7296 = vpop.permute.xlu0 %7295
      %v7297 = vlaneseq
      %v7298 = vshrl.u32 %v7297, 7
      %v7299 = vsub.s32 4, %v7298
      %v7300 = vrot.slane %v5807, %v7299
      %7302 = vbcast.lane.b32.xlu0 %v7300, 256
      %v7303 = vpop.permute.xlu0 %7302
      %v7304 = vlaneseq
      %v7305 = vshrl.u32 %v7304, 7
      %v7306 = vsub.s32 5, %v7305
      %v7307 = vrot.slane %v5807, %v7306
      %7309 = vbcast.lane.b32.xlu0 %v7307, 256
      %v7310 = vpop.permute.xlu0 %7309
      %v7311 = vlaneseq
      %v7312 = vshrl.u32 %v7311, 7
      %v7313 = vsub.s32 6, %v7312
      %v7314 = vrot.slane %v5807, %v7313
      %7316 = vbcast.lane.b32.xlu0 %v7314, 256
      %v7317 = vpop.permute.xlu0 %7316
      %v7318 = vlaneseq
      %v7319 = vshrl.u32 %v7318, 7
      %v7320 = vsub.s32 7, %v7319
      %v7321 = vrot.slane %v5807, %v7320
      %7323 = vbcast.lane.b32.xlu0 %v7321, 256
      %v7324 = vpop.permute.xlu0 %7323
      %v7325 = vlaneseq
      %v7326 = vshrl.u32 %v7325, 7
      %v7327 = vsub.s32 0, %v7326
      %v7328 = vrot.slane %v5808, %v7327
      %7330 = vbcast.lane.b32.xlu0 %v7328, 256
      %v7331 = vpop.permute.xlu0 %7330
      %v7332 = vlaneseq
      %v7333 = vshrl.u32 %v7332, 7
      %v7334 = vsub.s32 1, %v7333
      %v7335 = vrot.slane %v5808, %v7334
      %7337 = vbcast.lane.b32.xlu0 %v7335, 256
      %v7338 = vpop.permute.xlu0 %7337
      %v7339 = vlaneseq
      %v7340 = vshrl.u32 %v7339, 7
      %v7341 = vsub.s32 2, %v7340
      %v7342 = vrot.slane %v5808, %v7341
      %7344 = vbcast.lane.b32.xlu0 %v7342, 256
      %v7345 = vpop.permute.xlu0 %7344
      %v7346 = vlaneseq
      %v7347 = vshrl.u32 %v7346, 7
      %v7348 = vsub.s32 3, %v7347
      %v7349 = vrot.slane %v5808, %v7348
      %7351 = vbcast.lane.b32.xlu0 %v7349, 256
      %v7352 = vpop.permute.xlu0 %7351
      %v7353 = vlaneseq
      %v7354 = vshrl.u32 %v7353, 7
      %v7355 = vsub.s32 4, %v7354
      %v7356 = vrot.slane %v5808, %v7355
      %7358 = vbcast.lane.b32.xlu0 %v7356, 256
      %v7359 = vpop.permute.xlu0 %7358
      %v7360 = vlaneseq
      %v7361 = vshrl.u32 %v7360, 7
      %v7362 = vsub.s32 5, %v7361
      %v7363 = vrot.slane %v5808, %v7362
      %7365 = vbcast.lane.b32.xlu0 %v7363, 256
      %v7366 = vpop.permute.xlu0 %7365
      %v7367 = vlaneseq
      %v7368 = vshrl.u32 %v7367, 7
      %v7369 = vsub.s32 6, %v7368
      %v7370 = vrot.slane %v5808, %v7369
      %7372 = vbcast.lane.b32.xlu0 %v7370, 256
      %v7373 = vpop.permute.xlu0 %7372
      %v7374 = vlaneseq
      %v7375 = vshrl.u32 %v7374, 7
      %v7376 = vsub.s32 7, %v7375
      %v7377 = vrot.slane %v5808, %v7376
      %7379 = vbcast.lane.b32.xlu0 %v7377, 256
      %v7380 = vpop.permute.xlu0 %7379
      %v7381 = vlaneseq
      %v7382 = vshrl.u32 %v7381, 7
      %v7383 = vsub.s32 0, %v7382
      %v7384 = vrot.slane %v5809, %v7383
      %7386 = vbcast.lane.b32.xlu0 %v7384, 256
      %v7387 = vpop.permute.xlu0 %7386
      %v7388 = vlaneseq
      %v7389 = vshrl.u32 %v7388, 7
      %v7390 = vsub.s32 1, %v7389
      %v7391 = vrot.slane %v5809, %v7390
      %7393 = vbcast.lane.b32.xlu0 %v7391, 256
      %v7394 = vpop.permute.xlu0 %7393
      %v7395 = vlaneseq
      %v7396 = vshrl.u32 %v7395, 7
      %v7397 = vsub.s32 2, %v7396
      %v7398 = vrot.slane %v5809, %v7397
      %7400 = vbcast.lane.b32.xlu0 %v7398, 256
      %v7401 = vpop.permute.xlu0 %7400
      %v7402 = vlaneseq
      %v7403 = vshrl.u32 %v7402, 7
      %v7404 = vsub.s32 3, %v7403
      %v7405 = vrot.slane %v5809, %v7404
      %7407 = vbcast.lane.b32.xlu0 %v7405, 256
      %v7408 = vpop.permute.xlu0 %7407
      %v7409 = vlaneseq
      %v7410 = vshrl.u32 %v7409, 7
      %v7411 = vsub.s32 4, %v7410
      %v7412 = vrot.slane %v5809, %v7411
      %7414 = vbcast.lane.b32.xlu0 %v7412, 256
      %v7415 = vpop.permute.xlu0 %7414
      %v7416 = vlaneseq
      %v7417 = vshrl.u32 %v7416, 7
      %v7418 = vsub.s32 5, %v7417
      %v7419 = vrot.slane %v5809, %v7418
      %7421 = vbcast.lane.b32.xlu0 %v7419, 256
      %v7422 = vpop.permute.xlu0 %7421
      %v7423 = vlaneseq
      %v7424 = vshrl.u32 %v7423, 7
      %v7425 = vsub.s32 6, %v7424
      %v7426 = vrot.slane %v5809, %v7425
      %7428 = vbcast.lane.b32.xlu0 %v7426, 256
      %v7429 = vpop.permute.xlu0 %7428
      %v7430 = vlaneseq
      %v7431 = vshrl.u32 %v7430, 7
      %v7432 = vsub.s32 7, %v7431
      %v7433 = vrot.slane %v5809, %v7432
      %7435 = vbcast.lane.b32.xlu0 %v7433, 256
      %v7436 = vpop.permute.xlu0 %7435
      %v7437 = vlaneseq
      %v7438 = vshrl.u32 %v7437, 7
      %v7439 = vsub.s32 0, %v7438
      %v7440 = vrot.slane %v5810, %v7439
      %7442 = vbcast.lane.b32.xlu0 %v7440, 256
      %v7443 = vpop.permute.xlu0 %7442
      %v7444 = vlaneseq
      %v7445 = vshrl.u32 %v7444, 7
      %v7446 = vsub.s32 1, %v7445
      %v7447 = vrot.slane %v5810, %v7446
      %7449 = vbcast.lane.b32.xlu0 %v7447, 256
      %v7450 = vpop.permute.xlu0 %7449
      %v7451 = vlaneseq
      %v7452 = vshrl.u32 %v7451, 7
      %v7453 = vsub.s32 2, %v7452
      %v7454 = vrot.slane %v5810, %v7453
      %7456 = vbcast.lane.b32.xlu0 %v7454, 256
      %v7457 = vpop.permute.xlu0 %7456
      %v7458 = vlaneseq
      %v7459 = vshrl.u32 %v7458, 7
      %v7460 = vsub.s32 3, %v7459
      %v7461 = vrot.slane %v5810, %v7460
      %7463 = vbcast.lane.b32.xlu0 %v7461, 256
      %v7464 = vpop.permute.xlu0 %7463
      %v7465 = vlaneseq
      %v7466 = vshrl.u32 %v7465, 7
      %v7467 = vsub.s32 4, %v7466
      %v7468 = vrot.slane %v5810, %v7467
      %7470 = vbcast.lane.b32.xlu0 %v7468, 256
      %v7471 = vpop.permute.xlu0 %7470
      %v7472 = vlaneseq
      %v7473 = vshrl.u32 %v7472, 7
      %v7474 = vsub.s32 5, %v7473
      %v7475 = vrot.slane %v5810, %v7474
      %7477 = vbcast.lane.b32.xlu0 %v7475, 256
      %v7478 = vpop.permute.xlu0 %7477
      %v7479 = vlaneseq
      %v7480 = vshrl.u32 %v7479, 7
      %v7481 = vsub.s32 6, %v7480
      %v7482 = vrot.slane %v5810, %v7481
      %7484 = vbcast.lane.b32.xlu0 %v7482, 256
      %v7485 = vpop.permute.xlu0 %7484
      %v7486 = vlaneseq
      %v7487 = vshrl.u32 %v7486, 7
      %v7488 = vsub.s32 7, %v7487
      %v7489 = vrot.slane %v5810, %v7488
      %7491 = vbcast.lane.b32.xlu0 %v7489, 256
      %v7492 = vpop.permute.xlu0 %7491
      %v7493 = vlaneseq
      %v7494 = vshrl.u32 %v7493, 7
      %v7495 = vsub.s32 0, %v7494
      %v7496 = vrot.slane %v5811, %v7495
      %7498 = vbcast.lane.b32.xlu0 %v7496, 256
      %v7499 = vpop.permute.xlu0 %7498
      %v7500 = vlaneseq
      %v7501 = vshrl.u32 %v7500, 7
      %v7502 = vsub.s32 1, %v7501
      %v7503 = vrot.slane %v5811, %v7502
      %7505 = vbcast.lane.b32.xlu0 %v7503, 256
      %v7506 = vpop.permute.xlu0 %7505
      %v7507 = vlaneseq
      %v7508 = vshrl.u32 %v7507, 7
      %v7509 = vsub.s32 2, %v7508
      %v7510 = vrot.slane %v5811, %v7509
      %7512 = vbcast.lane.b32.xlu0 %v7510, 256
      %v7513 = vpop.permute.xlu0 %7512
      %v7514 = vlaneseq
      %v7515 = vshrl.u32 %v7514, 7
      %v7516 = vsub.s32 3, %v7515
      %v7517 = vrot.slane %v5811, %v7516
      %7519 = vbcast.lane.b32.xlu0 %v7517, 256
      %v7520 = vpop.permute.xlu0 %7519
      %v7521 = vlaneseq
      %v7522 = vshrl.u32 %v7521, 7
      %v7523 = vsub.s32 4, %v7522
      %v7524 = vrot.slane %v5811, %v7523
      %7526 = vbcast.lane.b32.xlu0 %v7524, 256
      %v7527 = vpop.permute.xlu0 %7526
      %v7528 = vlaneseq
      %v7529 = vshrl.u32 %v7528, 7
      %v7530 = vsub.s32 5, %v7529
      %v7531 = vrot.slane %v5811, %v7530
      %7533 = vbcast.lane.b32.xlu0 %v7531, 256
      %v7534 = vpop.permute.xlu0 %7533
      %v7535 = vlaneseq
      %v7536 = vshrl.u32 %v7535, 7
      %v7537 = vsub.s32 6, %v7536
      %v7538 = vrot.slane %v5811, %v7537
      %7540 = vbcast.lane.b32.xlu0 %v7538, 256
      %v7541 = vpop.permute.xlu0 %7540
      %v7542 = vlaneseq
      %v7543 = vshrl.u32 %v7542, 7
      %v7544 = vsub.s32 7, %v7543
      %v7545 = vrot.slane %v5811, %v7544
      %7547 = vbcast.lane.b32.xlu0 %v7545, 256
      %v7548 = vpop.permute.xlu0 %7547
      %v7549 = vlaneseq
      %v7550 = vshrl.u32 %v7549, 7
      %v7551 = vsub.s32 0, %v7550
      %v7552 = vrot.slane %v5812, %v7551
      %7554 = vbcast.lane.b32.xlu0 %v7552, 256
      %v7555 = vpop.permute.xlu0 %7554
      %v7556 = vlaneseq
      %v7557 = vshrl.u32 %v7556, 7
      %v7558 = vsub.s32 1, %v7557
      %v7559 = vrot.slane %v5812, %v7558
      %7561 = vbcast.lane.b32.xlu0 %v7559, 256
      %v7562 = vpop.permute.xlu0 %7561
      %v7563 = vlaneseq
      %v7564 = vshrl.u32 %v7563, 7
      %v7565 = vsub.s32 2, %v7564
      %v7566 = vrot.slane %v5812, %v7565
      %7568 = vbcast.lane.b32.xlu0 %v7566, 256
      %v7569 = vpop.permute.xlu0 %7568
      %v7570 = vlaneseq
      %v7571 = vshrl.u32 %v7570, 7
      %v7572 = vsub.s32 3, %v7571
      %v7573 = vrot.slane %v5812, %v7572
      %7575 = vbcast.lane.b32.xlu0 %v7573, 256
      %v7576 = vpop.permute.xlu0 %7575
      %v7577 = vlaneseq
      %v7578 = vshrl.u32 %v7577, 7
      %v7579 = vsub.s32 4, %v7578
      %v7580 = vrot.slane %v5812, %v7579
      %7582 = vbcast.lane.b32.xlu0 %v7580, 256
      %v7583 = vpop.permute.xlu0 %7582
      %v7584 = vlaneseq
      %v7585 = vshrl.u32 %v7584, 7
      %v7586 = vsub.s32 5, %v7585
      %v7587 = vrot.slane %v5812, %v7586
      %7589 = vbcast.lane.b32.xlu0 %v7587, 256
      %v7590 = vpop.permute.xlu0 %7589
      %v7591 = vlaneseq
      %v7592 = vshrl.u32 %v7591, 7
      %v7593 = vsub.s32 6, %v7592
      %v7594 = vrot.slane %v5812, %v7593
      %7596 = vbcast.lane.b32.xlu0 %v7594, 256
      %v7597 = vpop.permute.xlu0 %7596
      %v7598 = vlaneseq
      %v7599 = vshrl.u32 %v7598, 7
      %v7600 = vsub.s32 7, %v7599
      %v7601 = vrot.slane %v5812, %v7600
      %7603 = vbcast.lane.b32.xlu0 %v7601, 256
      %v7604 = vpop.permute.xlu0 %7603
      %v7605 = vsel %vm3597, %v5819, %v6715
      %v7606 = vsel %vm3597, %v5826, %v6722
      %v7607 = vsel %vm3597, %v5833, %v6729
      %v7608 = vsel %vm3597, %v5840, %v6736
      %v7609 = vsel %vm3597, %v5847, %v6743
      %v7610 = vsel %vm3597, %v5854, %v6750
      %v7611 = vsel %vm3597, %v5861, %v6757
      %v7612 = vsel %vm3597, %v5868, %v6764
      %v7613 = vsel %vm3597, %v5875, %v6771
      %v7614 = vsel %vm3597, %v5882, %v6778
      %v7615 = vsel %vm3597, %v5889, %v6785
      %v7616 = vsel %vm3597, %v5896, %v6792
      %v7617 = vsel %vm3597, %v5903, %v6799
      %v7618 = vsel %vm3597, %v5910, %v6806
      %v7619 = vsel %vm3597, %v5917, %v6813
      %v7620 = vsel %vm3597, %v5924, %v6820
      %v7621 = vsel %vm3597, %v5931, %v6827
      %v7622 = vsel %vm3597, %v5938, %v6834
      %v7623 = vsel %vm3597, %v5945, %v6841
      %v7624 = vsel %vm3597, %v5952, %v6848
      %v7625 = vsel %vm3597, %v5959, %v6855
      %v7626 = vsel %vm3597, %v5966, %v6862
      %v7627 = vsel %vm3597, %v5973, %v6869
      %v7628 = vsel %vm3597, %v5980, %v6876
      %v7629 = vsel %vm3597, %v5987, %v6883
      %v7630 = vsel %vm3597, %v5994, %v6890
      %v7631 = vsel %vm3597, %v6001, %v6897
      %v7632 = vsel %vm3597, %v6008, %v6904
      %v7633 = vsel %vm3597, %v6015, %v6911
      %v7634 = vsel %vm3597, %v6022, %v6918
      %v7635 = vsel %vm3597, %v6029, %v6925
      %v7636 = vsel %vm3597, %v6036, %v6932
      %v7637 = vsel %vm3597, %v6043, %v6939
      %v7638 = vsel %vm3597, %v6050, %v6946
      %v7639 = vsel %vm3597, %v6057, %v6953
      %v7640 = vsel %vm3597, %v6064, %v6960
      %v7641 = vsel %vm3597, %v6071, %v6967
      %v7642 = vsel %vm3597, %v6078, %v6974
      %v7643 = vsel %vm3597, %v6085, %v6981
      %v7644 = vsel %vm3597, %v6092, %v6988
      %v7645 = vsel %vm3597, %v6099, %v6995
      %v7646 = vsel %vm3597, %v6106, %v7002
      %v7647 = vsel %vm3597, %v6113, %v7009
      %v7648 = vsel %vm3597, %v6120, %v7016
      %v7649 = vsel %vm3597, %v6127, %v7023
      %v7650 = vsel %vm3597, %v6134, %v7030
      %v7651 = vsel %vm3597, %v6141, %v7037
      %v7652 = vsel %vm3597, %v6148, %v7044
      %v7653 = vsel %vm3597, %v6155, %v7051
      %v7654 = vsel %vm3597, %v6162, %v7058
      %v7655 = vsel %vm3597, %v6169, %v7065
      %v7656 = vsel %vm3597, %v6176, %v7072
      %v7657 = vsel %vm3597, %v6183, %v7079
      %v7658 = vsel %vm3597, %v6190, %v7086
      %v7659 = vsel %vm3597, %v6197, %v7093
      %v7660 = vsel %vm3597, %v6204, %v7100
      %v7661 = vsel %vm3597, %v6211, %v7107
      %v7662 = vsel %vm3597, %v6218, %v7114
      %v7663 = vsel %vm3597, %v6225, %v7121
      %v7664 = vsel %vm3597, %v6232, %v7128
      %v7665 = vsel %vm3597, %v6239, %v7135
      %v7666 = vsel %vm3597, %v6246, %v7142
      %v7667 = vsel %vm3597, %v6253, %v7149
      %v7668 = vsel %vm3597, %v6260, %v7156
      %v7669 = vsel %vm3597, %v6267, %v7163
      %v7670 = vsel %vm3597, %v6274, %v7170
      %v7671 = vsel %vm3597, %v6281, %v7177
      %v7672 = vsel %vm3597, %v6288, %v7184
      %v7673 = vsel %vm3597, %v6295, %v7191
      %v7674 = vsel %vm3597, %v6302, %v7198
      %v7675 = vsel %vm3597, %v6309, %v7205
      %v7676 = vsel %vm3597, %v6316, %v7212
      %v7677 = vsel %vm3597, %v6323, %v7219
      %v7678 = vsel %vm3597, %v6330, %v7226
      %v7679 = vsel %vm3597, %v6337, %v7233
      %v7680 = vsel %vm3597, %v6344, %v7240
      %v7681 = vsel %vm3597, %v6351, %v7247
      %v7682 = vsel %vm3597, %v6358, %v7254
      %v7683 = vsel %vm3597, %v6365, %v7261
      %v7684 = vsel %vm3597, %v6372, %v7268
      %v7685 = vsel %vm3597, %v6379, %v7275
      %v7686 = vsel %vm3597, %v6386, %v7282
      %v7687 = vsel %vm3597, %v6393, %v7289
      %v7688 = vsel %vm3597, %v6400, %v7296
      %v7689 = vsel %vm3597, %v6407, %v7303
      %v7690 = vsel %vm3597, %v6414, %v7310
      %v7691 = vsel %vm3597, %v6421, %v7317
      %v7692 = vsel %vm3597, %v6428, %v7324
      %v7693 = vsel %vm3597, %v6435, %v7331
      %v7694 = vsel %vm3597, %v6442, %v7338
      %v7695 = vsel %vm3597, %v6449, %v7345
      %v7696 = vsel %vm3597, %v6456, %v7352
      %v7697 = vsel %vm3597, %v6463, %v7359
      %v7698 = vsel %vm3597, %v6470, %v7366
      %v7699 = vsel %vm3597, %v6477, %v7373
      %v7700 = vsel %vm3597, %v6484, %v7380
      %v7701 = vsel %vm3597, %v6491, %v7387
      %v7702 = vsel %vm3597, %v6498, %v7394
      %v7703 = vsel %vm3597, %v6505, %v7401
      %v7704 = vsel %vm3597, %v6512, %v7408
      %v7705 = vsel %vm3597, %v6519, %v7415
      %v7706 = vsel %vm3597, %v6526, %v7422
      %v7707 = vsel %vm3597, %v6533, %v7429
      %v7708 = vsel %vm3597, %v6540, %v7436
      %v7709 = vsel %vm3597, %v6547, %v7443
      %v7710 = vsel %vm3597, %v6554, %v7450
      %v7711 = vsel %vm3597, %v6561, %v7457
      %v7712 = vsel %vm3597, %v6568, %v7464
      %v7713 = vsel %vm3597, %v6575, %v7471
      %v7714 = vsel %vm3597, %v6582, %v7478
      %v7715 = vsel %vm3597, %v6589, %v7485
      %v7716 = vsel %vm3597, %v6596, %v7492
      %v7717 = vsel %vm3597, %v6603, %v7499
      %v7718 = vsel %vm3597, %v6610, %v7506
      %v7719 = vsel %vm3597, %v6617, %v7513
      %v7720 = vsel %vm3597, %v6624, %v7520
      %v7721 = vsel %vm3597, %v6631, %v7527
      %v7722 = vsel %vm3597, %v6638, %v7534
      %v7723 = vsel %vm3597, %v6645, %v7541
      %v7724 = vsel %vm3597, %v6652, %v7548
      %v7725 = vsel %vm3597, %v6659, %v7555
      %v7726 = vsel %vm3597, %v6666, %v7562
      %v7727 = vsel %vm3597, %v6673, %v7569
      %v7728 = vsel %vm3597, %v6680, %v7576
      %v7729 = vsel %vm3597, %v6687, %v7583
      %v7730 = vsel %vm3597, %v6694, %v7590
      %v7731 = vsel %vm3597, %v6701, %v7597
      %v7732 = vsel %vm3597, %v6708, %v7604
      %v7733 = vcombine.low %v7605, %v7607
      %v7735 = vunpack.c.l.s4 1983009808
      %v7736 = vunpack.c.0.s8 %v7735
      %v7737 = vlaneseq
      %v7738 = vshrl.u32 %v7737, 7
      %v7739 = vsub.s32 %v7736, %v7738
      %v7740 = vrot.slane %v7733, %v7739
      %v7741 = vcombine.low %v7606, %v7608
      %v7743 = vunpack.c.l.s4 1983009808
      %v7744 = vunpack.c.0.s8 %v7743
      %v7745 = vlaneseq
      %v7746 = vshrl.u32 %v7745, 7
      %v7747 = vsub.s32 %v7744, %v7746
      %v7748 = vrot.slane %v7741, %v7747
      %v7749 = vcombine.low %v7609, %v7611
      %v7751 = vunpack.c.l.s4 1983009808
      %v7752 = vunpack.c.0.s8 %v7751
      %v7753 = vlaneseq
      %v7754 = vshrl.u32 %v7753, 7
      %v7755 = vsub.s32 %v7752, %v7754
      %v7756 = vrot.slane %v7749, %v7755
      %v7757 = vcombine.low %v7610, %v7612
      %v7759 = vunpack.c.l.s4 1983009808
      %v7760 = vunpack.c.0.s8 %v7759
      %v7761 = vlaneseq
      %v7762 = vshrl.u32 %v7761, 7
      %v7763 = vsub.s32 %v7760, %v7762
      %v7764 = vrot.slane %v7757, %v7763
      %v7765 = vcombine.low %v7740, %v7748
      %v7766 = vcombine.high %v7740, %v7748
      %v7768 = vunpack.c.l.s4 1934713408
      %v7769 = vunpack.c.0.s8 %v7768
      %v7770 = vlaneseq
      %v7771 = vshrl.u32 %v7770, 7
      %v7772 = vsub.s32 %v7769, %v7771
      %v7773 = vrot.slane %v7765, %v7772
      %v7775 = vunpack.c.l.s4 1934713408
      %v7776 = vunpack.c.0.s8 %v7775
      %v7777 = vlaneseq
      %v7778 = vshrl.u32 %v7777, 7
      %v7779 = vsub.s32 %v7776, %v7778
      %v7780 = vrot.slane %v7766, %v7779
      %v7781 = vcombine.low %v7756, %v7764
      %v7782 = vcombine.high %v7756, %v7764
      %v7784 = vunpack.c.l.s4 1934713408
      %v7785 = vunpack.c.0.s8 %v7784
      %v7786 = vlaneseq
      %v7787 = vshrl.u32 %v7786, 7
      %v7788 = vsub.s32 %v7785, %v7787
      %v7789 = vrot.slane %v7781, %v7788
      %v7791 = vunpack.c.l.s4 1934713408
      %v7792 = vunpack.c.0.s8 %v7791
      %v7793 = vlaneseq
      %v7794 = vshrl.u32 %v7793, 7
      %v7795 = vsub.s32 %v7792, %v7794
      %v7796 = vrot.slane %v7782, %v7795
      %v7797 = vcombine.low %v7773, %v7789
      %v7798 = vcombine.high %v7773, %v7789
      %v7799 = vcombine.low %v7780, %v7796
      %v7800 = vcombine.high %v7780, %v7796
      %v7801 = vcombine.low %v7613, %v7615
      %v7803 = vunpack.c.l.s4 1983009808
      %v7804 = vunpack.c.0.s8 %v7803
      %v7805 = vlaneseq
      %v7806 = vshrl.u32 %v7805, 7
      %v7807 = vsub.s32 %v7804, %v7806
      %v7808 = vrot.slane %v7801, %v7807
      %v7809 = vcombine.low %v7614, %v7616
      %v7811 = vunpack.c.l.s4 1983009808
      %v7812 = vunpack.c.0.s8 %v7811
      %v7813 = vlaneseq
      %v7814 = vshrl.u32 %v7813, 7
      %v7815 = vsub.s32 %v7812, %v7814
      %v7816 = vrot.slane %v7809, %v7815
      %v7817 = vcombine.low %v7617, %v7619
      %v7819 = vunpack.c.l.s4 1983009808
      %v7820 = vunpack.c.0.s8 %v7819
      %v7821 = vlaneseq
      %v7822 = vshrl.u32 %v7821, 7
      %v7823 = vsub.s32 %v7820, %v7822
      %v7824 = vrot.slane %v7817, %v7823
      %v7825 = vcombine.low %v7618, %v7620
      %v7827 = vunpack.c.l.s4 1983009808
      %v7828 = vunpack.c.0.s8 %v7827
      %v7829 = vlaneseq
      %v7830 = vshrl.u32 %v7829, 7
      %v7831 = vsub.s32 %v7828, %v7830
      %v7832 = vrot.slane %v7825, %v7831
      %v7833 = vcombine.low %v7808, %v7816
      %v7834 = vcombine.high %v7808, %v7816
      %v7836 = vunpack.c.l.s4 1934713408
      %v7837 = vunpack.c.0.s8 %v7836
      %v7838 = vlaneseq
      %v7839 = vshrl.u32 %v7838, 7
      %v7840 = vsub.s32 %v7837, %v7839
      %v7841 = vrot.slane %v7833, %v7840
      %v7843 = vunpack.c.l.s4 1934713408
      %v7844 = vunpack.c.0.s8 %v7843
      %v7845 = vlaneseq
      %v7846 = vshrl.u32 %v7845, 7
      %v7847 = vsub.s32 %v7844, %v7846
      %v7848 = vrot.slane %v7834, %v7847
      %v7849 = vcombine.low %v7824, %v7832
      %v7850 = vcombine.high %v7824, %v7832
      %v7852 = vunpack.c.l.s4 1934713408
      %v7853 = vunpack.c.0.s8 %v7852
      %v7854 = vlaneseq
      %v7855 = vshrl.u32 %v7854, 7
      %v7856 = vsub.s32 %v7853, %v7855
      %v7857 = vrot.slane %v7849, %v7856
      %v7859 = vunpack.c.l.s4 1934713408
      %v7860 = vunpack.c.0.s8 %v7859
      %v7861 = vlaneseq
      %v7862 = vshrl.u32 %v7861, 7
      %v7863 = vsub.s32 %v7860, %v7862
      %v7864 = vrot.slane %v7850, %v7863
      %v7865 = vcombine.low %v7841, %v7857
      %v7866 = vcombine.high %v7841, %v7857
      %v7867 = vcombine.low %v7848, %v7864
      %v7868 = vcombine.high %v7848, %v7864
      %v7869 = vcombine.low %v7621, %v7623
      %v7871 = vunpack.c.l.s4 1983009808
      %v7872 = vunpack.c.0.s8 %v7871
      %v7873 = vlaneseq
      %v7874 = vshrl.u32 %v7873, 7
      %v7875 = vsub.s32 %v7872, %v7874
      %v7876 = vrot.slane %v7869, %v7875
      %v7877 = vcombine.low %v7622, %v7624
      %v7879 = vunpack.c.l.s4 1983009808
      %v7880 = vunpack.c.0.s8 %v7879
      %v7881 = vlaneseq
      %v7882 = vshrl.u32 %v7881, 7
      %v7883 = vsub.s32 %v7880, %v7882
      %v7884 = vrot.slane %v7877, %v7883
      %v7885 = vcombine.low %v7625, %v7627
      %v7887 = vunpack.c.l.s4 1983009808
      %v7888 = vunpack.c.0.s8 %v7887
      %v7889 = vlaneseq
      %v7890 = vshrl.u32 %v7889, 7
      %v7891 = vsub.s32 %v7888, %v7890
      %v7892 = vrot.slane %v7885, %v7891
      %v7893 = vcombine.low %v7626, %v7628
      %v7895 = vunpack.c.l.s4 1983009808
      %v7896 = vunpack.c.0.s8 %v7895
      %v7897 = vlaneseq
      %v7898 = vshrl.u32 %v7897, 7
      %v7899 = vsub.s32 %v7896, %v7898
      %v7900 = vrot.slane %v7893, %v7899
      %v7901 = vcombine.low %v7876, %v7884
      %v7902 = vcombine.high %v7876, %v7884
      %v7904 = vunpack.c.l.s4 1934713408
      %v7905 = vunpack.c.0.s8 %v7904
      %v7906 = vlaneseq
      %v7907 = vshrl.u32 %v7906, 7
      %v7908 = vsub.s32 %v7905, %v7907
      %v7909 = vrot.slane %v7901, %v7908
      %v7911 = vunpack.c.l.s4 1934713408
      %v7912 = vunpack.c.0.s8 %v7911
      %v7913 = vlaneseq
      %v7914 = vshrl.u32 %v7913, 7
      %v7915 = vsub.s32 %v7912, %v7914
      %v7916 = vrot.slane %v7902, %v7915
      %v7917 = vcombine.low %v7892, %v7900
      %v7918 = vcombine.high %v7892, %v7900
      %v7920 = vunpack.c.l.s4 1934713408
      %v7921 = vunpack.c.0.s8 %v7920
      %v7922 = vlaneseq
      %v7923 = vshrl.u32 %v7922, 7
      %v7924 = vsub.s32 %v7921, %v7923
      %v7925 = vrot.slane %v7917, %v7924
      %v7927 = vunpack.c.l.s4 1934713408
      %v7928 = vunpack.c.0.s8 %v7927
      %v7929 = vlaneseq
      %v7930 = vshrl.u32 %v7929, 7
      %v7931 = vsub.s32 %v7928, %v7930
      %v7932 = vrot.slane %v7918, %v7931
      %v7933 = vcombine.low %v7909, %v7925
      %v7934 = vcombine.high %v7909, %v7925
      %v7935 = vcombine.low %v7916, %v7932
      %v7936 = vcombine.high %v7916, %v7932
      %v7937 = vcombine.low %v7629, %v7631
      %v7939 = vunpack.c.l.s4 1983009808
      %v7940 = vunpack.c.0.s8 %v7939
      %v7941 = vlaneseq
      %v7942 = vshrl.u32 %v7941, 7
      %v7943 = vsub.s32 %v7940, %v7942
      %v7944 = vrot.slane %v7937, %v7943
      %v7945 = vcombine.low %v7630, %v7632
      %v7947 = vunpack.c.l.s4 1983009808
      %v7948 = vunpack.c.0.s8 %v7947
      %v7949 = vlaneseq
      %v7950 = vshrl.u32 %v7949, 7
      %v7951 = vsub.s32 %v7948, %v7950
      %v7952 = vrot.slane %v7945, %v7951
      %v7953 = vcombine.low %v7633, %v7635
      %v7955 = vunpack.c.l.s4 1983009808
      %v7956 = vunpack.c.0.s8 %v7955
      %v7957 = vlaneseq
      %v7958 = vshrl.u32 %v7957, 7
      %v7959 = vsub.s32 %v7956, %v7958
      %v7960 = vrot.slane %v7953, %v7959
      %v7961 = vcombine.low %v7634, %v7636
      %v7963 = vunpack.c.l.s4 1983009808
      %v7964 = vunpack.c.0.s8 %v7963
      %v7965 = vlaneseq
      %v7966 = vshrl.u32 %v7965, 7
      %v7967 = vsub.s32 %v7964, %v7966
      %v7968 = vrot.slane %v7961, %v7967
      %v7969 = vcombine.low %v7944, %v7952
      %v7970 = vcombine.high %v7944, %v7952
      %v7972 = vunpack.c.l.s4 1934713408
      %v7973 = vunpack.c.0.s8 %v7972
      %v7974 = vlaneseq
      %v7975 = vshrl.u32 %v7974, 7
      %v7976 = vsub.s32 %v7973, %v7975
      %v7977 = vrot.slane %v7969, %v7976
      %v7979 = vunpack.c.l.s4 1934713408
      %v7980 = vunpack.c.0.s8 %v7979
      %v7981 = vlaneseq
      %v7982 = vshrl.u32 %v7981, 7
      %v7983 = vsub.s32 %v7980, %v7982
      %v7984 = vrot.slane %v7970, %v7983
      %v7985 = vcombine.low %v7960, %v7968
      %v7986 = vcombine.high %v7960, %v7968
      %v7988 = vunpack.c.l.s4 1934713408
      %v7989 = vunpack.c.0.s8 %v7988
      %v7990 = vlaneseq
      %v7991 = vshrl.u32 %v7990, 7
      %v7992 = vsub.s32 %v7989, %v7991
      %v7993 = vrot.slane %v7985, %v7992
      %v7995 = vunpack.c.l.s4 1934713408
      %v7996 = vunpack.c.0.s8 %v7995
      %v7997 = vlaneseq
      %v7998 = vshrl.u32 %v7997, 7
      %v7999 = vsub.s32 %v7996, %v7998
      %v8000 = vrot.slane %v7986, %v7999
      %v8001 = vcombine.low %v7977, %v7993
      %v8002 = vcombine.high %v7977, %v7993
      %v8003 = vcombine.low %v7984, %v8000
      %v8004 = vcombine.high %v7984, %v8000
      %v8005 = vcombine.low %v7637, %v7639
      %v8007 = vunpack.c.l.s4 1983009808
      %v8008 = vunpack.c.0.s8 %v8007
      %v8009 = vlaneseq
      %v8010 = vshrl.u32 %v8009, 7
      %v8011 = vsub.s32 %v8008, %v8010
      %v8012 = vrot.slane %v8005, %v8011
      %v8013 = vcombine.low %v7638, %v7640
      %v8015 = vunpack.c.l.s4 1983009808
      %v8016 = vunpack.c.0.s8 %v8015
      %v8017 = vlaneseq
      %v8018 = vshrl.u32 %v8017, 7
      %v8019 = vsub.s32 %v8016, %v8018
      %v8020 = vrot.slane %v8013, %v8019
      %v8021 = vcombine.low %v7641, %v7643
      %v8023 = vunpack.c.l.s4 1983009808
      %v8024 = vunpack.c.0.s8 %v8023
      %v8025 = vlaneseq
      %v8026 = vshrl.u32 %v8025, 7
      %v8027 = vsub.s32 %v8024, %v8026
      %v8028 = vrot.slane %v8021, %v8027
      %v8029 = vcombine.low %v7642, %v7644
      %v8031 = vunpack.c.l.s4 1983009808
      %v8032 = vunpack.c.0.s8 %v8031
      %v8033 = vlaneseq
      %v8034 = vshrl.u32 %v8033, 7
      %v8035 = vsub.s32 %v8032, %v8034
      %v8036 = vrot.slane %v8029, %v8035
      %v8037 = vcombine.low %v8012, %v8020
      %v8038 = vcombine.high %v8012, %v8020
      %v8040 = vunpack.c.l.s4 1934713408
      %v8041 = vunpack.c.0.s8 %v8040
      %v8042 = vlaneseq
      %v8043 = vshrl.u32 %v8042, 7
      %v8044 = vsub.s32 %v8041, %v8043
      %v8045 = vrot.slane %v8037, %v8044
      %v8047 = vunpack.c.l.s4 1934713408
      %v8048 = vunpack.c.0.s8 %v8047
      %v8049 = vlaneseq
      %v8050 = vshrl.u32 %v8049, 7
      %v8051 = vsub.s32 %v8048, %v8050
      %v8052 = vrot.slane %v8038, %v8051
      %v8053 = vcombine.low %v8028, %v8036
      %v8054 = vcombine.high %v8028, %v8036
      %v8056 = vunpack.c.l.s4 1934713408
      %v8057 = vunpack.c.0.s8 %v8056
      %v8058 = vlaneseq
      %v8059 = vshrl.u32 %v8058, 7
      %v8060 = vsub.s32 %v8057, %v8059
      %v8061 = vrot.slane %v8053, %v8060
      %v8063 = vunpack.c.l.s4 1934713408
      %v8064 = vunpack.c.0.s8 %v8063
      %v8065 = vlaneseq
      %v8066 = vshrl.u32 %v8065, 7
      %v8067 = vsub.s32 %v8064, %v8066
      %v8068 = vrot.slane %v8054, %v8067
      %v8069 = vcombine.low %v8045, %v8061
      %v8070 = vcombine.high %v8045, %v8061
      %v8071 = vcombine.low %v8052, %v8068
      %v8072 = vcombine.high %v8052, %v8068
      %v8073 = vcombine.low %v7645, %v7647
      %v8075 = vunpack.c.l.s4 1983009808
      %v8076 = vunpack.c.0.s8 %v8075
      %v8077 = vlaneseq
      %v8078 = vshrl.u32 %v8077, 7
      %v8079 = vsub.s32 %v8076, %v8078
      %v8080 = vrot.slane %v8073, %v8079
      %v8081 = vcombine.low %v7646, %v7648
      %v8083 = vunpack.c.l.s4 1983009808
      %v8084 = vunpack.c.0.s8 %v8083
      %v8085 = vlaneseq
      %v8086 = vshrl.u32 %v8085, 7
      %v8087 = vsub.s32 %v8084, %v8086
      %v8088 = vrot.slane %v8081, %v8087
      %v8089 = vcombine.low %v7649, %v7651
      %v8091 = vunpack.c.l.s4 1983009808
      %v8092 = vunpack.c.0.s8 %v8091
      %v8093 = vlaneseq
      %v8094 = vshrl.u32 %v8093, 7
      %v8095 = vsub.s32 %v8092, %v8094
      %v8096 = vrot.slane %v8089, %v8095
      %v8097 = vcombine.low %v7650, %v7652
      %v8099 = vunpack.c.l.s4 1983009808
      %v8100 = vunpack.c.0.s8 %v8099
      %v8101 = vlaneseq
      %v8102 = vshrl.u32 %v8101, 7
      %v8103 = vsub.s32 %v8100, %v8102
      %v8104 = vrot.slane %v8097, %v8103
      %v8105 = vcombine.low %v8080, %v8088
      %v8106 = vcombine.high %v8080, %v8088
      %v8108 = vunpack.c.l.s4 1934713408
      %v8109 = vunpack.c.0.s8 %v8108
      %v8110 = vlaneseq
      %v8111 = vshrl.u32 %v8110, 7
      %v8112 = vsub.s32 %v8109, %v8111
      %v8113 = vrot.slane %v8105, %v8112
      %v8115 = vunpack.c.l.s4 1934713408
      %v8116 = vunpack.c.0.s8 %v8115
      %v8117 = vlaneseq
      %v8118 = vshrl.u32 %v8117, 7
      %v8119 = vsub.s32 %v8116, %v8118
      %v8120 = vrot.slane %v8106, %v8119
      %v8121 = vcombine.low %v8096, %v8104
      %v8122 = vcombine.high %v8096, %v8104
      %v8124 = vunpack.c.l.s4 1934713408
      %v8125 = vunpack.c.0.s8 %v8124
      %v8126 = vlaneseq
      %v8127 = vshrl.u32 %v8126, 7
      %v8128 = vsub.s32 %v8125, %v8127
      %v8129 = vrot.slane %v8121, %v8128
      %v8131 = vunpack.c.l.s4 1934713408
      %v8132 = vunpack.c.0.s8 %v8131
      %v8133 = vlaneseq
      %v8134 = vshrl.u32 %v8133, 7
      %v8135 = vsub.s32 %v8132, %v8134
      %v8136 = vrot.slane %v8122, %v8135
      %v8137 = vcombine.low %v8113, %v8129
      %v8138 = vcombine.high %v8113, %v8129
      %v8139 = vcombine.low %v8120, %v8136
      %v8140 = vcombine.high %v8120, %v8136
      %v8141 = vcombine.low %v7653, %v7655
      %v8143 = vunpack.c.l.s4 1983009808
      %v8144 = vunpack.c.0.s8 %v8143
      %v8145 = vlaneseq
      %v8146 = vshrl.u32 %v8145, 7
      %v8147 = vsub.s32 %v8144, %v8146
      %v8148 = vrot.slane %v8141, %v8147
      %v8149 = vcombine.low %v7654, %v7656
      %v8151 = vunpack.c.l.s4 1983009808
      %v8152 = vunpack.c.0.s8 %v8151
      %v8153 = vlaneseq
      %v8154 = vshrl.u32 %v8153, 7
      %v8155 = vsub.s32 %v8152, %v8154
      %v8156 = vrot.slane %v8149, %v8155
      %v8157 = vcombine.low %v7657, %v7659
      %v8159 = vunpack.c.l.s4 1983009808
      %v8160 = vunpack.c.0.s8 %v8159
      %v8161 = vlaneseq
      %v8162 = vshrl.u32 %v8161, 7
      %v8163 = vsub.s32 %v8160, %v8162
      %v8164 = vrot.slane %v8157, %v8163
      %v8165 = vcombine.low %v7658, %v7660
      %v8167 = vunpack.c.l.s4 1983009808
      %v8168 = vunpack.c.0.s8 %v8167
      %v8169 = vlaneseq
      %v8170 = vshrl.u32 %v8169, 7
      %v8171 = vsub.s32 %v8168, %v8170
      %v8172 = vrot.slane %v8165, %v8171
      %v8173 = vcombine.low %v8148, %v8156
      %v8174 = vcombine.high %v8148, %v8156
      %v8176 = vunpack.c.l.s4 1934713408
      %v8177 = vunpack.c.0.s8 %v8176
      %v8178 = vlaneseq
      %v8179 = vshrl.u32 %v8178, 7
      %v8180 = vsub.s32 %v8177, %v8179
      %v8181 = vrot.slane %v8173, %v8180
      %v8183 = vunpack.c.l.s4 1934713408
      %v8184 = vunpack.c.0.s8 %v8183
      %v8185 = vlaneseq
      %v8186 = vshrl.u32 %v8185, 7
      %v8187 = vsub.s32 %v8184, %v8186
      %v8188 = vrot.slane %v8174, %v8187
      %v8189 = vcombine.low %v8164, %v8172
      %v8190 = vcombine.high %v8164, %v8172
      %v8192 = vunpack.c.l.s4 1934713408
      %v8193 = vunpack.c.0.s8 %v8192
      %v8194 = vlaneseq
      %v8195 = vshrl.u32 %v8194, 7
      %v8196 = vsub.s32 %v8193, %v8195
      %v8197 = vrot.slane %v8189, %v8196
      %v8199 = vunpack.c.l.s4 1934713408
      %v8200 = vunpack.c.0.s8 %v8199
      %v8201 = vlaneseq
      %v8202 = vshrl.u32 %v8201, 7
      %v8203 = vsub.s32 %v8200, %v8202
      %v8204 = vrot.slane %v8190, %v8203
      %v8205 = vcombine.low %v8181, %v8197
      %v8206 = vcombine.high %v8181, %v8197
      %v8207 = vcombine.low %v8188, %v8204
      %v8208 = vcombine.high %v8188, %v8204
      %v8209 = vcombine.low %v7661, %v7663
      %v8211 = vunpack.c.l.s4 1983009808
      %v8212 = vunpack.c.0.s8 %v8211
      %v8213 = vlaneseq
      %v8214 = vshrl.u32 %v8213, 7
      %v8215 = vsub.s32 %v8212, %v8214
      %v8216 = vrot.slane %v8209, %v8215
      %v8217 = vcombine.low %v7662, %v7664
      %v8219 = vunpack.c.l.s4 1983009808
      %v8220 = vunpack.c.0.s8 %v8219
      %v8221 = vlaneseq
      %v8222 = vshrl.u32 %v8221, 7
      %v8223 = vsub.s32 %v8220, %v8222
      %v8224 = vrot.slane %v8217, %v8223
      %v8225 = vcombine.low %v7665, %v7667
      %v8227 = vunpack.c.l.s4 1983009808
      %v8228 = vunpack.c.0.s8 %v8227
      %v8229 = vlaneseq
      %v8230 = vshrl.u32 %v8229, 7
      %v8231 = vsub.s32 %v8228, %v8230
      %v8232 = vrot.slane %v8225, %v8231
      %v8233 = vcombine.low %v7666, %v7668
      %v8235 = vunpack.c.l.s4 1983009808
      %v8236 = vunpack.c.0.s8 %v8235
      %v8237 = vlaneseq
      %v8238 = vshrl.u32 %v8237, 7
      %v8239 = vsub.s32 %v8236, %v8238
      %v8240 = vrot.slane %v8233, %v8239
      %v8241 = vcombine.low %v8216, %v8224
      %v8242 = vcombine.high %v8216, %v8224
      %v8244 = vunpack.c.l.s4 1934713408
      %v8245 = vunpack.c.0.s8 %v8244
      %v8246 = vlaneseq
      %v8247 = vshrl.u32 %v8246, 7
      %v8248 = vsub.s32 %v8245, %v8247
      %v8249 = vrot.slane %v8241, %v8248
      %v8251 = vunpack.c.l.s4 1934713408
      %v8252 = vunpack.c.0.s8 %v8251
      %v8253 = vlaneseq
      %v8254 = vshrl.u32 %v8253, 7
      %v8255 = vsub.s32 %v8252, %v8254
      %v8256 = vrot.slane %v8242, %v8255
      %v8257 = vcombine.low %v8232, %v8240
      %v8258 = vcombine.high %v8232, %v8240
      %v8260 = vunpack.c.l.s4 1934713408
      %v8261 = vunpack.c.0.s8 %v8260
      %v8262 = vlaneseq
      %v8263 = vshrl.u32 %v8262, 7
      %v8264 = vsub.s32 %v8261, %v8263
      %v8265 = vrot.slane %v8257, %v8264
      %v8267 = vunpack.c.l.s4 1934713408
      %v8268 = vunpack.c.0.s8 %v8267
      %v8269 = vlaneseq
      %v8270 = vshrl.u32 %v8269, 7
      %v8271 = vsub.s32 %v8268, %v8270
      %v8272 = vrot.slane %v8258, %v8271
      %v8273 = vcombine.low %v8249, %v8265
      %v8274 = vcombine.high %v8249, %v8265
      %v8275 = vcombine.low %v8256, %v8272
      %v8276 = vcombine.high %v8256, %v8272
      %v8277 = vcombine.low %v7669, %v7671
      %v8279 = vunpack.c.l.s4 1983009808
      %v8280 = vunpack.c.0.s8 %v8279
      %v8281 = vlaneseq
      %v8282 = vshrl.u32 %v8281, 7
      %v8283 = vsub.s32 %v8280, %v8282
      %v8284 = vrot.slane %v8277, %v8283
      %v8285 = vcombine.low %v7670, %v7672
      %v8287 = vunpack.c.l.s4 1983009808
      %v8288 = vunpack.c.0.s8 %v8287
      %v8289 = vlaneseq
      %v8290 = vshrl.u32 %v8289, 7
      %v8291 = vsub.s32 %v8288, %v8290
      %v8292 = vrot.slane %v8285, %v8291
      %v8293 = vcombine.low %v7673, %v7675
      %v8295 = vunpack.c.l.s4 1983009808
      %v8296 = vunpack.c.0.s8 %v8295
      %v8297 = vlaneseq
      %v8298 = vshrl.u32 %v8297, 7
      %v8299 = vsub.s32 %v8296, %v8298
      %v8300 = vrot.slane %v8293, %v8299
      %v8301 = vcombine.low %v7674, %v7676
      %v8303 = vunpack.c.l.s4 1983009808
      %v8304 = vunpack.c.0.s8 %v8303
      %v8305 = vlaneseq
      %v8306 = vshrl.u32 %v8305, 7
      %v8307 = vsub.s32 %v8304, %v8306
      %v8308 = vrot.slane %v8301, %v8307
      %v8309 = vcombine.low %v8284, %v8292
      %v8310 = vcombine.high %v8284, %v8292
      %v8312 = vunpack.c.l.s4 1934713408
      %v8313 = vunpack.c.0.s8 %v8312
      %v8314 = vlaneseq
      %v8315 = vshrl.u32 %v8314, 7
      %v8316 = vsub.s32 %v8313, %v8315
      %v8317 = vrot.slane %v8309, %v8316
      %v8319 = vunpack.c.l.s4 1934713408
      %v8320 = vunpack.c.0.s8 %v8319
      %v8321 = vlaneseq
      %v8322 = vshrl.u32 %v8321, 7
      %v8323 = vsub.s32 %v8320, %v8322
      %v8324 = vrot.slane %v8310, %v8323
      %v8325 = vcombine.low %v8300, %v8308
      %v8326 = vcombine.high %v8300, %v8308
      %v8328 = vunpack.c.l.s4 1934713408
      %v8329 = vunpack.c.0.s8 %v8328
      %v8330 = vlaneseq
      %v8331 = vshrl.u32 %v8330, 7
      %v8332 = vsub.s32 %v8329, %v8331
      %v8333 = vrot.slane %v8325, %v8332
      %v8335 = vunpack.c.l.s4 1934713408
      %v8336 = vunpack.c.0.s8 %v8335
      %v8337 = vlaneseq
      %v8338 = vshrl.u32 %v8337, 7
      %v8339 = vsub.s32 %v8336, %v8338
      %v8340 = vrot.slane %v8326, %v8339
      %v8341 = vcombine.low %v8317, %v8333
      %v8342 = vcombine.high %v8317, %v8333
      %v8343 = vcombine.low %v8324, %v8340
      %v8344 = vcombine.high %v8324, %v8340
      %v8345 = vcombine.low %v7677, %v7679
      %v8347 = vunpack.c.l.s4 1983009808
      %v8348 = vunpack.c.0.s8 %v8347
      %v8349 = vlaneseq
      %v8350 = vshrl.u32 %v8349, 7
      %v8351 = vsub.s32 %v8348, %v8350
      %v8352 = vrot.slane %v8345, %v8351
      %v8353 = vcombine.low %v7678, %v7680
      %v8355 = vunpack.c.l.s4 1983009808
      %v8356 = vunpack.c.0.s8 %v8355
      %v8357 = vlaneseq
      %v8358 = vshrl.u32 %v8357, 7
      %v8359 = vsub.s32 %v8356, %v8358
      %v8360 = vrot.slane %v8353, %v8359
      %v8361 = vcombine.low %v7681, %v7683
      %v8363 = vunpack.c.l.s4 1983009808
      %v8364 = vunpack.c.0.s8 %v8363
      %v8365 = vlaneseq
      %v8366 = vshrl.u32 %v8365, 7
      %v8367 = vsub.s32 %v8364, %v8366
      %v8368 = vrot.slane %v8361, %v8367
      %v8369 = vcombine.low %v7682, %v7684
      %v8371 = vunpack.c.l.s4 1983009808
      %v8372 = vunpack.c.0.s8 %v8371
      %v8373 = vlaneseq
      %v8374 = vshrl.u32 %v8373, 7
      %v8375 = vsub.s32 %v8372, %v8374
      %v8376 = vrot.slane %v8369, %v8375
      %v8377 = vcombine.low %v8352, %v8360
      %v8378 = vcombine.high %v8352, %v8360
      %v8380 = vunpack.c.l.s4 1934713408
      %v8381 = vunpack.c.0.s8 %v8380
      %v8382 = vlaneseq
      %v8383 = vshrl.u32 %v8382, 7
      %v8384 = vsub.s32 %v8381, %v8383
      %v8385 = vrot.slane %v8377, %v8384
      %v8387 = vunpack.c.l.s4 1934713408
      %v8388 = vunpack.c.0.s8 %v8387
      %v8389 = vlaneseq
      %v8390 = vshrl.u32 %v8389, 7
      %v8391 = vsub.s32 %v8388, %v8390
      %v8392 = vrot.slane %v8378, %v8391
      %v8393 = vcombine.low %v8368, %v8376
      %v8394 = vcombine.high %v8368, %v8376
      %v8396 = vunpack.c.l.s4 1934713408
      %v8397 = vunpack.c.0.s8 %v8396
      %v8398 = vlaneseq
      %v8399 = vshrl.u32 %v8398, 7
      %v8400 = vsub.s32 %v8397, %v8399
      %v8401 = vrot.slane %v8393, %v8400
      %v8403 = vunpack.c.l.s4 1934713408
      %v8404 = vunpack.c.0.s8 %v8403
      %v8405 = vlaneseq
      %v8406 = vshrl.u32 %v8405, 7
      %v8407 = vsub.s32 %v8404, %v8406
      %v8408 = vrot.slane %v8394, %v8407
      %v8409 = vcombine.low %v8385, %v8401
      %v8410 = vcombine.high %v8385, %v8401
      %v8411 = vcombine.low %v8392, %v8408
      %v8412 = vcombine.high %v8392, %v8408
      %v8413 = vcombine.low %v7685, %v7687
      %v8415 = vunpack.c.l.s4 1983009808
      %v8416 = vunpack.c.0.s8 %v8415
      %v8417 = vlaneseq
      %v8418 = vshrl.u32 %v8417, 7
      %v8419 = vsub.s32 %v8416, %v8418
      %v8420 = vrot.slane %v8413, %v8419
      %v8421 = vcombine.low %v7686, %v7688
      %v8423 = vunpack.c.l.s4 1983009808
      %v8424 = vunpack.c.0.s8 %v8423
      %v8425 = vlaneseq
      %v8426 = vshrl.u32 %v8425, 7
      %v8427 = vsub.s32 %v8424, %v8426
      %v8428 = vrot.slane %v8421, %v8427
      %v8429 = vcombine.low %v7689, %v7691
      %v8431 = vunpack.c.l.s4 1983009808
      %v8432 = vunpack.c.0.s8 %v8431
      %v8433 = vlaneseq
      %v8434 = vshrl.u32 %v8433, 7
      %v8435 = vsub.s32 %v8432, %v8434
      %v8436 = vrot.slane %v8429, %v8435
      %v8437 = vcombine.low %v7690, %v7692
      %v8439 = vunpack.c.l.s4 1983009808
      %v8440 = vunpack.c.0.s8 %v8439
      %v8441 = vlaneseq
      %v8442 = vshrl.u32 %v8441, 7
      %v8443 = vsub.s32 %v8440, %v8442
      %v8444 = vrot.slane %v8437, %v8443
      %v8445 = vcombine.low %v8420, %v8428
      %v8446 = vcombine.high %v8420, %v8428
      %v8448 = vunpack.c.l.s4 1934713408
      %v8449 = vunpack.c.0.s8 %v8448
      %v8450 = vlaneseq
      %v8451 = vshrl.u32 %v8450, 7
      %v8452 = vsub.s32 %v8449, %v8451
      %v8453 = vrot.slane %v8445, %v8452
      %v8455 = vunpack.c.l.s4 1934713408
      %v8456 = vunpack.c.0.s8 %v8455
      %v8457 = vlaneseq
      %v8458 = vshrl.u32 %v8457, 7
      %v8459 = vsub.s32 %v8456, %v8458
      %v8460 = vrot.slane %v8446, %v8459
      %v8461 = vcombine.low %v8436, %v8444
      %v8462 = vcombine.high %v8436, %v8444
      %v8464 = vunpack.c.l.s4 1934713408
      %v8465 = vunpack.c.0.s8 %v8464
      %v8466 = vlaneseq
      %v8467 = vshrl.u32 %v8466, 7
      %v8468 = vsub.s32 %v8465, %v8467
      %v8469 = vrot.slane %v8461, %v8468
      %v8471 = vunpack.c.l.s4 1934713408
      %v8472 = vunpack.c.0.s8 %v8471
      %v8473 = vlaneseq
      %v8474 = vshrl.u32 %v8473, 7
      %v8475 = vsub.s32 %v8472, %v8474
      %v8476 = vrot.slane %v8462, %v8475
      %v8477 = vcombine.low %v8453, %v8469
      %v8478 = vcombine.high %v8453, %v8469
      %v8479 = vcombine.low %v8460, %v8476
      %v8480 = vcombine.high %v8460, %v8476
      %v8481 = vcombine.low %v7693, %v7695
      %v8483 = vunpack.c.l.s4 1983009808
      %v8484 = vunpack.c.0.s8 %v8483
      %v8485 = vlaneseq
      %v8486 = vshrl.u32 %v8485, 7
      %v8487 = vsub.s32 %v8484, %v8486
      %v8488 = vrot.slane %v8481, %v8487
      %v8489 = vcombine.low %v7694, %v7696
      %v8491 = vunpack.c.l.s4 1983009808
      %v8492 = vunpack.c.0.s8 %v8491
      %v8493 = vlaneseq
      %v8494 = vshrl.u32 %v8493, 7
      %v8495 = vsub.s32 %v8492, %v8494
      %v8496 = vrot.slane %v8489, %v8495
      %v8497 = vcombine.low %v7697, %v7699
      %v8499 = vunpack.c.l.s4 1983009808
      %v8500 = vunpack.c.0.s8 %v8499
      %v8501 = vlaneseq
      %v8502 = vshrl.u32 %v8501, 7
      %v8503 = vsub.s32 %v8500, %v8502
      %v8504 = vrot.slane %v8497, %v8503
      %v8505 = vcombine.low %v7698, %v7700
      %v8507 = vunpack.c.l.s4 1983009808
      %v8508 = vunpack.c.0.s8 %v8507
      %v8509 = vlaneseq
      %v8510 = vshrl.u32 %v8509, 7
      %v8511 = vsub.s32 %v8508, %v8510
      %v8512 = vrot.slane %v8505, %v8511
      %v8513 = vcombine.low %v8488, %v8496
      %v8514 = vcombine.high %v8488, %v8496
      %v8516 = vunpack.c.l.s4 1934713408
      %v8517 = vunpack.c.0.s8 %v8516
      %v8518 = vlaneseq
      %v8519 = vshrl.u32 %v8518, 7
      %v8520 = vsub.s32 %v8517, %v8519
      %v8521 = vrot.slane %v8513, %v8520
      %v8523 = vunpack.c.l.s4 1934713408
      %v8524 = vunpack.c.0.s8 %v8523
      %v8525 = vlaneseq
      %v8526 = vshrl.u32 %v8525, 7
      %v8527 = vsub.s32 %v8524, %v8526
      %v8528 = vrot.slane %v8514, %v8527
      %v8529 = vcombine.low %v8504, %v8512
      %v8530 = vcombine.high %v8504, %v8512
      %v8532 = vunpack.c.l.s4 1934713408
      %v8533 = vunpack.c.0.s8 %v8532
      %v8534 = vlaneseq
      %v8535 = vshrl.u32 %v8534, 7
      %v8536 = vsub.s32 %v8533, %v8535
      %v8537 = vrot.slane %v8529, %v8536
      %v8539 = vunpack.c.l.s4 1934713408
      %v8540 = vunpack.c.0.s8 %v8539
      %v8541 = vlaneseq
      %v8542 = vshrl.u32 %v8541, 7
      %v8543 = vsub.s32 %v8540, %v8542
      %v8544 = vrot.slane %v8530, %v8543
      %v8545 = vcombine.low %v8521, %v8537
      %v8546 = vcombine.high %v8521, %v8537
      %v8547 = vcombine.low %v8528, %v8544
      %v8548 = vcombine.high %v8528, %v8544
      %v8549 = vcombine.low %v7701, %v7703
      %v8551 = vunpack.c.l.s4 1983009808
      %v8552 = vunpack.c.0.s8 %v8551
      %v8553 = vlaneseq
      %v8554 = vshrl.u32 %v8553, 7
      %v8555 = vsub.s32 %v8552, %v8554
      %v8556 = vrot.slane %v8549, %v8555
      %v8557 = vcombine.low %v7702, %v7704
      %v8559 = vunpack.c.l.s4 1983009808
      %v8560 = vunpack.c.0.s8 %v8559
      %v8561 = vlaneseq
      %v8562 = vshrl.u32 %v8561, 7
      %v8563 = vsub.s32 %v8560, %v8562
      %v8564 = vrot.slane %v8557, %v8563
      %v8565 = vcombine.low %v7705, %v7707
      %v8567 = vunpack.c.l.s4 1983009808
      %v8568 = vunpack.c.0.s8 %v8567
      %v8569 = vlaneseq
      %v8570 = vshrl.u32 %v8569, 7
      %v8571 = vsub.s32 %v8568, %v8570
      %v8572 = vrot.slane %v8565, %v8571
      %v8573 = vcombine.low %v7706, %v7708
      %v8575 = vunpack.c.l.s4 1983009808
      %v8576 = vunpack.c.0.s8 %v8575
      %v8577 = vlaneseq
      %v8578 = vshrl.u32 %v8577, 7
      %v8579 = vsub.s32 %v8576, %v8578
      %v8580 = vrot.slane %v8573, %v8579
      %v8581 = vcombine.low %v8556, %v8564
      %v8582 = vcombine.high %v8556, %v8564
      %v8584 = vunpack.c.l.s4 1934713408
      %v8585 = vunpack.c.0.s8 %v8584
      %v8586 = vlaneseq
      %v8587 = vshrl.u32 %v8586, 7
      %v8588 = vsub.s32 %v8585, %v8587
      %v8589 = vrot.slane %v8581, %v8588
      %v8591 = vunpack.c.l.s4 1934713408
      %v8592 = vunpack.c.0.s8 %v8591
      %v8593 = vlaneseq
      %v8594 = vshrl.u32 %v8593, 7
      %v8595 = vsub.s32 %v8592, %v8594
      %v8596 = vrot.slane %v8582, %v8595
      %v8597 = vcombine.low %v8572, %v8580
      %v8598 = vcombine.high %v8572, %v8580
      %v8600 = vunpack.c.l.s4 1934713408
      %v8601 = vunpack.c.0.s8 %v8600
      %v8602 = vlaneseq
      %v8603 = vshrl.u32 %v8602, 7
      %v8604 = vsub.s32 %v8601, %v8603
      %v8605 = vrot.slane %v8597, %v8604
      %v8607 = vunpack.c.l.s4 1934713408
      %v8608 = vunpack.c.0.s8 %v8607
      %v8609 = vlaneseq
      %v8610 = vshrl.u32 %v8609, 7
      %v8611 = vsub.s32 %v8608, %v8610
      %v8612 = vrot.slane %v8598, %v8611
      %v8613 = vcombine.low %v8589, %v8605
      %v8614 = vcombine.high %v8589, %v8605
      %v8615 = vcombine.low %v8596, %v8612
      %v8616 = vcombine.high %v8596, %v8612
      %v8617 = vcombine.low %v7709, %v7711
      %v8619 = vunpack.c.l.s4 1983009808
      %v8620 = vunpack.c.0.s8 %v8619
      %v8621 = vlaneseq
      %v8622 = vshrl.u32 %v8621, 7
      %v8623 = vsub.s32 %v8620, %v8622
      %v8624 = vrot.slane %v8617, %v8623
      %v8625 = vcombine.low %v7710, %v7712
      %v8627 = vunpack.c.l.s4 1983009808
      %v8628 = vunpack.c.0.s8 %v8627
      %v8629 = vlaneseq
      %v8630 = vshrl.u32 %v8629, 7
      %v8631 = vsub.s32 %v8628, %v8630
      %v8632 = vrot.slane %v8625, %v8631
      %v8633 = vcombine.low %v7713, %v7715
      %v8635 = vunpack.c.l.s4 1983009808
      %v8636 = vunpack.c.0.s8 %v8635
      %v8637 = vlaneseq
      %v8638 = vshrl.u32 %v8637, 7
      %v8639 = vsub.s32 %v8636, %v8638
      %v8640 = vrot.slane %v8633, %v8639
      %v8641 = vcombine.low %v7714, %v7716
      %v8643 = vunpack.c.l.s4 1983009808
      %v8644 = vunpack.c.0.s8 %v8643
      %v8645 = vlaneseq
      %v8646 = vshrl.u32 %v8645, 7
      %v8647 = vsub.s32 %v8644, %v8646
      %v8648 = vrot.slane %v8641, %v8647
      %v8649 = vcombine.low %v8624, %v8632
      %v8650 = vcombine.high %v8624, %v8632
      %v8652 = vunpack.c.l.s4 1934713408
      %v8653 = vunpack.c.0.s8 %v8652
      %v8654 = vlaneseq
      %v8655 = vshrl.u32 %v8654, 7
      %v8656 = vsub.s32 %v8653, %v8655
      %v8657 = vrot.slane %v8649, %v8656
      %v8659 = vunpack.c.l.s4 1934713408
      %v8660 = vunpack.c.0.s8 %v8659
      %v8661 = vlaneseq
      %v8662 = vshrl.u32 %v8661, 7
      %v8663 = vsub.s32 %v8660, %v8662
      %v8664 = vrot.slane %v8650, %v8663
      %v8665 = vcombine.low %v8640, %v8648
      %v8666 = vcombine.high %v8640, %v8648
      %v8668 = vunpack.c.l.s4 1934713408
      %v8669 = vunpack.c.0.s8 %v8668
      %v8670 = vlaneseq
      %v8671 = vshrl.u32 %v8670, 7
      %v8672 = vsub.s32 %v8669, %v8671
      %v8673 = vrot.slane %v8665, %v8672
      %v8675 = vunpack.c.l.s4 1934713408
      %v8676 = vunpack.c.0.s8 %v8675
      %v8677 = vlaneseq
      %v8678 = vshrl.u32 %v8677, 7
      %v8679 = vsub.s32 %v8676, %v8678
      %v8680 = vrot.slane %v8666, %v8679
      %v8681 = vcombine.low %v8657, %v8673
      %v8682 = vcombine.high %v8657, %v8673
      %v8683 = vcombine.low %v8664, %v8680
      %v8684 = vcombine.high %v8664, %v8680
      %v8685 = vcombine.low %v7717, %v7719
      %v8687 = vunpack.c.l.s4 1983009808
      %v8688 = vunpack.c.0.s8 %v8687
      %v8689 = vlaneseq
      %v8690 = vshrl.u32 %v8689, 7
      %v8691 = vsub.s32 %v8688, %v8690
      %v8692 = vrot.slane %v8685, %v8691
      %v8693 = vcombine.low %v7718, %v7720
      %v8695 = vunpack.c.l.s4 1983009808
      %v8696 = vunpack.c.0.s8 %v8695
      %v8697 = vlaneseq
      %v8698 = vshrl.u32 %v8697, 7
      %v8699 = vsub.s32 %v8696, %v8698
      %v8700 = vrot.slane %v8693, %v8699
      %v8701 = vcombine.low %v7721, %v7723
      %v8703 = vunpack.c.l.s4 1983009808
      %v8704 = vunpack.c.0.s8 %v8703
      %v8705 = vlaneseq
      %v8706 = vshrl.u32 %v8705, 7
      %v8707 = vsub.s32 %v8704, %v8706
      %v8708 = vrot.slane %v8701, %v8707
      %v8709 = vcombine.low %v7722, %v7724
      %v8711 = vunpack.c.l.s4 1983009808
      %v8712 = vunpack.c.0.s8 %v8711
      %v8713 = vlaneseq
      %v8714 = vshrl.u32 %v8713, 7
      %v8715 = vsub.s32 %v8712, %v8714
      %v8716 = vrot.slane %v8709, %v8715
      %v8717 = vcombine.low %v8692, %v8700
      %v8718 = vcombine.high %v8692, %v8700
      %v8720 = vunpack.c.l.s4 1934713408
      %v8721 = vunpack.c.0.s8 %v8720
      %v8722 = vlaneseq
      %v8723 = vshrl.u32 %v8722, 7
      %v8724 = vsub.s32 %v8721, %v8723
      %v8725 = vrot.slane %v8717, %v8724
      %v8727 = vunpack.c.l.s4 1934713408
      %v8728 = vunpack.c.0.s8 %v8727
      %v8729 = vlaneseq
      %v8730 = vshrl.u32 %v8729, 7
      %v8731 = vsub.s32 %v8728, %v8730
      %v8732 = vrot.slane %v8718, %v8731
      %v8733 = vcombine.low %v8708, %v8716
      %v8734 = vcombine.high %v8708, %v8716
      %v8736 = vunpack.c.l.s4 1934713408
      %v8737 = vunpack.c.0.s8 %v8736
      %v8738 = vlaneseq
      %v8739 = vshrl.u32 %v8738, 7
      %v8740 = vsub.s32 %v8737, %v8739
      %v8741 = vrot.slane %v8733, %v8740
      %v8743 = vunpack.c.l.s4 1934713408
      %v8744 = vunpack.c.0.s8 %v8743
      %v8745 = vlaneseq
      %v8746 = vshrl.u32 %v8745, 7
      %v8747 = vsub.s32 %v8744, %v8746
      %v8748 = vrot.slane %v8734, %v8747
      %v8749 = vcombine.low %v8725, %v8741
      %v8750 = vcombine.high %v8725, %v8741
      %v8751 = vcombine.low %v8732, %v8748
      %v8752 = vcombine.high %v8732, %v8748
      %v8753 = vcombine.low %v7725, %v7727
      %v8755 = vunpack.c.l.s4 1983009808
      %v8756 = vunpack.c.0.s8 %v8755
      %v8757 = vlaneseq
      %v8758 = vshrl.u32 %v8757, 7
      %v8759 = vsub.s32 %v8756, %v8758
      %v8760 = vrot.slane %v8753, %v8759
      %v8761 = vcombine.low %v7726, %v7728
      %v8763 = vunpack.c.l.s4 1983009808
      %v8764 = vunpack.c.0.s8 %v8763
      %v8765 = vlaneseq
      %v8766 = vshrl.u32 %v8765, 7
      %v8767 = vsub.s32 %v8764, %v8766
      %v8768 = vrot.slane %v8761, %v8767
      %v8769 = vcombine.low %v7729, %v7731
      %v8771 = vunpack.c.l.s4 1983009808
      %v8772 = vunpack.c.0.s8 %v8771
      %v8773 = vlaneseq
      %v8774 = vshrl.u32 %v8773, 7
      %v8775 = vsub.s32 %v8772, %v8774
      %v8776 = vrot.slane %v8769, %v8775
      %v8777 = vcombine.low %v7730, %v7732
      %v8779 = vunpack.c.l.s4 1983009808
      %v8780 = vunpack.c.0.s8 %v8779
      %v8781 = vlaneseq
      %v8782 = vshrl.u32 %v8781, 7
      %v8783 = vsub.s32 %v8780, %v8782
      %v8784 = vrot.slane %v8777, %v8783
      %v8785 = vcombine.low %v8760, %v8768
      %v8786 = vcombine.high %v8760, %v8768
      %v8788 = vunpack.c.l.s4 1934713408
      %v8789 = vunpack.c.0.s8 %v8788
      %v8790 = vlaneseq
      %v8791 = vshrl.u32 %v8790, 7
      %v8792 = vsub.s32 %v8789, %v8791
      %v8793 = vrot.slane %v8785, %v8792
      %v8795 = vunpack.c.l.s4 1934713408
      %v8796 = vunpack.c.0.s8 %v8795
      %v8797 = vlaneseq
      %v8798 = vshrl.u32 %v8797, 7
      %v8799 = vsub.s32 %v8796, %v8798
      %v8800 = vrot.slane %v8786, %v8799
      %v8801 = vcombine.low %v8776, %v8784
      %v8802 = vcombine.high %v8776, %v8784
      %v8804 = vunpack.c.l.s4 1934713408
      %v8805 = vunpack.c.0.s8 %v8804
      %v8806 = vlaneseq
      %v8807 = vshrl.u32 %v8806, 7
      %v8808 = vsub.s32 %v8805, %v8807
      %v8809 = vrot.slane %v8801, %v8808
      %v8811 = vunpack.c.l.s4 1934713408
      %v8812 = vunpack.c.0.s8 %v8811
      %v8813 = vlaneseq
      %v8814 = vshrl.u32 %v8813, 7
      %v8815 = vsub.s32 %v8812, %v8814
      %v8816 = vrot.slane %v8802, %v8815
      %v8817 = vcombine.low %v8793, %v8809
      %v8818 = vcombine.high %v8793, %v8809
      %v8819 = vcombine.low %v8800, %v8816
      %v8820 = vcombine.high %v8800, %v8816
      %8837 = vrot.lane.b32.xlu0 %v7798, 2
      %v8838 = vpop.permute.xlu0 %8837
      %8839 = vrot.lane.b32.xlu0 %v7866, 2
      %v8840 = vpop.permute.xlu0 %8839
      %8841 = vrot.lane.b32.xlu0 %v7934, 2
      %v8842 = vpop.permute.xlu0 %8841
      %8843 = vrot.lane.b32.xlu0 %v8002, 2
      %v8844 = vpop.permute.xlu0 %8843
      %8845 = vrot.lane.b32.xlu0 %v8070, 2
      %v8846 = vpop.permute.xlu0 %8845
      %8847 = vrot.lane.b32.xlu0 %v8138, 2
      %v8848 = vpop.permute.xlu0 %8847
      %8849 = vrot.lane.b32.xlu0 %v8206, 2
      %v8850 = vpop.permute.xlu0 %8849
      %8851 = vrot.lane.b32.xlu0 %v8274, 2
      %v8852 = vpop.permute.xlu0 %8851
      %8853 = vrot.lane.b32.xlu0 %v8342, 2
      %v8854 = vpop.permute.xlu0 %8853
      %8855 = vrot.lane.b32.xlu0 %v8410, 2
      %v8856 = vpop.permute.xlu0 %8855
      %8857 = vrot.lane.b32.xlu0 %v8478, 2
      %v8858 = vpop.permute.xlu0 %8857
      %8859 = vrot.lane.b32.xlu0 %v8546, 2
      %v8860 = vpop.permute.xlu0 %8859
      %8861 = vrot.lane.b32.xlu0 %v8614, 2
      %v8862 = vpop.permute.xlu0 %8861
      %8863 = vrot.lane.b32.xlu0 %v8682, 2
      %v8864 = vpop.permute.xlu0 %8863
      %8865 = vrot.lane.b32.xlu0 %v8750, 2
      %v8866 = vpop.permute.xlu0 %8865
      %8867 = vrot.lane.b32.xlu0 %v8818, 2
      %v8868 = vpop.permute.xlu0 %8867
      %8901 = vrot.lane.b32.xlu0 %v7799, 4
      %v8902 = vpop.permute.xlu0 %8901
      %8903 = vrot.lane.b32.xlu0 %v7867, 4
      %v8904 = vpop.permute.xlu0 %8903
      %8905 = vrot.lane.b32.xlu0 %v7935, 4
      %v8906 = vpop.permute.xlu0 %8905
      %8907 = vrot.lane.b32.xlu0 %v8003, 4
      %v8908 = vpop.permute.xlu0 %8907
      %8909 = vrot.lane.b32.xlu0 %v8071, 4
      %v8910 = vpop.permute.xlu0 %8909
      %8911 = vrot.lane.b32.xlu0 %v8139, 4
      %v8912 = vpop.permute.xlu0 %8911
      %8913 = vrot.lane.b32.xlu0 %v8207, 4
      %v8914 = vpop.permute.xlu0 %8913
      %8915 = vrot.lane.b32.xlu0 %v8275, 4
      %v8916 = vpop.permute.xlu0 %8915
      %8917 = vrot.lane.b32.xlu0 %v8343, 4
      %v8918 = vpop.permute.xlu0 %8917
      %8919 = vrot.lane.b32.xlu0 %v8411, 4
      %v8920 = vpop.permute.xlu0 %8919
      %8921 = vrot.lane.b32.xlu0 %v8479, 4
      %v8922 = vpop.permute.xlu0 %8921
      %8923 = vrot.lane.b32.xlu0 %v8547, 4
      %v8924 = vpop.permute.xlu0 %8923
      %8925 = vrot.lane.b32.xlu0 %v8615, 4
      %v8926 = vpop.permute.xlu0 %8925
      %8927 = vrot.lane.b32.xlu0 %v8683, 4
      %v8928 = vpop.permute.xlu0 %8927
      %8929 = vrot.lane.b32.xlu0 %v8751, 4
      %v8930 = vpop.permute.xlu0 %8929
      %8931 = vrot.lane.b32.xlu0 %v8819, 4
      %v8932 = vpop.permute.xlu0 %8931
      %8965 = vrot.lane.b32.xlu0 %v7800, 6
      %v8966 = vpop.permute.xlu0 %8965
      %8967 = vrot.lane.b32.xlu0 %v7868, 6
      %v8968 = vpop.permute.xlu0 %8967
      %8969 = vrot.lane.b32.xlu0 %v7936, 6
      %v8970 = vpop.permute.xlu0 %8969
      %8971 = vrot.lane.b32.xlu0 %v8004, 6
      %v8972 = vpop.permute.xlu0 %8971
      %8973 = vrot.lane.b32.xlu0 %v8072, 6
      %v8974 = vpop.permute.xlu0 %8973
      %8975 = vrot.lane.b32.xlu0 %v8140, 6
      %v8976 = vpop.permute.xlu0 %8975
      %8977 = vrot.lane.b32.xlu0 %v8208, 6
      %v8978 = vpop.permute.xlu0 %8977
      %8979 = vrot.lane.b32.xlu0 %v8276, 6
      %v8980 = vpop.permute.xlu0 %8979
      %8981 = vrot.lane.b32.xlu0 %v8344, 6
      %v8982 = vpop.permute.xlu0 %8981
      %8983 = vrot.lane.b32.xlu0 %v8412, 6
      %v8984 = vpop.permute.xlu0 %8983
      %8985 = vrot.lane.b32.xlu0 %v8480, 6
      %v8986 = vpop.permute.xlu0 %8985
      %8987 = vrot.lane.b32.xlu0 %v8548, 6
      %v8988 = vpop.permute.xlu0 %8987
      %8989 = vrot.lane.b32.xlu0 %v8616, 6
      %v8990 = vpop.permute.xlu0 %8989
      %8991 = vrot.lane.b32.xlu0 %v8684, 6
      %v8992 = vpop.permute.xlu0 %8991
      %8993 = vrot.lane.b32.xlu0 %v8752, 6
      %v8994 = vpop.permute.xlu0 %8993
      %8995 = vrot.lane.b32.xlu0 %v8820, 6
      %v8996 = vpop.permute.xlu0 %8995
      %v9013 = vsel %vm5006, %v7797, %v8838
      %v9014 = vsel %vm5006, %v7865, %v8840
      %v9015 = vsel %vm5006, %v7933, %v8842
      %v9016 = vsel %vm5006, %v8001, %v8844
      %v9017 = vsel %vm5006, %v8069, %v8846
      %v9018 = vsel %vm5006, %v8137, %v8848
      %v9019 = vsel %vm5006, %v8205, %v8850
      %v9020 = vsel %vm5006, %v8273, %v8852
      %v9021 = vsel %vm5006, %v8341, %v8854
      %v9022 = vsel %vm5006, %v8409, %v8856
      %v9023 = vsel %vm5006, %v8477, %v8858
      %v9024 = vsel %vm5006, %v8545, %v8860
      %v9025 = vsel %vm5006, %v8613, %v8862
      %v9026 = vsel %vm5006, %v8681, %v8864
      %v9027 = vsel %vm5006, %v8749, %v8866
      %v9028 = vsel %vm5006, %v8817, %v8868
      %v9029 = vsel %vm415, %v9013, %v8902
      %v9030 = vsel %vm415, %v9014, %v8904
      %v9031 = vsel %vm415, %v9015, %v8906
      %v9032 = vsel %vm415, %v9016, %v8908
      %v9033 = vsel %vm415, %v9017, %v8910
      %v9034 = vsel %vm415, %v9018, %v8912
      %v9035 = vsel %vm415, %v9019, %v8914
      %v9036 = vsel %vm415, %v9020, %v8916
      %v9037 = vsel %vm415, %v9021, %v8918
      %v9038 = vsel %vm415, %v9022, %v8920
      %v9039 = vsel %vm415, %v9023, %v8922
      %v9040 = vsel %vm415, %v9024, %v8924
      %v9041 = vsel %vm415, %v9025, %v8926
      %v9042 = vsel %vm415, %v9026, %v8928
      %v9043 = vsel %vm415, %v9027, %v8930
      %v9044 = vsel %vm415, %v9028, %v8932
      %v9045 = vsel %vm5039, %v9029, %v8966
      %v9046 = vsel %vm5039, %v9030, %v8968
      %v9047 = vsel %vm5039, %v9031, %v8970
      %v9048 = vsel %vm5039, %v9032, %v8972
      %v9049 = vsel %vm5039, %v9033, %v8974
      %v9050 = vsel %vm5039, %v9034, %v8976
      %v9051 = vsel %vm5039, %v9035, %v8978
      %v9052 = vsel %vm5039, %v9036, %v8980
      %v9053 = vsel %vm5039, %v9037, %v8982
      %v9054 = vsel %vm5039, %v9038, %v8984
      %v9055 = vsel %vm5039, %v9039, %v8986
      %v9056 = vsel %vm5039, %v9040, %v8988
      %v9057 = vsel %vm5039, %v9041, %v8990
      %v9058 = vsel %vm5039, %v9042, %v8992
      %v9059 = vsel %vm5039, %v9043, %v8994
      %v9060 = vsel %vm5039, %v9044, %v8996
      %s9061 = scalar_lea.vmem %s278, 128
      %9062 = vst.msk [vmem:[%s9061] sm:$0xff] %vm5056, %v9045
      %9063 = vst.msk [vmem:[%s9061 + $0x8] sm:$0xff] %vm5056, %v9046
      %9064 = vst.msk [vmem:[%s9061 + $0x10] sm:$0xff] %vm5056, %v9047
      %9065 = vst.msk [vmem:[%s9061 + $0x18] sm:$0xff] %vm5056, %v9048
      %9066 = vst.msk [vmem:[%s9061 + $0x20] sm:$0xff] %vm5056, %v9049
      %9067 = vst.msk [vmem:[%s9061 + $0x28] sm:$0xff] %vm5056, %v9050
      %9068 = vst.msk [vmem:[%s9061 + $0x30] sm:$0xff] %vm5056, %v9051
      %9069 = vst.msk [vmem:[%s9061 + $0x38] sm:$0xff] %vm5056, %v9052
      %9070 = vst.msk [vmem:[%s9061 + $0x40] sm:$0xff] %vm5056, %v9053
      %9071 = vst.msk [vmem:[%s9061 + $0x48] sm:$0xff] %vm5056, %v9054
      %9072 = vst.msk [vmem:[%s9061 + $0x50] sm:$0xff] %vm5056, %v9055
      %9073 = vst.msk [vmem:[%s9061 + $0x58] sm:$0xff] %vm5056, %v9056
      %9074 = vst.msk [vmem:[%s9061 + $0x60] sm:$0xff] %vm5056, %v9057
      %9075 = vst.msk [vmem:[%s9061 + $0x68] sm:$0xff] %vm5056, %v9058
      %9076 = vst.msk [vmem:[%s9061 + $0x70] sm:$0xff] %vm5056, %v9059
      %9077 = vst.msk [vmem:[%s9061 + $0x78] sm:$0xff] %vm5056, %v9060
      %p9078 = scmp.lt.s32.totalorder %s18, 1
      %s9079 = scalar_select %p9078, %s18, 1
      %s9080 = smul.addr %s9079, 32
      %s9081 = smul.addr %s9080, 8
      %s9082 = scalar_lea.vmem %s7, %s9081
      // Predicated region
      $region49: #{shuffle_block_forward.1} parent=47 // pred_check
        %p9083 = pneg %p188
      $region50: #{shuffle_block_forward.1} parent=47 // pred_check_branch
        %9085 = sbr.rel (%p9083) target = $region52
      $region51: #{shuffle_block_forward.1} parent=47 // pred_region
        _
      $region52: #{shuffle_block_forward.1} parent=47 // pred_fallthru
        _
    $region48: #{shuffle_block_forward.1} parent=5 // pred_fallthru
      _
    %p9086 = scmp.le.s32.totalorder 2, %s13
    // Predicated region
    $region53: #{shuffle_block_forward.1} parent=5 // pred_check
      %p9087 = pneg %p9086
    $region54: #{shuffle_block_forward.1} parent=5 // pred_check_branch
      %9089 = sbr.rel (%p9087) target = $region56
    $region55: #{shuffle_block_forward.1} parent=5 // pred_region
      %s9090 = ssub.s32 %s13, 2
      // Predicated region
      $region57: #{shuffle_block_forward.1} parent=55 // pred_check
        %p9091 = pneg %p194
      $region58: #{shuffle_block_forward.1} parent=55 // pred_check_branch
        %9093 = sbr.rel (%p9091) target = $region60
      $region59: #{shuffle_block_forward.1} parent=55 // pred_region
        %p9094 = scmp.lt.s32.totalorder %s19, 1
        %s9095 = scalar_select %p9094, %s19, 1
        %s9096 = smul.addr %s9095, 32
        %s9097 = smul.addr %s9096, 8
        %s9098 = scalar_lea.vmem %s7, %s9097
      $region60: #{shuffle_block_forward.1} parent=55 // pred_fallthru
        _
    $region56: #{shuffle_block_forward.1} parent=5 // pred_fallthru
      _
  $region6: #{shuffle_block_forward.1} parent=0 // loop_footer
    %s17 = sadd.s32 1, %s13
  $region7: #{shuffle_block_forward.1} parent=0 // loop_footer_branch
    %12 = sbr.rel target = $region3
  $region8: #{shuffle_block_forward.1} parent=0 // loop_exit
    _

</llo_original>
